<compile_context>
chip_gen: v7x
topology: tpu7x:2x2x1
jax: 0.10.0
libtpu: 0.0.40
codegen_flags: <defaults>
</compile_context>

<pallas_src>
import numpy as np
import jax
import jax.numpy as jnp
from jax.experimental import pallas as pl
from jax.experimental.pallas import tpu as pltpu

EPS = 1e-5
BATCH_TILE = 8   # images per grid step; rides the sublane dimension (exactly 1 tile)


# ----------------------------------------------------------------------------
# In-kernel building blocks (traced into the fused kernel)
# ----------------------------------------------------------------------------
def _zero_pad_hw(x):
    """Zero-pad the two leading (spatial) dims by 1 on each side.

    Purely leading-dim concatenation: the (TB, C) minor tiles are untouched,
    so this is layout preserving and stays entirely in VMEM/vregs.
    """
    h, w, tb, c = x.shape
    zr = jnp.zeros((1, w, tb, c), x.dtype)
    x = jnp.concatenate([zr, x, zr], axis=0)            # (h+2, w, tb, c)
    zc = jnp.zeros((h + 2, 1, tb, c), x.dtype)
    return jnp.concatenate([zc, x, zc], axis=1)         # (h+2, w+2, tb, c)


def _conv_bn_relu_pool(xp, w, b):
    """conv(3x3,'same') + folded-BN bias + ReLU + maxpool(2,2).

    xp: (H+2, W+2, TB, Cin) zero-padded activation (spatial dims leading,
        batch tile on sublanes, channels on lanes)
    w : (9*Cin, Cout)  conv weight with BN scale folded in
    b : (1, Cout)      conv bias + BN shift, folded
    returns (H//2, W//2, TB, Cout)
    """
    hp, wp, tb, cin = xp.shape
    h, wd = hp - 2, wp - 2
    cout = w.shape[1]

    # In-kernel im2col: 9 shifted views (free leading-dim slices) concatenated
    # on the lane axis -> a single (H*W*TB, 9*Cin) GEMM operand (one MXU GEMM
    # per conv layer; column order (kh, kw, ci) matches the folded weight rows).
    taps = [xp[kh:kh + h, kw:kw + wd] for kh in range(3) for kw in range(3)]
    patches = jnp.concatenate(taps, axis=-1).reshape(h * wd * tb, 9 * cin)

    z = jnp.dot(patches, w, preferred_element_type=jnp.float32) + b
    z = jnp.maximum(z, 0.0)                                   # ReLU

    # 2x2 max pool via leading-dim splits only (layout preserving: the
    # (TB, Cout) = (8, Cout) tiles stay intact, only leading indices change).
    z = z.reshape(h // 2, 2, wd, tb, cout)
    z = jnp.maximum(z[:, 0], z[:, 1])                         # pool over rows
    z = z.reshape(h // 2, wd // 2, 2, tb, cout)
    z = jnp.maximum(z[:, :, 0], z[:, :, 1])                   # pool over cols
    return z


def _make_fused_kernel(num_blocks):
    """Builds the fused forward kernel for `num_blocks` conv blocks + FC."""

    def kernel(*refs):
        # refs = (x, w1, b1, ..., wd, bd, w_fc, b_fc, out)
        x_ref = refs[0]
        wfc_ref = refs[1 + 2 * num_blocks]
        bfc_ref = refs[2 + 2 * num_blocks]
        o_ref = refs[3 + 2 * num_blocks]

        xp = x_ref[...]                                       # (H+2, W+2, TB, Cin)
        pooled = None
        for blk in range(num_blocks):
            w = refs[1 + 2 * blk][...]
            b = refs[2 + 2 * blk][...]
            pooled = _conv_bn_relu_pool(xp, w, b)
            if blk + 1 < num_blocks:
                # 'same' padding for the next conv, built in place (no scratch,
                # no HBM round trip).
                xp = _zero_pad_hw(pooled)

        # Flatten in (h, w, c) order; the FC weight columns were permuted
        # host-side so this matches torch.flatten over NCHW exactly.
        # Dropout(p=0.3) is identity in eval mode.
        ho, wo = pooled.shape[0], pooled.shape[1]
        feat = jnp.concatenate(
            [pooled[i, j] for i in range(ho) for j in range(wo)], axis=-1)
        o_ref[...] = (jnp.dot(feat, wfc_ref[...],
                              preferred_element_type=jnp.float32) + bfc_ref[...])

    return kernel


# ----------------------------------------------------------------------------
# Host-side parameter folding / layout (tiny, one-off, exact transformations)
# ----------------------------------------------------------------------------
def _fold_conv_bn(block):
    """Fold eval-mode BatchNorm into the conv weight/bias (exact)."""
    cout, cin = block["conv_w"].shape[0], block["conv_w"].shape[1]
    # (Cout, Cin, kh, kw) -> (kh, kw, Cin, Cout) -> (9*Cin, Cout); row index
    # = (kh*3 + kw)*Cin + ci, matching the kernel's tap-concat order.
    wm = jnp.transpose(block["conv_w"], (2, 3, 1, 0)).reshape(9 * cin, cout)
    s = block["gamma"] / jnp.sqrt(block["var"] + EPS)
    w_f = (wm * s[None, :]).astype(jnp.float32)
    b_f = ((block["conv_b"] - block["mean"]) * s + block["beta"]).astype(jnp.float32)
    return w_f, b_f.reshape(1, cout)


def _permute_fc_weight(fc_w, ho, wo, c):
    """Reorder FC weight columns from torch's NCHW flatten order (c, h, w) to
    the kernel's (h, w, c) flatten order; transpose to (features, classes)."""
    j = np.arange(ho * wo * c)
    ch = j % c
    hw = j // c
    hh = hw // wo
    ww = hw % wo
    perm = ch * (ho * wo) + hh * wo + ww
    return jnp.take(fc_w, perm, axis=1).T        # (ho*wo*c, num_classes)


@jax.jit
def model_forward(x_nchw, params):
    """Fused Pallas forward pass.  x_nchw: (N, Cin, H, W) float (NCHW, PyTorch)."""
    n, cin, h, w = x_nchw.shape
    blocks = params["blocks"]
    num_blocks = len(blocks)
    chans = [cin] + [blk["conv_w"].shape[0] for blk in blocks]
    ho, wo = h >> num_blocks, w >> num_blocks
    num_classes = params["fc_w"].shape[0]

    folded = [_fold_conv_bn(blk) for blk in blocks]
    wfc = _permute_fc_weight(params["fc_w"], ho, wo, chans[-1]).astype(jnp.float32)
    bfc = params["fc_b"].reshape(1, num_classes).astype(jnp.float32)

    # Input layout: NCHW -> (H+2, W+2, N_pad, Cin).  Batch is padded to a
    # multiple of the sublane tile so every in-kernel reshape is layout
    # preserving; padded rows are computed then sliced off.
    tb = BATCH_TILE
    n_pad = -(-n // tb) * tb
    x_t = jnp.transpose(x_nchw, (2, 3, 0, 1)).astype(jnp.float32)
    x_p = jnp.pad(x_t, ((1, 1), (1, 1), (0, n_pad - n), (0, 0)))

    in_specs = [pl.BlockSpec((h + 2, w + 2, tb, cin), lambda i: (0, 0, i, 0))]
    args = [x_p]
    for w_f, b_f in folded:
        # Constant block indices -> fetched once, stay VMEM-resident across grid.
        in_specs += [pl.BlockSpec(w_f.shape, lambda i: (0, 0)),
                     pl.BlockSpec(b_f.shape, lambda i: (0, 0))]
        args += [w_f, b_f]
    in_specs += [pl.BlockSpec(wfc.shape, lambda i: (0, 0)),
                 pl.BlockSpec(bfc.shape, lambda i: (0, 0))]
    args += [wfc, bfc]

    out = pl.pallas_call(
        _make_fused_kernel(num_blocks),
        out_shape=jax.ShapeDtypeStruct((n_pad, num_classes), jnp.float32),
        grid=(n_pad // tb,),
        in_specs=in_specs,
        out_specs=pl.BlockSpec((tb, num_classes), lambda i: (i, 0)),
        compiler_params=pltpu.CompilerParams(
            dimension_semantics=("parallel",)),
    )(*args)
    return out[:n]


# ----------------------------------------------------------------------------
# Pure-JAX reference (for correctness check)
# ----------------------------------------------------------------------------
def reference_forward(x_nchw, params):
    x = jnp.transpose(x_nchw, (0, 2, 3, 1)).astype(jnp.float32)
    for p in params["blocks"]:
        w = jnp.transpose(p["conv_w"], (2, 3, 1, 0))  # HWIO
        z = jax.lax.conv_general_dilated(
            x, w, window_strides=(1, 1), padding="SAME",
            dimension_numbers=("NHWC", "HWIO", "NHWC"))
        z = z + p["conv_b"]
        s = p["gamma"] / jnp.sqrt(p["var"] + EPS)
        z = z * s + (p["beta"] - p["mean"] * s)
        z = jnp.maximum(z, 0.0)
        x = jax.lax.reduce_window(z, -jnp.inf, jax.lax.max,
                                  (1, 2, 2, 1), (1, 2, 2, 1), "VALID")
    n = x.shape[0]
    feat = jnp.transpose(x, (0, 3, 1, 2)).reshape(n, -1)   # torch NCHW flatten
    return feat @ params["fc_w"].T + params["fc_b"]


# ----------------------------------------------------------------------------
# Deterministic parameter initialization
# ----------------------------------------------------------------------------
def init_params(key, in_channels, out_channels, img_size, layer_sizes):
    d = len(layer_sizes)
    h, w = img_size
    chans = [in_channels] + list(layer_sizes)
    fc_in = (h // (1 << d)) * (w // (1 << d)) * chans[-1]

    params = {"blocks": []}
    for c in range(d):
        cin, cout = chans[c], chans[c + 1]
        key, k1, k2, k3, k4, k5, k6 = jax.random.split(key, 7)
        lim = 1.0 / np.sqrt(cin * 9)
        params["blocks"].append({
            "conv_w": jax.random.uniform(k1, (cout, cin, 3, 3), jnp.float32, -lim, lim),
            "conv_b": jax.random.uniform(k2, (cout,), jnp.float32, -lim, lim),
            "gamma": 1.0 + 0.1 * jax.random.normal(k3, (cout,), jnp.float32),
            "beta": 0.1 * jax.random.normal(k4, (cout,), jnp.float32),
            "mean": 0.1 * jax.random.normal(k5, (cout,), jnp.float32),
            "var": jax.random.uniform(k6, (cout,), jnp.float32, 0.5, 1.5),
        })
    key, k1, k2 = jax.random.split(key, 3)
    lim = 1.0 / np.sqrt(fc_in)
    params["fc_w"] = jax.random.uniform(k1, (out_channels, fc_in), jnp.float32, -lim, lim)
    params["fc_b"] = jax.random.uniform(k2, (out_channels,), jnp.float32, -lim, lim)
    return params


if __name__ == "__main__":
    in_channels, out_channels = 4, 10
    img_size = (16, 16)
    layer_sizes = [8, 16]

    key = jax.random.PRNGKey(0)
    kp, kx = jax.random.split(key)
    params = init_params(kp, in_channels, out_channels, img_size, layer_sizes)

    x = jax.random.normal(kx, (2, in_channels, img_size[0], img_size[1]), jnp.float32)

    out = jax.block_until_ready(model_forward(x, params))
    assert out.shape == (2, out_channels), out.shape

    ref = jax.block_until_ready(reference_forward(x, params))
    np.testing.assert_allclose(np.asarray(out), np.asarray(ref), rtol=1e-4, atol=1e-4)

    print("KERNEL_OK")
</pallas_src>

<mosaic_0001>
module attributes {stable_mosaic.version = 11 : i64} {
  func.func @kernel(%arg0: i32, %arg1: memref<18x18x8x4xf32, #tpu.memory_space<vmem>>, %arg2: memref<36x8xf32, #tpu.memory_space<vmem>>, %arg3: memref<1x8xf32, #tpu.memory_space<vmem>>, %arg4: memref<72x16xf32, #tpu.memory_space<vmem>>, %arg5: memref<1x16xf32, #tpu.memory_space<vmem>>, %arg6: memref<256x10xf32, #tpu.memory_space<vmem>>, %arg7: memref<1x10xf32, #tpu.memory_space<vmem>>, %arg8: memref<8x10xf32, #tpu.memory_space<vmem>>) attributes {dimension_semantics = [#tpu.dimension_semantics<parallel>], iteration_bounds = array<i64: 1>, scalar_prefetch = 0 : i64, scratch_operands = 0 : i64, tpu.core_type = #tpu.core_type<tc>, window_params = [{transform_indices = @transform_0, window_bounds = array<i64: 18, 18, 8, 4>}, {pipeline_mode = #tpu.pipeline_mode<synchronous>, transform_indices = @transform_1, window_bounds = array<i64: 36, 8>}, {pipeline_mode = #tpu.pipeline_mode<synchronous>, transform_indices = @transform_2, window_bounds = array<i64: 1, 8>}, {pipeline_mode = #tpu.pipeline_mode<synchronous>, transform_indices = @transform_3, window_bounds = array<i64: 72, 16>}, {pipeline_mode = #tpu.pipeline_mode<synchronous>, transform_indices = @transform_4, window_bounds = array<i64: 1, 16>}, {pipeline_mode = #tpu.pipeline_mode<synchronous>, transform_indices = @transform_5, window_bounds = array<i64: 256, 10>}, {pipeline_mode = #tpu.pipeline_mode<synchronous>, transform_indices = @transform_6, window_bounds = array<i64: 1, 10>}, {transform_indices = @transform_7, window_bounds = array<i64: 8, 10>}]} {
    %c0 = arith.constant 0 : index
    %c0_0 = arith.constant 0 : index
    %c0_1 = arith.constant 0 : index
    %c0_2 = arith.constant 0 : index
    %0 = vector.load %arg1[%c0, %c0_0, %c0_1, %c0_2] : memref<18x18x8x4xf32, #tpu.memory_space<vmem>>, vector<18x18x8x4xf32>
    %c0_3 = arith.constant 0 : index
    %c0_4 = arith.constant 0 : index
    %1 = vector.load %arg2[%c0_3, %c0_4] : memref<36x8xf32, #tpu.memory_space<vmem>>, vector<36x8xf32>
    %c0_5 = arith.constant 0 : index
    %c0_6 = arith.constant 0 : index
    %2 = vector.load %arg3[%c0_5, %c0_6] : memref<1x8xf32, #tpu.memory_space<vmem>>, vector<1x8xf32>
    %3 = vector.extract_strided_slice %0 {offsets = [0, 0, 0, 0], sizes = [16, 16, 8, 4], strides = [1, 1, 1, 1]} : vector<18x18x8x4xf32> to vector<16x16x8x4xf32>
    %4 = vector.extract_strided_slice %0 {offsets = [0, 1, 0, 0], sizes = [16, 16, 8, 4], strides = [1, 1, 1, 1]} : vector<18x18x8x4xf32> to vector<16x16x8x4xf32>
    %5 = vector.extract_strided_slice %0 {offsets = [0, 2, 0, 0], sizes = [16, 16, 8, 4], strides = [1, 1, 1, 1]} : vector<18x18x8x4xf32> to vector<16x16x8x4xf32>
    %6 = vector.extract_strided_slice %0 {offsets = [1, 0, 0, 0], sizes = [16, 16, 8, 4], strides = [1, 1, 1, 1]} : vector<18x18x8x4xf32> to vector<16x16x8x4xf32>
    %7 = vector.extract_strided_slice %0 {offsets = [1, 1, 0, 0], sizes = [16, 16, 8, 4], strides = [1, 1, 1, 1]} : vector<18x18x8x4xf32> to vector<16x16x8x4xf32>
    %8 = vector.extract_strided_slice %0 {offsets = [1, 2, 0, 0], sizes = [16, 16, 8, 4], strides = [1, 1, 1, 1]} : vector<18x18x8x4xf32> to vector<16x16x8x4xf32>
    %9 = vector.extract_strided_slice %0 {offsets = [2, 0, 0, 0], sizes = [16, 16, 8, 4], strides = [1, 1, 1, 1]} : vector<18x18x8x4xf32> to vector<16x16x8x4xf32>
    %10 = vector.extract_strided_slice %0 {offsets = [2, 1, 0, 0], sizes = [16, 16, 8, 4], strides = [1, 1, 1, 1]} : vector<18x18x8x4xf32> to vector<16x16x8x4xf32>
    %11 = vector.extract_strided_slice %0 {offsets = [2, 2, 0, 0], sizes = [16, 16, 8, 4], strides = [1, 1, 1, 1]} : vector<18x18x8x4xf32> to vector<16x16x8x4xf32>
    %12 = tpu.concatenate %3, %4, %5, %6, %7, %8, %9, %10, %11 in 3 : vector<16x16x8x4xf32>, vector<16x16x8x4xf32>, vector<16x16x8x4xf32>, vector<16x16x8x4xf32>, vector<16x16x8x4xf32>, vector<16x16x8x4xf32>, vector<16x16x8x4xf32>, vector<16x16x8x4xf32>, vector<16x16x8x4xf32> -> vector<16x16x8x36xf32>
    %13 = vector.shape_cast %12 : vector<16x16x8x36xf32> to vector<2048x36xf32>
    %cst = arith.constant dense<0.000000e+00> : vector<2048x8xf32>
    %14 = tpu.matmul %13, %1, %cst {dimension_numbers = #tpu.dot_dimension_numbers<[1], [0], [0], [1], [0, 0, 1, 1], [], []>} : vector<2048x36xf32>, vector<36x8xf32>, vector<2048x8xf32> -> vector<2048x8xf32>
    %15 = vector.broadcast %2 : vector<1x8xf32> to vector<2048x8xf32>
    %16 = arith.addf %14, %15 : vector<2048x8xf32>
    %cst_7 = arith.constant 0.000000e+00 : f32
    %17 = vector.broadcast %cst_7 : f32 to vector<2048x8xf32>
    %18 = arith.maximumf %16, %17 : vector<2048x8xf32>
    %19 = vector.shape_cast %18 : vector<2048x8xf32> to vector<8x2x16x8x8xf32>
    %20 = vector.extract_strided_slice %19 {offsets = [0, 0, 0, 0, 0], sizes = [8, 1, 16, 8, 8], strides = [1, 1, 1, 1, 1]} : vector<8x2x16x8x8xf32> to vector<8x1x16x8x8xf32>
    %21 = vector.shape_cast %20 : vector<8x1x16x8x8xf32> to vector<8x16x8x8xf32>
    %22 = vector.extract_strided_slice %19 {offsets = [0, 1, 0, 0, 0], sizes = [8, 1, 16, 8, 8], strides = [1, 1, 1, 1, 1]} : vector<8x2x16x8x8xf32> to vector<8x1x16x8x8xf32>
    %23 = vector.shape_cast %22 : vector<8x1x16x8x8xf32> to vector<8x16x8x8xf32>
    %24 = arith.maximumf %21, %23 : vector<8x16x8x8xf32>
    %25 = vector.shape_cast %24 : vector<8x16x8x8xf32> to vector<8x8x2x8x8xf32>
    %26 = vector.extract_strided_slice %25 {offsets = [0, 0, 0, 0, 0], sizes = [8, 8, 1, 8, 8], strides = [1, 1, 1, 1, 1]} : vector<8x8x2x8x8xf32> to vector<8x8x1x8x8xf32>
    %27 = vector.shape_cast %26 : vector<8x8x1x8x8xf32> to vector<8x8x8x8xf32>
    %28 = vector.extract_strided_slice %25 {offsets = [0, 0, 1, 0, 0], sizes = [8, 8, 1, 8, 8], strides = [1, 1, 1, 1, 1]} : vector<8x8x2x8x8xf32> to vector<8x8x1x8x8xf32>
    %29 = vector.shape_cast %28 : vector<8x8x1x8x8xf32> to vector<8x8x8x8xf32>
    %30 = arith.maximumf %27, %29 : vector<8x8x8x8xf32>
    %cst_8 = arith.constant 0.000000e+00 : f32
    %31 = vector.broadcast %cst_8 : f32 to vector<1x8x8x8xf32>
    %32 = tpu.concatenate %31, %30, %31 in 0 : vector<1x8x8x8xf32>, vector<8x8x8x8xf32>, vector<1x8x8x8xf32> -> vector<10x8x8x8xf32>
    %cst_9 = arith.constant 0.000000e+00 : f32
    %33 = vector.broadcast %cst_9 : f32 to vector<10x1x8x8xf32>
    %34 = tpu.concatenate %33, %32, %33 in 1 : vector<10x1x8x8xf32>, vector<10x8x8x8xf32>, vector<10x1x8x8xf32> -> vector<10x10x8x8xf32>
    %c0_10 = arith.constant 0 : index
    %c0_11 = arith.constant 0 : index
    %35 = vector.load %arg4[%c0_10, %c0_11] : memref<72x16xf32, #tpu.memory_space<vmem>>, vector<72x16xf32>
    %c0_12 = arith.constant 0 : index
    %c0_13 = arith.constant 0 : index
    %36 = vector.load %arg5[%c0_12, %c0_13] : memref<1x16xf32, #tpu.memory_space<vmem>>, vector<1x16xf32>
    %37 = vector.extract_strided_slice %34 {offsets = [0, 0, 0, 0], sizes = [8, 8, 8, 8], strides = [1, 1, 1, 1]} : vector<10x10x8x8xf32> to vector<8x8x8x8xf32>
    %38 = vector.extract_strided_slice %34 {offsets = [0, 1, 0, 0], sizes = [8, 8, 8, 8], strides = [1, 1, 1, 1]} : vector<10x10x8x8xf32> to vector<8x8x8x8xf32>
    %39 = vector.extract_strided_slice %34 {offsets = [0, 2, 0, 0], sizes = [8, 8, 8, 8], strides = [1, 1, 1, 1]} : vector<10x10x8x8xf32> to vector<8x8x8x8xf32>
    %40 = vector.extract_strided_slice %34 {offsets = [1, 0, 0, 0], sizes = [8, 8, 8, 8], strides = [1, 1, 1, 1]} : vector<10x10x8x8xf32> to vector<8x8x8x8xf32>
    %41 = vector.extract_strided_slice %34 {offsets = [1, 1, 0, 0], sizes = [8, 8, 8, 8], strides = [1, 1, 1, 1]} : vector<10x10x8x8xf32> to vector<8x8x8x8xf32>
    %42 = vector.extract_strided_slice %34 {offsets = [1, 2, 0, 0], sizes = [8, 8, 8, 8], strides = [1, 1, 1, 1]} : vector<10x10x8x8xf32> to vector<8x8x8x8xf32>
    %43 = vector.extract_strided_slice %34 {offsets = [2, 0, 0, 0], sizes = [8, 8, 8, 8], strides = [1, 1, 1, 1]} : vector<10x10x8x8xf32> to vector<8x8x8x8xf32>
    %44 = vector.extract_strided_slice %34 {offsets = [2, 1, 0, 0], sizes = [8, 8, 8, 8], strides = [1, 1, 1, 1]} : vector<10x10x8x8xf32> to vector<8x8x8x8xf32>
    %45 = vector.extract_strided_slice %34 {offsets = [2, 2, 0, 0], sizes = [8, 8, 8, 8], strides = [1, 1, 1, 1]} : vector<10x10x8x8xf32> to vector<8x8x8x8xf32>
    %46 = tpu.concatenate %37, %38, %39, %40, %41, %42, %43, %44, %45 in 3 : vector<8x8x8x8xf32>, vector<8x8x8x8xf32>, vector<8x8x8x8xf32>, vector<8x8x8x8xf32>, vector<8x8x8x8xf32>, vector<8x8x8x8xf32>, vector<8x8x8x8xf32>, vector<8x8x8x8xf32>, vector<8x8x8x8xf32> -> vector<8x8x8x72xf32>
    %47 = vector.shape_cast %46 : vector<8x8x8x72xf32> to vector<512x72xf32>
    %cst_14 = arith.constant dense<0.000000e+00> : vector<512x16xf32>
    %48 = tpu.matmul %47, %35, %cst_14 {dimension_numbers = #tpu.dot_dimension_numbers<[1], [0], [0], [1], [0, 0, 1, 1], [], []>} : vector<512x72xf32>, vector<72x16xf32>, vector<512x16xf32> -> vector<512x16xf32>
    %49 = vector.broadcast %36 : vector<1x16xf32> to vector<512x16xf32>
    %50 = arith.addf %48, %49 : vector<512x16xf32>
    %cst_15 = arith.constant 0.000000e+00 : f32
    %51 = vector.broadcast %cst_15 : f32 to vector<512x16xf32>
    %52 = arith.maximumf %50, %51 : vector<512x16xf32>
    %53 = vector.shape_cast %52 : vector<512x16xf32> to vector<4x2x8x8x16xf32>
    %54 = vector.extract_strided_slice %53 {offsets = [0, 0, 0, 0, 0], sizes = [4, 1, 8, 8, 16], strides = [1, 1, 1, 1, 1]} : vector<4x2x8x8x16xf32> to vector<4x1x8x8x16xf32>
    %55 = vector.shape_cast %54 : vector<4x1x8x8x16xf32> to vector<4x8x8x16xf32>
    %56 = vector.extract_strided_slice %53 {offsets = [0, 1, 0, 0, 0], sizes = [4, 1, 8, 8, 16], strides = [1, 1, 1, 1, 1]} : vector<4x2x8x8x16xf32> to vector<4x1x8x8x16xf32>
    %57 = vector.shape_cast %56 : vector<4x1x8x8x16xf32> to vector<4x8x8x16xf32>
    %58 = arith.maximumf %55, %57 : vector<4x8x8x16xf32>
    %59 = vector.shape_cast %58 : vector<4x8x8x16xf32> to vector<4x4x2x8x16xf32>
    %60 = vector.extract_strided_slice %59 {offsets = [0, 0, 0, 0, 0], sizes = [4, 4, 1, 8, 16], strides = [1, 1, 1, 1, 1]} : vector<4x4x2x8x16xf32> to vector<4x4x1x8x16xf32>
    %61 = vector.shape_cast %60 : vector<4x4x1x8x16xf32> to vector<4x4x8x16xf32>
    %62 = vector.extract_strided_slice %59 {offsets = [0, 0, 1, 0, 0], sizes = [4, 4, 1, 8, 16], strides = [1, 1, 1, 1, 1]} : vector<4x4x2x8x16xf32> to vector<4x4x1x8x16xf32>
    %63 = vector.shape_cast %62 : vector<4x4x1x8x16xf32> to vector<4x4x8x16xf32>
    %64 = arith.maximumf %61, %63 : vector<4x4x8x16xf32>
    %65 = vector.extract_strided_slice %64 {offsets = [0, 0, 0, 0], sizes = [1, 1, 8, 16], strides = [1, 1, 1, 1]} : vector<4x4x8x16xf32> to vector<1x1x8x16xf32>
    %66 = vector.shape_cast %65 : vector<1x1x8x16xf32> to vector<8x16xf32>
    %67 = vector.extract_strided_slice %64 {offsets = [0, 1, 0, 0], sizes = [1, 1, 8, 16], strides = [1, 1, 1, 1]} : vector<4x4x8x16xf32> to vector<1x1x8x16xf32>
    %68 = vector.shape_cast %67 : vector<1x1x8x16xf32> to vector<8x16xf32>
    %69 = vector.extract_strided_slice %64 {offsets = [0, 2, 0, 0], sizes = [1, 1, 8, 16], strides = [1, 1, 1, 1]} : vector<4x4x8x16xf32> to vector<1x1x8x16xf32>
    %70 = vector.shape_cast %69 : vector<1x1x8x16xf32> to vector<8x16xf32>
    %71 = vector.extract_strided_slice %64 {offsets = [0, 3, 0, 0], sizes = [1, 1, 8, 16], strides = [1, 1, 1, 1]} : vector<4x4x8x16xf32> to vector<1x1x8x16xf32>
    %72 = vector.shape_cast %71 : vector<1x1x8x16xf32> to vector<8x16xf32>
    %73 = vector.extract_strided_slice %64 {offsets = [1, 0, 0, 0], sizes = [1, 1, 8, 16], strides = [1, 1, 1, 1]} : vector<4x4x8x16xf32> to vector<1x1x8x16xf32>
    %74 = vector.shape_cast %73 : vector<1x1x8x16xf32> to vector<8x16xf32>
    %75 = vector.extract_strided_slice %64 {offsets = [1, 1, 0, 0], sizes = [1, 1, 8, 16], strides = [1, 1, 1, 1]} : vector<4x4x8x16xf32> to vector<1x1x8x16xf32>
    %76 = vector.shape_cast %75 : vector<1x1x8x16xf32> to vector<8x16xf32>
    %77 = vector.extract_strided_slice %64 {offsets = [1, 2, 0, 0], sizes = [1, 1, 8, 16], strides = [1, 1, 1, 1]} : vector<4x4x8x16xf32> to vector<1x1x8x16xf32>
    %78 = vector.shape_cast %77 : vector<1x1x8x16xf32> to vector<8x16xf32>
    %79 = vector.extract_strided_slice %64 {offsets = [1, 3, 0, 0], sizes = [1, 1, 8, 16], strides = [1, 1, 1, 1]} : vector<4x4x8x16xf32> to vector<1x1x8x16xf32>
    %80 = vector.shape_cast %79 : vector<1x1x8x16xf32> to vector<8x16xf32>
    %81 = vector.extract_strided_slice %64 {offsets = [2, 0, 0, 0], sizes = [1, 1, 8, 16], strides = [1, 1, 1, 1]} : vector<4x4x8x16xf32> to vector<1x1x8x16xf32>
    %82 = vector.shape_cast %81 : vector<1x1x8x16xf32> to vector<8x16xf32>
    %83 = vector.extract_strided_slice %64 {offsets = [2, 1, 0, 0], sizes = [1, 1, 8, 16], strides = [1, 1, 1, 1]} : vector<4x4x8x16xf32> to vector<1x1x8x16xf32>
    %84 = vector.shape_cast %83 : vector<1x1x8x16xf32> to vector<8x16xf32>
    %85 = vector.extract_strided_slice %64 {offsets = [2, 2, 0, 0], sizes = [1, 1, 8, 16], strides = [1, 1, 1, 1]} : vector<4x4x8x16xf32> to vector<1x1x8x16xf32>
    %86 = vector.shape_cast %85 : vector<1x1x8x16xf32> to vector<8x16xf32>
    %87 = vector.extract_strided_slice %64 {offsets = [2, 3, 0, 0], sizes = [1, 1, 8, 16], strides = [1, 1, 1, 1]} : vector<4x4x8x16xf32> to vector<1x1x8x16xf32>
    %88 = vector.shape_cast %87 : vector<1x1x8x16xf32> to vector<8x16xf32>
    %89 = vector.extract_strided_slice %64 {offsets = [3, 0, 0, 0], sizes = [1, 1, 8, 16], strides = [1, 1, 1, 1]} : vector<4x4x8x16xf32> to vector<1x1x8x16xf32>
    %90 = vector.shape_cast %89 : vector<1x1x8x16xf32> to vector<8x16xf32>
    %91 = vector.extract_strided_slice %64 {offsets = [3, 1, 0, 0], sizes = [1, 1, 8, 16], strides = [1, 1, 1, 1]} : vector<4x4x8x16xf32> to vector<1x1x8x16xf32>
    %92 = vector.shape_cast %91 : vector<1x1x8x16xf32> to vector<8x16xf32>
    %93 = vector.extract_strided_slice %64 {offsets = [3, 2, 0, 0], sizes = [1, 1, 8, 16], strides = [1, 1, 1, 1]} : vector<4x4x8x16xf32> to vector<1x1x8x16xf32>
    %94 = vector.shape_cast %93 : vector<1x1x8x16xf32> to vector<8x16xf32>
    %95 = vector.extract_strided_slice %64 {offsets = [3, 3, 0, 0], sizes = [1, 1, 8, 16], strides = [1, 1, 1, 1]} : vector<4x4x8x16xf32> to vector<1x1x8x16xf32>
    %96 = vector.shape_cast %95 : vector<1x1x8x16xf32> to vector<8x16xf32>
    %97 = tpu.concatenate %66, %68, %70, %72, %74, %76, %78, %80, %82, %84, %86, %88, %90, %92, %94, %96 in 1 : vector<8x16xf32>, vector<8x16xf32>, vector<8x16xf32>, vector<8x16xf32>, vector<8x16xf32>, vector<8x16xf32>, vector<8x16xf32>, vector<8x16xf32>, vector<8x16xf32>, vector<8x16xf32>, vector<8x16xf32>, vector<8x16xf32>, vector<8x16xf32>, vector<8x16xf32>, vector<8x16xf32>, vector<8x16xf32> -> vector<8x256xf32>
    %c0_16 = arith.constant 0 : index
    %c0_17 = arith.constant 0 : index
    %98 = vector.load %arg6[%c0_16, %c0_17] : memref<256x10xf32, #tpu.memory_space<vmem>>, vector<256x10xf32>
    %cst_18 = arith.constant dense<0.000000e+00> : vector<8x10xf32>
    %99 = tpu.matmul %97, %98, %cst_18 {dimension_numbers = #tpu.dot_dimension_numbers<[1], [0], [0], [1], [0, 0, 1, 1], [], []>} : vector<8x256xf32>, vector<256x10xf32>, vector<8x10xf32> -> vector<8x10xf32>
    %c0_19 = arith.constant 0 : index
    %c0_20 = arith.constant 0 : index
    %100 = vector.load %arg7[%c0_19, %c0_20] : memref<1x10xf32, #tpu.memory_space<vmem>>, vector<1x10xf32>
    %101 = vector.broadcast %100 : vector<1x10xf32> to vector<8x10xf32>
    %102 = arith.addf %99, %101 : vector<8x10xf32>
    %c0_21 = arith.constant 0 : index
    %c0_22 = arith.constant 0 : index
    %103 = vector.load %arg8[%c0_21, %c0_22] : memref<8x10xf32, #tpu.memory_space<vmem>>, vector<8x10xf32>
    tpu.vector_store %arg8[%c0_21, %c0_22], %102 {strides = array<i32>} : memref<8x10xf32, #tpu.memory_space<vmem>>, vector<8x10xf32>,
    return
  }
  func.func @transform_0(%arg0: i32) -> (i32, i32, i32, i32) {
    %c0_i32 = arith.constant 0 : i32
    %c0_i32_0 = arith.constant 0 : i32
    %c0_i32_1 = arith.constant 0 : i32
    %c0_i32_2 = arith.constant 0 : i32
    return %c0_i32, %c0_i32_0, %arg0, %c0_i32_1 : i32, i32, i32, i32
  }
  func.func @transform_1(%arg0: i32) -> (i32, i32) {
    %c0_i32 = arith.constant 0 : i32
    %c0_i32_0 = arith.constant 0 : i32
    %c0_i32_1 = arith.constant 0 : i32
    return %c0_i32, %c0_i32_0 : i32, i32
  }
  func.func @transform_2(%arg0: i32) -> (i32, i32) {
    %c0_i32 = arith.constant 0 : i32
    %c0_i32_0 = arith.constant 0 : i32
    %c0_i32_1 = arith.constant 0 : i32
    return %c0_i32, %c0_i32_0 : i32, i32
  }
  func.func @transform_3(%arg0: i32) -> (i32, i32) {
    %c0_i32 = arith.constant 0 : i32
    %c0_i32_0 = arith.constant 0 : i32
    %c0_i32_1 = arith.constant 0 : i32
    return %c0_i32, %c0_i32_0 : i32, i32
  }
  func.func @transform_4(%arg0: i32) -> (i32, i32) {
    %c0_i32 = arith.constant 0 : i32
    %c0_i32_0 = arith.constant 0 : i32
    %c0_i32_1 = arith.constant 0 : i32
    return %c0_i32, %c0_i32_0 : i32, i32
  }
  func.func @transform_5(%arg0: i32) -> (i32, i32) {
    %c0_i32 = arith.constant 0 : i32
    %c0_i32_0 = arith.constant 0 : i32
    %c0_i32_1 = arith.constant 0 : i32
    return %c0_i32, %c0_i32_0 : i32, i32
  }
  func.func @transform_6(%arg0: i32) -> (i32, i32) {
    %c0_i32 = arith.constant 0 : i32
    %c0_i32_0 = arith.constant 0 : i32
    %c0_i32_1 = arith.constant 0 : i32
    return %c0_i32, %c0_i32_0 : i32, i32
  }
  func.func @transform_7(%arg0: i32) -> (i32, i32) {
    %c0_i32 = arith.constant 0 : i32
    %c0_i32_0 = arith.constant 0 : i32
    return %arg0, %c0_i32 : i32, i32
  }
}

</mosaic_0001>

<llo_original>
// kernel: model_forward.1
$region0: #{model_forward.1}
  #allocation0 [shape = 'u32[]', space=smem, size = 0x4, offset = 0x4, fixed_abs, tag = 'smem constant byte address 0x4 - core index']
  #allocation1 [shape = 'u32[144,128]{1,0:T(1,128)}', space=vmem, size = 0x12000, scoped, tag = 'internal scratch']
  %s0 = inlined_call_operand.vmem [shape: f32[18,18,8,4], index: 0, kind: input, shape index: {}]
  %s1 = inlined_call_operand.vmem [shape: f32[36,8], index: 1, kind: input, shape index: {}]
  %s2 = inlined_call_operand.vmem [shape: f32[1,8], index: 2, kind: input, shape index: {}]
  %s3 = inlined_call_operand.vmem [shape: f32[72,16], index: 3, kind: input, shape index: {}]
  %s4 = inlined_call_operand.vmem [shape: f32[1,16], index: 4, kind: input, shape index: {}]
  %s5 = inlined_call_operand.vmem [shape: f32[256,10], index: 5, kind: input, shape index: {}]
  %s6 = inlined_call_operand.vmem [shape: f32[1,10], index: 6, kind: input, shape index: {}]
  %s7 = inlined_call_operand.vmem [shape: f32[8,10], index: 7, kind: output, shape index: {}]
  %s8 = sld [smem:[#allocation0]]
  $region38: #{model_forward.1} parent=0
    _
  %s10 = ssub.s32 1, %s8
  %s11 = scalar_select 0, %s10, %s8
  // Predicated region
  $region2: #{model_forward.1} parent=0 // pred_check
    _
  $region3: #{model_forward.1} parent=0 // pred_check_branch
    %13 = sbr.rel (0) target = $region5
  $region4: #{model_forward.1} parent=0 // pred_region
    _
  $region5: #{model_forward.1} parent=0 // pred_fallthru
    _
  // Predicated region
  $region6: #{model_forward.1} parent=0 // pred_check
    _
  $region7: #{model_forward.1} parent=0 // pred_check_branch
    %15 = sbr.rel (0) target = $region9
  $region8: #{model_forward.1} parent=0 // pred_region
    _
  $region9: #{model_forward.1} parent=0 // pred_fallthru
    _
  // Predicated region
  $region10: #{model_forward.1} parent=0 // pred_check
    _
  $region11: #{model_forward.1} parent=0 // pred_check_branch
    %17 = sbr.rel (0) target = $region13
  $region12: #{model_forward.1} parent=0 // pred_region
    _
  $region13: #{model_forward.1} parent=0 // pred_fallthru
    _
  // Predicated region
  $region14: #{model_forward.1} parent=0 // pred_check
    _
  $region15: #{model_forward.1} parent=0 // pred_check_branch
    %19 = sbr.rel (0) target = $region17
  $region16: #{model_forward.1} parent=0 // pred_region
    _
  $region17: #{model_forward.1} parent=0 // pred_fallthru
    _
  // Predicated region
  $region18: #{model_forward.1} parent=0 // pred_check
    _
  $region19: #{model_forward.1} parent=0 // pred_check_branch
    %21 = sbr.rel (0) target = $region21
  $region20: #{model_forward.1} parent=0 // pred_region
    _
  $region21: #{model_forward.1} parent=0 // pred_fallthru
    _
  // Predicated region
  $region22: #{model_forward.1} parent=0 // pred_check
    _
  $region23: #{model_forward.1} parent=0 // pred_check_branch
    %23 = sbr.rel (0) target = $region25
  $region24: #{model_forward.1} parent=0 // pred_region
    _
  $region25: #{model_forward.1} parent=0 // pred_fallthru
    _
  // Predicated region
  $region26: #{model_forward.1} parent=0 // pred_check
    _
  $region27: #{model_forward.1} parent=0 // pred_check_branch
    %25 = sbr.rel (0) target = $region29
  $region28: #{model_forward.1} parent=0 // pred_region
    _
  $region29: #{model_forward.1} parent=0 // pred_fallthru
    _
  %v26 = vld [vmem:[%s0] sm:$0xff]
  %v27 = vld [vmem:[%s0 + $0x8] sm:$0xff]
  %v28 = vld [vmem:[%s0 + $0x10] sm:$0xff]
  %v29 = vld [vmem:[%s0 + $0x18] sm:$0xff]
  %v30 = vld [vmem:[%s0 + $0x20] sm:$0xff]
  %v31 = vld [vmem:[%s0 + $0x28] sm:$0xff]
  %v32 = vld [vmem:[%s0 + $0x30] sm:$0xff]
  %v33 = vld [vmem:[%s0 + $0x38] sm:$0xff]
  %v34 = vld [vmem:[%s0 + $0x40] sm:$0xff]
  %v35 = vld [vmem:[%s0 + $0x48] sm:$0xff]
  %v36 = vld [vmem:[%s0 + $0x50] sm:$0xff]
  %v37 = vld [vmem:[%s0 + $0x58] sm:$0xff]
  %v38 = vld [vmem:[%s0 + $0x60] sm:$0xff]
  %v39 = vld [vmem:[%s0 + $0x68] sm:$0xff]
  %v40 = vld [vmem:[%s0 + $0x70] sm:$0xff]
  %v41 = vld [vmem:[%s0 + $0x78] sm:$0xff]
  %v42 = vld [vmem:[%s0 + $0x80] sm:$0xff]
  %v43 = vld [vmem:[%s0 + $0x88] sm:$0xff]
  %v44 = vld [vmem:[%s0 + $0x90] sm:$0xff]
  %v45 = vld [vmem:[%s0 + $0x98] sm:$0xff]
  %v46 = vld [vmem:[%s0 + $0xa0] sm:$0xff]
  %v47 = vld [vmem:[%s0 + $0xa8] sm:$0xff]
  %v48 = vld [vmem:[%s0 + $0xb0] sm:$0xff]
  %v49 = vld [vmem:[%s0 + $0xb8] sm:$0xff]
  %v50 = vld [vmem:[%s0 + $0xc0] sm:$0xff]
  %v51 = vld [vmem:[%s0 + $0xc8] sm:$0xff]
  %v52 = vld [vmem:[%s0 + $0xd0] sm:$0xff]
  %v53 = vld [vmem:[%s0 + $0xd8] sm:$0xff]
  %v54 = vld [vmem:[%s0 + $0xe0] sm:$0xff]
  %v55 = vld [vmem:[%s0 + $0xe8] sm:$0xff]
  %v56 = vld [vmem:[%s0 + $0xf0] sm:$0xff]
  %v57 = vld [vmem:[%s0 + $0xf8] sm:$0xff]
  %v58 = vld [vmem:[%s0 + $0x100] sm:$0xff]
  %v59 = vld [vmem:[%s0 + $0x108] sm:$0xff]
  %v60 = vld [vmem:[%s0 + $0x110] sm:$0xff]
  %v61 = vld [vmem:[%s0 + $0x118] sm:$0xff]
  %v62 = vld [vmem:[%s0 + $0x120] sm:$0xff]
  %v63 = vld [vmem:[%s0 + $0x128] sm:$0xff]
  %v64 = vld [vmem:[%s0 + $0x130] sm:$0xff]
  %v65 = vld [vmem:[%s0 + $0x138] sm:$0xff]
  %v66 = vld [vmem:[%s0 + $0x140] sm:$0xff]
  %v67 = vld [vmem:[%s0 + $0x148] sm:$0xff]
  %v68 = vld [vmem:[%s0 + $0x150] sm:$0xff]
  %v69 = vld [vmem:[%s0 + $0x158] sm:$0xff]
  %v70 = vld [vmem:[%s0 + $0x160] sm:$0xff]
  %v71 = vld [vmem:[%s0 + $0x168] sm:$0xff]
  %v72 = vld [vmem:[%s0 + $0x170] sm:$0xff]
  %v73 = vld [vmem:[%s0 + $0x178] sm:$0xff]
  %v74 = vld [vmem:[%s0 + $0x180] sm:$0xff]
  %v75 = vld [vmem:[%s0 + $0x188] sm:$0xff]
  %v76 = vld [vmem:[%s0 + $0x190] sm:$0xff]
  %v77 = vld [vmem:[%s0 + $0x198] sm:$0xff]
  %v78 = vld [vmem:[%s0 + $0x1a0] sm:$0xff]
  %v79 = vld [vmem:[%s0 + $0x1a8] sm:$0xff]
  %v80 = vld [vmem:[%s0 + $0x1b0] sm:$0xff]
  %v81 = vld [vmem:[%s0 + $0x1b8] sm:$0xff]
  %v82 = vld [vmem:[%s0 + $0x1c0] sm:$0xff]
  %v83 = vld [vmem:[%s0 + $0x1c8] sm:$0xff]
  %v84 = vld [vmem:[%s0 + $0x1d0] sm:$0xff]
  %v85 = vld [vmem:[%s0 + $0x1d8] sm:$0xff]
  %v86 = vld [vmem:[%s0 + $0x1e0] sm:$0xff]
  %v87 = vld [vmem:[%s0 + $0x1e8] sm:$0xff]
  %v88 = vld [vmem:[%s0 + $0x1f0] sm:$0xff]
  %v89 = vld [vmem:[%s0 + $0x1f8] sm:$0xff]
  %v90 = vld [vmem:[%s0 + $0x200] sm:$0xff]
  %v91 = vld [vmem:[%s0 + $0x208] sm:$0xff]
  %v92 = vld [vmem:[%s0 + $0x210] sm:$0xff]
  %v93 = vld [vmem:[%s0 + $0x218] sm:$0xff]
  %v94 = vld [vmem:[%s0 + $0x220] sm:$0xff]
  %v95 = vld [vmem:[%s0 + $0x228] sm:$0xff]
  %v96 = vld [vmem:[%s0 + $0x230] sm:$0xff]
  %v97 = vld [vmem:[%s0 + $0x238] sm:$0xff]
  %v98 = vld [vmem:[%s0 + $0x240] sm:$0xff]
  %v99 = vld [vmem:[%s0 + $0x248] sm:$0xff]
  %v100 = vld [vmem:[%s0 + $0x250] sm:$0xff]
  %v101 = vld [vmem:[%s0 + $0x258] sm:$0xff]
  %v102 = vld [vmem:[%s0 + $0x260] sm:$0xff]
  %v103 = vld [vmem:[%s0 + $0x268] sm:$0xff]
  %v104 = vld [vmem:[%s0 + $0x270] sm:$0xff]
  %v105 = vld [vmem:[%s0 + $0x278] sm:$0xff]
  %v106 = vld [vmem:[%s0 + $0x280] sm:$0xff]
  %v107 = vld [vmem:[%s0 + $0x288] sm:$0xff]
  %v108 = vld [vmem:[%s0 + $0x290] sm:$0xff]
  %v109 = vld [vmem:[%s0 + $0x298] sm:$0xff]
  %v110 = vld [vmem:[%s0 + $0x2a0] sm:$0xff]
  %v111 = vld [vmem:[%s0 + $0x2a8] sm:$0xff]
  %v112 = vld [vmem:[%s0 + $0x2b0] sm:$0xff]
  %v113 = vld [vmem:[%s0 + $0x2b8] sm:$0xff]
  %v114 = vld [vmem:[%s0 + $0x2c0] sm:$0xff]
  %v115 = vld [vmem:[%s0 + $0x2c8] sm:$0xff]
  %v116 = vld [vmem:[%s0 + $0x2d0] sm:$0xff]
  %v117 = vld [vmem:[%s0 + $0x2d8] sm:$0xff]
  %v118 = vld [vmem:[%s0 + $0x2e0] sm:$0xff]
  %v119 = vld [vmem:[%s0 + $0x2e8] sm:$0xff]
  %v120 = vld [vmem:[%s0 + $0x2f0] sm:$0xff]
  %v121 = vld [vmem:[%s0 + $0x2f8] sm:$0xff]
  %v122 = vld [vmem:[%s0 + $0x300] sm:$0xff]
  %v123 = vld [vmem:[%s0 + $0x308] sm:$0xff]
  %v124 = vld [vmem:[%s0 + $0x310] sm:$0xff]
  %v125 = vld [vmem:[%s0 + $0x318] sm:$0xff]
  %v126 = vld [vmem:[%s0 + $0x320] sm:$0xff]
  %v127 = vld [vmem:[%s0 + $0x328] sm:$0xff]
  %v128 = vld [vmem:[%s0 + $0x330] sm:$0xff]
  %v129 = vld [vmem:[%s0 + $0x338] sm:$0xff]
  %v130 = vld [vmem:[%s0 + $0x340] sm:$0xff]
  %v131 = vld [vmem:[%s0 + $0x348] sm:$0xff]
  %v132 = vld [vmem:[%s0 + $0x350] sm:$0xff]
  %v133 = vld [vmem:[%s0 + $0x358] sm:$0xff]
  %v134 = vld [vmem:[%s0 + $0x360] sm:$0xff]
  %v135 = vld [vmem:[%s0 + $0x368] sm:$0xff]
  %v136 = vld [vmem:[%s0 + $0x370] sm:$0xff]
  %v137 = vld [vmem:[%s0 + $0x378] sm:$0xff]
  %v138 = vld [vmem:[%s0 + $0x380] sm:$0xff]
  %v139 = vld [vmem:[%s0 + $0x388] sm:$0xff]
  %v140 = vld [vmem:[%s0 + $0x390] sm:$0xff]
  %v141 = vld [vmem:[%s0 + $0x398] sm:$0xff]
  %v142 = vld [vmem:[%s0 + $0x3a0] sm:$0xff]
  %v143 = vld [vmem:[%s0 + $0x3a8] sm:$0xff]
  %v144 = vld [vmem:[%s0 + $0x3b0] sm:$0xff]
  %v145 = vld [vmem:[%s0 + $0x3b8] sm:$0xff]
  %v146 = vld [vmem:[%s0 + $0x3c0] sm:$0xff]
  %v147 = vld [vmem:[%s0 + $0x3c8] sm:$0xff]
  %v148 = vld [vmem:[%s0 + $0x3d0] sm:$0xff]
  %v149 = vld [vmem:[%s0 + $0x3d8] sm:$0xff]
  %v150 = vld [vmem:[%s0 + $0x3e0] sm:$0xff]
  %v151 = vld [vmem:[%s0 + $0x3e8] sm:$0xff]
  %v152 = vld [vmem:[%s0 + $0x3f0] sm:$0xff]
  %v153 = vld [vmem:[%s0 + $0x3f8] sm:$0xff]
  %v154 = vld [vmem:[%s0 + $0x400] sm:$0xff]
  %v155 = vld [vmem:[%s0 + $0x408] sm:$0xff]
  %v156 = vld [vmem:[%s0 + $0x410] sm:$0xff]
  %v157 = vld [vmem:[%s0 + $0x418] sm:$0xff]
  %v158 = vld [vmem:[%s0 + $0x420] sm:$0xff]
  %v159 = vld [vmem:[%s0 + $0x428] sm:$0xff]
  %v160 = vld [vmem:[%s0 + $0x430] sm:$0xff]
  %v161 = vld [vmem:[%s0 + $0x438] sm:$0xff]
  %v162 = vld [vmem:[%s0 + $0x440] sm:$0xff]
  %v163 = vld [vmem:[%s0 + $0x448] sm:$0xff]
  %v164 = vld [vmem:[%s0 + $0x450] sm:$0xff]
  %v165 = vld [vmem:[%s0 + $0x458] sm:$0xff]
  %v166 = vld [vmem:[%s0 + $0x460] sm:$0xff]
  %v167 = vld [vmem:[%s0 + $0x468] sm:$0xff]
  %v168 = vld [vmem:[%s0 + $0x470] sm:$0xff]
  %v169 = vld [vmem:[%s0 + $0x478] sm:$0xff]
  %v170 = vld [vmem:[%s0 + $0x480] sm:$0xff]
  %v171 = vld [vmem:[%s0 + $0x488] sm:$0xff]
  %v172 = vld [vmem:[%s0 + $0x490] sm:$0xff]
  %v173 = vld [vmem:[%s0 + $0x498] sm:$0xff]
  %v174 = vld [vmem:[%s0 + $0x4a0] sm:$0xff]
  %v175 = vld [vmem:[%s0 + $0x4a8] sm:$0xff]
  %v176 = vld [vmem:[%s0 + $0x4b0] sm:$0xff]
  %v177 = vld [vmem:[%s0 + $0x4b8] sm:$0xff]
  %v178 = vld [vmem:[%s0 + $0x4c0] sm:$0xff]
  %v179 = vld [vmem:[%s0 + $0x4c8] sm:$0xff]
  %v180 = vld [vmem:[%s0 + $0x4d0] sm:$0xff]
  %v181 = vld [vmem:[%s0 + $0x4d8] sm:$0xff]
  %v182 = vld [vmem:[%s0 + $0x4e0] sm:$0xff]
  %v183 = vld [vmem:[%s0 + $0x4e8] sm:$0xff]
  %v184 = vld [vmem:[%s0 + $0x4f0] sm:$0xff]
  %v185 = vld [vmem:[%s0 + $0x4f8] sm:$0xff]
  %v186 = vld [vmem:[%s0 + $0x500] sm:$0xff]
  %v187 = vld [vmem:[%s0 + $0x508] sm:$0xff]
  %v188 = vld [vmem:[%s0 + $0x510] sm:$0xff]
  %v189 = vld [vmem:[%s0 + $0x518] sm:$0xff]
  %v190 = vld [vmem:[%s0 + $0x520] sm:$0xff]
  %v191 = vld [vmem:[%s0 + $0x528] sm:$0xff]
  %v192 = vld [vmem:[%s0 + $0x530] sm:$0xff]
  %v193 = vld [vmem:[%s0 + $0x538] sm:$0xff]
  %v194 = vld [vmem:[%s0 + $0x540] sm:$0xff]
  %v195 = vld [vmem:[%s0 + $0x548] sm:$0xff]
  %v196 = vld [vmem:[%s0 + $0x550] sm:$0xff]
  %v197 = vld [vmem:[%s0 + $0x558] sm:$0xff]
  %v198 = vld [vmem:[%s0 + $0x560] sm:$0xff]
  %v199 = vld [vmem:[%s0 + $0x568] sm:$0xff]
  %v200 = vld [vmem:[%s0 + $0x570] sm:$0xff]
  %v201 = vld [vmem:[%s0 + $0x578] sm:$0xff]
  %v202 = vld [vmem:[%s0 + $0x580] sm:$0xff]
  %v203 = vld [vmem:[%s0 + $0x588] sm:$0xff]
  %v204 = vld [vmem:[%s0 + $0x590] sm:$0xff]
  %v205 = vld [vmem:[%s0 + $0x598] sm:$0xff]
  %v206 = vld [vmem:[%s0 + $0x5a0] sm:$0xff]
  %v207 = vld [vmem:[%s0 + $0x5a8] sm:$0xff]
  %v208 = vld [vmem:[%s0 + $0x5b0] sm:$0xff]
  %v209 = vld [vmem:[%s0 + $0x5b8] sm:$0xff]
  %v210 = vld [vmem:[%s0 + $0x5c0] sm:$0xff]
  %v211 = vld [vmem:[%s0 + $0x5c8] sm:$0xff]
  %v212 = vld [vmem:[%s0 + $0x5d0] sm:$0xff]
  %v213 = vld [vmem:[%s0 + $0x5d8] sm:$0xff]
  %v214 = vld [vmem:[%s0 + $0x5e0] sm:$0xff]
  %v215 = vld [vmem:[%s0 + $0x5e8] sm:$0xff]
  %v216 = vld [vmem:[%s0 + $0x5f0] sm:$0xff]
  %v217 = vld [vmem:[%s0 + $0x5f8] sm:$0xff]
  %v218 = vld [vmem:[%s0 + $0x600] sm:$0xff]
  %v219 = vld [vmem:[%s0 + $0x608] sm:$0xff]
  %v220 = vld [vmem:[%s0 + $0x610] sm:$0xff]
  %v221 = vld [vmem:[%s0 + $0x618] sm:$0xff]
  %v222 = vld [vmem:[%s0 + $0x620] sm:$0xff]
  %v223 = vld [vmem:[%s0 + $0x628] sm:$0xff]
  %v224 = vld [vmem:[%s0 + $0x630] sm:$0xff]
  %v225 = vld [vmem:[%s0 + $0x638] sm:$0xff]
  %v226 = vld [vmem:[%s0 + $0x640] sm:$0xff]
  %v227 = vld [vmem:[%s0 + $0x648] sm:$0xff]
  %v228 = vld [vmem:[%s0 + $0x650] sm:$0xff]
  %v229 = vld [vmem:[%s0 + $0x658] sm:$0xff]
  %v230 = vld [vmem:[%s0 + $0x660] sm:$0xff]
  %v231 = vld [vmem:[%s0 + $0x668] sm:$0xff]
  %v232 = vld [vmem:[%s0 + $0x670] sm:$0xff]
  %v233 = vld [vmem:[%s0 + $0x678] sm:$0xff]
  %v234 = vld [vmem:[%s0 + $0x680] sm:$0xff]
  %v235 = vld [vmem:[%s0 + $0x688] sm:$0xff]
  %v236 = vld [vmem:[%s0 + $0x690] sm:$0xff]
  %v237 = vld [vmem:[%s0 + $0x698] sm:$0xff]
  %v238 = vld [vmem:[%s0 + $0x6a0] sm:$0xff]
  %v239 = vld [vmem:[%s0 + $0x6a8] sm:$0xff]
  %v240 = vld [vmem:[%s0 + $0x6b0] sm:$0xff]
  %v241 = vld [vmem:[%s0 + $0x6b8] sm:$0xff]
  %v242 = vld [vmem:[%s0 + $0x6c0] sm:$0xff]
  %v243 = vld [vmem:[%s0 + $0x6c8] sm:$0xff]
  %v244 = vld [vmem:[%s0 + $0x6d0] sm:$0xff]
  %v245 = vld [vmem:[%s0 + $0x6d8] sm:$0xff]
  %v246 = vld [vmem:[%s0 + $0x6e0] sm:$0xff]
  %v247 = vld [vmem:[%s0 + $0x6e8] sm:$0xff]
  %v248 = vld [vmem:[%s0 + $0x6f0] sm:$0xff]
  %v249 = vld [vmem:[%s0 + $0x6f8] sm:$0xff]
  %v250 = vld [vmem:[%s0 + $0x700] sm:$0xff]
  %v251 = vld [vmem:[%s0 + $0x708] sm:$0xff]
  %v252 = vld [vmem:[%s0 + $0x710] sm:$0xff]
  %v253 = vld [vmem:[%s0 + $0x718] sm:$0xff]
  %v254 = vld [vmem:[%s0 + $0x720] sm:$0xff]
  %v255 = vld [vmem:[%s0 + $0x728] sm:$0xff]
  %v256 = vld [vmem:[%s0 + $0x730] sm:$0xff]
  %v257 = vld [vmem:[%s0 + $0x738] sm:$0xff]
  %v258 = vld [vmem:[%s0 + $0x740] sm:$0xff]
  %v259 = vld [vmem:[%s0 + $0x748] sm:$0xff]
  %v260 = vld [vmem:[%s0 + $0x750] sm:$0xff]
  %v261 = vld [vmem:[%s0 + $0x758] sm:$0xff]
  %v262 = vld [vmem:[%s0 + $0x760] sm:$0xff]
  %v263 = vld [vmem:[%s0 + $0x768] sm:$0xff]
  %v264 = vld [vmem:[%s0 + $0x770] sm:$0xff]
  %v265 = vld [vmem:[%s0 + $0x778] sm:$0xff]
  %v266 = vld [vmem:[%s0 + $0x780] sm:$0xff]
  %v267 = vld [vmem:[%s0 + $0x788] sm:$0xff]
  %v268 = vld [vmem:[%s0 + $0x790] sm:$0xff]
  %v269 = vld [vmem:[%s0 + $0x798] sm:$0xff]
  %v270 = vld [vmem:[%s0 + $0x7a0] sm:$0xff]
  %v271 = vld [vmem:[%s0 + $0x7a8] sm:$0xff]
  %v272 = vld [vmem:[%s0 + $0x7b0] sm:$0xff]
  %v273 = vld [vmem:[%s0 + $0x7b8] sm:$0xff]
  %v274 = vld [vmem:[%s0 + $0x7c0] sm:$0xff]
  %v275 = vld [vmem:[%s0 + $0x7c8] sm:$0xff]
  %v276 = vld [vmem:[%s0 + $0x7d0] sm:$0xff]
  %v277 = vld [vmem:[%s0 + $0x7d8] sm:$0xff]
  %v278 = vld [vmem:[%s0 + $0x7e0] sm:$0xff]
  %v279 = vld [vmem:[%s0 + $0x7e8] sm:$0xff]
  %v280 = vld [vmem:[%s0 + $0x7f0] sm:$0xff]
  %v281 = vld [vmem:[%s0 + $0x7f8] sm:$0xff]
  %v282 = vld [vmem:[%s0 + $0x800] sm:$0xff]
  %v283 = vld [vmem:[%s0 + $0x808] sm:$0xff]
  %v284 = vld [vmem:[%s0 + $0x810] sm:$0xff]
  %v285 = vld [vmem:[%s0 + $0x818] sm:$0xff]
  %v286 = vld [vmem:[%s0 + $0x820] sm:$0xff]
  %v287 = vld [vmem:[%s0 + $0x828] sm:$0xff]
  %v288 = vld [vmem:[%s0 + $0x830] sm:$0xff]
  %v289 = vld [vmem:[%s0 + $0x838] sm:$0xff]
  %v290 = vld [vmem:[%s0 + $0x840] sm:$0xff]
  %v291 = vld [vmem:[%s0 + $0x848] sm:$0xff]
  %v292 = vld [vmem:[%s0 + $0x850] sm:$0xff]
  %v293 = vld [vmem:[%s0 + $0x858] sm:$0xff]
  %v294 = vld [vmem:[%s0 + $0x860] sm:$0xff]
  %v295 = vld [vmem:[%s0 + $0x868] sm:$0xff]
  %v296 = vld [vmem:[%s0 + $0x870] sm:$0xff]
  %v297 = vld [vmem:[%s0 + $0x878] sm:$0xff]
  %v298 = vld [vmem:[%s0 + $0x880] sm:$0xff]
  %v299 = vld [vmem:[%s0 + $0x888] sm:$0xff]
  %v300 = vld [vmem:[%s0 + $0x890] sm:$0xff]
  %v301 = vld [vmem:[%s0 + $0x898] sm:$0xff]
  %v302 = vld [vmem:[%s0 + $0x8a0] sm:$0xff]
  %v303 = vld [vmem:[%s0 + $0x8a8] sm:$0xff]
  %v304 = vld [vmem:[%s0 + $0x8b0] sm:$0xff]
  %v305 = vld [vmem:[%s0 + $0x8b8] sm:$0xff]
  %v306 = vld [vmem:[%s0 + $0x8c0] sm:$0xff]
  %v307 = vld [vmem:[%s0 + $0x8c8] sm:$0xff]
  %v308 = vld [vmem:[%s0 + $0x8d0] sm:$0xff]
  %v309 = vld [vmem:[%s0 + $0x8d8] sm:$0xff]
  %v310 = vld [vmem:[%s0 + $0x8e0] sm:$0xff]
  %v311 = vld [vmem:[%s0 + $0x8e8] sm:$0xff]
  %v312 = vld [vmem:[%s0 + $0x8f0] sm:$0xff]
  %v313 = vld [vmem:[%s0 + $0x8f8] sm:$0xff]
  %v314 = vld [vmem:[%s0 + $0x900] sm:$0xff]
  %v315 = vld [vmem:[%s0 + $0x908] sm:$0xff]
  %v316 = vld [vmem:[%s0 + $0x910] sm:$0xff]
  %v317 = vld [vmem:[%s0 + $0x918] sm:$0xff]
  %v318 = vld [vmem:[%s0 + $0x920] sm:$0xff]
  %v319 = vld [vmem:[%s0 + $0x928] sm:$0xff]
  %v320 = vld [vmem:[%s0 + $0x930] sm:$0xff]
  %v321 = vld [vmem:[%s0 + $0x938] sm:$0xff]
  %v322 = vld [vmem:[%s0 + $0x940] sm:$0xff]
  %v323 = vld [vmem:[%s0 + $0x948] sm:$0xff]
  %v324 = vld [vmem:[%s0 + $0x950] sm:$0xff]
  %v325 = vld [vmem:[%s0 + $0x958] sm:$0xff]
  %v326 = vld [vmem:[%s0 + $0x960] sm:$0xff]
  %v327 = vld [vmem:[%s0 + $0x968] sm:$0xff]
  %v328 = vld [vmem:[%s0 + $0x970] sm:$0xff]
  %v329 = vld [vmem:[%s0 + $0x978] sm:$0xff]
  %v330 = vld [vmem:[%s0 + $0x980] sm:$0xff]
  %v331 = vld [vmem:[%s0 + $0x988] sm:$0xff]
  %v332 = vld [vmem:[%s0 + $0x990] sm:$0xff]
  %v333 = vld [vmem:[%s0 + $0x998] sm:$0xff]
  %v334 = vld [vmem:[%s0 + $0x9a0] sm:$0xff]
  %v335 = vld [vmem:[%s0 + $0x9a8] sm:$0xff]
  %v336 = vld [vmem:[%s0 + $0x9b0] sm:$0xff]
  %v337 = vld [vmem:[%s0 + $0x9b8] sm:$0xff]
  %v338 = vld [vmem:[%s0 + $0x9c0] sm:$0xff]
  %v339 = vld [vmem:[%s0 + $0x9c8] sm:$0xff]
  %v340 = vld [vmem:[%s0 + $0x9d0] sm:$0xff]
  %v341 = vld [vmem:[%s0 + $0x9d8] sm:$0xff]
  %v342 = vld [vmem:[%s0 + $0x9e0] sm:$0xff]
  %v343 = vld [vmem:[%s0 + $0x9e8] sm:$0xff]
  %v344 = vld [vmem:[%s0 + $0x9f0] sm:$0xff]
  %v345 = vld [vmem:[%s0 + $0x9f8] sm:$0xff]
  %v346 = vld [vmem:[%s0 + $0xa00] sm:$0xff]
  %v347 = vld [vmem:[%s0 + $0xa08] sm:$0xff]
  %v348 = vld [vmem:[%s0 + $0xa10] sm:$0xff]
  %v349 = vld [vmem:[%s0 + $0xa18] sm:$0xff]
  %v350 = vld [vmem:[%s1] sm:$0xff]
  %v351 = vld [vmem:[%s1 + $0x8] sm:$0xff]
  %v352 = vld [vmem:[%s1 + $0x10] sm:$0xff]
  %v353 = vld [vmem:[%s1 + $0x18] sm:$0xff]
  %v354 = vld [vmem:[%s1 + $0x20] sm:$0xf]
  %v355 = vld [vmem:[%s2] sm:$0x1]
  %612 = vrot.lane.b32.xlu0 %v27, 4
  %v613 = vpop.permute.xlu0 %612
  %614 = vrot.lane.b32.xlu0 %v28, 4
  %v615 = vpop.permute.xlu0 %614
  %616 = vrot.lane.b32.xlu0 %v29, 4
  %v617 = vpop.permute.xlu0 %616
  %618 = vrot.lane.b32.xlu0 %v30, 4
  %v619 = vpop.permute.xlu0 %618
  %620 = vrot.lane.b32.xlu0 %v31, 4
  %v621 = vpop.permute.xlu0 %620
  %622 = vrot.lane.b32.xlu0 %v32, 4
  %v623 = vpop.permute.xlu0 %622
  %624 = vrot.lane.b32.xlu0 %v33, 4
  %v625 = vpop.permute.xlu0 %624
  %626 = vrot.lane.b32.xlu0 %v34, 4
  %v627 = vpop.permute.xlu0 %626
  %628 = vrot.lane.b32.xlu0 %v35, 4
  %v629 = vpop.permute.xlu0 %628
  %630 = vrot.lane.b32.xlu0 %v36, 4
  %v631 = vpop.permute.xlu0 %630
  %632 = vrot.lane.b32.xlu0 %v37, 4
  %v633 = vpop.permute.xlu0 %632
  %634 = vrot.lane.b32.xlu0 %v38, 4
  %v635 = vpop.permute.xlu0 %634
  %636 = vrot.lane.b32.xlu0 %v39, 4
  %v637 = vpop.permute.xlu0 %636
  %638 = vrot.lane.b32.xlu0 %v40, 4
  %v639 = vpop.permute.xlu0 %638
  %640 = vrot.lane.b32.xlu0 %v41, 4
  %v641 = vpop.permute.xlu0 %640
  %642 = vrot.lane.b32.xlu0 %v42, 4
  %v643 = vpop.permute.xlu0 %642
  %644 = vrot.lane.b32.xlu0 %v45, 4
  %v645 = vpop.permute.xlu0 %644
  %646 = vrot.lane.b32.xlu0 %v46, 4
  %v647 = vpop.permute.xlu0 %646
  %648 = vrot.lane.b32.xlu0 %v47, 4
  %v649 = vpop.permute.xlu0 %648
  %650 = vrot.lane.b32.xlu0 %v48, 4
  %v651 = vpop.permute.xlu0 %650
  %652 = vrot.lane.b32.xlu0 %v49, 4
  %v653 = vpop.permute.xlu0 %652
  %654 = vrot.lane.b32.xlu0 %v50, 4
  %v655 = vpop.permute.xlu0 %654
  %656 = vrot.lane.b32.xlu0 %v51, 4
  %v657 = vpop.permute.xlu0 %656
  %658 = vrot.lane.b32.xlu0 %v52, 4
  %v659 = vpop.permute.xlu0 %658
  %660 = vrot.lane.b32.xlu0 %v53, 4
  %v661 = vpop.permute.xlu0 %660
  %662 = vrot.lane.b32.xlu0 %v54, 4
  %v663 = vpop.permute.xlu0 %662
  %664 = vrot.lane.b32.xlu0 %v55, 4
  %v665 = vpop.permute.xlu0 %664
  %666 = vrot.lane.b32.xlu0 %v56, 4
  %v667 = vpop.permute.xlu0 %666
  %668 = vrot.lane.b32.xlu0 %v57, 4
  %v669 = vpop.permute.xlu0 %668
  %670 = vrot.lane.b32.xlu0 %v58, 4
  %v671 = vpop.permute.xlu0 %670
  %672 = vrot.lane.b32.xlu0 %v59, 4
  %v673 = vpop.permute.xlu0 %672
  %674 = vrot.lane.b32.xlu0 %v60, 4
  %v675 = vpop.permute.xlu0 %674
  %676 = vrot.lane.b32.xlu0 %v63, 4
  %v677 = vpop.permute.xlu0 %676
  %678 = vrot.lane.b32.xlu0 %v64, 4
  %v679 = vpop.permute.xlu0 %678
  %680 = vrot.lane.b32.xlu0 %v65, 4
  %v681 = vpop.permute.xlu0 %680
  %682 = vrot.lane.b32.xlu0 %v66, 4
  %v683 = vpop.permute.xlu0 %682
  %684 = vrot.lane.b32.xlu0 %v67, 4
  %v685 = vpop.permute.xlu0 %684
  %686 = vrot.lane.b32.xlu0 %v68, 4
  %v687 = vpop.permute.xlu0 %686
  %688 = vrot.lane.b32.xlu0 %v69, 4
  %v689 = vpop.permute.xlu0 %688
  %690 = vrot.lane.b32.xlu0 %v70, 4
  %v691 = vpop.permute.xlu0 %690
  %692 = vrot.lane.b32.xlu0 %v71, 4
  %v693 = vpop.permute.xlu0 %692
  %694 = vrot.lane.b32.xlu0 %v72, 4
  %v695 = vpop.permute.xlu0 %694
  %696 = vrot.lane.b32.xlu0 %v73, 4
  %v697 = vpop.permute.xlu0 %696
  %698 = vrot.lane.b32.xlu0 %v74, 4
  %v699 = vpop.permute.xlu0 %698
  %700 = vrot.lane.b32.xlu0 %v75, 4
  %v701 = vpop.permute.xlu0 %700
  %702 = vrot.lane.b32.xlu0 %v76, 4
  %v703 = vpop.permute.xlu0 %702
  %704 = vrot.lane.b32.xlu0 %v77, 4
  %v705 = vpop.permute.xlu0 %704
  %706 = vrot.lane.b32.xlu0 %v78, 4
  %v707 = vpop.permute.xlu0 %706
  %708 = vrot.lane.b32.xlu0 %v81, 4
  %v709 = vpop.permute.xlu0 %708
  %710 = vrot.lane.b32.xlu0 %v82, 4
  %v711 = vpop.permute.xlu0 %710
  %712 = vrot.lane.b32.xlu0 %v83, 4
  %v713 = vpop.permute.xlu0 %712
  %714 = vrot.lane.b32.xlu0 %v84, 4
  %v715 = vpop.permute.xlu0 %714
  %716 = vrot.lane.b32.xlu0 %v85, 4
  %v717 = vpop.permute.xlu0 %716
  %718 = vrot.lane.b32.xlu0 %v86, 4
  %v719 = vpop.permute.xlu0 %718
  %720 = vrot.lane.b32.xlu0 %v87, 4
  %v721 = vpop.permute.xlu0 %720
  %722 = vrot.lane.b32.xlu0 %v88, 4
  %v723 = vpop.permute.xlu0 %722
  %724 = vrot.lane.b32.xlu0 %v89, 4
  %v725 = vpop.permute.xlu0 %724
  %726 = vrot.lane.b32.xlu0 %v90, 4
  %v727 = vpop.permute.xlu0 %726
  %728 = vrot.lane.b32.xlu0 %v91, 4
  %v729 = vpop.permute.xlu0 %728
  %730 = vrot.lane.b32.xlu0 %v92, 4
  %v731 = vpop.permute.xlu0 %730
  %732 = vrot.lane.b32.xlu0 %v93, 4
  %v733 = vpop.permute.xlu0 %732
  %734 = vrot.lane.b32.xlu0 %v94, 4
  %v735 = vpop.permute.xlu0 %734
  %736 = vrot.lane.b32.xlu0 %v95, 4
  %v737 = vpop.permute.xlu0 %736
  %738 = vrot.lane.b32.xlu0 %v96, 4
  %v739 = vpop.permute.xlu0 %738
  %740 = vrot.lane.b32.xlu0 %v99, 4
  %v741 = vpop.permute.xlu0 %740
  %742 = vrot.lane.b32.xlu0 %v100, 4
  %v743 = vpop.permute.xlu0 %742
  %744 = vrot.lane.b32.xlu0 %v101, 4
  %v745 = vpop.permute.xlu0 %744
  %746 = vrot.lane.b32.xlu0 %v102, 4
  %v747 = vpop.permute.xlu0 %746
  %748 = vrot.lane.b32.xlu0 %v103, 4
  %v749 = vpop.permute.xlu0 %748
  %750 = vrot.lane.b32.xlu0 %v104, 4
  %v751 = vpop.permute.xlu0 %750
  %752 = vrot.lane.b32.xlu0 %v105, 4
  %v753 = vpop.permute.xlu0 %752
  %754 = vrot.lane.b32.xlu0 %v106, 4
  %v755 = vpop.permute.xlu0 %754
  %756 = vrot.lane.b32.xlu0 %v107, 4
  %v757 = vpop.permute.xlu0 %756
  %758 = vrot.lane.b32.xlu0 %v108, 4
  %v759 = vpop.permute.xlu0 %758
  %760 = vrot.lane.b32.xlu0 %v109, 4
  %v761 = vpop.permute.xlu0 %760
  %762 = vrot.lane.b32.xlu0 %v110, 4
  %v763 = vpop.permute.xlu0 %762
  %764 = vrot.lane.b32.xlu0 %v111, 4
  %v765 = vpop.permute.xlu0 %764
  %766 = vrot.lane.b32.xlu0 %v112, 4
  %v767 = vpop.permute.xlu0 %766
  %768 = vrot.lane.b32.xlu0 %v113, 4
  %v769 = vpop.permute.xlu0 %768
  %770 = vrot.lane.b32.xlu0 %v114, 4
  %v771 = vpop.permute.xlu0 %770
  %772 = vrot.lane.b32.xlu0 %v117, 4
  %v773 = vpop.permute.xlu0 %772
  %774 = vrot.lane.b32.xlu0 %v118, 4
  %v775 = vpop.permute.xlu0 %774
  %776 = vrot.lane.b32.xlu0 %v119, 4
  %v777 = vpop.permute.xlu0 %776
  %778 = vrot.lane.b32.xlu0 %v120, 4
  %v779 = vpop.permute.xlu0 %778
  %780 = vrot.lane.b32.xlu0 %v121, 4
  %v781 = vpop.permute.xlu0 %780
  %782 = vrot.lane.b32.xlu0 %v122, 4
  %v783 = vpop.permute.xlu0 %782
  %784 = vrot.lane.b32.xlu0 %v123, 4
  %v785 = vpop.permute.xlu0 %784
  %786 = vrot.lane.b32.xlu0 %v124, 4
  %v787 = vpop.permute.xlu0 %786
  %788 = vrot.lane.b32.xlu0 %v125, 4
  %v789 = vpop.permute.xlu0 %788
  %790 = vrot.lane.b32.xlu0 %v126, 4
  %v791 = vpop.permute.xlu0 %790
  %792 = vrot.lane.b32.xlu0 %v127, 4
  %v793 = vpop.permute.xlu0 %792
  %794 = vrot.lane.b32.xlu0 %v128, 4
  %v795 = vpop.permute.xlu0 %794
  %796 = vrot.lane.b32.xlu0 %v129, 4
  %v797 = vpop.permute.xlu0 %796
  %798 = vrot.lane.b32.xlu0 %v130, 4
  %v799 = vpop.permute.xlu0 %798
  %800 = vrot.lane.b32.xlu0 %v131, 4
  %v801 = vpop.permute.xlu0 %800
  %802 = vrot.lane.b32.xlu0 %v132, 4
  %v803 = vpop.permute.xlu0 %802
  %804 = vrot.lane.b32.xlu0 %v135, 4
  %v805 = vpop.permute.xlu0 %804
  %806 = vrot.lane.b32.xlu0 %v136, 4
  %v807 = vpop.permute.xlu0 %806
  %808 = vrot.lane.b32.xlu0 %v137, 4
  %v809 = vpop.permute.xlu0 %808
  %810 = vrot.lane.b32.xlu0 %v138, 4
  %v811 = vpop.permute.xlu0 %810
  %812 = vrot.lane.b32.xlu0 %v139, 4
  %v813 = vpop.permute.xlu0 %812
  %814 = vrot.lane.b32.xlu0 %v140, 4
  %v815 = vpop.permute.xlu0 %814
  %816 = vrot.lane.b32.xlu0 %v141, 4
  %v817 = vpop.permute.xlu0 %816
  %818 = vrot.lane.b32.xlu0 %v142, 4
  %v819 = vpop.permute.xlu0 %818
  %820 = vrot.lane.b32.xlu0 %v143, 4
  %v821 = vpop.permute.xlu0 %820
  %822 = vrot.lane.b32.xlu0 %v144, 4
  %v823 = vpop.permute.xlu0 %822
  %824 = vrot.lane.b32.xlu0 %v145, 4
  %v825 = vpop.permute.xlu0 %824
  %826 = vrot.lane.b32.xlu0 %v146, 4
  %v827 = vpop.permute.xlu0 %826
  %828 = vrot.lane.b32.xlu0 %v147, 4
  %v829 = vpop.permute.xlu0 %828
  %830 = vrot.lane.b32.xlu0 %v148, 4
  %v831 = vpop.permute.xlu0 %830
  %832 = vrot.lane.b32.xlu0 %v149, 4
  %v833 = vpop.permute.xlu0 %832
  %834 = vrot.lane.b32.xlu0 %v150, 4
  %v835 = vpop.permute.xlu0 %834
  %836 = vrot.lane.b32.xlu0 %v153, 4
  %v837 = vpop.permute.xlu0 %836
  %838 = vrot.lane.b32.xlu0 %v154, 4
  %v839 = vpop.permute.xlu0 %838
  %840 = vrot.lane.b32.xlu0 %v155, 4
  %v841 = vpop.permute.xlu0 %840
  %842 = vrot.lane.b32.xlu0 %v156, 4
  %v843 = vpop.permute.xlu0 %842
  %844 = vrot.lane.b32.xlu0 %v157, 4
  %v845 = vpop.permute.xlu0 %844
  %846 = vrot.lane.b32.xlu0 %v158, 4
  %v847 = vpop.permute.xlu0 %846
  %848 = vrot.lane.b32.xlu0 %v159, 4
  %v849 = vpop.permute.xlu0 %848
  %850 = vrot.lane.b32.xlu0 %v160, 4
  %v851 = vpop.permute.xlu0 %850
  %852 = vrot.lane.b32.xlu0 %v161, 4
  %v853 = vpop.permute.xlu0 %852
  %854 = vrot.lane.b32.xlu0 %v162, 4
  %v855 = vpop.permute.xlu0 %854
  %856 = vrot.lane.b32.xlu0 %v163, 4
  %v857 = vpop.permute.xlu0 %856
  %858 = vrot.lane.b32.xlu0 %v164, 4
  %v859 = vpop.permute.xlu0 %858
  %860 = vrot.lane.b32.xlu0 %v165, 4
  %v861 = vpop.permute.xlu0 %860
  %862 = vrot.lane.b32.xlu0 %v166, 4
  %v863 = vpop.permute.xlu0 %862
  %864 = vrot.lane.b32.xlu0 %v167, 4
  %v865 = vpop.permute.xlu0 %864
  %866 = vrot.lane.b32.xlu0 %v168, 4
  %v867 = vpop.permute.xlu0 %866
  %868 = vrot.lane.b32.xlu0 %v171, 4
  %v869 = vpop.permute.xlu0 %868
  %870 = vrot.lane.b32.xlu0 %v172, 4
  %v871 = vpop.permute.xlu0 %870
  %872 = vrot.lane.b32.xlu0 %v173, 4
  %v873 = vpop.permute.xlu0 %872
  %874 = vrot.lane.b32.xlu0 %v174, 4
  %v875 = vpop.permute.xlu0 %874
  %876 = vrot.lane.b32.xlu0 %v175, 4
  %v877 = vpop.permute.xlu0 %876
  %878 = vrot.lane.b32.xlu0 %v176, 4
  %v879 = vpop.permute.xlu0 %878
  %880 = vrot.lane.b32.xlu0 %v177, 4
  %v881 = vpop.permute.xlu0 %880
  %882 = vrot.lane.b32.xlu0 %v178, 4
  %v883 = vpop.permute.xlu0 %882
  %884 = vrot.lane.b32.xlu0 %v179, 4
  %v885 = vpop.permute.xlu0 %884
  %886 = vrot.lane.b32.xlu0 %v180, 4
  %v887 = vpop.permute.xlu0 %886
  %888 = vrot.lane.b32.xlu0 %v181, 4
  %v889 = vpop.permute.xlu0 %888
  %890 = vrot.lane.b32.xlu0 %v182, 4
  %v891 = vpop.permute.xlu0 %890
  %892 = vrot.lane.b32.xlu0 %v183, 4
  %v893 = vpop.permute.xlu0 %892
  %894 = vrot.lane.b32.xlu0 %v184, 4
  %v895 = vpop.permute.xlu0 %894
  %896 = vrot.lane.b32.xlu0 %v185, 4
  %v897 = vpop.permute.xlu0 %896
  %898 = vrot.lane.b32.xlu0 %v186, 4
  %v899 = vpop.permute.xlu0 %898
  %900 = vrot.lane.b32.xlu0 %v189, 4
  %v901 = vpop.permute.xlu0 %900
  %902 = vrot.lane.b32.xlu0 %v190, 4
  %v903 = vpop.permute.xlu0 %902
  %904 = vrot.lane.b32.xlu0 %v191, 4
  %v905 = vpop.permute.xlu0 %904
  %906 = vrot.lane.b32.xlu0 %v192, 4
  %v907 = vpop.permute.xlu0 %906
  %908 = vrot.lane.b32.xlu0 %v193, 4
  %v909 = vpop.permute.xlu0 %908
  %910 = vrot.lane.b32.xlu0 %v194, 4
  %v911 = vpop.permute.xlu0 %910
  %912 = vrot.lane.b32.xlu0 %v195, 4
  %v913 = vpop.permute.xlu0 %912
  %914 = vrot.lane.b32.xlu0 %v196, 4
  %v915 = vpop.permute.xlu0 %914
  %916 = vrot.lane.b32.xlu0 %v197, 4
  %v917 = vpop.permute.xlu0 %916
  %918 = vrot.lane.b32.xlu0 %v198, 4
  %v919 = vpop.permute.xlu0 %918
  %920 = vrot.lane.b32.xlu0 %v199, 4
  %v921 = vpop.permute.xlu0 %920
  %922 = vrot.lane.b32.xlu0 %v200, 4
  %v923 = vpop.permute.xlu0 %922
  %924 = vrot.lane.b32.xlu0 %v201, 4
  %v925 = vpop.permute.xlu0 %924
  %926 = vrot.lane.b32.xlu0 %v202, 4
  %v927 = vpop.permute.xlu0 %926
  %928 = vrot.lane.b32.xlu0 %v203, 4
  %v929 = vpop.permute.xlu0 %928
  %930 = vrot.lane.b32.xlu0 %v204, 4
  %v931 = vpop.permute.xlu0 %930
  %932 = vrot.lane.b32.xlu0 %v207, 4
  %v933 = vpop.permute.xlu0 %932
  %934 = vrot.lane.b32.xlu0 %v208, 4
  %v935 = vpop.permute.xlu0 %934
  %936 = vrot.lane.b32.xlu0 %v209, 4
  %v937 = vpop.permute.xlu0 %936
  %938 = vrot.lane.b32.xlu0 %v210, 4
  %v939 = vpop.permute.xlu0 %938
  %940 = vrot.lane.b32.xlu0 %v211, 4
  %v941 = vpop.permute.xlu0 %940
  %942 = vrot.lane.b32.xlu0 %v212, 4
  %v943 = vpop.permute.xlu0 %942
  %944 = vrot.lane.b32.xlu0 %v213, 4
  %v945 = vpop.permute.xlu0 %944
  %946 = vrot.lane.b32.xlu0 %v214, 4
  %v947 = vpop.permute.xlu0 %946
  %948 = vrot.lane.b32.xlu0 %v215, 4
  %v949 = vpop.permute.xlu0 %948
  %950 = vrot.lane.b32.xlu0 %v216, 4
  %v951 = vpop.permute.xlu0 %950
  %952 = vrot.lane.b32.xlu0 %v217, 4
  %v953 = vpop.permute.xlu0 %952
  %954 = vrot.lane.b32.xlu0 %v218, 4
  %v955 = vpop.permute.xlu0 %954
  %956 = vrot.lane.b32.xlu0 %v219, 4
  %v957 = vpop.permute.xlu0 %956
  %958 = vrot.lane.b32.xlu0 %v220, 4
  %v959 = vpop.permute.xlu0 %958
  %960 = vrot.lane.b32.xlu0 %v221, 4
  %v961 = vpop.permute.xlu0 %960
  %962 = vrot.lane.b32.xlu0 %v222, 4
  %v963 = vpop.permute.xlu0 %962
  %964 = vrot.lane.b32.xlu0 %v225, 4
  %v965 = vpop.permute.xlu0 %964
  %966 = vrot.lane.b32.xlu0 %v226, 4
  %v967 = vpop.permute.xlu0 %966
  %968 = vrot.lane.b32.xlu0 %v227, 4
  %v969 = vpop.permute.xlu0 %968
  %970 = vrot.lane.b32.xlu0 %v228, 4
  %v971 = vpop.permute.xlu0 %970
  %972 = vrot.lane.b32.xlu0 %v229, 4
  %v973 = vpop.permute.xlu0 %972
  %974 = vrot.lane.b32.xlu0 %v230, 4
  %v975 = vpop.permute.xlu0 %974
  %976 = vrot.lane.b32.xlu0 %v231, 4
  %v977 = vpop.permute.xlu0 %976
  %978 = vrot.lane.b32.xlu0 %v232, 4
  %v979 = vpop.permute.xlu0 %978
  %980 = vrot.lane.b32.xlu0 %v233, 4
  %v981 = vpop.permute.xlu0 %980
  %982 = vrot.lane.b32.xlu0 %v234, 4
  %v983 = vpop.permute.xlu0 %982
  %984 = vrot.lane.b32.xlu0 %v235, 4
  %v985 = vpop.permute.xlu0 %984
  %986 = vrot.lane.b32.xlu0 %v236, 4
  %v987 = vpop.permute.xlu0 %986
  %988 = vrot.lane.b32.xlu0 %v237, 4
  %v989 = vpop.permute.xlu0 %988
  %990 = vrot.lane.b32.xlu0 %v238, 4
  %v991 = vpop.permute.xlu0 %990
  %992 = vrot.lane.b32.xlu0 %v239, 4
  %v993 = vpop.permute.xlu0 %992
  %994 = vrot.lane.b32.xlu0 %v240, 4
  %v995 = vpop.permute.xlu0 %994
  %996 = vrot.lane.b32.xlu0 %v243, 4
  %v997 = vpop.permute.xlu0 %996
  %998 = vrot.lane.b32.xlu0 %v244, 4
  %v999 = vpop.permute.xlu0 %998
  %1000 = vrot.lane.b32.xlu0 %v245, 4
  %v1001 = vpop.permute.xlu0 %1000
  %1002 = vrot.lane.b32.xlu0 %v246, 4
  %v1003 = vpop.permute.xlu0 %1002
  %1004 = vrot.lane.b32.xlu0 %v247, 4
  %v1005 = vpop.permute.xlu0 %1004
  %1006 = vrot.lane.b32.xlu0 %v248, 4
  %v1007 = vpop.permute.xlu0 %1006
  %1008 = vrot.lane.b32.xlu0 %v249, 4
  %v1009 = vpop.permute.xlu0 %1008
  %1010 = vrot.lane.b32.xlu0 %v250, 4
  %v1011 = vpop.permute.xlu0 %1010
  %1012 = vrot.lane.b32.xlu0 %v251, 4
  %v1013 = vpop.permute.xlu0 %1012
  %1014 = vrot.lane.b32.xlu0 %v252, 4
  %v1015 = vpop.permute.xlu0 %1014
  %1016 = vrot.lane.b32.xlu0 %v253, 4
  %v1017 = vpop.permute.xlu0 %1016
  %1018 = vrot.lane.b32.xlu0 %v254, 4
  %v1019 = vpop.permute.xlu0 %1018
  %1020 = vrot.lane.b32.xlu0 %v255, 4
  %v1021 = vpop.permute.xlu0 %1020
  %1022 = vrot.lane.b32.xlu0 %v256, 4
  %v1023 = vpop.permute.xlu0 %1022
  %1024 = vrot.lane.b32.xlu0 %v257, 4
  %v1025 = vpop.permute.xlu0 %1024
  %1026 = vrot.lane.b32.xlu0 %v258, 4
  %v1027 = vpop.permute.xlu0 %1026
  %1028 = vrot.lane.b32.xlu0 %v261, 4
  %v1029 = vpop.permute.xlu0 %1028
  %1030 = vrot.lane.b32.xlu0 %v262, 4
  %v1031 = vpop.permute.xlu0 %1030
  %1032 = vrot.lane.b32.xlu0 %v263, 4
  %v1033 = vpop.permute.xlu0 %1032
  %1034 = vrot.lane.b32.xlu0 %v264, 4
  %v1035 = vpop.permute.xlu0 %1034
  %1036 = vrot.lane.b32.xlu0 %v265, 4
  %v1037 = vpop.permute.xlu0 %1036
  %1038 = vrot.lane.b32.xlu0 %v266, 4
  %v1039 = vpop.permute.xlu0 %1038
  %1040 = vrot.lane.b32.xlu0 %v267, 4
  %v1041 = vpop.permute.xlu0 %1040
  %1042 = vrot.lane.b32.xlu0 %v268, 4
  %v1043 = vpop.permute.xlu0 %1042
  %1044 = vrot.lane.b32.xlu0 %v269, 4
  %v1045 = vpop.permute.xlu0 %1044
  %1046 = vrot.lane.b32.xlu0 %v270, 4
  %v1047 = vpop.permute.xlu0 %1046
  %1048 = vrot.lane.b32.xlu0 %v271, 4
  %v1049 = vpop.permute.xlu0 %1048
  %1050 = vrot.lane.b32.xlu0 %v272, 4
  %v1051 = vpop.permute.xlu0 %1050
  %1052 = vrot.lane.b32.xlu0 %v273, 4
  %v1053 = vpop.permute.xlu0 %1052
  %1054 = vrot.lane.b32.xlu0 %v274, 4
  %v1055 = vpop.permute.xlu0 %1054
  %1056 = vrot.lane.b32.xlu0 %v275, 4
  %v1057 = vpop.permute.xlu0 %1056
  %1058 = vrot.lane.b32.xlu0 %v276, 4
  %v1059 = vpop.permute.xlu0 %1058
  %1060 = vrot.lane.b32.xlu0 %v279, 4
  %v1061 = vpop.permute.xlu0 %1060
  %1062 = vrot.lane.b32.xlu0 %v280, 4
  %v1063 = vpop.permute.xlu0 %1062
  %1064 = vrot.lane.b32.xlu0 %v281, 4
  %v1065 = vpop.permute.xlu0 %1064
  %1066 = vrot.lane.b32.xlu0 %v282, 4
  %v1067 = vpop.permute.xlu0 %1066
  %1068 = vrot.lane.b32.xlu0 %v283, 4
  %v1069 = vpop.permute.xlu0 %1068
  %1070 = vrot.lane.b32.xlu0 %v284, 4
  %v1071 = vpop.permute.xlu0 %1070
  %1072 = vrot.lane.b32.xlu0 %v285, 4
  %v1073 = vpop.permute.xlu0 %1072
  %1074 = vrot.lane.b32.xlu0 %v286, 4
  %v1075 = vpop.permute.xlu0 %1074
  %1076 = vrot.lane.b32.xlu0 %v287, 4
  %v1077 = vpop.permute.xlu0 %1076
  %1078 = vrot.lane.b32.xlu0 %v288, 4
  %v1079 = vpop.permute.xlu0 %1078
  %1080 = vrot.lane.b32.xlu0 %v289, 4
  %v1081 = vpop.permute.xlu0 %1080
  %1082 = vrot.lane.b32.xlu0 %v290, 4
  %v1083 = vpop.permute.xlu0 %1082
  %1084 = vrot.lane.b32.xlu0 %v291, 4
  %v1085 = vpop.permute.xlu0 %1084
  %1086 = vrot.lane.b32.xlu0 %v292, 4
  %v1087 = vpop.permute.xlu0 %1086
  %1088 = vrot.lane.b32.xlu0 %v293, 4
  %v1089 = vpop.permute.xlu0 %1088
  %1090 = vrot.lane.b32.xlu0 %v294, 4
  %v1091 = vpop.permute.xlu0 %1090
  %1092 = vrot.lane.b32.xlu0 %v297, 4
  %v1093 = vpop.permute.xlu0 %1092
  %1094 = vrot.lane.b32.xlu0 %v298, 4
  %v1095 = vpop.permute.xlu0 %1094
  %1096 = vrot.lane.b32.xlu0 %v299, 4
  %v1097 = vpop.permute.xlu0 %1096
  %1098 = vrot.lane.b32.xlu0 %v300, 4
  %v1099 = vpop.permute.xlu0 %1098
  %1100 = vrot.lane.b32.xlu0 %v301, 4
  %v1101 = vpop.permute.xlu0 %1100
  %1102 = vrot.lane.b32.xlu0 %v302, 4
  %v1103 = vpop.permute.xlu0 %1102
  %1104 = vrot.lane.b32.xlu0 %v303, 4
  %v1105 = vpop.permute.xlu0 %1104
  %1106 = vrot.lane.b32.xlu0 %v304, 4
  %v1107 = vpop.permute.xlu0 %1106
  %1108 = vrot.lane.b32.xlu0 %v305, 4
  %v1109 = vpop.permute.xlu0 %1108
  %1110 = vrot.lane.b32.xlu0 %v306, 4
  %v1111 = vpop.permute.xlu0 %1110
  %1112 = vrot.lane.b32.xlu0 %v307, 4
  %v1113 = vpop.permute.xlu0 %1112
  %1114 = vrot.lane.b32.xlu0 %v308, 4
  %v1115 = vpop.permute.xlu0 %1114
  %1116 = vrot.lane.b32.xlu0 %v309, 4
  %v1117 = vpop.permute.xlu0 %1116
  %1118 = vrot.lane.b32.xlu0 %v310, 4
  %v1119 = vpop.permute.xlu0 %1118
  %1120 = vrot.lane.b32.xlu0 %v311, 4
  %v1121 = vpop.permute.xlu0 %1120
  %1122 = vrot.lane.b32.xlu0 %v312, 4
  %v1123 = vpop.permute.xlu0 %1122
  %1396 = vrot.lane.b32.xlu0 %v28, 8
  %v1397 = vpop.permute.xlu0 %1396
  %1398 = vrot.lane.b32.xlu0 %v29, 8
  %v1399 = vpop.permute.xlu0 %1398
  %1400 = vrot.lane.b32.xlu0 %v30, 8
  %v1401 = vpop.permute.xlu0 %1400
  %1402 = vrot.lane.b32.xlu0 %v31, 8
  %v1403 = vpop.permute.xlu0 %1402
  %1404 = vrot.lane.b32.xlu0 %v32, 8
  %v1405 = vpop.permute.xlu0 %1404
  %1406 = vrot.lane.b32.xlu0 %v33, 8
  %v1407 = vpop.permute.xlu0 %1406
  %1408 = vrot.lane.b32.xlu0 %v34, 8
  %v1409 = vpop.permute.xlu0 %1408
  %1410 = vrot.lane.b32.xlu0 %v35, 8
  %v1411 = vpop.permute.xlu0 %1410
  %1412 = vrot.lane.b32.xlu0 %v36, 8
  %v1413 = vpop.permute.xlu0 %1412
  %1414 = vrot.lane.b32.xlu0 %v37, 8
  %v1415 = vpop.permute.xlu0 %1414
  %1416 = vrot.lane.b32.xlu0 %v38, 8
  %v1417 = vpop.permute.xlu0 %1416
  %1418 = vrot.lane.b32.xlu0 %v39, 8
  %v1419 = vpop.permute.xlu0 %1418
  %1420 = vrot.lane.b32.xlu0 %v40, 8
  %v1421 = vpop.permute.xlu0 %1420
  %1422 = vrot.lane.b32.xlu0 %v41, 8
  %v1423 = vpop.permute.xlu0 %1422
  %1424 = vrot.lane.b32.xlu0 %v42, 8
  %v1425 = vpop.permute.xlu0 %1424
  %1426 = vrot.lane.b32.xlu0 %v43, 8
  %v1427 = vpop.permute.xlu0 %1426
  %1428 = vrot.lane.b32.xlu0 %v46, 8
  %v1429 = vpop.permute.xlu0 %1428
  %1430 = vrot.lane.b32.xlu0 %v47, 8
  %v1431 = vpop.permute.xlu0 %1430
  %1432 = vrot.lane.b32.xlu0 %v48, 8
  %v1433 = vpop.permute.xlu0 %1432
  %1434 = vrot.lane.b32.xlu0 %v49, 8
  %v1435 = vpop.permute.xlu0 %1434
  %1436 = vrot.lane.b32.xlu0 %v50, 8
  %v1437 = vpop.permute.xlu0 %1436
  %1438 = vrot.lane.b32.xlu0 %v51, 8
  %v1439 = vpop.permute.xlu0 %1438
  %1440 = vrot.lane.b32.xlu0 %v52, 8
  %v1441 = vpop.permute.xlu0 %1440
  %1442 = vrot.lane.b32.xlu0 %v53, 8
  %v1443 = vpop.permute.xlu0 %1442
  %1444 = vrot.lane.b32.xlu0 %v54, 8
  %v1445 = vpop.permute.xlu0 %1444
  %1446 = vrot.lane.b32.xlu0 %v55, 8
  %v1447 = vpop.permute.xlu0 %1446
  %1448 = vrot.lane.b32.xlu0 %v56, 8
  %v1449 = vpop.permute.xlu0 %1448
  %1450 = vrot.lane.b32.xlu0 %v57, 8
  %v1451 = vpop.permute.xlu0 %1450
  %1452 = vrot.lane.b32.xlu0 %v58, 8
  %v1453 = vpop.permute.xlu0 %1452
  %1454 = vrot.lane.b32.xlu0 %v59, 8
  %v1455 = vpop.permute.xlu0 %1454
  %1456 = vrot.lane.b32.xlu0 %v60, 8
  %v1457 = vpop.permute.xlu0 %1456
  %1458 = vrot.lane.b32.xlu0 %v61, 8
  %v1459 = vpop.permute.xlu0 %1458
  %1460 = vrot.lane.b32.xlu0 %v64, 8
  %v1461 = vpop.permute.xlu0 %1460
  %1462 = vrot.lane.b32.xlu0 %v65, 8
  %v1463 = vpop.permute.xlu0 %1462
  %1464 = vrot.lane.b32.xlu0 %v66, 8
  %v1465 = vpop.permute.xlu0 %1464
  %1466 = vrot.lane.b32.xlu0 %v67, 8
  %v1467 = vpop.permute.xlu0 %1466
  %1468 = vrot.lane.b32.xlu0 %v68, 8
  %v1469 = vpop.permute.xlu0 %1468
  %1470 = vrot.lane.b32.xlu0 %v69, 8
  %v1471 = vpop.permute.xlu0 %1470
  %1472 = vrot.lane.b32.xlu0 %v70, 8
  %v1473 = vpop.permute.xlu0 %1472
  %1474 = vrot.lane.b32.xlu0 %v71, 8
  %v1475 = vpop.permute.xlu0 %1474
  %1476 = vrot.lane.b32.xlu0 %v72, 8
  %v1477 = vpop.permute.xlu0 %1476
  %1478 = vrot.lane.b32.xlu0 %v73, 8
  %v1479 = vpop.permute.xlu0 %1478
  %1480 = vrot.lane.b32.xlu0 %v74, 8
  %v1481 = vpop.permute.xlu0 %1480
  %1482 = vrot.lane.b32.xlu0 %v75, 8
  %v1483 = vpop.permute.xlu0 %1482
  %1484 = vrot.lane.b32.xlu0 %v76, 8
  %v1485 = vpop.permute.xlu0 %1484
  %1486 = vrot.lane.b32.xlu0 %v77, 8
  %v1487 = vpop.permute.xlu0 %1486
  %1488 = vrot.lane.b32.xlu0 %v78, 8
  %v1489 = vpop.permute.xlu0 %1488
  %1490 = vrot.lane.b32.xlu0 %v79, 8
  %v1491 = vpop.permute.xlu0 %1490
  %1492 = vrot.lane.b32.xlu0 %v82, 8
  %v1493 = vpop.permute.xlu0 %1492
  %1494 = vrot.lane.b32.xlu0 %v83, 8
  %v1495 = vpop.permute.xlu0 %1494
  %1496 = vrot.lane.b32.xlu0 %v84, 8
  %v1497 = vpop.permute.xlu0 %1496
  %1498 = vrot.lane.b32.xlu0 %v85, 8
  %v1499 = vpop.permute.xlu0 %1498
  %1500 = vrot.lane.b32.xlu0 %v86, 8
  %v1501 = vpop.permute.xlu0 %1500
  %1502 = vrot.lane.b32.xlu0 %v87, 8
  %v1503 = vpop.permute.xlu0 %1502
  %1504 = vrot.lane.b32.xlu0 %v88, 8
  %v1505 = vpop.permute.xlu0 %1504
  %1506 = vrot.lane.b32.xlu0 %v89, 8
  %v1507 = vpop.permute.xlu0 %1506
  %1508 = vrot.lane.b32.xlu0 %v90, 8
  %v1509 = vpop.permute.xlu0 %1508
  %1510 = vrot.lane.b32.xlu0 %v91, 8
  %v1511 = vpop.permute.xlu0 %1510
  %1512 = vrot.lane.b32.xlu0 %v92, 8
  %v1513 = vpop.permute.xlu0 %1512
  %1514 = vrot.lane.b32.xlu0 %v93, 8
  %v1515 = vpop.permute.xlu0 %1514
  %1516 = vrot.lane.b32.xlu0 %v94, 8
  %v1517 = vpop.permute.xlu0 %1516
  %1518 = vrot.lane.b32.xlu0 %v95, 8
  %v1519 = vpop.permute.xlu0 %1518
  %1520 = vrot.lane.b32.xlu0 %v96, 8
  %v1521 = vpop.permute.xlu0 %1520
  %1522 = vrot.lane.b32.xlu0 %v97, 8
  %v1523 = vpop.permute.xlu0 %1522
  %1524 = vrot.lane.b32.xlu0 %v100, 8
  %v1525 = vpop.permute.xlu0 %1524
  %1526 = vrot.lane.b32.xlu0 %v101, 8
  %v1527 = vpop.permute.xlu0 %1526
  %1528 = vrot.lane.b32.xlu0 %v102, 8
  %v1529 = vpop.permute.xlu0 %1528
  %1530 = vrot.lane.b32.xlu0 %v103, 8
  %v1531 = vpop.permute.xlu0 %1530
  %1532 = vrot.lane.b32.xlu0 %v104, 8
  %v1533 = vpop.permute.xlu0 %1532
  %1534 = vrot.lane.b32.xlu0 %v105, 8
  %v1535 = vpop.permute.xlu0 %1534
  %1536 = vrot.lane.b32.xlu0 %v106, 8
  %v1537 = vpop.permute.xlu0 %1536
  %1538 = vrot.lane.b32.xlu0 %v107, 8
  %v1539 = vpop.permute.xlu0 %1538
  %1540 = vrot.lane.b32.xlu0 %v108, 8
  %v1541 = vpop.permute.xlu0 %1540
  %1542 = vrot.lane.b32.xlu0 %v109, 8
  %v1543 = vpop.permute.xlu0 %1542
  %1544 = vrot.lane.b32.xlu0 %v110, 8
  %v1545 = vpop.permute.xlu0 %1544
  %1546 = vrot.lane.b32.xlu0 %v111, 8
  %v1547 = vpop.permute.xlu0 %1546
  %1548 = vrot.lane.b32.xlu0 %v112, 8
  %v1549 = vpop.permute.xlu0 %1548
  %1550 = vrot.lane.b32.xlu0 %v113, 8
  %v1551 = vpop.permute.xlu0 %1550
  %1552 = vrot.lane.b32.xlu0 %v114, 8
  %v1553 = vpop.permute.xlu0 %1552
  %1554 = vrot.lane.b32.xlu0 %v115, 8
  %v1555 = vpop.permute.xlu0 %1554
  %1556 = vrot.lane.b32.xlu0 %v118, 8
  %v1557 = vpop.permute.xlu0 %1556
  %1558 = vrot.lane.b32.xlu0 %v119, 8
  %v1559 = vpop.permute.xlu0 %1558
  %1560 = vrot.lane.b32.xlu0 %v120, 8
  %v1561 = vpop.permute.xlu0 %1560
  %1562 = vrot.lane.b32.xlu0 %v121, 8
  %v1563 = vpop.permute.xlu0 %1562
  %1564 = vrot.lane.b32.xlu0 %v122, 8
  %v1565 = vpop.permute.xlu0 %1564
  %1566 = vrot.lane.b32.xlu0 %v123, 8
  %v1567 = vpop.permute.xlu0 %1566
  %1568 = vrot.lane.b32.xlu0 %v124, 8
  %v1569 = vpop.permute.xlu0 %1568
  %1570 = vrot.lane.b32.xlu0 %v125, 8
  %v1571 = vpop.permute.xlu0 %1570
  %1572 = vrot.lane.b32.xlu0 %v126, 8
  %v1573 = vpop.permute.xlu0 %1572
  %1574 = vrot.lane.b32.xlu0 %v127, 8
  %v1575 = vpop.permute.xlu0 %1574
  %1576 = vrot.lane.b32.xlu0 %v128, 8
  %v1577 = vpop.permute.xlu0 %1576
  %1578 = vrot.lane.b32.xlu0 %v129, 8
  %v1579 = vpop.permute.xlu0 %1578
  %1580 = vrot.lane.b32.xlu0 %v130, 8
  %v1581 = vpop.permute.xlu0 %1580
  %1582 = vrot.lane.b32.xlu0 %v131, 8
  %v1583 = vpop.permute.xlu0 %1582
  %1584 = vrot.lane.b32.xlu0 %v132, 8
  %v1585 = vpop.permute.xlu0 %1584
  %1586 = vrot.lane.b32.xlu0 %v133, 8
  %v1587 = vpop.permute.xlu0 %1586
  %1588 = vrot.lane.b32.xlu0 %v136, 8
  %v1589 = vpop.permute.xlu0 %1588
  %1590 = vrot.lane.b32.xlu0 %v137, 8
  %v1591 = vpop.permute.xlu0 %1590
  %1592 = vrot.lane.b32.xlu0 %v138, 8
  %v1593 = vpop.permute.xlu0 %1592
  %1594 = vrot.lane.b32.xlu0 %v139, 8
  %v1595 = vpop.permute.xlu0 %1594
  %1596 = vrot.lane.b32.xlu0 %v140, 8
  %v1597 = vpop.permute.xlu0 %1596
  %1598 = vrot.lane.b32.xlu0 %v141, 8
  %v1599 = vpop.permute.xlu0 %1598
  %1600 = vrot.lane.b32.xlu0 %v142, 8
  %v1601 = vpop.permute.xlu0 %1600
  %1602 = vrot.lane.b32.xlu0 %v143, 8
  %v1603 = vpop.permute.xlu0 %1602
  %1604 = vrot.lane.b32.xlu0 %v144, 8
  %v1605 = vpop.permute.xlu0 %1604
  %1606 = vrot.lane.b32.xlu0 %v145, 8
  %v1607 = vpop.permute.xlu0 %1606
  %1608 = vrot.lane.b32.xlu0 %v146, 8
  %v1609 = vpop.permute.xlu0 %1608
  %1610 = vrot.lane.b32.xlu0 %v147, 8
  %v1611 = vpop.permute.xlu0 %1610
  %1612 = vrot.lane.b32.xlu0 %v148, 8
  %v1613 = vpop.permute.xlu0 %1612
  %1614 = vrot.lane.b32.xlu0 %v149, 8
  %v1615 = vpop.permute.xlu0 %1614
  %1616 = vrot.lane.b32.xlu0 %v150, 8
  %v1617 = vpop.permute.xlu0 %1616
  %1618 = vrot.lane.b32.xlu0 %v151, 8
  %v1619 = vpop.permute.xlu0 %1618
  %1620 = vrot.lane.b32.xlu0 %v154, 8
  %v1621 = vpop.permute.xlu0 %1620
  %1622 = vrot.lane.b32.xlu0 %v155, 8
  %v1623 = vpop.permute.xlu0 %1622
  %1624 = vrot.lane.b32.xlu0 %v156, 8
  %v1625 = vpop.permute.xlu0 %1624
  %1626 = vrot.lane.b32.xlu0 %v157, 8
  %v1627 = vpop.permute.xlu0 %1626
  %1628 = vrot.lane.b32.xlu0 %v158, 8
  %v1629 = vpop.permute.xlu0 %1628
  %1630 = vrot.lane.b32.xlu0 %v159, 8
  %v1631 = vpop.permute.xlu0 %1630
  %1632 = vrot.lane.b32.xlu0 %v160, 8
  %v1633 = vpop.permute.xlu0 %1632
  %1634 = vrot.lane.b32.xlu0 %v161, 8
  %v1635 = vpop.permute.xlu0 %1634
  %1636 = vrot.lane.b32.xlu0 %v162, 8
  %v1637 = vpop.permute.xlu0 %1636
  %1638 = vrot.lane.b32.xlu0 %v163, 8
  %v1639 = vpop.permute.xlu0 %1638
  %1640 = vrot.lane.b32.xlu0 %v164, 8
  %v1641 = vpop.permute.xlu0 %1640
  %1642 = vrot.lane.b32.xlu0 %v165, 8
  %v1643 = vpop.permute.xlu0 %1642
  %1644 = vrot.lane.b32.xlu0 %v166, 8
  %v1645 = vpop.permute.xlu0 %1644
  %1646 = vrot.lane.b32.xlu0 %v167, 8
  %v1647 = vpop.permute.xlu0 %1646
  %1648 = vrot.lane.b32.xlu0 %v168, 8
  %v1649 = vpop.permute.xlu0 %1648
  %1650 = vrot.lane.b32.xlu0 %v169, 8
  %v1651 = vpop.permute.xlu0 %1650
  %1652 = vrot.lane.b32.xlu0 %v172, 8
  %v1653 = vpop.permute.xlu0 %1652
  %1654 = vrot.lane.b32.xlu0 %v173, 8
  %v1655 = vpop.permute.xlu0 %1654
  %1656 = vrot.lane.b32.xlu0 %v174, 8
  %v1657 = vpop.permute.xlu0 %1656
  %1658 = vrot.lane.b32.xlu0 %v175, 8
  %v1659 = vpop.permute.xlu0 %1658
  %1660 = vrot.lane.b32.xlu0 %v176, 8
  %v1661 = vpop.permute.xlu0 %1660
  %1662 = vrot.lane.b32.xlu0 %v177, 8
  %v1663 = vpop.permute.xlu0 %1662
  %1664 = vrot.lane.b32.xlu0 %v178, 8
  %v1665 = vpop.permute.xlu0 %1664
  %1666 = vrot.lane.b32.xlu0 %v179, 8
  %v1667 = vpop.permute.xlu0 %1666
  %1668 = vrot.lane.b32.xlu0 %v180, 8
  %v1669 = vpop.permute.xlu0 %1668
  %1670 = vrot.lane.b32.xlu0 %v181, 8
  %v1671 = vpop.permute.xlu0 %1670
  %1672 = vrot.lane.b32.xlu0 %v182, 8
  %v1673 = vpop.permute.xlu0 %1672
  %1674 = vrot.lane.b32.xlu0 %v183, 8
  %v1675 = vpop.permute.xlu0 %1674
  %1676 = vrot.lane.b32.xlu0 %v184, 8
  %v1677 = vpop.permute.xlu0 %1676
  %1678 = vrot.lane.b32.xlu0 %v185, 8
  %v1679 = vpop.permute.xlu0 %1678
  %1680 = vrot.lane.b32.xlu0 %v186, 8
  %v1681 = vpop.permute.xlu0 %1680
  %1682 = vrot.lane.b32.xlu0 %v187, 8
  %v1683 = vpop.permute.xlu0 %1682
  %1684 = vrot.lane.b32.xlu0 %v190, 8
  %v1685 = vpop.permute.xlu0 %1684
  %1686 = vrot.lane.b32.xlu0 %v191, 8
  %v1687 = vpop.permute.xlu0 %1686
  %1688 = vrot.lane.b32.xlu0 %v192, 8
  %v1689 = vpop.permute.xlu0 %1688
  %1690 = vrot.lane.b32.xlu0 %v193, 8
  %v1691 = vpop.permute.xlu0 %1690
  %1692 = vrot.lane.b32.xlu0 %v194, 8
  %v1693 = vpop.permute.xlu0 %1692
  %1694 = vrot.lane.b32.xlu0 %v195, 8
  %v1695 = vpop.permute.xlu0 %1694
  %1696 = vrot.lane.b32.xlu0 %v196, 8
  %v1697 = vpop.permute.xlu0 %1696
  %1698 = vrot.lane.b32.xlu0 %v197, 8
  %v1699 = vpop.permute.xlu0 %1698
  %1700 = vrot.lane.b32.xlu0 %v198, 8
  %v1701 = vpop.permute.xlu0 %1700
  %1702 = vrot.lane.b32.xlu0 %v199, 8
  %v1703 = vpop.permute.xlu0 %1702
  %1704 = vrot.lane.b32.xlu0 %v200, 8
  %v1705 = vpop.permute.xlu0 %1704
  %1706 = vrot.lane.b32.xlu0 %v201, 8
  %v1707 = vpop.permute.xlu0 %1706
  %1708 = vrot.lane.b32.xlu0 %v202, 8
  %v1709 = vpop.permute.xlu0 %1708
  %1710 = vrot.lane.b32.xlu0 %v203, 8
  %v1711 = vpop.permute.xlu0 %1710
  %1712 = vrot.lane.b32.xlu0 %v204, 8
  %v1713 = vpop.permute.xlu0 %1712
  %1714 = vrot.lane.b32.xlu0 %v205, 8
  %v1715 = vpop.permute.xlu0 %1714
  %1716 = vrot.lane.b32.xlu0 %v208, 8
  %v1717 = vpop.permute.xlu0 %1716
  %1718 = vrot.lane.b32.xlu0 %v209, 8
  %v1719 = vpop.permute.xlu0 %1718
  %1720 = vrot.lane.b32.xlu0 %v210, 8
  %v1721 = vpop.permute.xlu0 %1720
  %1722 = vrot.lane.b32.xlu0 %v211, 8
  %v1723 = vpop.permute.xlu0 %1722
  %1724 = vrot.lane.b32.xlu0 %v212, 8
  %v1725 = vpop.permute.xlu0 %1724
  %1726 = vrot.lane.b32.xlu0 %v213, 8
  %v1727 = vpop.permute.xlu0 %1726
  %1728 = vrot.lane.b32.xlu0 %v214, 8
  %v1729 = vpop.permute.xlu0 %1728
  %1730 = vrot.lane.b32.xlu0 %v215, 8
  %v1731 = vpop.permute.xlu0 %1730
  %1732 = vrot.lane.b32.xlu0 %v216, 8
  %v1733 = vpop.permute.xlu0 %1732
  %1734 = vrot.lane.b32.xlu0 %v217, 8
  %v1735 = vpop.permute.xlu0 %1734
  %1736 = vrot.lane.b32.xlu0 %v218, 8
  %v1737 = vpop.permute.xlu0 %1736
  %1738 = vrot.lane.b32.xlu0 %v219, 8
  %v1739 = vpop.permute.xlu0 %1738
  %1740 = vrot.lane.b32.xlu0 %v220, 8
  %v1741 = vpop.permute.xlu0 %1740
  %1742 = vrot.lane.b32.xlu0 %v221, 8
  %v1743 = vpop.permute.xlu0 %1742
  %1744 = vrot.lane.b32.xlu0 %v222, 8
  %v1745 = vpop.permute.xlu0 %1744
  %1746 = vrot.lane.b32.xlu0 %v223, 8
  %v1747 = vpop.permute.xlu0 %1746
  %1748 = vrot.lane.b32.xlu0 %v226, 8
  %v1749 = vpop.permute.xlu0 %1748
  %1750 = vrot.lane.b32.xlu0 %v227, 8
  %v1751 = vpop.permute.xlu0 %1750
  %1752 = vrot.lane.b32.xlu0 %v228, 8
  %v1753 = vpop.permute.xlu0 %1752
  %1754 = vrot.lane.b32.xlu0 %v229, 8
  %v1755 = vpop.permute.xlu0 %1754
  %1756 = vrot.lane.b32.xlu0 %v230, 8
  %v1757 = vpop.permute.xlu0 %1756
  %1758 = vrot.lane.b32.xlu0 %v231, 8
  %v1759 = vpop.permute.xlu0 %1758
  %1760 = vrot.lane.b32.xlu0 %v232, 8
  %v1761 = vpop.permute.xlu0 %1760
  %1762 = vrot.lane.b32.xlu0 %v233, 8
  %v1763 = vpop.permute.xlu0 %1762
  %1764 = vrot.lane.b32.xlu0 %v234, 8
  %v1765 = vpop.permute.xlu0 %1764
  %1766 = vrot.lane.b32.xlu0 %v235, 8
  %v1767 = vpop.permute.xlu0 %1766
  %1768 = vrot.lane.b32.xlu0 %v236, 8
  %v1769 = vpop.permute.xlu0 %1768
  %1770 = vrot.lane.b32.xlu0 %v237, 8
  %v1771 = vpop.permute.xlu0 %1770
  %1772 = vrot.lane.b32.xlu0 %v238, 8
  %v1773 = vpop.permute.xlu0 %1772
  %1774 = vrot.lane.b32.xlu0 %v239, 8
  %v1775 = vpop.permute.xlu0 %1774
  %1776 = vrot.lane.b32.xlu0 %v240, 8
  %v1777 = vpop.permute.xlu0 %1776
  %1778 = vrot.lane.b32.xlu0 %v241, 8
  %v1779 = vpop.permute.xlu0 %1778
  %1780 = vrot.lane.b32.xlu0 %v244, 8
  %v1781 = vpop.permute.xlu0 %1780
  %1782 = vrot.lane.b32.xlu0 %v245, 8
  %v1783 = vpop.permute.xlu0 %1782
  %1784 = vrot.lane.b32.xlu0 %v246, 8
  %v1785 = vpop.permute.xlu0 %1784
  %1786 = vrot.lane.b32.xlu0 %v247, 8
  %v1787 = vpop.permute.xlu0 %1786
  %1788 = vrot.lane.b32.xlu0 %v248, 8
  %v1789 = vpop.permute.xlu0 %1788
  %1790 = vrot.lane.b32.xlu0 %v249, 8
  %v1791 = vpop.permute.xlu0 %1790
  %1792 = vrot.lane.b32.xlu0 %v250, 8
  %v1793 = vpop.permute.xlu0 %1792
  %1794 = vrot.lane.b32.xlu0 %v251, 8
  %v1795 = vpop.permute.xlu0 %1794
  %1796 = vrot.lane.b32.xlu0 %v252, 8
  %v1797 = vpop.permute.xlu0 %1796
  %1798 = vrot.lane.b32.xlu0 %v253, 8
  %v1799 = vpop.permute.xlu0 %1798
  %1800 = vrot.lane.b32.xlu0 %v254, 8
  %v1801 = vpop.permute.xlu0 %1800
  %1802 = vrot.lane.b32.xlu0 %v255, 8
  %v1803 = vpop.permute.xlu0 %1802
  %1804 = vrot.lane.b32.xlu0 %v256, 8
  %v1805 = vpop.permute.xlu0 %1804
  %1806 = vrot.lane.b32.xlu0 %v257, 8
  %v1807 = vpop.permute.xlu0 %1806
  %1808 = vrot.lane.b32.xlu0 %v258, 8
  %v1809 = vpop.permute.xlu0 %1808
  %1810 = vrot.lane.b32.xlu0 %v259, 8
  %v1811 = vpop.permute.xlu0 %1810
  %1812 = vrot.lane.b32.xlu0 %v262, 8
  %v1813 = vpop.permute.xlu0 %1812
  %1814 = vrot.lane.b32.xlu0 %v263, 8
  %v1815 = vpop.permute.xlu0 %1814
  %1816 = vrot.lane.b32.xlu0 %v264, 8
  %v1817 = vpop.permute.xlu0 %1816
  %1818 = vrot.lane.b32.xlu0 %v265, 8
  %v1819 = vpop.permute.xlu0 %1818
  %1820 = vrot.lane.b32.xlu0 %v266, 8
  %v1821 = vpop.permute.xlu0 %1820
  %1822 = vrot.lane.b32.xlu0 %v267, 8
  %v1823 = vpop.permute.xlu0 %1822
  %1824 = vrot.lane.b32.xlu0 %v268, 8
  %v1825 = vpop.permute.xlu0 %1824
  %1826 = vrot.lane.b32.xlu0 %v269, 8
  %v1827 = vpop.permute.xlu0 %1826
  %1828 = vrot.lane.b32.xlu0 %v270, 8
  %v1829 = vpop.permute.xlu0 %1828
  %1830 = vrot.lane.b32.xlu0 %v271, 8
  %v1831 = vpop.permute.xlu0 %1830
  %1832 = vrot.lane.b32.xlu0 %v272, 8
  %v1833 = vpop.permute.xlu0 %1832
  %1834 = vrot.lane.b32.xlu0 %v273, 8
  %v1835 = vpop.permute.xlu0 %1834
  %1836 = vrot.lane.b32.xlu0 %v274, 8
  %v1837 = vpop.permute.xlu0 %1836
  %1838 = vrot.lane.b32.xlu0 %v275, 8
  %v1839 = vpop.permute.xlu0 %1838
  %1840 = vrot.lane.b32.xlu0 %v276, 8
  %v1841 = vpop.permute.xlu0 %1840
  %1842 = vrot.lane.b32.xlu0 %v277, 8
  %v1843 = vpop.permute.xlu0 %1842
  %1844 = vrot.lane.b32.xlu0 %v280, 8
  %v1845 = vpop.permute.xlu0 %1844
  %1846 = vrot.lane.b32.xlu0 %v281, 8
  %v1847 = vpop.permute.xlu0 %1846
  %1848 = vrot.lane.b32.xlu0 %v282, 8
  %v1849 = vpop.permute.xlu0 %1848
  %1850 = vrot.lane.b32.xlu0 %v283, 8
  %v1851 = vpop.permute.xlu0 %1850
  %1852 = vrot.lane.b32.xlu0 %v284, 8
  %v1853 = vpop.permute.xlu0 %1852
  %1854 = vrot.lane.b32.xlu0 %v285, 8
  %v1855 = vpop.permute.xlu0 %1854
  %1856 = vrot.lane.b32.xlu0 %v286, 8
  %v1857 = vpop.permute.xlu0 %1856
  %1858 = vrot.lane.b32.xlu0 %v287, 8
  %v1859 = vpop.permute.xlu0 %1858
  %1860 = vrot.lane.b32.xlu0 %v288, 8
  %v1861 = vpop.permute.xlu0 %1860
  %1862 = vrot.lane.b32.xlu0 %v289, 8
  %v1863 = vpop.permute.xlu0 %1862
  %1864 = vrot.lane.b32.xlu0 %v290, 8
  %v1865 = vpop.permute.xlu0 %1864
  %1866 = vrot.lane.b32.xlu0 %v291, 8
  %v1867 = vpop.permute.xlu0 %1866
  %1868 = vrot.lane.b32.xlu0 %v292, 8
  %v1869 = vpop.permute.xlu0 %1868
  %1870 = vrot.lane.b32.xlu0 %v293, 8
  %v1871 = vpop.permute.xlu0 %1870
  %1872 = vrot.lane.b32.xlu0 %v294, 8
  %v1873 = vpop.permute.xlu0 %1872
  %1874 = vrot.lane.b32.xlu0 %v295, 8
  %v1875 = vpop.permute.xlu0 %1874
  %1876 = vrot.lane.b32.xlu0 %v298, 8
  %v1877 = vpop.permute.xlu0 %1876
  %1878 = vrot.lane.b32.xlu0 %v299, 8
  %v1879 = vpop.permute.xlu0 %1878
  %1880 = vrot.lane.b32.xlu0 %v300, 8
  %v1881 = vpop.permute.xlu0 %1880
  %1882 = vrot.lane.b32.xlu0 %v301, 8
  %v1883 = vpop.permute.xlu0 %1882
  %1884 = vrot.lane.b32.xlu0 %v302, 8
  %v1885 = vpop.permute.xlu0 %1884
  %1886 = vrot.lane.b32.xlu0 %v303, 8
  %v1887 = vpop.permute.xlu0 %1886
  %1888 = vrot.lane.b32.xlu0 %v304, 8
  %v1889 = vpop.permute.xlu0 %1888
  %1890 = vrot.lane.b32.xlu0 %v305, 8
  %v1891 = vpop.permute.xlu0 %1890
  %1892 = vrot.lane.b32.xlu0 %v306, 8
  %v1893 = vpop.permute.xlu0 %1892
  %1894 = vrot.lane.b32.xlu0 %v307, 8
  %v1895 = vpop.permute.xlu0 %1894
  %1896 = vrot.lane.b32.xlu0 %v308, 8
  %v1897 = vpop.permute.xlu0 %1896
  %1898 = vrot.lane.b32.xlu0 %v309, 8
  %v1899 = vpop.permute.xlu0 %1898
  %1900 = vrot.lane.b32.xlu0 %v310, 8
  %v1901 = vpop.permute.xlu0 %1900
  %1902 = vrot.lane.b32.xlu0 %v311, 8
  %v1903 = vpop.permute.xlu0 %1902
  %1904 = vrot.lane.b32.xlu0 %v312, 8
  %v1905 = vpop.permute.xlu0 %1904
  %1906 = vrot.lane.b32.xlu0 %v313, 8
  %v1907 = vpop.permute.xlu0 %1906
  %2195 = vrot.lane.b32.xlu0 %v44, 12
  %v2196 = vpop.permute.xlu0 %2195
  %2197 = vrot.lane.b32.xlu0 %v45, 12
  %v2198 = vpop.permute.xlu0 %2197
  %2199 = vrot.lane.b32.xlu0 %v46, 12
  %v2200 = vpop.permute.xlu0 %2199
  %2201 = vrot.lane.b32.xlu0 %v47, 12
  %v2202 = vpop.permute.xlu0 %2201
  %2203 = vrot.lane.b32.xlu0 %v48, 12
  %v2204 = vpop.permute.xlu0 %2203
  %2205 = vrot.lane.b32.xlu0 %v49, 12
  %v2206 = vpop.permute.xlu0 %2205
  %2207 = vrot.lane.b32.xlu0 %v50, 12
  %v2208 = vpop.permute.xlu0 %2207
  %2209 = vrot.lane.b32.xlu0 %v51, 12
  %v2210 = vpop.permute.xlu0 %2209
  %2211 = vrot.lane.b32.xlu0 %v52, 12
  %v2212 = vpop.permute.xlu0 %2211
  %2213 = vrot.lane.b32.xlu0 %v53, 12
  %v2214 = vpop.permute.xlu0 %2213
  %2215 = vrot.lane.b32.xlu0 %v54, 12
  %v2216 = vpop.permute.xlu0 %2215
  %2217 = vrot.lane.b32.xlu0 %v55, 12
  %v2218 = vpop.permute.xlu0 %2217
  %2219 = vrot.lane.b32.xlu0 %v56, 12
  %v2220 = vpop.permute.xlu0 %2219
  %2221 = vrot.lane.b32.xlu0 %v57, 12
  %v2222 = vpop.permute.xlu0 %2221
  %2223 = vrot.lane.b32.xlu0 %v58, 12
  %v2224 = vpop.permute.xlu0 %2223
  %2225 = vrot.lane.b32.xlu0 %v59, 12
  %v2226 = vpop.permute.xlu0 %2225
  %2227 = vrot.lane.b32.xlu0 %v62, 12
  %v2228 = vpop.permute.xlu0 %2227
  %2229 = vrot.lane.b32.xlu0 %v63, 12
  %v2230 = vpop.permute.xlu0 %2229
  %2231 = vrot.lane.b32.xlu0 %v64, 12
  %v2232 = vpop.permute.xlu0 %2231
  %2233 = vrot.lane.b32.xlu0 %v65, 12
  %v2234 = vpop.permute.xlu0 %2233
  %2235 = vrot.lane.b32.xlu0 %v66, 12
  %v2236 = vpop.permute.xlu0 %2235
  %2237 = vrot.lane.b32.xlu0 %v67, 12
  %v2238 = vpop.permute.xlu0 %2237
  %2239 = vrot.lane.b32.xlu0 %v68, 12
  %v2240 = vpop.permute.xlu0 %2239
  %2241 = vrot.lane.b32.xlu0 %v69, 12
  %v2242 = vpop.permute.xlu0 %2241
  %2243 = vrot.lane.b32.xlu0 %v70, 12
  %v2244 = vpop.permute.xlu0 %2243
  %2245 = vrot.lane.b32.xlu0 %v71, 12
  %v2246 = vpop.permute.xlu0 %2245
  %2247 = vrot.lane.b32.xlu0 %v72, 12
  %v2248 = vpop.permute.xlu0 %2247
  %2249 = vrot.lane.b32.xlu0 %v73, 12
  %v2250 = vpop.permute.xlu0 %2249
  %2251 = vrot.lane.b32.xlu0 %v74, 12
  %v2252 = vpop.permute.xlu0 %2251
  %2253 = vrot.lane.b32.xlu0 %v75, 12
  %v2254 = vpop.permute.xlu0 %2253
  %2255 = vrot.lane.b32.xlu0 %v76, 12
  %v2256 = vpop.permute.xlu0 %2255
  %2257 = vrot.lane.b32.xlu0 %v77, 12
  %v2258 = vpop.permute.xlu0 %2257
  %2259 = vrot.lane.b32.xlu0 %v80, 12
  %v2260 = vpop.permute.xlu0 %2259
  %2261 = vrot.lane.b32.xlu0 %v81, 12
  %v2262 = vpop.permute.xlu0 %2261
  %2263 = vrot.lane.b32.xlu0 %v82, 12
  %v2264 = vpop.permute.xlu0 %2263
  %2265 = vrot.lane.b32.xlu0 %v83, 12
  %v2266 = vpop.permute.xlu0 %2265
  %2267 = vrot.lane.b32.xlu0 %v84, 12
  %v2268 = vpop.permute.xlu0 %2267
  %2269 = vrot.lane.b32.xlu0 %v85, 12
  %v2270 = vpop.permute.xlu0 %2269
  %2271 = vrot.lane.b32.xlu0 %v86, 12
  %v2272 = vpop.permute.xlu0 %2271
  %2273 = vrot.lane.b32.xlu0 %v87, 12
  %v2274 = vpop.permute.xlu0 %2273
  %2275 = vrot.lane.b32.xlu0 %v88, 12
  %v2276 = vpop.permute.xlu0 %2275
  %2277 = vrot.lane.b32.xlu0 %v89, 12
  %v2278 = vpop.permute.xlu0 %2277
  %2279 = vrot.lane.b32.xlu0 %v90, 12
  %v2280 = vpop.permute.xlu0 %2279
  %2281 = vrot.lane.b32.xlu0 %v91, 12
  %v2282 = vpop.permute.xlu0 %2281
  %2283 = vrot.lane.b32.xlu0 %v92, 12
  %v2284 = vpop.permute.xlu0 %2283
  %2285 = vrot.lane.b32.xlu0 %v93, 12
  %v2286 = vpop.permute.xlu0 %2285
  %2287 = vrot.lane.b32.xlu0 %v94, 12
  %v2288 = vpop.permute.xlu0 %2287
  %2289 = vrot.lane.b32.xlu0 %v95, 12
  %v2290 = vpop.permute.xlu0 %2289
  %2291 = vrot.lane.b32.xlu0 %v98, 12
  %v2292 = vpop.permute.xlu0 %2291
  %2293 = vrot.lane.b32.xlu0 %v99, 12
  %v2294 = vpop.permute.xlu0 %2293
  %2295 = vrot.lane.b32.xlu0 %v100, 12
  %v2296 = vpop.permute.xlu0 %2295
  %2297 = vrot.lane.b32.xlu0 %v101, 12
  %v2298 = vpop.permute.xlu0 %2297
  %2299 = vrot.lane.b32.xlu0 %v102, 12
  %v2300 = vpop.permute.xlu0 %2299
  %2301 = vrot.lane.b32.xlu0 %v103, 12
  %v2302 = vpop.permute.xlu0 %2301
  %2303 = vrot.lane.b32.xlu0 %v104, 12
  %v2304 = vpop.permute.xlu0 %2303
  %2305 = vrot.lane.b32.xlu0 %v105, 12
  %v2306 = vpop.permute.xlu0 %2305
  %2307 = vrot.lane.b32.xlu0 %v106, 12
  %v2308 = vpop.permute.xlu0 %2307
  %2309 = vrot.lane.b32.xlu0 %v107, 12
  %v2310 = vpop.permute.xlu0 %2309
  %2311 = vrot.lane.b32.xlu0 %v108, 12
  %v2312 = vpop.permute.xlu0 %2311
  %2313 = vrot.lane.b32.xlu0 %v109, 12
  %v2314 = vpop.permute.xlu0 %2313
  %2315 = vrot.lane.b32.xlu0 %v110, 12
  %v2316 = vpop.permute.xlu0 %2315
  %2317 = vrot.lane.b32.xlu0 %v111, 12
  %v2318 = vpop.permute.xlu0 %2317
  %2319 = vrot.lane.b32.xlu0 %v112, 12
  %v2320 = vpop.permute.xlu0 %2319
  %2321 = vrot.lane.b32.xlu0 %v113, 12
  %v2322 = vpop.permute.xlu0 %2321
  %2323 = vrot.lane.b32.xlu0 %v116, 12
  %v2324 = vpop.permute.xlu0 %2323
  %2325 = vrot.lane.b32.xlu0 %v117, 12
  %v2326 = vpop.permute.xlu0 %2325
  %2327 = vrot.lane.b32.xlu0 %v118, 12
  %v2328 = vpop.permute.xlu0 %2327
  %2329 = vrot.lane.b32.xlu0 %v119, 12
  %v2330 = vpop.permute.xlu0 %2329
  %2331 = vrot.lane.b32.xlu0 %v120, 12
  %v2332 = vpop.permute.xlu0 %2331
  %2333 = vrot.lane.b32.xlu0 %v121, 12
  %v2334 = vpop.permute.xlu0 %2333
  %2335 = vrot.lane.b32.xlu0 %v122, 12
  %v2336 = vpop.permute.xlu0 %2335
  %2337 = vrot.lane.b32.xlu0 %v123, 12
  %v2338 = vpop.permute.xlu0 %2337
  %2339 = vrot.lane.b32.xlu0 %v124, 12
  %v2340 = vpop.permute.xlu0 %2339
  %2341 = vrot.lane.b32.xlu0 %v125, 12
  %v2342 = vpop.permute.xlu0 %2341
  %2343 = vrot.lane.b32.xlu0 %v126, 12
  %v2344 = vpop.permute.xlu0 %2343
  %2345 = vrot.lane.b32.xlu0 %v127, 12
  %v2346 = vpop.permute.xlu0 %2345
  %2347 = vrot.lane.b32.xlu0 %v128, 12
  %v2348 = vpop.permute.xlu0 %2347
  %2349 = vrot.lane.b32.xlu0 %v129, 12
  %v2350 = vpop.permute.xlu0 %2349
  %2351 = vrot.lane.b32.xlu0 %v130, 12
  %v2352 = vpop.permute.xlu0 %2351
  %2353 = vrot.lane.b32.xlu0 %v131, 12
  %v2354 = vpop.permute.xlu0 %2353
  %2355 = vrot.lane.b32.xlu0 %v134, 12
  %v2356 = vpop.permute.xlu0 %2355
  %2357 = vrot.lane.b32.xlu0 %v135, 12
  %v2358 = vpop.permute.xlu0 %2357
  %2359 = vrot.lane.b32.xlu0 %v136, 12
  %v2360 = vpop.permute.xlu0 %2359
  %2361 = vrot.lane.b32.xlu0 %v137, 12
  %v2362 = vpop.permute.xlu0 %2361
  %2363 = vrot.lane.b32.xlu0 %v138, 12
  %v2364 = vpop.permute.xlu0 %2363
  %2365 = vrot.lane.b32.xlu0 %v139, 12
  %v2366 = vpop.permute.xlu0 %2365
  %2367 = vrot.lane.b32.xlu0 %v140, 12
  %v2368 = vpop.permute.xlu0 %2367
  %2369 = vrot.lane.b32.xlu0 %v141, 12
  %v2370 = vpop.permute.xlu0 %2369
  %2371 = vrot.lane.b32.xlu0 %v142, 12
  %v2372 = vpop.permute.xlu0 %2371
  %2373 = vrot.lane.b32.xlu0 %v143, 12
  %v2374 = vpop.permute.xlu0 %2373
  %2375 = vrot.lane.b32.xlu0 %v144, 12
  %v2376 = vpop.permute.xlu0 %2375
  %2377 = vrot.lane.b32.xlu0 %v145, 12
  %v2378 = vpop.permute.xlu0 %2377
  %2379 = vrot.lane.b32.xlu0 %v146, 12
  %v2380 = vpop.permute.xlu0 %2379
  %2381 = vrot.lane.b32.xlu0 %v147, 12
  %v2382 = vpop.permute.xlu0 %2381
  %2383 = vrot.lane.b32.xlu0 %v148, 12
  %v2384 = vpop.permute.xlu0 %2383
  %2385 = vrot.lane.b32.xlu0 %v149, 12
  %v2386 = vpop.permute.xlu0 %2385
  %2387 = vrot.lane.b32.xlu0 %v152, 12
  %v2388 = vpop.permute.xlu0 %2387
  %2389 = vrot.lane.b32.xlu0 %v153, 12
  %v2390 = vpop.permute.xlu0 %2389
  %2391 = vrot.lane.b32.xlu0 %v154, 12
  %v2392 = vpop.permute.xlu0 %2391
  %2393 = vrot.lane.b32.xlu0 %v155, 12
  %v2394 = vpop.permute.xlu0 %2393
  %2395 = vrot.lane.b32.xlu0 %v156, 12
  %v2396 = vpop.permute.xlu0 %2395
  %2397 = vrot.lane.b32.xlu0 %v157, 12
  %v2398 = vpop.permute.xlu0 %2397
  %2399 = vrot.lane.b32.xlu0 %v158, 12
  %v2400 = vpop.permute.xlu0 %2399
  %2401 = vrot.lane.b32.xlu0 %v159, 12
  %v2402 = vpop.permute.xlu0 %2401
  %2403 = vrot.lane.b32.xlu0 %v160, 12
  %v2404 = vpop.permute.xlu0 %2403
  %2405 = vrot.lane.b32.xlu0 %v161, 12
  %v2406 = vpop.permute.xlu0 %2405
  %2407 = vrot.lane.b32.xlu0 %v162, 12
  %v2408 = vpop.permute.xlu0 %2407
  %2409 = vrot.lane.b32.xlu0 %v163, 12
  %v2410 = vpop.permute.xlu0 %2409
  %2411 = vrot.lane.b32.xlu0 %v164, 12
  %v2412 = vpop.permute.xlu0 %2411
  %2413 = vrot.lane.b32.xlu0 %v165, 12
  %v2414 = vpop.permute.xlu0 %2413
  %2415 = vrot.lane.b32.xlu0 %v166, 12
  %v2416 = vpop.permute.xlu0 %2415
  %2417 = vrot.lane.b32.xlu0 %v167, 12
  %v2418 = vpop.permute.xlu0 %2417
  %2419 = vrot.lane.b32.xlu0 %v170, 12
  %v2420 = vpop.permute.xlu0 %2419
  %2421 = vrot.lane.b32.xlu0 %v171, 12
  %v2422 = vpop.permute.xlu0 %2421
  %2423 = vrot.lane.b32.xlu0 %v172, 12
  %v2424 = vpop.permute.xlu0 %2423
  %2425 = vrot.lane.b32.xlu0 %v173, 12
  %v2426 = vpop.permute.xlu0 %2425
  %2427 = vrot.lane.b32.xlu0 %v174, 12
  %v2428 = vpop.permute.xlu0 %2427
  %2429 = vrot.lane.b32.xlu0 %v175, 12
  %v2430 = vpop.permute.xlu0 %2429
  %2431 = vrot.lane.b32.xlu0 %v176, 12
  %v2432 = vpop.permute.xlu0 %2431
  %2433 = vrot.lane.b32.xlu0 %v177, 12
  %v2434 = vpop.permute.xlu0 %2433
  %2435 = vrot.lane.b32.xlu0 %v178, 12
  %v2436 = vpop.permute.xlu0 %2435
  %2437 = vrot.lane.b32.xlu0 %v179, 12
  %v2438 = vpop.permute.xlu0 %2437
  %2439 = vrot.lane.b32.xlu0 %v180, 12
  %v2440 = vpop.permute.xlu0 %2439
  %2441 = vrot.lane.b32.xlu0 %v181, 12
  %v2442 = vpop.permute.xlu0 %2441
  %2443 = vrot.lane.b32.xlu0 %v182, 12
  %v2444 = vpop.permute.xlu0 %2443
  %2445 = vrot.lane.b32.xlu0 %v183, 12
  %v2446 = vpop.permute.xlu0 %2445
  %2447 = vrot.lane.b32.xlu0 %v184, 12
  %v2448 = vpop.permute.xlu0 %2447
  %2449 = vrot.lane.b32.xlu0 %v185, 12
  %v2450 = vpop.permute.xlu0 %2449
  %2451 = vrot.lane.b32.xlu0 %v188, 12
  %v2452 = vpop.permute.xlu0 %2451
  %2453 = vrot.lane.b32.xlu0 %v189, 12
  %v2454 = vpop.permute.xlu0 %2453
  %2455 = vrot.lane.b32.xlu0 %v190, 12
  %v2456 = vpop.permute.xlu0 %2455
  %2457 = vrot.lane.b32.xlu0 %v191, 12
  %v2458 = vpop.permute.xlu0 %2457
  %2459 = vrot.lane.b32.xlu0 %v192, 12
  %v2460 = vpop.permute.xlu0 %2459
  %2461 = vrot.lane.b32.xlu0 %v193, 12
  %v2462 = vpop.permute.xlu0 %2461
  %2463 = vrot.lane.b32.xlu0 %v194, 12
  %v2464 = vpop.permute.xlu0 %2463
  %2465 = vrot.lane.b32.xlu0 %v195, 12
  %v2466 = vpop.permute.xlu0 %2465
  %2467 = vrot.lane.b32.xlu0 %v196, 12
  %v2468 = vpop.permute.xlu0 %2467
  %2469 = vrot.lane.b32.xlu0 %v197, 12
  %v2470 = vpop.permute.xlu0 %2469
  %2471 = vrot.lane.b32.xlu0 %v198, 12
  %v2472 = vpop.permute.xlu0 %2471
  %2473 = vrot.lane.b32.xlu0 %v199, 12
  %v2474 = vpop.permute.xlu0 %2473
  %2475 = vrot.lane.b32.xlu0 %v200, 12
  %v2476 = vpop.permute.xlu0 %2475
  %2477 = vrot.lane.b32.xlu0 %v201, 12
  %v2478 = vpop.permute.xlu0 %2477
  %2479 = vrot.lane.b32.xlu0 %v202, 12
  %v2480 = vpop.permute.xlu0 %2479
  %2481 = vrot.lane.b32.xlu0 %v203, 12
  %v2482 = vpop.permute.xlu0 %2481
  %2483 = vrot.lane.b32.xlu0 %v206, 12
  %v2484 = vpop.permute.xlu0 %2483
  %2485 = vrot.lane.b32.xlu0 %v207, 12
  %v2486 = vpop.permute.xlu0 %2485
  %2487 = vrot.lane.b32.xlu0 %v208, 12
  %v2488 = vpop.permute.xlu0 %2487
  %2489 = vrot.lane.b32.xlu0 %v209, 12
  %v2490 = vpop.permute.xlu0 %2489
  %2491 = vrot.lane.b32.xlu0 %v210, 12
  %v2492 = vpop.permute.xlu0 %2491
  %2493 = vrot.lane.b32.xlu0 %v211, 12
  %v2494 = vpop.permute.xlu0 %2493
  %2495 = vrot.lane.b32.xlu0 %v212, 12
  %v2496 = vpop.permute.xlu0 %2495
  %2497 = vrot.lane.b32.xlu0 %v213, 12
  %v2498 = vpop.permute.xlu0 %2497
  %2499 = vrot.lane.b32.xlu0 %v214, 12
  %v2500 = vpop.permute.xlu0 %2499
  %2501 = vrot.lane.b32.xlu0 %v215, 12
  %v2502 = vpop.permute.xlu0 %2501
  %2503 = vrot.lane.b32.xlu0 %v216, 12
  %v2504 = vpop.permute.xlu0 %2503
  %2505 = vrot.lane.b32.xlu0 %v217, 12
  %v2506 = vpop.permute.xlu0 %2505
  %2507 = vrot.lane.b32.xlu0 %v218, 12
  %v2508 = vpop.permute.xlu0 %2507
  %2509 = vrot.lane.b32.xlu0 %v219, 12
  %v2510 = vpop.permute.xlu0 %2509
  %2511 = vrot.lane.b32.xlu0 %v220, 12
  %v2512 = vpop.permute.xlu0 %2511
  %2513 = vrot.lane.b32.xlu0 %v221, 12
  %v2514 = vpop.permute.xlu0 %2513
  %2515 = vrot.lane.b32.xlu0 %v224, 12
  %v2516 = vpop.permute.xlu0 %2515
  %2517 = vrot.lane.b32.xlu0 %v225, 12
  %v2518 = vpop.permute.xlu0 %2517
  %2519 = vrot.lane.b32.xlu0 %v226, 12
  %v2520 = vpop.permute.xlu0 %2519
  %2521 = vrot.lane.b32.xlu0 %v227, 12
  %v2522 = vpop.permute.xlu0 %2521
  %2523 = vrot.lane.b32.xlu0 %v228, 12
  %v2524 = vpop.permute.xlu0 %2523
  %2525 = vrot.lane.b32.xlu0 %v229, 12
  %v2526 = vpop.permute.xlu0 %2525
  %2527 = vrot.lane.b32.xlu0 %v230, 12
  %v2528 = vpop.permute.xlu0 %2527
  %2529 = vrot.lane.b32.xlu0 %v231, 12
  %v2530 = vpop.permute.xlu0 %2529
  %2531 = vrot.lane.b32.xlu0 %v232, 12
  %v2532 = vpop.permute.xlu0 %2531
  %2533 = vrot.lane.b32.xlu0 %v233, 12
  %v2534 = vpop.permute.xlu0 %2533
  %2535 = vrot.lane.b32.xlu0 %v234, 12
  %v2536 = vpop.permute.xlu0 %2535
  %2537 = vrot.lane.b32.xlu0 %v235, 12
  %v2538 = vpop.permute.xlu0 %2537
  %2539 = vrot.lane.b32.xlu0 %v236, 12
  %v2540 = vpop.permute.xlu0 %2539
  %2541 = vrot.lane.b32.xlu0 %v237, 12
  %v2542 = vpop.permute.xlu0 %2541
  %2543 = vrot.lane.b32.xlu0 %v238, 12
  %v2544 = vpop.permute.xlu0 %2543
  %2545 = vrot.lane.b32.xlu0 %v239, 12
  %v2546 = vpop.permute.xlu0 %2545
  %2547 = vrot.lane.b32.xlu0 %v242, 12
  %v2548 = vpop.permute.xlu0 %2547
  %2549 = vrot.lane.b32.xlu0 %v243, 12
  %v2550 = vpop.permute.xlu0 %2549
  %2551 = vrot.lane.b32.xlu0 %v244, 12
  %v2552 = vpop.permute.xlu0 %2551
  %2553 = vrot.lane.b32.xlu0 %v245, 12
  %v2554 = vpop.permute.xlu0 %2553
  %2555 = vrot.lane.b32.xlu0 %v246, 12
  %v2556 = vpop.permute.xlu0 %2555
  %2557 = vrot.lane.b32.xlu0 %v247, 12
  %v2558 = vpop.permute.xlu0 %2557
  %2559 = vrot.lane.b32.xlu0 %v248, 12
  %v2560 = vpop.permute.xlu0 %2559
  %2561 = vrot.lane.b32.xlu0 %v249, 12
  %v2562 = vpop.permute.xlu0 %2561
  %2563 = vrot.lane.b32.xlu0 %v250, 12
  %v2564 = vpop.permute.xlu0 %2563
  %2565 = vrot.lane.b32.xlu0 %v251, 12
  %v2566 = vpop.permute.xlu0 %2565
  %2567 = vrot.lane.b32.xlu0 %v252, 12
  %v2568 = vpop.permute.xlu0 %2567
  %2569 = vrot.lane.b32.xlu0 %v253, 12
  %v2570 = vpop.permute.xlu0 %2569
  %2571 = vrot.lane.b32.xlu0 %v254, 12
  %v2572 = vpop.permute.xlu0 %2571
  %2573 = vrot.lane.b32.xlu0 %v255, 12
  %v2574 = vpop.permute.xlu0 %2573
  %2575 = vrot.lane.b32.xlu0 %v256, 12
  %v2576 = vpop.permute.xlu0 %2575
  %2577 = vrot.lane.b32.xlu0 %v257, 12
  %v2578 = vpop.permute.xlu0 %2577
  %2579 = vrot.lane.b32.xlu0 %v260, 12
  %v2580 = vpop.permute.xlu0 %2579
  %2581 = vrot.lane.b32.xlu0 %v261, 12
  %v2582 = vpop.permute.xlu0 %2581
  %2583 = vrot.lane.b32.xlu0 %v262, 12
  %v2584 = vpop.permute.xlu0 %2583
  %2585 = vrot.lane.b32.xlu0 %v263, 12
  %v2586 = vpop.permute.xlu0 %2585
  %2587 = vrot.lane.b32.xlu0 %v264, 12
  %v2588 = vpop.permute.xlu0 %2587
  %2589 = vrot.lane.b32.xlu0 %v265, 12
  %v2590 = vpop.permute.xlu0 %2589
  %2591 = vrot.lane.b32.xlu0 %v266, 12
  %v2592 = vpop.permute.xlu0 %2591
  %2593 = vrot.lane.b32.xlu0 %v267, 12
  %v2594 = vpop.permute.xlu0 %2593
  %2595 = vrot.lane.b32.xlu0 %v268, 12
  %v2596 = vpop.permute.xlu0 %2595
  %2597 = vrot.lane.b32.xlu0 %v269, 12
  %v2598 = vpop.permute.xlu0 %2597
  %2599 = vrot.lane.b32.xlu0 %v270, 12
  %v2600 = vpop.permute.xlu0 %2599
  %2601 = vrot.lane.b32.xlu0 %v271, 12
  %v2602 = vpop.permute.xlu0 %2601
  %2603 = vrot.lane.b32.xlu0 %v272, 12
  %v2604 = vpop.permute.xlu0 %2603
  %2605 = vrot.lane.b32.xlu0 %v273, 12
  %v2606 = vpop.permute.xlu0 %2605
  %2607 = vrot.lane.b32.xlu0 %v274, 12
  %v2608 = vpop.permute.xlu0 %2607
  %2609 = vrot.lane.b32.xlu0 %v275, 12
  %v2610 = vpop.permute.xlu0 %2609
  %2611 = vrot.lane.b32.xlu0 %v278, 12
  %v2612 = vpop.permute.xlu0 %2611
  %2613 = vrot.lane.b32.xlu0 %v279, 12
  %v2614 = vpop.permute.xlu0 %2613
  %2615 = vrot.lane.b32.xlu0 %v280, 12
  %v2616 = vpop.permute.xlu0 %2615
  %2617 = vrot.lane.b32.xlu0 %v281, 12
  %v2618 = vpop.permute.xlu0 %2617
  %2619 = vrot.lane.b32.xlu0 %v282, 12
  %v2620 = vpop.permute.xlu0 %2619
  %2621 = vrot.lane.b32.xlu0 %v283, 12
  %v2622 = vpop.permute.xlu0 %2621
  %2623 = vrot.lane.b32.xlu0 %v284, 12
  %v2624 = vpop.permute.xlu0 %2623
  %2625 = vrot.lane.b32.xlu0 %v285, 12
  %v2626 = vpop.permute.xlu0 %2625
  %2627 = vrot.lane.b32.xlu0 %v286, 12
  %v2628 = vpop.permute.xlu0 %2627
  %2629 = vrot.lane.b32.xlu0 %v287, 12
  %v2630 = vpop.permute.xlu0 %2629
  %2631 = vrot.lane.b32.xlu0 %v288, 12
  %v2632 = vpop.permute.xlu0 %2631
  %2633 = vrot.lane.b32.xlu0 %v289, 12
  %v2634 = vpop.permute.xlu0 %2633
  %2635 = vrot.lane.b32.xlu0 %v290, 12
  %v2636 = vpop.permute.xlu0 %2635
  %2637 = vrot.lane.b32.xlu0 %v291, 12
  %v2638 = vpop.permute.xlu0 %2637
  %2639 = vrot.lane.b32.xlu0 %v292, 12
  %v2640 = vpop.permute.xlu0 %2639
  %2641 = vrot.lane.b32.xlu0 %v293, 12
  %v2642 = vpop.permute.xlu0 %2641
  %2643 = vrot.lane.b32.xlu0 %v296, 12
  %v2644 = vpop.permute.xlu0 %2643
  %2645 = vrot.lane.b32.xlu0 %v297, 12
  %v2646 = vpop.permute.xlu0 %2645
  %2647 = vrot.lane.b32.xlu0 %v298, 12
  %v2648 = vpop.permute.xlu0 %2647
  %2649 = vrot.lane.b32.xlu0 %v299, 12
  %v2650 = vpop.permute.xlu0 %2649
  %2651 = vrot.lane.b32.xlu0 %v300, 12
  %v2652 = vpop.permute.xlu0 %2651
  %2653 = vrot.lane.b32.xlu0 %v301, 12
  %v2654 = vpop.permute.xlu0 %2653
  %2655 = vrot.lane.b32.xlu0 %v302, 12
  %v2656 = vpop.permute.xlu0 %2655
  %2657 = vrot.lane.b32.xlu0 %v303, 12
  %v2658 = vpop.permute.xlu0 %2657
  %2659 = vrot.lane.b32.xlu0 %v304, 12
  %v2660 = vpop.permute.xlu0 %2659
  %2661 = vrot.lane.b32.xlu0 %v305, 12
  %v2662 = vpop.permute.xlu0 %2661
  %2663 = vrot.lane.b32.xlu0 %v306, 12
  %v2664 = vpop.permute.xlu0 %2663
  %2665 = vrot.lane.b32.xlu0 %v307, 12
  %v2666 = vpop.permute.xlu0 %2665
  %2667 = vrot.lane.b32.xlu0 %v308, 12
  %v2668 = vpop.permute.xlu0 %2667
  %2669 = vrot.lane.b32.xlu0 %v309, 12
  %v2670 = vpop.permute.xlu0 %2669
  %2671 = vrot.lane.b32.xlu0 %v310, 12
  %v2672 = vpop.permute.xlu0 %2671
  %2673 = vrot.lane.b32.xlu0 %v311, 12
  %v2674 = vpop.permute.xlu0 %2673
  %2675 = vrot.lane.b32.xlu0 %v314, 12
  %v2676 = vpop.permute.xlu0 %2675
  %2677 = vrot.lane.b32.xlu0 %v315, 12
  %v2678 = vpop.permute.xlu0 %2677
  %2679 = vrot.lane.b32.xlu0 %v316, 12
  %v2680 = vpop.permute.xlu0 %2679
  %2681 = vrot.lane.b32.xlu0 %v317, 12
  %v2682 = vpop.permute.xlu0 %2681
  %2683 = vrot.lane.b32.xlu0 %v318, 12
  %v2684 = vpop.permute.xlu0 %2683
  %2685 = vrot.lane.b32.xlu0 %v319, 12
  %v2686 = vpop.permute.xlu0 %2685
  %2687 = vrot.lane.b32.xlu0 %v320, 12
  %v2688 = vpop.permute.xlu0 %2687
  %2689 = vrot.lane.b32.xlu0 %v321, 12
  %v2690 = vpop.permute.xlu0 %2689
  %2691 = vrot.lane.b32.xlu0 %v322, 12
  %v2692 = vpop.permute.xlu0 %2691
  %2693 = vrot.lane.b32.xlu0 %v323, 12
  %v2694 = vpop.permute.xlu0 %2693
  %2695 = vrot.lane.b32.xlu0 %v324, 12
  %v2696 = vpop.permute.xlu0 %2695
  %2697 = vrot.lane.b32.xlu0 %v325, 12
  %v2698 = vpop.permute.xlu0 %2697
  %2699 = vrot.lane.b32.xlu0 %v326, 12
  %v2700 = vpop.permute.xlu0 %2699
  %2701 = vrot.lane.b32.xlu0 %v327, 12
  %v2702 = vpop.permute.xlu0 %2701
  %2703 = vrot.lane.b32.xlu0 %v328, 12
  %v2704 = vpop.permute.xlu0 %2703
  %2705 = vrot.lane.b32.xlu0 %v329, 12
  %v2706 = vpop.permute.xlu0 %2705
  %2964 = vrot.lane.b32.xlu0 %v45, 16
  %v2965 = vpop.permute.xlu0 %2964
  %2966 = vrot.lane.b32.xlu0 %v46, 16
  %v2967 = vpop.permute.xlu0 %2966
  %2968 = vrot.lane.b32.xlu0 %v47, 16
  %v2969 = vpop.permute.xlu0 %2968
  %2970 = vrot.lane.b32.xlu0 %v48, 16
  %v2971 = vpop.permute.xlu0 %2970
  %2972 = vrot.lane.b32.xlu0 %v49, 16
  %v2973 = vpop.permute.xlu0 %2972
  %2974 = vrot.lane.b32.xlu0 %v50, 16
  %v2975 = vpop.permute.xlu0 %2974
  %2976 = vrot.lane.b32.xlu0 %v51, 16
  %v2977 = vpop.permute.xlu0 %2976
  %2978 = vrot.lane.b32.xlu0 %v52, 16
  %v2979 = vpop.permute.xlu0 %2978
  %2980 = vrot.lane.b32.xlu0 %v53, 16
  %v2981 = vpop.permute.xlu0 %2980
  %2982 = vrot.lane.b32.xlu0 %v54, 16
  %v2983 = vpop.permute.xlu0 %2982
  %2984 = vrot.lane.b32.xlu0 %v55, 16
  %v2985 = vpop.permute.xlu0 %2984
  %2986 = vrot.lane.b32.xlu0 %v56, 16
  %v2987 = vpop.permute.xlu0 %2986
  %2988 = vrot.lane.b32.xlu0 %v57, 16
  %v2989 = vpop.permute.xlu0 %2988
  %2990 = vrot.lane.b32.xlu0 %v58, 16
  %v2991 = vpop.permute.xlu0 %2990
  %2992 = vrot.lane.b32.xlu0 %v59, 16
  %v2993 = vpop.permute.xlu0 %2992
  %2994 = vrot.lane.b32.xlu0 %v60, 16
  %v2995 = vpop.permute.xlu0 %2994
  %2996 = vrot.lane.b32.xlu0 %v63, 16
  %v2997 = vpop.permute.xlu0 %2996
  %2998 = vrot.lane.b32.xlu0 %v64, 16
  %v2999 = vpop.permute.xlu0 %2998
  %3000 = vrot.lane.b32.xlu0 %v65, 16
  %v3001 = vpop.permute.xlu0 %3000
  %3002 = vrot.lane.b32.xlu0 %v66, 16
  %v3003 = vpop.permute.xlu0 %3002
  %3004 = vrot.lane.b32.xlu0 %v67, 16
  %v3005 = vpop.permute.xlu0 %3004
  %3006 = vrot.lane.b32.xlu0 %v68, 16
  %v3007 = vpop.permute.xlu0 %3006
  %3008 = vrot.lane.b32.xlu0 %v69, 16
  %v3009 = vpop.permute.xlu0 %3008
  %3010 = vrot.lane.b32.xlu0 %v70, 16
  %v3011 = vpop.permute.xlu0 %3010
  %3012 = vrot.lane.b32.xlu0 %v71, 16
  %v3013 = vpop.permute.xlu0 %3012
  %3014 = vrot.lane.b32.xlu0 %v72, 16
  %v3015 = vpop.permute.xlu0 %3014
  %3016 = vrot.lane.b32.xlu0 %v73, 16
  %v3017 = vpop.permute.xlu0 %3016
  %3018 = vrot.lane.b32.xlu0 %v74, 16
  %v3019 = vpop.permute.xlu0 %3018
  %3020 = vrot.lane.b32.xlu0 %v75, 16
  %v3021 = vpop.permute.xlu0 %3020
  %3022 = vrot.lane.b32.xlu0 %v76, 16
  %v3023 = vpop.permute.xlu0 %3022
  %3024 = vrot.lane.b32.xlu0 %v77, 16
  %v3025 = vpop.permute.xlu0 %3024
  %3026 = vrot.lane.b32.xlu0 %v78, 16
  %v3027 = vpop.permute.xlu0 %3026
  %3028 = vrot.lane.b32.xlu0 %v81, 16
  %v3029 = vpop.permute.xlu0 %3028
  %3030 = vrot.lane.b32.xlu0 %v82, 16
  %v3031 = vpop.permute.xlu0 %3030
  %3032 = vrot.lane.b32.xlu0 %v83, 16
  %v3033 = vpop.permute.xlu0 %3032
  %3034 = vrot.lane.b32.xlu0 %v84, 16
  %v3035 = vpop.permute.xlu0 %3034
  %3036 = vrot.lane.b32.xlu0 %v85, 16
  %v3037 = vpop.permute.xlu0 %3036
  %3038 = vrot.lane.b32.xlu0 %v86, 16
  %v3039 = vpop.permute.xlu0 %3038
  %3040 = vrot.lane.b32.xlu0 %v87, 16
  %v3041 = vpop.permute.xlu0 %3040
  %3042 = vrot.lane.b32.xlu0 %v88, 16
  %v3043 = vpop.permute.xlu0 %3042
  %3044 = vrot.lane.b32.xlu0 %v89, 16
  %v3045 = vpop.permute.xlu0 %3044
  %3046 = vrot.lane.b32.xlu0 %v90, 16
  %v3047 = vpop.permute.xlu0 %3046
  %3048 = vrot.lane.b32.xlu0 %v91, 16
  %v3049 = vpop.permute.xlu0 %3048
  %3050 = vrot.lane.b32.xlu0 %v92, 16
  %v3051 = vpop.permute.xlu0 %3050
  %3052 = vrot.lane.b32.xlu0 %v93, 16
  %v3053 = vpop.permute.xlu0 %3052
  %3054 = vrot.lane.b32.xlu0 %v94, 16
  %v3055 = vpop.permute.xlu0 %3054
  %3056 = vrot.lane.b32.xlu0 %v95, 16
  %v3057 = vpop.permute.xlu0 %3056
  %3058 = vrot.lane.b32.xlu0 %v96, 16
  %v3059 = vpop.permute.xlu0 %3058
  %3060 = vrot.lane.b32.xlu0 %v99, 16
  %v3061 = vpop.permute.xlu0 %3060
  %3062 = vrot.lane.b32.xlu0 %v100, 16
  %v3063 = vpop.permute.xlu0 %3062
  %3064 = vrot.lane.b32.xlu0 %v101, 16
  %v3065 = vpop.permute.xlu0 %3064
  %3066 = vrot.lane.b32.xlu0 %v102, 16
  %v3067 = vpop.permute.xlu0 %3066
  %3068 = vrot.lane.b32.xlu0 %v103, 16
  %v3069 = vpop.permute.xlu0 %3068
  %3070 = vrot.lane.b32.xlu0 %v104, 16
  %v3071 = vpop.permute.xlu0 %3070
  %3072 = vrot.lane.b32.xlu0 %v105, 16
  %v3073 = vpop.permute.xlu0 %3072
  %3074 = vrot.lane.b32.xlu0 %v106, 16
  %v3075 = vpop.permute.xlu0 %3074
  %3076 = vrot.lane.b32.xlu0 %v107, 16
  %v3077 = vpop.permute.xlu0 %3076
  %3078 = vrot.lane.b32.xlu0 %v108, 16
  %v3079 = vpop.permute.xlu0 %3078
  %3080 = vrot.lane.b32.xlu0 %v109, 16
  %v3081 = vpop.permute.xlu0 %3080
  %3082 = vrot.lane.b32.xlu0 %v110, 16
  %v3083 = vpop.permute.xlu0 %3082
  %3084 = vrot.lane.b32.xlu0 %v111, 16
  %v3085 = vpop.permute.xlu0 %3084
  %3086 = vrot.lane.b32.xlu0 %v112, 16
  %v3087 = vpop.permute.xlu0 %3086
  %3088 = vrot.lane.b32.xlu0 %v113, 16
  %v3089 = vpop.permute.xlu0 %3088
  %3090 = vrot.lane.b32.xlu0 %v114, 16
  %v3091 = vpop.permute.xlu0 %3090
  %3092 = vrot.lane.b32.xlu0 %v117, 16
  %v3093 = vpop.permute.xlu0 %3092
  %3094 = vrot.lane.b32.xlu0 %v118, 16
  %v3095 = vpop.permute.xlu0 %3094
  %3096 = vrot.lane.b32.xlu0 %v119, 16
  %v3097 = vpop.permute.xlu0 %3096
  %3098 = vrot.lane.b32.xlu0 %v120, 16
  %v3099 = vpop.permute.xlu0 %3098
  %3100 = vrot.lane.b32.xlu0 %v121, 16
  %v3101 = vpop.permute.xlu0 %3100
  %3102 = vrot.lane.b32.xlu0 %v122, 16
  %v3103 = vpop.permute.xlu0 %3102
  %3104 = vrot.lane.b32.xlu0 %v123, 16
  %v3105 = vpop.permute.xlu0 %3104
  %3106 = vrot.lane.b32.xlu0 %v124, 16
  %v3107 = vpop.permute.xlu0 %3106
  %3108 = vrot.lane.b32.xlu0 %v125, 16
  %v3109 = vpop.permute.xlu0 %3108
  %3110 = vrot.lane.b32.xlu0 %v126, 16
  %v3111 = vpop.permute.xlu0 %3110
  %3112 = vrot.lane.b32.xlu0 %v127, 16
  %v3113 = vpop.permute.xlu0 %3112
  %3114 = vrot.lane.b32.xlu0 %v128, 16
  %v3115 = vpop.permute.xlu0 %3114
  %3116 = vrot.lane.b32.xlu0 %v129, 16
  %v3117 = vpop.permute.xlu0 %3116
  %3118 = vrot.lane.b32.xlu0 %v130, 16
  %v3119 = vpop.permute.xlu0 %3118
  %3120 = vrot.lane.b32.xlu0 %v131, 16
  %v3121 = vpop.permute.xlu0 %3120
  %3122 = vrot.lane.b32.xlu0 %v132, 16
  %v3123 = vpop.permute.xlu0 %3122
  %3124 = vrot.lane.b32.xlu0 %v135, 16
  %v3125 = vpop.permute.xlu0 %3124
  %3126 = vrot.lane.b32.xlu0 %v136, 16
  %v3127 = vpop.permute.xlu0 %3126
  %3128 = vrot.lane.b32.xlu0 %v137, 16
  %v3129 = vpop.permute.xlu0 %3128
  %3130 = vrot.lane.b32.xlu0 %v138, 16
  %v3131 = vpop.permute.xlu0 %3130
  %3132 = vrot.lane.b32.xlu0 %v139, 16
  %v3133 = vpop.permute.xlu0 %3132
  %3134 = vrot.lane.b32.xlu0 %v140, 16
  %v3135 = vpop.permute.xlu0 %3134
  %3136 = vrot.lane.b32.xlu0 %v141, 16
  %v3137 = vpop.permute.xlu0 %3136
  %3138 = vrot.lane.b32.xlu0 %v142, 16
  %v3139 = vpop.permute.xlu0 %3138
  %3140 = vrot.lane.b32.xlu0 %v143, 16
  %v3141 = vpop.permute.xlu0 %3140
  %3142 = vrot.lane.b32.xlu0 %v144, 16
  %v3143 = vpop.permute.xlu0 %3142
  %3144 = vrot.lane.b32.xlu0 %v145, 16
  %v3145 = vpop.permute.xlu0 %3144
  %3146 = vrot.lane.b32.xlu0 %v146, 16
  %v3147 = vpop.permute.xlu0 %3146
  %3148 = vrot.lane.b32.xlu0 %v147, 16
  %v3149 = vpop.permute.xlu0 %3148
  %3150 = vrot.lane.b32.xlu0 %v148, 16
  %v3151 = vpop.permute.xlu0 %3150
  %3152 = vrot.lane.b32.xlu0 %v149, 16
  %v3153 = vpop.permute.xlu0 %3152
  %3154 = vrot.lane.b32.xlu0 %v150, 16
  %v3155 = vpop.permute.xlu0 %3154
  %3156 = vrot.lane.b32.xlu0 %v153, 16
  %v3157 = vpop.permute.xlu0 %3156
  %3158 = vrot.lane.b32.xlu0 %v154, 16
  %v3159 = vpop.permute.xlu0 %3158
  %3160 = vrot.lane.b32.xlu0 %v155, 16
  %v3161 = vpop.permute.xlu0 %3160
  %3162 = vrot.lane.b32.xlu0 %v156, 16
  %v3163 = vpop.permute.xlu0 %3162
  %3164 = vrot.lane.b32.xlu0 %v157, 16
  %v3165 = vpop.permute.xlu0 %3164
  %3166 = vrot.lane.b32.xlu0 %v158, 16
  %v3167 = vpop.permute.xlu0 %3166
  %3168 = vrot.lane.b32.xlu0 %v159, 16
  %v3169 = vpop.permute.xlu0 %3168
  %3170 = vrot.lane.b32.xlu0 %v160, 16
  %v3171 = vpop.permute.xlu0 %3170
  %3172 = vrot.lane.b32.xlu0 %v161, 16
  %v3173 = vpop.permute.xlu0 %3172
  %3174 = vrot.lane.b32.xlu0 %v162, 16
  %v3175 = vpop.permute.xlu0 %3174
  %3176 = vrot.lane.b32.xlu0 %v163, 16
  %v3177 = vpop.permute.xlu0 %3176
  %3178 = vrot.lane.b32.xlu0 %v164, 16
  %v3179 = vpop.permute.xlu0 %3178
  %3180 = vrot.lane.b32.xlu0 %v165, 16
  %v3181 = vpop.permute.xlu0 %3180
  %3182 = vrot.lane.b32.xlu0 %v166, 16
  %v3183 = vpop.permute.xlu0 %3182
  %3184 = vrot.lane.b32.xlu0 %v167, 16
  %v3185 = vpop.permute.xlu0 %3184
  %3186 = vrot.lane.b32.xlu0 %v168, 16
  %v3187 = vpop.permute.xlu0 %3186
  %3188 = vrot.lane.b32.xlu0 %v171, 16
  %v3189 = vpop.permute.xlu0 %3188
  %3190 = vrot.lane.b32.xlu0 %v172, 16
  %v3191 = vpop.permute.xlu0 %3190
  %3192 = vrot.lane.b32.xlu0 %v173, 16
  %v3193 = vpop.permute.xlu0 %3192
  %3194 = vrot.lane.b32.xlu0 %v174, 16
  %v3195 = vpop.permute.xlu0 %3194
  %3196 = vrot.lane.b32.xlu0 %v175, 16
  %v3197 = vpop.permute.xlu0 %3196
  %3198 = vrot.lane.b32.xlu0 %v176, 16
  %v3199 = vpop.permute.xlu0 %3198
  %3200 = vrot.lane.b32.xlu0 %v177, 16
  %v3201 = vpop.permute.xlu0 %3200
  %3202 = vrot.lane.b32.xlu0 %v178, 16
  %v3203 = vpop.permute.xlu0 %3202
  %3204 = vrot.lane.b32.xlu0 %v179, 16
  %v3205 = vpop.permute.xlu0 %3204
  %3206 = vrot.lane.b32.xlu0 %v180, 16
  %v3207 = vpop.permute.xlu0 %3206
  %3208 = vrot.lane.b32.xlu0 %v181, 16
  %v3209 = vpop.permute.xlu0 %3208
  %3210 = vrot.lane.b32.xlu0 %v182, 16
  %v3211 = vpop.permute.xlu0 %3210
  %3212 = vrot.lane.b32.xlu0 %v183, 16
  %v3213 = vpop.permute.xlu0 %3212
  %3214 = vrot.lane.b32.xlu0 %v184, 16
  %v3215 = vpop.permute.xlu0 %3214
  %3216 = vrot.lane.b32.xlu0 %v185, 16
  %v3217 = vpop.permute.xlu0 %3216
  %3218 = vrot.lane.b32.xlu0 %v186, 16
  %v3219 = vpop.permute.xlu0 %3218
  %3220 = vrot.lane.b32.xlu0 %v189, 16
  %v3221 = vpop.permute.xlu0 %3220
  %3222 = vrot.lane.b32.xlu0 %v190, 16
  %v3223 = vpop.permute.xlu0 %3222
  %3224 = vrot.lane.b32.xlu0 %v191, 16
  %v3225 = vpop.permute.xlu0 %3224
  %3226 = vrot.lane.b32.xlu0 %v192, 16
  %v3227 = vpop.permute.xlu0 %3226
  %3228 = vrot.lane.b32.xlu0 %v193, 16
  %v3229 = vpop.permute.xlu0 %3228
  %3230 = vrot.lane.b32.xlu0 %v194, 16
  %v3231 = vpop.permute.xlu0 %3230
  %3232 = vrot.lane.b32.xlu0 %v195, 16
  %v3233 = vpop.permute.xlu0 %3232
  %3234 = vrot.lane.b32.xlu0 %v196, 16
  %v3235 = vpop.permute.xlu0 %3234
  %3236 = vrot.lane.b32.xlu0 %v197, 16
  %v3237 = vpop.permute.xlu0 %3236
  %3238 = vrot.lane.b32.xlu0 %v198, 16
  %v3239 = vpop.permute.xlu0 %3238
  %3240 = vrot.lane.b32.xlu0 %v199, 16
  %v3241 = vpop.permute.xlu0 %3240
  %3242 = vrot.lane.b32.xlu0 %v200, 16
  %v3243 = vpop.permute.xlu0 %3242
  %3244 = vrot.lane.b32.xlu0 %v201, 16
  %v3245 = vpop.permute.xlu0 %3244
  %3246 = vrot.lane.b32.xlu0 %v202, 16
  %v3247 = vpop.permute.xlu0 %3246
  %3248 = vrot.lane.b32.xlu0 %v203, 16
  %v3249 = vpop.permute.xlu0 %3248
  %3250 = vrot.lane.b32.xlu0 %v204, 16
  %v3251 = vpop.permute.xlu0 %3250
  %3252 = vrot.lane.b32.xlu0 %v207, 16
  %v3253 = vpop.permute.xlu0 %3252
  %3254 = vrot.lane.b32.xlu0 %v208, 16
  %v3255 = vpop.permute.xlu0 %3254
  %3256 = vrot.lane.b32.xlu0 %v209, 16
  %v3257 = vpop.permute.xlu0 %3256
  %3258 = vrot.lane.b32.xlu0 %v210, 16
  %v3259 = vpop.permute.xlu0 %3258
  %3260 = vrot.lane.b32.xlu0 %v211, 16
  %v3261 = vpop.permute.xlu0 %3260
  %3262 = vrot.lane.b32.xlu0 %v212, 16
  %v3263 = vpop.permute.xlu0 %3262
  %3264 = vrot.lane.b32.xlu0 %v213, 16
  %v3265 = vpop.permute.xlu0 %3264
  %3266 = vrot.lane.b32.xlu0 %v214, 16
  %v3267 = vpop.permute.xlu0 %3266
  %3268 = vrot.lane.b32.xlu0 %v215, 16
  %v3269 = vpop.permute.xlu0 %3268
  %3270 = vrot.lane.b32.xlu0 %v216, 16
  %v3271 = vpop.permute.xlu0 %3270
  %3272 = vrot.lane.b32.xlu0 %v217, 16
  %v3273 = vpop.permute.xlu0 %3272
  %3274 = vrot.lane.b32.xlu0 %v218, 16
  %v3275 = vpop.permute.xlu0 %3274
  %3276 = vrot.lane.b32.xlu0 %v219, 16
  %v3277 = vpop.permute.xlu0 %3276
  %3278 = vrot.lane.b32.xlu0 %v220, 16
  %v3279 = vpop.permute.xlu0 %3278
  %3280 = vrot.lane.b32.xlu0 %v221, 16
  %v3281 = vpop.permute.xlu0 %3280
  %3282 = vrot.lane.b32.xlu0 %v222, 16
  %v3283 = vpop.permute.xlu0 %3282
  %3284 = vrot.lane.b32.xlu0 %v225, 16
  %v3285 = vpop.permute.xlu0 %3284
  %3286 = vrot.lane.b32.xlu0 %v226, 16
  %v3287 = vpop.permute.xlu0 %3286
  %3288 = vrot.lane.b32.xlu0 %v227, 16
  %v3289 = vpop.permute.xlu0 %3288
  %3290 = vrot.lane.b32.xlu0 %v228, 16
  %v3291 = vpop.permute.xlu0 %3290
  %3292 = vrot.lane.b32.xlu0 %v229, 16
  %v3293 = vpop.permute.xlu0 %3292
  %3294 = vrot.lane.b32.xlu0 %v230, 16
  %v3295 = vpop.permute.xlu0 %3294
  %3296 = vrot.lane.b32.xlu0 %v231, 16
  %v3297 = vpop.permute.xlu0 %3296
  %3298 = vrot.lane.b32.xlu0 %v232, 16
  %v3299 = vpop.permute.xlu0 %3298
  %3300 = vrot.lane.b32.xlu0 %v233, 16
  %v3301 = vpop.permute.xlu0 %3300
  %3302 = vrot.lane.b32.xlu0 %v234, 16
  %v3303 = vpop.permute.xlu0 %3302
  %3304 = vrot.lane.b32.xlu0 %v235, 16
  %v3305 = vpop.permute.xlu0 %3304
  %3306 = vrot.lane.b32.xlu0 %v236, 16
  %v3307 = vpop.permute.xlu0 %3306
  %3308 = vrot.lane.b32.xlu0 %v237, 16
  %v3309 = vpop.permute.xlu0 %3308
  %3310 = vrot.lane.b32.xlu0 %v238, 16
  %v3311 = vpop.permute.xlu0 %3310
  %3312 = vrot.lane.b32.xlu0 %v239, 16
  %v3313 = vpop.permute.xlu0 %3312
  %3314 = vrot.lane.b32.xlu0 %v240, 16
  %v3315 = vpop.permute.xlu0 %3314
  %3316 = vrot.lane.b32.xlu0 %v243, 16
  %v3317 = vpop.permute.xlu0 %3316
  %3318 = vrot.lane.b32.xlu0 %v244, 16
  %v3319 = vpop.permute.xlu0 %3318
  %3320 = vrot.lane.b32.xlu0 %v245, 16
  %v3321 = vpop.permute.xlu0 %3320
  %3322 = vrot.lane.b32.xlu0 %v246, 16
  %v3323 = vpop.permute.xlu0 %3322
  %3324 = vrot.lane.b32.xlu0 %v247, 16
  %v3325 = vpop.permute.xlu0 %3324
  %3326 = vrot.lane.b32.xlu0 %v248, 16
  %v3327 = vpop.permute.xlu0 %3326
  %3328 = vrot.lane.b32.xlu0 %v249, 16
  %v3329 = vpop.permute.xlu0 %3328
  %3330 = vrot.lane.b32.xlu0 %v250, 16
  %v3331 = vpop.permute.xlu0 %3330
  %3332 = vrot.lane.b32.xlu0 %v251, 16
  %v3333 = vpop.permute.xlu0 %3332
  %3334 = vrot.lane.b32.xlu0 %v252, 16
  %v3335 = vpop.permute.xlu0 %3334
  %3336 = vrot.lane.b32.xlu0 %v253, 16
  %v3337 = vpop.permute.xlu0 %3336
  %3338 = vrot.lane.b32.xlu0 %v254, 16
  %v3339 = vpop.permute.xlu0 %3338
  %3340 = vrot.lane.b32.xlu0 %v255, 16
  %v3341 = vpop.permute.xlu0 %3340
  %3342 = vrot.lane.b32.xlu0 %v256, 16
  %v3343 = vpop.permute.xlu0 %3342
  %3344 = vrot.lane.b32.xlu0 %v257, 16
  %v3345 = vpop.permute.xlu0 %3344
  %3346 = vrot.lane.b32.xlu0 %v258, 16
  %v3347 = vpop.permute.xlu0 %3346
  %3348 = vrot.lane.b32.xlu0 %v261, 16
  %v3349 = vpop.permute.xlu0 %3348
  %3350 = vrot.lane.b32.xlu0 %v262, 16
  %v3351 = vpop.permute.xlu0 %3350
  %3352 = vrot.lane.b32.xlu0 %v263, 16
  %v3353 = vpop.permute.xlu0 %3352
  %3354 = vrot.lane.b32.xlu0 %v264, 16
  %v3355 = vpop.permute.xlu0 %3354
  %3356 = vrot.lane.b32.xlu0 %v265, 16
  %v3357 = vpop.permute.xlu0 %3356
  %3358 = vrot.lane.b32.xlu0 %v266, 16
  %v3359 = vpop.permute.xlu0 %3358
  %3360 = vrot.lane.b32.xlu0 %v267, 16
  %v3361 = vpop.permute.xlu0 %3360
  %3362 = vrot.lane.b32.xlu0 %v268, 16
  %v3363 = vpop.permute.xlu0 %3362
  %3364 = vrot.lane.b32.xlu0 %v269, 16
  %v3365 = vpop.permute.xlu0 %3364
  %3366 = vrot.lane.b32.xlu0 %v270, 16
  %v3367 = vpop.permute.xlu0 %3366
  %3368 = vrot.lane.b32.xlu0 %v271, 16
  %v3369 = vpop.permute.xlu0 %3368
  %3370 = vrot.lane.b32.xlu0 %v272, 16
  %v3371 = vpop.permute.xlu0 %3370
  %3372 = vrot.lane.b32.xlu0 %v273, 16
  %v3373 = vpop.permute.xlu0 %3372
  %3374 = vrot.lane.b32.xlu0 %v274, 16
  %v3375 = vpop.permute.xlu0 %3374
  %3376 = vrot.lane.b32.xlu0 %v275, 16
  %v3377 = vpop.permute.xlu0 %3376
  %3378 = vrot.lane.b32.xlu0 %v276, 16
  %v3379 = vpop.permute.xlu0 %3378
  %3380 = vrot.lane.b32.xlu0 %v279, 16
  %v3381 = vpop.permute.xlu0 %3380
  %3382 = vrot.lane.b32.xlu0 %v280, 16
  %v3383 = vpop.permute.xlu0 %3382
  %3384 = vrot.lane.b32.xlu0 %v281, 16
  %v3385 = vpop.permute.xlu0 %3384
  %3386 = vrot.lane.b32.xlu0 %v282, 16
  %v3387 = vpop.permute.xlu0 %3386
  %3388 = vrot.lane.b32.xlu0 %v283, 16
  %v3389 = vpop.permute.xlu0 %3388
  %3390 = vrot.lane.b32.xlu0 %v284, 16
  %v3391 = vpop.permute.xlu0 %3390
  %3392 = vrot.lane.b32.xlu0 %v285, 16
  %v3393 = vpop.permute.xlu0 %3392
  %3394 = vrot.lane.b32.xlu0 %v286, 16
  %v3395 = vpop.permute.xlu0 %3394
  %3396 = vrot.lane.b32.xlu0 %v287, 16
  %v3397 = vpop.permute.xlu0 %3396
  %3398 = vrot.lane.b32.xlu0 %v288, 16
  %v3399 = vpop.permute.xlu0 %3398
  %3400 = vrot.lane.b32.xlu0 %v289, 16
  %v3401 = vpop.permute.xlu0 %3400
  %3402 = vrot.lane.b32.xlu0 %v290, 16
  %v3403 = vpop.permute.xlu0 %3402
  %3404 = vrot.lane.b32.xlu0 %v291, 16
  %v3405 = vpop.permute.xlu0 %3404
  %3406 = vrot.lane.b32.xlu0 %v292, 16
  %v3407 = vpop.permute.xlu0 %3406
  %3408 = vrot.lane.b32.xlu0 %v293, 16
  %v3409 = vpop.permute.xlu0 %3408
  %3410 = vrot.lane.b32.xlu0 %v294, 16
  %v3411 = vpop.permute.xlu0 %3410
  %3412 = vrot.lane.b32.xlu0 %v297, 16
  %v3413 = vpop.permute.xlu0 %3412
  %3414 = vrot.lane.b32.xlu0 %v298, 16
  %v3415 = vpop.permute.xlu0 %3414
  %3416 = vrot.lane.b32.xlu0 %v299, 16
  %v3417 = vpop.permute.xlu0 %3416
  %3418 = vrot.lane.b32.xlu0 %v300, 16
  %v3419 = vpop.permute.xlu0 %3418
  %3420 = vrot.lane.b32.xlu0 %v301, 16
  %v3421 = vpop.permute.xlu0 %3420
  %3422 = vrot.lane.b32.xlu0 %v302, 16
  %v3423 = vpop.permute.xlu0 %3422
  %3424 = vrot.lane.b32.xlu0 %v303, 16
  %v3425 = vpop.permute.xlu0 %3424
  %3426 = vrot.lane.b32.xlu0 %v304, 16
  %v3427 = vpop.permute.xlu0 %3426
  %3428 = vrot.lane.b32.xlu0 %v305, 16
  %v3429 = vpop.permute.xlu0 %3428
  %3430 = vrot.lane.b32.xlu0 %v306, 16
  %v3431 = vpop.permute.xlu0 %3430
  %3432 = vrot.lane.b32.xlu0 %v307, 16
  %v3433 = vpop.permute.xlu0 %3432
  %3434 = vrot.lane.b32.xlu0 %v308, 16
  %v3435 = vpop.permute.xlu0 %3434
  %3436 = vrot.lane.b32.xlu0 %v309, 16
  %v3437 = vpop.permute.xlu0 %3436
  %3438 = vrot.lane.b32.xlu0 %v310, 16
  %v3439 = vpop.permute.xlu0 %3438
  %3440 = vrot.lane.b32.xlu0 %v311, 16
  %v3441 = vpop.permute.xlu0 %3440
  %3442 = vrot.lane.b32.xlu0 %v312, 16
  %v3443 = vpop.permute.xlu0 %3442
  %3444 = vrot.lane.b32.xlu0 %v315, 16
  %v3445 = vpop.permute.xlu0 %3444
  %3446 = vrot.lane.b32.xlu0 %v316, 16
  %v3447 = vpop.permute.xlu0 %3446
  %3448 = vrot.lane.b32.xlu0 %v317, 16
  %v3449 = vpop.permute.xlu0 %3448
  %3450 = vrot.lane.b32.xlu0 %v318, 16
  %v3451 = vpop.permute.xlu0 %3450
  %3452 = vrot.lane.b32.xlu0 %v319, 16
  %v3453 = vpop.permute.xlu0 %3452
  %3454 = vrot.lane.b32.xlu0 %v320, 16
  %v3455 = vpop.permute.xlu0 %3454
  %3456 = vrot.lane.b32.xlu0 %v321, 16
  %v3457 = vpop.permute.xlu0 %3456
  %3458 = vrot.lane.b32.xlu0 %v322, 16
  %v3459 = vpop.permute.xlu0 %3458
  %3460 = vrot.lane.b32.xlu0 %v323, 16
  %v3461 = vpop.permute.xlu0 %3460
  %3462 = vrot.lane.b32.xlu0 %v324, 16
  %v3463 = vpop.permute.xlu0 %3462
  %3464 = vrot.lane.b32.xlu0 %v325, 16
  %v3465 = vpop.permute.xlu0 %3464
  %3466 = vrot.lane.b32.xlu0 %v326, 16
  %v3467 = vpop.permute.xlu0 %3466
  %3468 = vrot.lane.b32.xlu0 %v327, 16
  %v3469 = vpop.permute.xlu0 %3468
  %3470 = vrot.lane.b32.xlu0 %v328, 16
  %v3471 = vpop.permute.xlu0 %3470
  %3472 = vrot.lane.b32.xlu0 %v329, 16
  %v3473 = vpop.permute.xlu0 %3472
  %3474 = vrot.lane.b32.xlu0 %v330, 16
  %v3475 = vpop.permute.xlu0 %3474
  %3733 = vrot.lane.b32.xlu0 %v46, 20
  %v3734 = vpop.permute.xlu0 %3733
  %3735 = vrot.lane.b32.xlu0 %v47, 20
  %v3736 = vpop.permute.xlu0 %3735
  %3737 = vrot.lane.b32.xlu0 %v48, 20
  %v3738 = vpop.permute.xlu0 %3737
  %3739 = vrot.lane.b32.xlu0 %v49, 20
  %v3740 = vpop.permute.xlu0 %3739
  %3741 = vrot.lane.b32.xlu0 %v50, 20
  %v3742 = vpop.permute.xlu0 %3741
  %3743 = vrot.lane.b32.xlu0 %v51, 20
  %v3744 = vpop.permute.xlu0 %3743
  %3745 = vrot.lane.b32.xlu0 %v52, 20
  %v3746 = vpop.permute.xlu0 %3745
  %3747 = vrot.lane.b32.xlu0 %v53, 20
  %v3748 = vpop.permute.xlu0 %3747
  %3749 = vrot.lane.b32.xlu0 %v54, 20
  %v3750 = vpop.permute.xlu0 %3749
  %3751 = vrot.lane.b32.xlu0 %v55, 20
  %v3752 = vpop.permute.xlu0 %3751
  %3753 = vrot.lane.b32.xlu0 %v56, 20
  %v3754 = vpop.permute.xlu0 %3753
  %3755 = vrot.lane.b32.xlu0 %v57, 20
  %v3756 = vpop.permute.xlu0 %3755
  %3757 = vrot.lane.b32.xlu0 %v58, 20
  %v3758 = vpop.permute.xlu0 %3757
  %3759 = vrot.lane.b32.xlu0 %v59, 20
  %v3760 = vpop.permute.xlu0 %3759
  %3761 = vrot.lane.b32.xlu0 %v60, 20
  %v3762 = vpop.permute.xlu0 %3761
  %3763 = vrot.lane.b32.xlu0 %v61, 20
  %v3764 = vpop.permute.xlu0 %3763
  %3765 = vrot.lane.b32.xlu0 %v64, 20
  %v3766 = vpop.permute.xlu0 %3765
  %3767 = vrot.lane.b32.xlu0 %v65, 20
  %v3768 = vpop.permute.xlu0 %3767
  %3769 = vrot.lane.b32.xlu0 %v66, 20
  %v3770 = vpop.permute.xlu0 %3769
  %3771 = vrot.lane.b32.xlu0 %v67, 20
  %v3772 = vpop.permute.xlu0 %3771
  %3773 = vrot.lane.b32.xlu0 %v68, 20
  %v3774 = vpop.permute.xlu0 %3773
  %3775 = vrot.lane.b32.xlu0 %v69, 20
  %v3776 = vpop.permute.xlu0 %3775
  %3777 = vrot.lane.b32.xlu0 %v70, 20
  %v3778 = vpop.permute.xlu0 %3777
  %3779 = vrot.lane.b32.xlu0 %v71, 20
  %v3780 = vpop.permute.xlu0 %3779
  %3781 = vrot.lane.b32.xlu0 %v72, 20
  %v3782 = vpop.permute.xlu0 %3781
  %3783 = vrot.lane.b32.xlu0 %v73, 20
  %v3784 = vpop.permute.xlu0 %3783
  %3785 = vrot.lane.b32.xlu0 %v74, 20
  %v3786 = vpop.permute.xlu0 %3785
  %3787 = vrot.lane.b32.xlu0 %v75, 20
  %v3788 = vpop.permute.xlu0 %3787
  %3789 = vrot.lane.b32.xlu0 %v76, 20
  %v3790 = vpop.permute.xlu0 %3789
  %3791 = vrot.lane.b32.xlu0 %v77, 20
  %v3792 = vpop.permute.xlu0 %3791
  %3793 = vrot.lane.b32.xlu0 %v78, 20
  %v3794 = vpop.permute.xlu0 %3793
  %3795 = vrot.lane.b32.xlu0 %v79, 20
  %v3796 = vpop.permute.xlu0 %3795
  %3797 = vrot.lane.b32.xlu0 %v82, 20
  %v3798 = vpop.permute.xlu0 %3797
  %3799 = vrot.lane.b32.xlu0 %v83, 20
  %v3800 = vpop.permute.xlu0 %3799
  %3801 = vrot.lane.b32.xlu0 %v84, 20
  %v3802 = vpop.permute.xlu0 %3801
  %3803 = vrot.lane.b32.xlu0 %v85, 20
  %v3804 = vpop.permute.xlu0 %3803
  %3805 = vrot.lane.b32.xlu0 %v86, 20
  %v3806 = vpop.permute.xlu0 %3805
  %3807 = vrot.lane.b32.xlu0 %v87, 20
  %v3808 = vpop.permute.xlu0 %3807
  %3809 = vrot.lane.b32.xlu0 %v88, 20
  %v3810 = vpop.permute.xlu0 %3809
  %3811 = vrot.lane.b32.xlu0 %v89, 20
  %v3812 = vpop.permute.xlu0 %3811
  %3813 = vrot.lane.b32.xlu0 %v90, 20
  %v3814 = vpop.permute.xlu0 %3813
  %3815 = vrot.lane.b32.xlu0 %v91, 20
  %v3816 = vpop.permute.xlu0 %3815
  %3817 = vrot.lane.b32.xlu0 %v92, 20
  %v3818 = vpop.permute.xlu0 %3817
  %3819 = vrot.lane.b32.xlu0 %v93, 20
  %v3820 = vpop.permute.xlu0 %3819
  %3821 = vrot.lane.b32.xlu0 %v94, 20
  %v3822 = vpop.permute.xlu0 %3821
  %3823 = vrot.lane.b32.xlu0 %v95, 20
  %v3824 = vpop.permute.xlu0 %3823
  %3825 = vrot.lane.b32.xlu0 %v96, 20
  %v3826 = vpop.permute.xlu0 %3825
  %3827 = vrot.lane.b32.xlu0 %v97, 20
  %v3828 = vpop.permute.xlu0 %3827
  %3829 = vrot.lane.b32.xlu0 %v100, 20
  %v3830 = vpop.permute.xlu0 %3829
  %3831 = vrot.lane.b32.xlu0 %v101, 20
  %v3832 = vpop.permute.xlu0 %3831
  %3833 = vrot.lane.b32.xlu0 %v102, 20
  %v3834 = vpop.permute.xlu0 %3833
  %3835 = vrot.lane.b32.xlu0 %v103, 20
  %v3836 = vpop.permute.xlu0 %3835
  %3837 = vrot.lane.b32.xlu0 %v104, 20
  %v3838 = vpop.permute.xlu0 %3837
  %3839 = vrot.lane.b32.xlu0 %v105, 20
  %v3840 = vpop.permute.xlu0 %3839
  %3841 = vrot.lane.b32.xlu0 %v106, 20
  %v3842 = vpop.permute.xlu0 %3841
  %3843 = vrot.lane.b32.xlu0 %v107, 20
  %v3844 = vpop.permute.xlu0 %3843
  %3845 = vrot.lane.b32.xlu0 %v108, 20
  %v3846 = vpop.permute.xlu0 %3845
  %3847 = vrot.lane.b32.xlu0 %v109, 20
  %v3848 = vpop.permute.xlu0 %3847
  %3849 = vrot.lane.b32.xlu0 %v110, 20
  %v3850 = vpop.permute.xlu0 %3849
  %3851 = vrot.lane.b32.xlu0 %v111, 20
  %v3852 = vpop.permute.xlu0 %3851
  %3853 = vrot.lane.b32.xlu0 %v112, 20
  %v3854 = vpop.permute.xlu0 %3853
  %3855 = vrot.lane.b32.xlu0 %v113, 20
  %v3856 = vpop.permute.xlu0 %3855
  %3857 = vrot.lane.b32.xlu0 %v114, 20
  %v3858 = vpop.permute.xlu0 %3857
  %3859 = vrot.lane.b32.xlu0 %v115, 20
  %v3860 = vpop.permute.xlu0 %3859
  %3861 = vrot.lane.b32.xlu0 %v118, 20
  %v3862 = vpop.permute.xlu0 %3861
  %3863 = vrot.lane.b32.xlu0 %v119, 20
  %v3864 = vpop.permute.xlu0 %3863
  %3865 = vrot.lane.b32.xlu0 %v120, 20
  %v3866 = vpop.permute.xlu0 %3865
  %3867 = vrot.lane.b32.xlu0 %v121, 20
  %v3868 = vpop.permute.xlu0 %3867
  %3869 = vrot.lane.b32.xlu0 %v122, 20
  %v3870 = vpop.permute.xlu0 %3869
  %3871 = vrot.lane.b32.xlu0 %v123, 20
  %v3872 = vpop.permute.xlu0 %3871
  %3873 = vrot.lane.b32.xlu0 %v124, 20
  %v3874 = vpop.permute.xlu0 %3873
  %3875 = vrot.lane.b32.xlu0 %v125, 20
  %v3876 = vpop.permute.xlu0 %3875
  %3877 = vrot.lane.b32.xlu0 %v126, 20
  %v3878 = vpop.permute.xlu0 %3877
  %3879 = vrot.lane.b32.xlu0 %v127, 20
  %v3880 = vpop.permute.xlu0 %3879
  %3881 = vrot.lane.b32.xlu0 %v128, 20
  %v3882 = vpop.permute.xlu0 %3881
  %3883 = vrot.lane.b32.xlu0 %v129, 20
  %v3884 = vpop.permute.xlu0 %3883
  %3885 = vrot.lane.b32.xlu0 %v130, 20
  %v3886 = vpop.permute.xlu0 %3885
  %3887 = vrot.lane.b32.xlu0 %v131, 20
  %v3888 = vpop.permute.xlu0 %3887
  %3889 = vrot.lane.b32.xlu0 %v132, 20
  %v3890 = vpop.permute.xlu0 %3889
  %3891 = vrot.lane.b32.xlu0 %v133, 20
  %v3892 = vpop.permute.xlu0 %3891
  %3893 = vrot.lane.b32.xlu0 %v136, 20
  %v3894 = vpop.permute.xlu0 %3893
  %3895 = vrot.lane.b32.xlu0 %v137, 20
  %v3896 = vpop.permute.xlu0 %3895
  %3897 = vrot.lane.b32.xlu0 %v138, 20
  %v3898 = vpop.permute.xlu0 %3897
  %3899 = vrot.lane.b32.xlu0 %v139, 20
  %v3900 = vpop.permute.xlu0 %3899
  %3901 = vrot.lane.b32.xlu0 %v140, 20
  %v3902 = vpop.permute.xlu0 %3901
  %3903 = vrot.lane.b32.xlu0 %v141, 20
  %v3904 = vpop.permute.xlu0 %3903
  %3905 = vrot.lane.b32.xlu0 %v142, 20
  %v3906 = vpop.permute.xlu0 %3905
  %3907 = vrot.lane.b32.xlu0 %v143, 20
  %v3908 = vpop.permute.xlu0 %3907
  %3909 = vrot.lane.b32.xlu0 %v144, 20
  %v3910 = vpop.permute.xlu0 %3909
  %3911 = vrot.lane.b32.xlu0 %v145, 20
  %v3912 = vpop.permute.xlu0 %3911
  %3913 = vrot.lane.b32.xlu0 %v146, 20
  %v3914 = vpop.permute.xlu0 %3913
  %3915 = vrot.lane.b32.xlu0 %v147, 20
  %v3916 = vpop.permute.xlu0 %3915
  %3917 = vrot.lane.b32.xlu0 %v148, 20
  %v3918 = vpop.permute.xlu0 %3917
  %3919 = vrot.lane.b32.xlu0 %v149, 20
  %v3920 = vpop.permute.xlu0 %3919
  %3921 = vrot.lane.b32.xlu0 %v150, 20
  %v3922 = vpop.permute.xlu0 %3921
  %3923 = vrot.lane.b32.xlu0 %v151, 20
  %v3924 = vpop.permute.xlu0 %3923
  %3925 = vrot.lane.b32.xlu0 %v154, 20
  %v3926 = vpop.permute.xlu0 %3925
  %3927 = vrot.lane.b32.xlu0 %v155, 20
  %v3928 = vpop.permute.xlu0 %3927
  %3929 = vrot.lane.b32.xlu0 %v156, 20
  %v3930 = vpop.permute.xlu0 %3929
  %3931 = vrot.lane.b32.xlu0 %v157, 20
  %v3932 = vpop.permute.xlu0 %3931
  %3933 = vrot.lane.b32.xlu0 %v158, 20
  %v3934 = vpop.permute.xlu0 %3933
  %3935 = vrot.lane.b32.xlu0 %v159, 20
  %v3936 = vpop.permute.xlu0 %3935
  %3937 = vrot.lane.b32.xlu0 %v160, 20
  %v3938 = vpop.permute.xlu0 %3937
  %3939 = vrot.lane.b32.xlu0 %v161, 20
  %v3940 = vpop.permute.xlu0 %3939
  %3941 = vrot.lane.b32.xlu0 %v162, 20
  %v3942 = vpop.permute.xlu0 %3941
  %3943 = vrot.lane.b32.xlu0 %v163, 20
  %v3944 = vpop.permute.xlu0 %3943
  %3945 = vrot.lane.b32.xlu0 %v164, 20
  %v3946 = vpop.permute.xlu0 %3945
  %3947 = vrot.lane.b32.xlu0 %v165, 20
  %v3948 = vpop.permute.xlu0 %3947
  %3949 = vrot.lane.b32.xlu0 %v166, 20
  %v3950 = vpop.permute.xlu0 %3949
  %3951 = vrot.lane.b32.xlu0 %v167, 20
  %v3952 = vpop.permute.xlu0 %3951
  %3953 = vrot.lane.b32.xlu0 %v168, 20
  %v3954 = vpop.permute.xlu0 %3953
  %3955 = vrot.lane.b32.xlu0 %v169, 20
  %v3956 = vpop.permute.xlu0 %3955
  %3957 = vrot.lane.b32.xlu0 %v172, 20
  %v3958 = vpop.permute.xlu0 %3957
  %3959 = vrot.lane.b32.xlu0 %v173, 20
  %v3960 = vpop.permute.xlu0 %3959
  %3961 = vrot.lane.b32.xlu0 %v174, 20
  %v3962 = vpop.permute.xlu0 %3961
  %3963 = vrot.lane.b32.xlu0 %v175, 20
  %v3964 = vpop.permute.xlu0 %3963
  %3965 = vrot.lane.b32.xlu0 %v176, 20
  %v3966 = vpop.permute.xlu0 %3965
  %3967 = vrot.lane.b32.xlu0 %v177, 20
  %v3968 = vpop.permute.xlu0 %3967
  %3969 = vrot.lane.b32.xlu0 %v178, 20
  %v3970 = vpop.permute.xlu0 %3969
  %3971 = vrot.lane.b32.xlu0 %v179, 20
  %v3972 = vpop.permute.xlu0 %3971
  %3973 = vrot.lane.b32.xlu0 %v180, 20
  %v3974 = vpop.permute.xlu0 %3973
  %3975 = vrot.lane.b32.xlu0 %v181, 20
  %v3976 = vpop.permute.xlu0 %3975
  %3977 = vrot.lane.b32.xlu0 %v182, 20
  %v3978 = vpop.permute.xlu0 %3977
  %3979 = vrot.lane.b32.xlu0 %v183, 20
  %v3980 = vpop.permute.xlu0 %3979
  %3981 = vrot.lane.b32.xlu0 %v184, 20
  %v3982 = vpop.permute.xlu0 %3981
  %3983 = vrot.lane.b32.xlu0 %v185, 20
  %v3984 = vpop.permute.xlu0 %3983
  %3985 = vrot.lane.b32.xlu0 %v186, 20
  %v3986 = vpop.permute.xlu0 %3985
  %3987 = vrot.lane.b32.xlu0 %v187, 20
  %v3988 = vpop.permute.xlu0 %3987
  %3989 = vrot.lane.b32.xlu0 %v190, 20
  %v3990 = vpop.permute.xlu0 %3989
  %3991 = vrot.lane.b32.xlu0 %v191, 20
  %v3992 = vpop.permute.xlu0 %3991
  %3993 = vrot.lane.b32.xlu0 %v192, 20
  %v3994 = vpop.permute.xlu0 %3993
  %3995 = vrot.lane.b32.xlu0 %v193, 20
  %v3996 = vpop.permute.xlu0 %3995
  %3997 = vrot.lane.b32.xlu0 %v194, 20
  %v3998 = vpop.permute.xlu0 %3997
  %3999 = vrot.lane.b32.xlu0 %v195, 20
  %v4000 = vpop.permute.xlu0 %3999
  %4001 = vrot.lane.b32.xlu0 %v196, 20
  %v4002 = vpop.permute.xlu0 %4001
  %4003 = vrot.lane.b32.xlu0 %v197, 20
  %v4004 = vpop.permute.xlu0 %4003
  %4005 = vrot.lane.b32.xlu0 %v198, 20
  %v4006 = vpop.permute.xlu0 %4005
  %4007 = vrot.lane.b32.xlu0 %v199, 20
  %v4008 = vpop.permute.xlu0 %4007
  %4009 = vrot.lane.b32.xlu0 %v200, 20
  %v4010 = vpop.permute.xlu0 %4009
  %4011 = vrot.lane.b32.xlu0 %v201, 20
  %v4012 = vpop.permute.xlu0 %4011
  %4013 = vrot.lane.b32.xlu0 %v202, 20
  %v4014 = vpop.permute.xlu0 %4013
  %4015 = vrot.lane.b32.xlu0 %v203, 20
  %v4016 = vpop.permute.xlu0 %4015
  %4017 = vrot.lane.b32.xlu0 %v204, 20
  %v4018 = vpop.permute.xlu0 %4017
  %4019 = vrot.lane.b32.xlu0 %v205, 20
  %v4020 = vpop.permute.xlu0 %4019
  %4021 = vrot.lane.b32.xlu0 %v208, 20
  %v4022 = vpop.permute.xlu0 %4021
  %4023 = vrot.lane.b32.xlu0 %v209, 20
  %v4024 = vpop.permute.xlu0 %4023
  %4025 = vrot.lane.b32.xlu0 %v210, 20
  %v4026 = vpop.permute.xlu0 %4025
  %4027 = vrot.lane.b32.xlu0 %v211, 20
  %v4028 = vpop.permute.xlu0 %4027
  %4029 = vrot.lane.b32.xlu0 %v212, 20
  %v4030 = vpop.permute.xlu0 %4029
  %4031 = vrot.lane.b32.xlu0 %v213, 20
  %v4032 = vpop.permute.xlu0 %4031
  %4033 = vrot.lane.b32.xlu0 %v214, 20
  %v4034 = vpop.permute.xlu0 %4033
  %4035 = vrot.lane.b32.xlu0 %v215, 20
  %v4036 = vpop.permute.xlu0 %4035
  %4037 = vrot.lane.b32.xlu0 %v216, 20
  %v4038 = vpop.permute.xlu0 %4037
  %4039 = vrot.lane.b32.xlu0 %v217, 20
  %v4040 = vpop.permute.xlu0 %4039
  %4041 = vrot.lane.b32.xlu0 %v218, 20
  %v4042 = vpop.permute.xlu0 %4041
  %4043 = vrot.lane.b32.xlu0 %v219, 20
  %v4044 = vpop.permute.xlu0 %4043
  %4045 = vrot.lane.b32.xlu0 %v220, 20
  %v4046 = vpop.permute.xlu0 %4045
  %4047 = vrot.lane.b32.xlu0 %v221, 20
  %v4048 = vpop.permute.xlu0 %4047
  %4049 = vrot.lane.b32.xlu0 %v222, 20
  %v4050 = vpop.permute.xlu0 %4049
  %4051 = vrot.lane.b32.xlu0 %v223, 20
  %v4052 = vpop.permute.xlu0 %4051
  %4053 = vrot.lane.b32.xlu0 %v226, 20
  %v4054 = vpop.permute.xlu0 %4053
  %4055 = vrot.lane.b32.xlu0 %v227, 20
  %v4056 = vpop.permute.xlu0 %4055
  %4057 = vrot.lane.b32.xlu0 %v228, 20
  %v4058 = vpop.permute.xlu0 %4057
  %4059 = vrot.lane.b32.xlu0 %v229, 20
  %v4060 = vpop.permute.xlu0 %4059
  %4061 = vrot.lane.b32.xlu0 %v230, 20
  %v4062 = vpop.permute.xlu0 %4061
  %4063 = vrot.lane.b32.xlu0 %v231, 20
  %v4064 = vpop.permute.xlu0 %4063
  %4065 = vrot.lane.b32.xlu0 %v232, 20
  %v4066 = vpop.permute.xlu0 %4065
  %4067 = vrot.lane.b32.xlu0 %v233, 20
  %v4068 = vpop.permute.xlu0 %4067
  %4069 = vrot.lane.b32.xlu0 %v234, 20
  %v4070 = vpop.permute.xlu0 %4069
  %4071 = vrot.lane.b32.xlu0 %v235, 20
  %v4072 = vpop.permute.xlu0 %4071
  %4073 = vrot.lane.b32.xlu0 %v236, 20
  %v4074 = vpop.permute.xlu0 %4073
  %4075 = vrot.lane.b32.xlu0 %v237, 20
  %v4076 = vpop.permute.xlu0 %4075
  %4077 = vrot.lane.b32.xlu0 %v238, 20
  %v4078 = vpop.permute.xlu0 %4077
  %4079 = vrot.lane.b32.xlu0 %v239, 20
  %v4080 = vpop.permute.xlu0 %4079
  %4081 = vrot.lane.b32.xlu0 %v240, 20
  %v4082 = vpop.permute.xlu0 %4081
  %4083 = vrot.lane.b32.xlu0 %v241, 20
  %v4084 = vpop.permute.xlu0 %4083
  %4085 = vrot.lane.b32.xlu0 %v244, 20
  %v4086 = vpop.permute.xlu0 %4085
  %4087 = vrot.lane.b32.xlu0 %v245, 20
  %v4088 = vpop.permute.xlu0 %4087
  %4089 = vrot.lane.b32.xlu0 %v246, 20
  %v4090 = vpop.permute.xlu0 %4089
  %4091 = vrot.lane.b32.xlu0 %v247, 20
  %v4092 = vpop.permute.xlu0 %4091
  %4093 = vrot.lane.b32.xlu0 %v248, 20
  %v4094 = vpop.permute.xlu0 %4093
  %4095 = vrot.lane.b32.xlu0 %v249, 20
  %v4096 = vpop.permute.xlu0 %4095
  %4097 = vrot.lane.b32.xlu0 %v250, 20
  %v4098 = vpop.permute.xlu0 %4097
  %4099 = vrot.lane.b32.xlu0 %v251, 20
  %v4100 = vpop.permute.xlu0 %4099
  %4101 = vrot.lane.b32.xlu0 %v252, 20
  %v4102 = vpop.permute.xlu0 %4101
  %4103 = vrot.lane.b32.xlu0 %v253, 20
  %v4104 = vpop.permute.xlu0 %4103
  %4105 = vrot.lane.b32.xlu0 %v254, 20
  %v4106 = vpop.permute.xlu0 %4105
  %4107 = vrot.lane.b32.xlu0 %v255, 20
  %v4108 = vpop.permute.xlu0 %4107
  %4109 = vrot.lane.b32.xlu0 %v256, 20
  %v4110 = vpop.permute.xlu0 %4109
  %4111 = vrot.lane.b32.xlu0 %v257, 20
  %v4112 = vpop.permute.xlu0 %4111
  %4113 = vrot.lane.b32.xlu0 %v258, 20
  %v4114 = vpop.permute.xlu0 %4113
  %4115 = vrot.lane.b32.xlu0 %v259, 20
  %v4116 = vpop.permute.xlu0 %4115
  %4117 = vrot.lane.b32.xlu0 %v262, 20
  %v4118 = vpop.permute.xlu0 %4117
  %4119 = vrot.lane.b32.xlu0 %v263, 20
  %v4120 = vpop.permute.xlu0 %4119
  %4121 = vrot.lane.b32.xlu0 %v264, 20
  %v4122 = vpop.permute.xlu0 %4121
  %4123 = vrot.lane.b32.xlu0 %v265, 20
  %v4124 = vpop.permute.xlu0 %4123
  %4125 = vrot.lane.b32.xlu0 %v266, 20
  %v4126 = vpop.permute.xlu0 %4125
  %4127 = vrot.lane.b32.xlu0 %v267, 20
  %v4128 = vpop.permute.xlu0 %4127
  %4129 = vrot.lane.b32.xlu0 %v268, 20
  %v4130 = vpop.permute.xlu0 %4129
  %4131 = vrot.lane.b32.xlu0 %v269, 20
  %v4132 = vpop.permute.xlu0 %4131
  %4133 = vrot.lane.b32.xlu0 %v270, 20
  %v4134 = vpop.permute.xlu0 %4133
  %4135 = vrot.lane.b32.xlu0 %v271, 20
  %v4136 = vpop.permute.xlu0 %4135
  %4137 = vrot.lane.b32.xlu0 %v272, 20
  %v4138 = vpop.permute.xlu0 %4137
  %4139 = vrot.lane.b32.xlu0 %v273, 20
  %v4140 = vpop.permute.xlu0 %4139
  %4141 = vrot.lane.b32.xlu0 %v274, 20
  %v4142 = vpop.permute.xlu0 %4141
  %4143 = vrot.lane.b32.xlu0 %v275, 20
  %v4144 = vpop.permute.xlu0 %4143
  %4145 = vrot.lane.b32.xlu0 %v276, 20
  %v4146 = vpop.permute.xlu0 %4145
  %4147 = vrot.lane.b32.xlu0 %v277, 20
  %v4148 = vpop.permute.xlu0 %4147
  %4149 = vrot.lane.b32.xlu0 %v280, 20
  %v4150 = vpop.permute.xlu0 %4149
  %4151 = vrot.lane.b32.xlu0 %v281, 20
  %v4152 = vpop.permute.xlu0 %4151
  %4153 = vrot.lane.b32.xlu0 %v282, 20
  %v4154 = vpop.permute.xlu0 %4153
  %4155 = vrot.lane.b32.xlu0 %v283, 20
  %v4156 = vpop.permute.xlu0 %4155
  %4157 = vrot.lane.b32.xlu0 %v284, 20
  %v4158 = vpop.permute.xlu0 %4157
  %4159 = vrot.lane.b32.xlu0 %v285, 20
  %v4160 = vpop.permute.xlu0 %4159
  %4161 = vrot.lane.b32.xlu0 %v286, 20
  %v4162 = vpop.permute.xlu0 %4161
  %4163 = vrot.lane.b32.xlu0 %v287, 20
  %v4164 = vpop.permute.xlu0 %4163
  %4165 = vrot.lane.b32.xlu0 %v288, 20
  %v4166 = vpop.permute.xlu0 %4165
  %4167 = vrot.lane.b32.xlu0 %v289, 20
  %v4168 = vpop.permute.xlu0 %4167
  %4169 = vrot.lane.b32.xlu0 %v290, 20
  %v4170 = vpop.permute.xlu0 %4169
  %4171 = vrot.lane.b32.xlu0 %v291, 20
  %v4172 = vpop.permute.xlu0 %4171
  %4173 = vrot.lane.b32.xlu0 %v292, 20
  %v4174 = vpop.permute.xlu0 %4173
  %4175 = vrot.lane.b32.xlu0 %v293, 20
  %v4176 = vpop.permute.xlu0 %4175
  %4177 = vrot.lane.b32.xlu0 %v294, 20
  %v4178 = vpop.permute.xlu0 %4177
  %4179 = vrot.lane.b32.xlu0 %v295, 20
  %v4180 = vpop.permute.xlu0 %4179
  %4181 = vrot.lane.b32.xlu0 %v298, 20
  %v4182 = vpop.permute.xlu0 %4181
  %4183 = vrot.lane.b32.xlu0 %v299, 20
  %v4184 = vpop.permute.xlu0 %4183
  %4185 = vrot.lane.b32.xlu0 %v300, 20
  %v4186 = vpop.permute.xlu0 %4185
  %4187 = vrot.lane.b32.xlu0 %v301, 20
  %v4188 = vpop.permute.xlu0 %4187
  %4189 = vrot.lane.b32.xlu0 %v302, 20
  %v4190 = vpop.permute.xlu0 %4189
  %4191 = vrot.lane.b32.xlu0 %v303, 20
  %v4192 = vpop.permute.xlu0 %4191
  %4193 = vrot.lane.b32.xlu0 %v304, 20
  %v4194 = vpop.permute.xlu0 %4193
  %4195 = vrot.lane.b32.xlu0 %v305, 20
  %v4196 = vpop.permute.xlu0 %4195
  %4197 = vrot.lane.b32.xlu0 %v306, 20
  %v4198 = vpop.permute.xlu0 %4197
  %4199 = vrot.lane.b32.xlu0 %v307, 20
  %v4200 = vpop.permute.xlu0 %4199
  %4201 = vrot.lane.b32.xlu0 %v308, 20
  %v4202 = vpop.permute.xlu0 %4201
  %4203 = vrot.lane.b32.xlu0 %v309, 20
  %v4204 = vpop.permute.xlu0 %4203
  %4205 = vrot.lane.b32.xlu0 %v310, 20
  %v4206 = vpop.permute.xlu0 %4205
  %4207 = vrot.lane.b32.xlu0 %v311, 20
  %v4208 = vpop.permute.xlu0 %4207
  %4209 = vrot.lane.b32.xlu0 %v312, 20
  %v4210 = vpop.permute.xlu0 %4209
  %4211 = vrot.lane.b32.xlu0 %v313, 20
  %v4212 = vpop.permute.xlu0 %4211
  %4213 = vrot.lane.b32.xlu0 %v316, 20
  %v4214 = vpop.permute.xlu0 %4213
  %4215 = vrot.lane.b32.xlu0 %v317, 20
  %v4216 = vpop.permute.xlu0 %4215
  %4217 = vrot.lane.b32.xlu0 %v318, 20
  %v4218 = vpop.permute.xlu0 %4217
  %4219 = vrot.lane.b32.xlu0 %v319, 20
  %v4220 = vpop.permute.xlu0 %4219
  %4221 = vrot.lane.b32.xlu0 %v320, 20
  %v4222 = vpop.permute.xlu0 %4221
  %4223 = vrot.lane.b32.xlu0 %v321, 20
  %v4224 = vpop.permute.xlu0 %4223
  %4225 = vrot.lane.b32.xlu0 %v322, 20
  %v4226 = vpop.permute.xlu0 %4225
  %4227 = vrot.lane.b32.xlu0 %v323, 20
  %v4228 = vpop.permute.xlu0 %4227
  %4229 = vrot.lane.b32.xlu0 %v324, 20
  %v4230 = vpop.permute.xlu0 %4229
  %4231 = vrot.lane.b32.xlu0 %v325, 20
  %v4232 = vpop.permute.xlu0 %4231
  %4233 = vrot.lane.b32.xlu0 %v326, 20
  %v4234 = vpop.permute.xlu0 %4233
  %4235 = vrot.lane.b32.xlu0 %v327, 20
  %v4236 = vpop.permute.xlu0 %4235
  %4237 = vrot.lane.b32.xlu0 %v328, 20
  %v4238 = vpop.permute.xlu0 %4237
  %4239 = vrot.lane.b32.xlu0 %v329, 20
  %v4240 = vpop.permute.xlu0 %4239
  %4241 = vrot.lane.b32.xlu0 %v330, 20
  %v4242 = vpop.permute.xlu0 %4241
  %4243 = vrot.lane.b32.xlu0 %v331, 20
  %v4244 = vpop.permute.xlu0 %4243
  %4517 = vrot.lane.b32.xlu0 %v62, 24
  %v4518 = vpop.permute.xlu0 %4517
  %4519 = vrot.lane.b32.xlu0 %v63, 24
  %v4520 = vpop.permute.xlu0 %4519
  %4521 = vrot.lane.b32.xlu0 %v64, 24
  %v4522 = vpop.permute.xlu0 %4521
  %4523 = vrot.lane.b32.xlu0 %v65, 24
  %v4524 = vpop.permute.xlu0 %4523
  %4525 = vrot.lane.b32.xlu0 %v66, 24
  %v4526 = vpop.permute.xlu0 %4525
  %4527 = vrot.lane.b32.xlu0 %v67, 24
  %v4528 = vpop.permute.xlu0 %4527
  %4529 = vrot.lane.b32.xlu0 %v68, 24
  %v4530 = vpop.permute.xlu0 %4529
  %4531 = vrot.lane.b32.xlu0 %v69, 24
  %v4532 = vpop.permute.xlu0 %4531
  %4533 = vrot.lane.b32.xlu0 %v70, 24
  %v4534 = vpop.permute.xlu0 %4533
  %4535 = vrot.lane.b32.xlu0 %v71, 24
  %v4536 = vpop.permute.xlu0 %4535
  %4537 = vrot.lane.b32.xlu0 %v72, 24
  %v4538 = vpop.permute.xlu0 %4537
  %4539 = vrot.lane.b32.xlu0 %v73, 24
  %v4540 = vpop.permute.xlu0 %4539
  %4541 = vrot.lane.b32.xlu0 %v74, 24
  %v4542 = vpop.permute.xlu0 %4541
  %4543 = vrot.lane.b32.xlu0 %v75, 24
  %v4544 = vpop.permute.xlu0 %4543
  %4545 = vrot.lane.b32.xlu0 %v76, 24
  %v4546 = vpop.permute.xlu0 %4545
  %4547 = vrot.lane.b32.xlu0 %v77, 24
  %v4548 = vpop.permute.xlu0 %4547
  %4549 = vrot.lane.b32.xlu0 %v80, 24
  %v4550 = vpop.permute.xlu0 %4549
  %4551 = vrot.lane.b32.xlu0 %v81, 24
  %v4552 = vpop.permute.xlu0 %4551
  %4553 = vrot.lane.b32.xlu0 %v82, 24
  %v4554 = vpop.permute.xlu0 %4553
  %4555 = vrot.lane.b32.xlu0 %v83, 24
  %v4556 = vpop.permute.xlu0 %4555
  %4557 = vrot.lane.b32.xlu0 %v84, 24
  %v4558 = vpop.permute.xlu0 %4557
  %4559 = vrot.lane.b32.xlu0 %v85, 24
  %v4560 = vpop.permute.xlu0 %4559
  %4561 = vrot.lane.b32.xlu0 %v86, 24
  %v4562 = vpop.permute.xlu0 %4561
  %4563 = vrot.lane.b32.xlu0 %v87, 24
  %v4564 = vpop.permute.xlu0 %4563
  %4565 = vrot.lane.b32.xlu0 %v88, 24
  %v4566 = vpop.permute.xlu0 %4565
  %4567 = vrot.lane.b32.xlu0 %v89, 24
  %v4568 = vpop.permute.xlu0 %4567
  %4569 = vrot.lane.b32.xlu0 %v90, 24
  %v4570 = vpop.permute.xlu0 %4569
  %4571 = vrot.lane.b32.xlu0 %v91, 24
  %v4572 = vpop.permute.xlu0 %4571
  %4573 = vrot.lane.b32.xlu0 %v92, 24
  %v4574 = vpop.permute.xlu0 %4573
  %4575 = vrot.lane.b32.xlu0 %v93, 24
  %v4576 = vpop.permute.xlu0 %4575
  %4577 = vrot.lane.b32.xlu0 %v94, 24
  %v4578 = vpop.permute.xlu0 %4577
  %4579 = vrot.lane.b32.xlu0 %v95, 24
  %v4580 = vpop.permute.xlu0 %4579
  %4581 = vrot.lane.b32.xlu0 %v98, 24
  %v4582 = vpop.permute.xlu0 %4581
  %4583 = vrot.lane.b32.xlu0 %v99, 24
  %v4584 = vpop.permute.xlu0 %4583
  %4585 = vrot.lane.b32.xlu0 %v100, 24
  %v4586 = vpop.permute.xlu0 %4585
  %4587 = vrot.lane.b32.xlu0 %v101, 24
  %v4588 = vpop.permute.xlu0 %4587
  %4589 = vrot.lane.b32.xlu0 %v102, 24
  %v4590 = vpop.permute.xlu0 %4589
  %4591 = vrot.lane.b32.xlu0 %v103, 24
  %v4592 = vpop.permute.xlu0 %4591
  %4593 = vrot.lane.b32.xlu0 %v104, 24
  %v4594 = vpop.permute.xlu0 %4593
  %4595 = vrot.lane.b32.xlu0 %v105, 24
  %v4596 = vpop.permute.xlu0 %4595
  %4597 = vrot.lane.b32.xlu0 %v106, 24
  %v4598 = vpop.permute.xlu0 %4597
  %4599 = vrot.lane.b32.xlu0 %v107, 24
  %v4600 = vpop.permute.xlu0 %4599
  %4601 = vrot.lane.b32.xlu0 %v108, 24
  %v4602 = vpop.permute.xlu0 %4601
  %4603 = vrot.lane.b32.xlu0 %v109, 24
  %v4604 = vpop.permute.xlu0 %4603
  %4605 = vrot.lane.b32.xlu0 %v110, 24
  %v4606 = vpop.permute.xlu0 %4605
  %4607 = vrot.lane.b32.xlu0 %v111, 24
  %v4608 = vpop.permute.xlu0 %4607
  %4609 = vrot.lane.b32.xlu0 %v112, 24
  %v4610 = vpop.permute.xlu0 %4609
  %4611 = vrot.lane.b32.xlu0 %v113, 24
  %v4612 = vpop.permute.xlu0 %4611
  %4613 = vrot.lane.b32.xlu0 %v116, 24
  %v4614 = vpop.permute.xlu0 %4613
  %4615 = vrot.lane.b32.xlu0 %v117, 24
  %v4616 = vpop.permute.xlu0 %4615
  %4617 = vrot.lane.b32.xlu0 %v118, 24
  %v4618 = vpop.permute.xlu0 %4617
  %4619 = vrot.lane.b32.xlu0 %v119, 24
  %v4620 = vpop.permute.xlu0 %4619
  %4621 = vrot.lane.b32.xlu0 %v120, 24
  %v4622 = vpop.permute.xlu0 %4621
  %4623 = vrot.lane.b32.xlu0 %v121, 24
  %v4624 = vpop.permute.xlu0 %4623
  %4625 = vrot.lane.b32.xlu0 %v122, 24
  %v4626 = vpop.permute.xlu0 %4625
  %4627 = vrot.lane.b32.xlu0 %v123, 24
  %v4628 = vpop.permute.xlu0 %4627
  %4629 = vrot.lane.b32.xlu0 %v124, 24
  %v4630 = vpop.permute.xlu0 %4629
  %4631 = vrot.lane.b32.xlu0 %v125, 24
  %v4632 = vpop.permute.xlu0 %4631
  %4633 = vrot.lane.b32.xlu0 %v126, 24
  %v4634 = vpop.permute.xlu0 %4633
  %4635 = vrot.lane.b32.xlu0 %v127, 24
  %v4636 = vpop.permute.xlu0 %4635
  %4637 = vrot.lane.b32.xlu0 %v128, 24
  %v4638 = vpop.permute.xlu0 %4637
  %4639 = vrot.lane.b32.xlu0 %v129, 24
  %v4640 = vpop.permute.xlu0 %4639
  %4641 = vrot.lane.b32.xlu0 %v130, 24
  %v4642 = vpop.permute.xlu0 %4641
  %4643 = vrot.lane.b32.xlu0 %v131, 24
  %v4644 = vpop.permute.xlu0 %4643
  %4645 = vrot.lane.b32.xlu0 %v134, 24
  %v4646 = vpop.permute.xlu0 %4645
  %4647 = vrot.lane.b32.xlu0 %v135, 24
  %v4648 = vpop.permute.xlu0 %4647
  %4649 = vrot.lane.b32.xlu0 %v136, 24
  %v4650 = vpop.permute.xlu0 %4649
  %4651 = vrot.lane.b32.xlu0 %v137, 24
  %v4652 = vpop.permute.xlu0 %4651
  %4653 = vrot.lane.b32.xlu0 %v138, 24
  %v4654 = vpop.permute.xlu0 %4653
  %4655 = vrot.lane.b32.xlu0 %v139, 24
  %v4656 = vpop.permute.xlu0 %4655
  %4657 = vrot.lane.b32.xlu0 %v140, 24
  %v4658 = vpop.permute.xlu0 %4657
  %4659 = vrot.lane.b32.xlu0 %v141, 24
  %v4660 = vpop.permute.xlu0 %4659
  %4661 = vrot.lane.b32.xlu0 %v142, 24
  %v4662 = vpop.permute.xlu0 %4661
  %4663 = vrot.lane.b32.xlu0 %v143, 24
  %v4664 = vpop.permute.xlu0 %4663
  %4665 = vrot.lane.b32.xlu0 %v144, 24
  %v4666 = vpop.permute.xlu0 %4665
  %4667 = vrot.lane.b32.xlu0 %v145, 24
  %v4668 = vpop.permute.xlu0 %4667
  %4669 = vrot.lane.b32.xlu0 %v146, 24
  %v4670 = vpop.permute.xlu0 %4669
  %4671 = vrot.lane.b32.xlu0 %v147, 24
  %v4672 = vpop.permute.xlu0 %4671
  %4673 = vrot.lane.b32.xlu0 %v148, 24
  %v4674 = vpop.permute.xlu0 %4673
  %4675 = vrot.lane.b32.xlu0 %v149, 24
  %v4676 = vpop.permute.xlu0 %4675
  %4677 = vrot.lane.b32.xlu0 %v152, 24
  %v4678 = vpop.permute.xlu0 %4677
  %4679 = vrot.lane.b32.xlu0 %v153, 24
  %v4680 = vpop.permute.xlu0 %4679
  %4681 = vrot.lane.b32.xlu0 %v154, 24
  %v4682 = vpop.permute.xlu0 %4681
  %4683 = vrot.lane.b32.xlu0 %v155, 24
  %v4684 = vpop.permute.xlu0 %4683
  %4685 = vrot.lane.b32.xlu0 %v156, 24
  %v4686 = vpop.permute.xlu0 %4685
  %4687 = vrot.lane.b32.xlu0 %v157, 24
  %v4688 = vpop.permute.xlu0 %4687
  %4689 = vrot.lane.b32.xlu0 %v158, 24
  %v4690 = vpop.permute.xlu0 %4689
  %4691 = vrot.lane.b32.xlu0 %v159, 24
  %v4692 = vpop.permute.xlu0 %4691
  %4693 = vrot.lane.b32.xlu0 %v160, 24
  %v4694 = vpop.permute.xlu0 %4693
  %4695 = vrot.lane.b32.xlu0 %v161, 24
  %v4696 = vpop.permute.xlu0 %4695
  %4697 = vrot.lane.b32.xlu0 %v162, 24
  %v4698 = vpop.permute.xlu0 %4697
  %4699 = vrot.lane.b32.xlu0 %v163, 24
  %v4700 = vpop.permute.xlu0 %4699
  %4701 = vrot.lane.b32.xlu0 %v164, 24
  %v4702 = vpop.permute.xlu0 %4701
  %4703 = vrot.lane.b32.xlu0 %v165, 24
  %v4704 = vpop.permute.xlu0 %4703
  %4705 = vrot.lane.b32.xlu0 %v166, 24
  %v4706 = vpop.permute.xlu0 %4705
  %4707 = vrot.lane.b32.xlu0 %v167, 24
  %v4708 = vpop.permute.xlu0 %4707
  %4709 = vrot.lane.b32.xlu0 %v170, 24
  %v4710 = vpop.permute.xlu0 %4709
  %4711 = vrot.lane.b32.xlu0 %v171, 24
  %v4712 = vpop.permute.xlu0 %4711
  %4713 = vrot.lane.b32.xlu0 %v172, 24
  %v4714 = vpop.permute.xlu0 %4713
  %4715 = vrot.lane.b32.xlu0 %v173, 24
  %v4716 = vpop.permute.xlu0 %4715
  %4717 = vrot.lane.b32.xlu0 %v174, 24
  %v4718 = vpop.permute.xlu0 %4717
  %4719 = vrot.lane.b32.xlu0 %v175, 24
  %v4720 = vpop.permute.xlu0 %4719
  %4721 = vrot.lane.b32.xlu0 %v176, 24
  %v4722 = vpop.permute.xlu0 %4721
  %4723 = vrot.lane.b32.xlu0 %v177, 24
  %v4724 = vpop.permute.xlu0 %4723
  %4725 = vrot.lane.b32.xlu0 %v178, 24
  %v4726 = vpop.permute.xlu0 %4725
  %4727 = vrot.lane.b32.xlu0 %v179, 24
  %v4728 = vpop.permute.xlu0 %4727
  %4729 = vrot.lane.b32.xlu0 %v180, 24
  %v4730 = vpop.permute.xlu0 %4729
  %4731 = vrot.lane.b32.xlu0 %v181, 24
  %v4732 = vpop.permute.xlu0 %4731
  %4733 = vrot.lane.b32.xlu0 %v182, 24
  %v4734 = vpop.permute.xlu0 %4733
  %4735 = vrot.lane.b32.xlu0 %v183, 24
  %v4736 = vpop.permute.xlu0 %4735
  %4737 = vrot.lane.b32.xlu0 %v184, 24
  %v4738 = vpop.permute.xlu0 %4737
  %4739 = vrot.lane.b32.xlu0 %v185, 24
  %v4740 = vpop.permute.xlu0 %4739
  %4741 = vrot.lane.b32.xlu0 %v188, 24
  %v4742 = vpop.permute.xlu0 %4741
  %4743 = vrot.lane.b32.xlu0 %v189, 24
  %v4744 = vpop.permute.xlu0 %4743
  %4745 = vrot.lane.b32.xlu0 %v190, 24
  %v4746 = vpop.permute.xlu0 %4745
  %4747 = vrot.lane.b32.xlu0 %v191, 24
  %v4748 = vpop.permute.xlu0 %4747
  %4749 = vrot.lane.b32.xlu0 %v192, 24
  %v4750 = vpop.permute.xlu0 %4749
  %4751 = vrot.lane.b32.xlu0 %v193, 24
  %v4752 = vpop.permute.xlu0 %4751
  %4753 = vrot.lane.b32.xlu0 %v194, 24
  %v4754 = vpop.permute.xlu0 %4753
  %4755 = vrot.lane.b32.xlu0 %v195, 24
  %v4756 = vpop.permute.xlu0 %4755
  %4757 = vrot.lane.b32.xlu0 %v196, 24
  %v4758 = vpop.permute.xlu0 %4757
  %4759 = vrot.lane.b32.xlu0 %v197, 24
  %v4760 = vpop.permute.xlu0 %4759
  %4761 = vrot.lane.b32.xlu0 %v198, 24
  %v4762 = vpop.permute.xlu0 %4761
  %4763 = vrot.lane.b32.xlu0 %v199, 24
  %v4764 = vpop.permute.xlu0 %4763
  %4765 = vrot.lane.b32.xlu0 %v200, 24
  %v4766 = vpop.permute.xlu0 %4765
  %4767 = vrot.lane.b32.xlu0 %v201, 24
  %v4768 = vpop.permute.xlu0 %4767
  %4769 = vrot.lane.b32.xlu0 %v202, 24
  %v4770 = vpop.permute.xlu0 %4769
  %4771 = vrot.lane.b32.xlu0 %v203, 24
  %v4772 = vpop.permute.xlu0 %4771
  %4773 = vrot.lane.b32.xlu0 %v206, 24
  %v4774 = vpop.permute.xlu0 %4773
  %4775 = vrot.lane.b32.xlu0 %v207, 24
  %v4776 = vpop.permute.xlu0 %4775
  %4777 = vrot.lane.b32.xlu0 %v208, 24
  %v4778 = vpop.permute.xlu0 %4777
  %4779 = vrot.lane.b32.xlu0 %v209, 24
  %v4780 = vpop.permute.xlu0 %4779
  %4781 = vrot.lane.b32.xlu0 %v210, 24
  %v4782 = vpop.permute.xlu0 %4781
  %4783 = vrot.lane.b32.xlu0 %v211, 24
  %v4784 = vpop.permute.xlu0 %4783
  %4785 = vrot.lane.b32.xlu0 %v212, 24
  %v4786 = vpop.permute.xlu0 %4785
  %4787 = vrot.lane.b32.xlu0 %v213, 24
  %v4788 = vpop.permute.xlu0 %4787
  %4789 = vrot.lane.b32.xlu0 %v214, 24
  %v4790 = vpop.permute.xlu0 %4789
  %4791 = vrot.lane.b32.xlu0 %v215, 24
  %v4792 = vpop.permute.xlu0 %4791
  %4793 = vrot.lane.b32.xlu0 %v216, 24
  %v4794 = vpop.permute.xlu0 %4793
  %4795 = vrot.lane.b32.xlu0 %v217, 24
  %v4796 = vpop.permute.xlu0 %4795
  %4797 = vrot.lane.b32.xlu0 %v218, 24
  %v4798 = vpop.permute.xlu0 %4797
  %4799 = vrot.lane.b32.xlu0 %v219, 24
  %v4800 = vpop.permute.xlu0 %4799
  %4801 = vrot.lane.b32.xlu0 %v220, 24
  %v4802 = vpop.permute.xlu0 %4801
  %4803 = vrot.lane.b32.xlu0 %v221, 24
  %v4804 = vpop.permute.xlu0 %4803
  %4805 = vrot.lane.b32.xlu0 %v224, 24
  %v4806 = vpop.permute.xlu0 %4805
  %4807 = vrot.lane.b32.xlu0 %v225, 24
  %v4808 = vpop.permute.xlu0 %4807
  %4809 = vrot.lane.b32.xlu0 %v226, 24
  %v4810 = vpop.permute.xlu0 %4809
  %4811 = vrot.lane.b32.xlu0 %v227, 24
  %v4812 = vpop.permute.xlu0 %4811
  %4813 = vrot.lane.b32.xlu0 %v228, 24
  %v4814 = vpop.permute.xlu0 %4813
  %4815 = vrot.lane.b32.xlu0 %v229, 24
  %v4816 = vpop.permute.xlu0 %4815
  %4817 = vrot.lane.b32.xlu0 %v230, 24
  %v4818 = vpop.permute.xlu0 %4817
  %4819 = vrot.lane.b32.xlu0 %v231, 24
  %v4820 = vpop.permute.xlu0 %4819
  %4821 = vrot.lane.b32.xlu0 %v232, 24
  %v4822 = vpop.permute.xlu0 %4821
  %4823 = vrot.lane.b32.xlu0 %v233, 24
  %v4824 = vpop.permute.xlu0 %4823
  %4825 = vrot.lane.b32.xlu0 %v234, 24
  %v4826 = vpop.permute.xlu0 %4825
  %4827 = vrot.lane.b32.xlu0 %v235, 24
  %v4828 = vpop.permute.xlu0 %4827
  %4829 = vrot.lane.b32.xlu0 %v236, 24
  %v4830 = vpop.permute.xlu0 %4829
  %4831 = vrot.lane.b32.xlu0 %v237, 24
  %v4832 = vpop.permute.xlu0 %4831
  %4833 = vrot.lane.b32.xlu0 %v238, 24
  %v4834 = vpop.permute.xlu0 %4833
  %4835 = vrot.lane.b32.xlu0 %v239, 24
  %v4836 = vpop.permute.xlu0 %4835
  %4837 = vrot.lane.b32.xlu0 %v242, 24
  %v4838 = vpop.permute.xlu0 %4837
  %4839 = vrot.lane.b32.xlu0 %v243, 24
  %v4840 = vpop.permute.xlu0 %4839
  %4841 = vrot.lane.b32.xlu0 %v244, 24
  %v4842 = vpop.permute.xlu0 %4841
  %4843 = vrot.lane.b32.xlu0 %v245, 24
  %v4844 = vpop.permute.xlu0 %4843
  %4845 = vrot.lane.b32.xlu0 %v246, 24
  %v4846 = vpop.permute.xlu0 %4845
  %4847 = vrot.lane.b32.xlu0 %v247, 24
  %v4848 = vpop.permute.xlu0 %4847
  %4849 = vrot.lane.b32.xlu0 %v248, 24
  %v4850 = vpop.permute.xlu0 %4849
  %4851 = vrot.lane.b32.xlu0 %v249, 24
  %v4852 = vpop.permute.xlu0 %4851
  %4853 = vrot.lane.b32.xlu0 %v250, 24
  %v4854 = vpop.permute.xlu0 %4853
  %4855 = vrot.lane.b32.xlu0 %v251, 24
  %v4856 = vpop.permute.xlu0 %4855
  %4857 = vrot.lane.b32.xlu0 %v252, 24
  %v4858 = vpop.permute.xlu0 %4857
  %4859 = vrot.lane.b32.xlu0 %v253, 24
  %v4860 = vpop.permute.xlu0 %4859
  %4861 = vrot.lane.b32.xlu0 %v254, 24
  %v4862 = vpop.permute.xlu0 %4861
  %4863 = vrot.lane.b32.xlu0 %v255, 24
  %v4864 = vpop.permute.xlu0 %4863
  %4865 = vrot.lane.b32.xlu0 %v256, 24
  %v4866 = vpop.permute.xlu0 %4865
  %4867 = vrot.lane.b32.xlu0 %v257, 24
  %v4868 = vpop.permute.xlu0 %4867
  %4869 = vrot.lane.b32.xlu0 %v260, 24
  %v4870 = vpop.permute.xlu0 %4869
  %4871 = vrot.lane.b32.xlu0 %v261, 24
  %v4872 = vpop.permute.xlu0 %4871
  %4873 = vrot.lane.b32.xlu0 %v262, 24
  %v4874 = vpop.permute.xlu0 %4873
  %4875 = vrot.lane.b32.xlu0 %v263, 24
  %v4876 = vpop.permute.xlu0 %4875
  %4877 = vrot.lane.b32.xlu0 %v264, 24
  %v4878 = vpop.permute.xlu0 %4877
  %4879 = vrot.lane.b32.xlu0 %v265, 24
  %v4880 = vpop.permute.xlu0 %4879
  %4881 = vrot.lane.b32.xlu0 %v266, 24
  %v4882 = vpop.permute.xlu0 %4881
  %4883 = vrot.lane.b32.xlu0 %v267, 24
  %v4884 = vpop.permute.xlu0 %4883
  %4885 = vrot.lane.b32.xlu0 %v268, 24
  %v4886 = vpop.permute.xlu0 %4885
  %4887 = vrot.lane.b32.xlu0 %v269, 24
  %v4888 = vpop.permute.xlu0 %4887
  %4889 = vrot.lane.b32.xlu0 %v270, 24
  %v4890 = vpop.permute.xlu0 %4889
  %4891 = vrot.lane.b32.xlu0 %v271, 24
  %v4892 = vpop.permute.xlu0 %4891
  %4893 = vrot.lane.b32.xlu0 %v272, 24
  %v4894 = vpop.permute.xlu0 %4893
  %4895 = vrot.lane.b32.xlu0 %v273, 24
  %v4896 = vpop.permute.xlu0 %4895
  %4897 = vrot.lane.b32.xlu0 %v274, 24
  %v4898 = vpop.permute.xlu0 %4897
  %4899 = vrot.lane.b32.xlu0 %v275, 24
  %v4900 = vpop.permute.xlu0 %4899
  %4901 = vrot.lane.b32.xlu0 %v278, 24
  %v4902 = vpop.permute.xlu0 %4901
  %4903 = vrot.lane.b32.xlu0 %v279, 24
  %v4904 = vpop.permute.xlu0 %4903
  %4905 = vrot.lane.b32.xlu0 %v280, 24
  %v4906 = vpop.permute.xlu0 %4905
  %4907 = vrot.lane.b32.xlu0 %v281, 24
  %v4908 = vpop.permute.xlu0 %4907
  %4909 = vrot.lane.b32.xlu0 %v282, 24
  %v4910 = vpop.permute.xlu0 %4909
  %4911 = vrot.lane.b32.xlu0 %v283, 24
  %v4912 = vpop.permute.xlu0 %4911
  %4913 = vrot.lane.b32.xlu0 %v284, 24
  %v4914 = vpop.permute.xlu0 %4913
  %4915 = vrot.lane.b32.xlu0 %v285, 24
  %v4916 = vpop.permute.xlu0 %4915
  %4917 = vrot.lane.b32.xlu0 %v286, 24
  %v4918 = vpop.permute.xlu0 %4917
  %4919 = vrot.lane.b32.xlu0 %v287, 24
  %v4920 = vpop.permute.xlu0 %4919
  %4921 = vrot.lane.b32.xlu0 %v288, 24
  %v4922 = vpop.permute.xlu0 %4921
  %4923 = vrot.lane.b32.xlu0 %v289, 24
  %v4924 = vpop.permute.xlu0 %4923
  %4925 = vrot.lane.b32.xlu0 %v290, 24
  %v4926 = vpop.permute.xlu0 %4925
  %4927 = vrot.lane.b32.xlu0 %v291, 24
  %v4928 = vpop.permute.xlu0 %4927
  %4929 = vrot.lane.b32.xlu0 %v292, 24
  %v4930 = vpop.permute.xlu0 %4929
  %4931 = vrot.lane.b32.xlu0 %v293, 24
  %v4932 = vpop.permute.xlu0 %4931
  %4933 = vrot.lane.b32.xlu0 %v296, 24
  %v4934 = vpop.permute.xlu0 %4933
  %4935 = vrot.lane.b32.xlu0 %v297, 24
  %v4936 = vpop.permute.xlu0 %4935
  %4937 = vrot.lane.b32.xlu0 %v298, 24
  %v4938 = vpop.permute.xlu0 %4937
  %4939 = vrot.lane.b32.xlu0 %v299, 24
  %v4940 = vpop.permute.xlu0 %4939
  %4941 = vrot.lane.b32.xlu0 %v300, 24
  %v4942 = vpop.permute.xlu0 %4941
  %4943 = vrot.lane.b32.xlu0 %v301, 24
  %v4944 = vpop.permute.xlu0 %4943
  %4945 = vrot.lane.b32.xlu0 %v302, 24
  %v4946 = vpop.permute.xlu0 %4945
  %4947 = vrot.lane.b32.xlu0 %v303, 24
  %v4948 = vpop.permute.xlu0 %4947
  %4949 = vrot.lane.b32.xlu0 %v304, 24
  %v4950 = vpop.permute.xlu0 %4949
  %4951 = vrot.lane.b32.xlu0 %v305, 24
  %v4952 = vpop.permute.xlu0 %4951
  %4953 = vrot.lane.b32.xlu0 %v306, 24
  %v4954 = vpop.permute.xlu0 %4953
  %4955 = vrot.lane.b32.xlu0 %v307, 24
  %v4956 = vpop.permute.xlu0 %4955
  %4957 = vrot.lane.b32.xlu0 %v308, 24
  %v4958 = vpop.permute.xlu0 %4957
  %4959 = vrot.lane.b32.xlu0 %v309, 24
  %v4960 = vpop.permute.xlu0 %4959
  %4961 = vrot.lane.b32.xlu0 %v310, 24
  %v4962 = vpop.permute.xlu0 %4961
  %4963 = vrot.lane.b32.xlu0 %v311, 24
  %v4964 = vpop.permute.xlu0 %4963
  %4965 = vrot.lane.b32.xlu0 %v314, 24
  %v4966 = vpop.permute.xlu0 %4965
  %4967 = vrot.lane.b32.xlu0 %v315, 24
  %v4968 = vpop.permute.xlu0 %4967
  %4969 = vrot.lane.b32.xlu0 %v316, 24
  %v4970 = vpop.permute.xlu0 %4969
  %4971 = vrot.lane.b32.xlu0 %v317, 24
  %v4972 = vpop.permute.xlu0 %4971
  %4973 = vrot.lane.b32.xlu0 %v318, 24
  %v4974 = vpop.permute.xlu0 %4973
  %4975 = vrot.lane.b32.xlu0 %v319, 24
  %v4976 = vpop.permute.xlu0 %4975
  %4977 = vrot.lane.b32.xlu0 %v320, 24
  %v4978 = vpop.permute.xlu0 %4977
  %4979 = vrot.lane.b32.xlu0 %v321, 24
  %v4980 = vpop.permute.xlu0 %4979
  %4981 = vrot.lane.b32.xlu0 %v322, 24
  %v4982 = vpop.permute.xlu0 %4981
  %4983 = vrot.lane.b32.xlu0 %v323, 24
  %v4984 = vpop.permute.xlu0 %4983
  %4985 = vrot.lane.b32.xlu0 %v324, 24
  %v4986 = vpop.permute.xlu0 %4985
  %4987 = vrot.lane.b32.xlu0 %v325, 24
  %v4988 = vpop.permute.xlu0 %4987
  %4989 = vrot.lane.b32.xlu0 %v326, 24
  %v4990 = vpop.permute.xlu0 %4989
  %4991 = vrot.lane.b32.xlu0 %v327, 24
  %v4992 = vpop.permute.xlu0 %4991
  %4993 = vrot.lane.b32.xlu0 %v328, 24
  %v4994 = vpop.permute.xlu0 %4993
  %4995 = vrot.lane.b32.xlu0 %v329, 24
  %v4996 = vpop.permute.xlu0 %4995
  %4997 = vrot.lane.b32.xlu0 %v332, 24
  %v4998 = vpop.permute.xlu0 %4997
  %4999 = vrot.lane.b32.xlu0 %v333, 24
  %v5000 = vpop.permute.xlu0 %4999
  %5001 = vrot.lane.b32.xlu0 %v334, 24
  %v5002 = vpop.permute.xlu0 %5001
  %5003 = vrot.lane.b32.xlu0 %v335, 24
  %v5004 = vpop.permute.xlu0 %5003
  %5005 = vrot.lane.b32.xlu0 %v336, 24
  %v5006 = vpop.permute.xlu0 %5005
  %5007 = vrot.lane.b32.xlu0 %v337, 24
  %v5008 = vpop.permute.xlu0 %5007
  %5009 = vrot.lane.b32.xlu0 %v338, 24
  %v5010 = vpop.permute.xlu0 %5009
  %5011 = vrot.lane.b32.xlu0 %v339, 24
  %v5012 = vpop.permute.xlu0 %5011
  %5013 = vrot.lane.b32.xlu0 %v340, 24
  %v5014 = vpop.permute.xlu0 %5013
  %5015 = vrot.lane.b32.xlu0 %v341, 24
  %v5016 = vpop.permute.xlu0 %5015
  %5017 = vrot.lane.b32.xlu0 %v342, 24
  %v5018 = vpop.permute.xlu0 %5017
  %5019 = vrot.lane.b32.xlu0 %v343, 24
  %v5020 = vpop.permute.xlu0 %5019
  %5021 = vrot.lane.b32.xlu0 %v344, 24
  %v5022 = vpop.permute.xlu0 %5021
  %5023 = vrot.lane.b32.xlu0 %v345, 24
  %v5024 = vpop.permute.xlu0 %5023
  %5025 = vrot.lane.b32.xlu0 %v346, 24
  %v5026 = vpop.permute.xlu0 %5025
  %5027 = vrot.lane.b32.xlu0 %v347, 24
  %v5028 = vpop.permute.xlu0 %5027
  %5286 = vrot.lane.b32.xlu0 %v63, 28
  %v5287 = vpop.permute.xlu0 %5286
  %5288 = vrot.lane.b32.xlu0 %v64, 28
  %v5289 = vpop.permute.xlu0 %5288
  %5290 = vrot.lane.b32.xlu0 %v65, 28
  %v5291 = vpop.permute.xlu0 %5290
  %5292 = vrot.lane.b32.xlu0 %v66, 28
  %v5293 = vpop.permute.xlu0 %5292
  %5294 = vrot.lane.b32.xlu0 %v67, 28
  %v5295 = vpop.permute.xlu0 %5294
  %5296 = vrot.lane.b32.xlu0 %v68, 28
  %v5297 = vpop.permute.xlu0 %5296
  %5298 = vrot.lane.b32.xlu0 %v69, 28
  %v5299 = vpop.permute.xlu0 %5298
  %5300 = vrot.lane.b32.xlu0 %v70, 28
  %v5301 = vpop.permute.xlu0 %5300
  %5302 = vrot.lane.b32.xlu0 %v71, 28
  %v5303 = vpop.permute.xlu0 %5302
  %5304 = vrot.lane.b32.xlu0 %v72, 28
  %v5305 = vpop.permute.xlu0 %5304
  %5306 = vrot.lane.b32.xlu0 %v73, 28
  %v5307 = vpop.permute.xlu0 %5306
  %5308 = vrot.lane.b32.xlu0 %v74, 28
  %v5309 = vpop.permute.xlu0 %5308
  %5310 = vrot.lane.b32.xlu0 %v75, 28
  %v5311 = vpop.permute.xlu0 %5310
  %5312 = vrot.lane.b32.xlu0 %v76, 28
  %v5313 = vpop.permute.xlu0 %5312
  %5314 = vrot.lane.b32.xlu0 %v77, 28
  %v5315 = vpop.permute.xlu0 %5314
  %5316 = vrot.lane.b32.xlu0 %v78, 28
  %v5317 = vpop.permute.xlu0 %5316
  %5318 = vrot.lane.b32.xlu0 %v81, 28
  %v5319 = vpop.permute.xlu0 %5318
  %5320 = vrot.lane.b32.xlu0 %v82, 28
  %v5321 = vpop.permute.xlu0 %5320
  %5322 = vrot.lane.b32.xlu0 %v83, 28
  %v5323 = vpop.permute.xlu0 %5322
  %5324 = vrot.lane.b32.xlu0 %v84, 28
  %v5325 = vpop.permute.xlu0 %5324
  %5326 = vrot.lane.b32.xlu0 %v85, 28
  %v5327 = vpop.permute.xlu0 %5326
  %5328 = vrot.lane.b32.xlu0 %v86, 28
  %v5329 = vpop.permute.xlu0 %5328
  %5330 = vrot.lane.b32.xlu0 %v87, 28
  %v5331 = vpop.permute.xlu0 %5330
  %5332 = vrot.lane.b32.xlu0 %v88, 28
  %v5333 = vpop.permute.xlu0 %5332
  %5334 = vrot.lane.b32.xlu0 %v89, 28
  %v5335 = vpop.permute.xlu0 %5334
  %5336 = vrot.lane.b32.xlu0 %v90, 28
  %v5337 = vpop.permute.xlu0 %5336
  %5338 = vrot.lane.b32.xlu0 %v91, 28
  %v5339 = vpop.permute.xlu0 %5338
  %5340 = vrot.lane.b32.xlu0 %v92, 28
  %v5341 = vpop.permute.xlu0 %5340
  %5342 = vrot.lane.b32.xlu0 %v93, 28
  %v5343 = vpop.permute.xlu0 %5342
  %5344 = vrot.lane.b32.xlu0 %v94, 28
  %v5345 = vpop.permute.xlu0 %5344
  %5346 = vrot.lane.b32.xlu0 %v95, 28
  %v5347 = vpop.permute.xlu0 %5346
  %5348 = vrot.lane.b32.xlu0 %v96, 28
  %v5349 = vpop.permute.xlu0 %5348
  %5350 = vrot.lane.b32.xlu0 %v99, 28
  %v5351 = vpop.permute.xlu0 %5350
  %5352 = vrot.lane.b32.xlu0 %v100, 28
  %v5353 = vpop.permute.xlu0 %5352
  %5354 = vrot.lane.b32.xlu0 %v101, 28
  %v5355 = vpop.permute.xlu0 %5354
  %5356 = vrot.lane.b32.xlu0 %v102, 28
  %v5357 = vpop.permute.xlu0 %5356
  %5358 = vrot.lane.b32.xlu0 %v103, 28
  %v5359 = vpop.permute.xlu0 %5358
  %5360 = vrot.lane.b32.xlu0 %v104, 28
  %v5361 = vpop.permute.xlu0 %5360
  %5362 = vrot.lane.b32.xlu0 %v105, 28
  %v5363 = vpop.permute.xlu0 %5362
  %5364 = vrot.lane.b32.xlu0 %v106, 28
  %v5365 = vpop.permute.xlu0 %5364
  %5366 = vrot.lane.b32.xlu0 %v107, 28
  %v5367 = vpop.permute.xlu0 %5366
  %5368 = vrot.lane.b32.xlu0 %v108, 28
  %v5369 = vpop.permute.xlu0 %5368
  %5370 = vrot.lane.b32.xlu0 %v109, 28
  %v5371 = vpop.permute.xlu0 %5370
  %5372 = vrot.lane.b32.xlu0 %v110, 28
  %v5373 = vpop.permute.xlu0 %5372
  %5374 = vrot.lane.b32.xlu0 %v111, 28
  %v5375 = vpop.permute.xlu0 %5374
  %5376 = vrot.lane.b32.xlu0 %v112, 28
  %v5377 = vpop.permute.xlu0 %5376
  %5378 = vrot.lane.b32.xlu0 %v113, 28
  %v5379 = vpop.permute.xlu0 %5378
  %5380 = vrot.lane.b32.xlu0 %v114, 28
  %v5381 = vpop.permute.xlu0 %5380
  %5382 = vrot.lane.b32.xlu0 %v117, 28
  %v5383 = vpop.permute.xlu0 %5382
  %5384 = vrot.lane.b32.xlu0 %v118, 28
  %v5385 = vpop.permute.xlu0 %5384
  %5386 = vrot.lane.b32.xlu0 %v119, 28
  %v5387 = vpop.permute.xlu0 %5386
  %5388 = vrot.lane.b32.xlu0 %v120, 28
  %v5389 = vpop.permute.xlu0 %5388
  %5390 = vrot.lane.b32.xlu0 %v121, 28
  %v5391 = vpop.permute.xlu0 %5390
  %5392 = vrot.lane.b32.xlu0 %v122, 28
  %v5393 = vpop.permute.xlu0 %5392
  %5394 = vrot.lane.b32.xlu0 %v123, 28
  %v5395 = vpop.permute.xlu0 %5394
  %5396 = vrot.lane.b32.xlu0 %v124, 28
  %v5397 = vpop.permute.xlu0 %5396
  %5398 = vrot.lane.b32.xlu0 %v125, 28
  %v5399 = vpop.permute.xlu0 %5398
  %5400 = vrot.lane.b32.xlu0 %v126, 28
  %v5401 = vpop.permute.xlu0 %5400
  %5402 = vrot.lane.b32.xlu0 %v127, 28
  %v5403 = vpop.permute.xlu0 %5402
  %5404 = vrot.lane.b32.xlu0 %v128, 28
  %v5405 = vpop.permute.xlu0 %5404
  %5406 = vrot.lane.b32.xlu0 %v129, 28
  %v5407 = vpop.permute.xlu0 %5406
  %5408 = vrot.lane.b32.xlu0 %v130, 28
  %v5409 = vpop.permute.xlu0 %5408
  %5410 = vrot.lane.b32.xlu0 %v131, 28
  %v5411 = vpop.permute.xlu0 %5410
  %5412 = vrot.lane.b32.xlu0 %v132, 28
  %v5413 = vpop.permute.xlu0 %5412
  %5414 = vrot.lane.b32.xlu0 %v135, 28
  %v5415 = vpop.permute.xlu0 %5414
  %5416 = vrot.lane.b32.xlu0 %v136, 28
  %v5417 = vpop.permute.xlu0 %5416
  %5418 = vrot.lane.b32.xlu0 %v137, 28
  %v5419 = vpop.permute.xlu0 %5418
  %5420 = vrot.lane.b32.xlu0 %v138, 28
  %v5421 = vpop.permute.xlu0 %5420
  %5422 = vrot.lane.b32.xlu0 %v139, 28
  %v5423 = vpop.permute.xlu0 %5422
  %5424 = vrot.lane.b32.xlu0 %v140, 28
  %v5425 = vpop.permute.xlu0 %5424
  %5426 = vrot.lane.b32.xlu0 %v141, 28
  %v5427 = vpop.permute.xlu0 %5426
  %5428 = vrot.lane.b32.xlu0 %v142, 28
  %v5429 = vpop.permute.xlu0 %5428
  %5430 = vrot.lane.b32.xlu0 %v143, 28
  %v5431 = vpop.permute.xlu0 %5430
  %5432 = vrot.lane.b32.xlu0 %v144, 28
  %v5433 = vpop.permute.xlu0 %5432
  %5434 = vrot.lane.b32.xlu0 %v145, 28
  %v5435 = vpop.permute.xlu0 %5434
  %5436 = vrot.lane.b32.xlu0 %v146, 28
  %v5437 = vpop.permute.xlu0 %5436
  %5438 = vrot.lane.b32.xlu0 %v147, 28
  %v5439 = vpop.permute.xlu0 %5438
  %5440 = vrot.lane.b32.xlu0 %v148, 28
  %v5441 = vpop.permute.xlu0 %5440
  %5442 = vrot.lane.b32.xlu0 %v149, 28
  %v5443 = vpop.permute.xlu0 %5442
  %5444 = vrot.lane.b32.xlu0 %v150, 28
  %v5445 = vpop.permute.xlu0 %5444
  %5446 = vrot.lane.b32.xlu0 %v153, 28
  %v5447 = vpop.permute.xlu0 %5446
  %5448 = vrot.lane.b32.xlu0 %v154, 28
  %v5449 = vpop.permute.xlu0 %5448
  %5450 = vrot.lane.b32.xlu0 %v155, 28
  %v5451 = vpop.permute.xlu0 %5450
  %5452 = vrot.lane.b32.xlu0 %v156, 28
  %v5453 = vpop.permute.xlu0 %5452
  %5454 = vrot.lane.b32.xlu0 %v157, 28
  %v5455 = vpop.permute.xlu0 %5454
  %5456 = vrot.lane.b32.xlu0 %v158, 28
  %v5457 = vpop.permute.xlu0 %5456
  %5458 = vrot.lane.b32.xlu0 %v159, 28
  %v5459 = vpop.permute.xlu0 %5458
  %5460 = vrot.lane.b32.xlu0 %v160, 28
  %v5461 = vpop.permute.xlu0 %5460
  %5462 = vrot.lane.b32.xlu0 %v161, 28
  %v5463 = vpop.permute.xlu0 %5462
  %5464 = vrot.lane.b32.xlu0 %v162, 28
  %v5465 = vpop.permute.xlu0 %5464
  %5466 = vrot.lane.b32.xlu0 %v163, 28
  %v5467 = vpop.permute.xlu0 %5466
  %5468 = vrot.lane.b32.xlu0 %v164, 28
  %v5469 = vpop.permute.xlu0 %5468
  %5470 = vrot.lane.b32.xlu0 %v165, 28
  %v5471 = vpop.permute.xlu0 %5470
  %5472 = vrot.lane.b32.xlu0 %v166, 28
  %v5473 = vpop.permute.xlu0 %5472
  %5474 = vrot.lane.b32.xlu0 %v167, 28
  %v5475 = vpop.permute.xlu0 %5474
  %5476 = vrot.lane.b32.xlu0 %v168, 28
  %v5477 = vpop.permute.xlu0 %5476
  %5478 = vrot.lane.b32.xlu0 %v171, 28
  %v5479 = vpop.permute.xlu0 %5478
  %5480 = vrot.lane.b32.xlu0 %v172, 28
  %v5481 = vpop.permute.xlu0 %5480
  %5482 = vrot.lane.b32.xlu0 %v173, 28
  %v5483 = vpop.permute.xlu0 %5482
  %5484 = vrot.lane.b32.xlu0 %v174, 28
  %v5485 = vpop.permute.xlu0 %5484
  %5486 = vrot.lane.b32.xlu0 %v175, 28
  %v5487 = vpop.permute.xlu0 %5486
  %5488 = vrot.lane.b32.xlu0 %v176, 28
  %v5489 = vpop.permute.xlu0 %5488
  %5490 = vrot.lane.b32.xlu0 %v177, 28
  %v5491 = vpop.permute.xlu0 %5490
  %5492 = vrot.lane.b32.xlu0 %v178, 28
  %v5493 = vpop.permute.xlu0 %5492
  %5494 = vrot.lane.b32.xlu0 %v179, 28
  %v5495 = vpop.permute.xlu0 %5494
  %5496 = vrot.lane.b32.xlu0 %v180, 28
  %v5497 = vpop.permute.xlu0 %5496
  %5498 = vrot.lane.b32.xlu0 %v181, 28
  %v5499 = vpop.permute.xlu0 %5498
  %5500 = vrot.lane.b32.xlu0 %v182, 28
  %v5501 = vpop.permute.xlu0 %5500
  %5502 = vrot.lane.b32.xlu0 %v183, 28
  %v5503 = vpop.permute.xlu0 %5502
  %5504 = vrot.lane.b32.xlu0 %v184, 28
  %v5505 = vpop.permute.xlu0 %5504
  %5506 = vrot.lane.b32.xlu0 %v185, 28
  %v5507 = vpop.permute.xlu0 %5506
  %5508 = vrot.lane.b32.xlu0 %v186, 28
  %v5509 = vpop.permute.xlu0 %5508
  %5510 = vrot.lane.b32.xlu0 %v189, 28
  %v5511 = vpop.permute.xlu0 %5510
  %5512 = vrot.lane.b32.xlu0 %v190, 28
  %v5513 = vpop.permute.xlu0 %5512
  %5514 = vrot.lane.b32.xlu0 %v191, 28
  %v5515 = vpop.permute.xlu0 %5514
  %5516 = vrot.lane.b32.xlu0 %v192, 28
  %v5517 = vpop.permute.xlu0 %5516
  %5518 = vrot.lane.b32.xlu0 %v193, 28
  %v5519 = vpop.permute.xlu0 %5518
  %5520 = vrot.lane.b32.xlu0 %v194, 28
  %v5521 = vpop.permute.xlu0 %5520
  %5522 = vrot.lane.b32.xlu0 %v195, 28
  %v5523 = vpop.permute.xlu0 %5522
  %5524 = vrot.lane.b32.xlu0 %v196, 28
  %v5525 = vpop.permute.xlu0 %5524
  %5526 = vrot.lane.b32.xlu0 %v197, 28
  %v5527 = vpop.permute.xlu0 %5526
  %5528 = vrot.lane.b32.xlu0 %v198, 28
  %v5529 = vpop.permute.xlu0 %5528
  %5530 = vrot.lane.b32.xlu0 %v199, 28
  %v5531 = vpop.permute.xlu0 %5530
  %5532 = vrot.lane.b32.xlu0 %v200, 28
  %v5533 = vpop.permute.xlu0 %5532
  %5534 = vrot.lane.b32.xlu0 %v201, 28
  %v5535 = vpop.permute.xlu0 %5534
  %5536 = vrot.lane.b32.xlu0 %v202, 28
  %v5537 = vpop.permute.xlu0 %5536
  %5538 = vrot.lane.b32.xlu0 %v203, 28
  %v5539 = vpop.permute.xlu0 %5538
  %5540 = vrot.lane.b32.xlu0 %v204, 28
  %v5541 = vpop.permute.xlu0 %5540
  %5542 = vrot.lane.b32.xlu0 %v207, 28
  %v5543 = vpop.permute.xlu0 %5542
  %5544 = vrot.lane.b32.xlu0 %v208, 28
  %v5545 = vpop.permute.xlu0 %5544
  %5546 = vrot.lane.b32.xlu0 %v209, 28
  %v5547 = vpop.permute.xlu0 %5546
  %5548 = vrot.lane.b32.xlu0 %v210, 28
  %v5549 = vpop.permute.xlu0 %5548
  %5550 = vrot.lane.b32.xlu0 %v211, 28
  %v5551 = vpop.permute.xlu0 %5550
  %5552 = vrot.lane.b32.xlu0 %v212, 28
  %v5553 = vpop.permute.xlu0 %5552
  %5554 = vrot.lane.b32.xlu0 %v213, 28
  %v5555 = vpop.permute.xlu0 %5554
  %5556 = vrot.lane.b32.xlu0 %v214, 28
  %v5557 = vpop.permute.xlu0 %5556
  %5558 = vrot.lane.b32.xlu0 %v215, 28
  %v5559 = vpop.permute.xlu0 %5558
  %5560 = vrot.lane.b32.xlu0 %v216, 28
  %v5561 = vpop.permute.xlu0 %5560
  %5562 = vrot.lane.b32.xlu0 %v217, 28
  %v5563 = vpop.permute.xlu0 %5562
  %5564 = vrot.lane.b32.xlu0 %v218, 28
  %v5565 = vpop.permute.xlu0 %5564
  %5566 = vrot.lane.b32.xlu0 %v219, 28
  %v5567 = vpop.permute.xlu0 %5566
  %5568 = vrot.lane.b32.xlu0 %v220, 28
  %v5569 = vpop.permute.xlu0 %5568
  %5570 = vrot.lane.b32.xlu0 %v221, 28
  %v5571 = vpop.permute.xlu0 %5570
  %5572 = vrot.lane.b32.xlu0 %v222, 28
  %v5573 = vpop.permute.xlu0 %5572
  %5574 = vrot.lane.b32.xlu0 %v225, 28
  %v5575 = vpop.permute.xlu0 %5574
  %5576 = vrot.lane.b32.xlu0 %v226, 28
  %v5577 = vpop.permute.xlu0 %5576
  %5578 = vrot.lane.b32.xlu0 %v227, 28
  %v5579 = vpop.permute.xlu0 %5578
  %5580 = vrot.lane.b32.xlu0 %v228, 28
  %v5581 = vpop.permute.xlu0 %5580
  %5582 = vrot.lane.b32.xlu0 %v229, 28
  %v5583 = vpop.permute.xlu0 %5582
  %5584 = vrot.lane.b32.xlu0 %v230, 28
  %v5585 = vpop.permute.xlu0 %5584
  %5586 = vrot.lane.b32.xlu0 %v231, 28
  %v5587 = vpop.permute.xlu0 %5586
  %5588 = vrot.lane.b32.xlu0 %v232, 28
  %v5589 = vpop.permute.xlu0 %5588
  %5590 = vrot.lane.b32.xlu0 %v233, 28
  %v5591 = vpop.permute.xlu0 %5590
  %5592 = vrot.lane.b32.xlu0 %v234, 28
  %v5593 = vpop.permute.xlu0 %5592
  %5594 = vrot.lane.b32.xlu0 %v235, 28
  %v5595 = vpop.permute.xlu0 %5594
  %5596 = vrot.lane.b32.xlu0 %v236, 28
  %v5597 = vpop.permute.xlu0 %5596
  %5598 = vrot.lane.b32.xlu0 %v237, 28
  %v5599 = vpop.permute.xlu0 %5598
  %5600 = vrot.lane.b32.xlu0 %v238, 28
  %v5601 = vpop.permute.xlu0 %5600
  %5602 = vrot.lane.b32.xlu0 %v239, 28
  %v5603 = vpop.permute.xlu0 %5602
  %5604 = vrot.lane.b32.xlu0 %v240, 28
  %v5605 = vpop.permute.xlu0 %5604
  %5606 = vrot.lane.b32.xlu0 %v243, 28
  %v5607 = vpop.permute.xlu0 %5606
  %5608 = vrot.lane.b32.xlu0 %v244, 28
  %v5609 = vpop.permute.xlu0 %5608
  %5610 = vrot.lane.b32.xlu0 %v245, 28
  %v5611 = vpop.permute.xlu0 %5610
  %5612 = vrot.lane.b32.xlu0 %v246, 28
  %v5613 = vpop.permute.xlu0 %5612
  %5614 = vrot.lane.b32.xlu0 %v247, 28
  %v5615 = vpop.permute.xlu0 %5614
  %5616 = vrot.lane.b32.xlu0 %v248, 28
  %v5617 = vpop.permute.xlu0 %5616
  %5618 = vrot.lane.b32.xlu0 %v249, 28
  %v5619 = vpop.permute.xlu0 %5618
  %5620 = vrot.lane.b32.xlu0 %v250, 28
  %v5621 = vpop.permute.xlu0 %5620
  %5622 = vrot.lane.b32.xlu0 %v251, 28
  %v5623 = vpop.permute.xlu0 %5622
  %5624 = vrot.lane.b32.xlu0 %v252, 28
  %v5625 = vpop.permute.xlu0 %5624
  %5626 = vrot.lane.b32.xlu0 %v253, 28
  %v5627 = vpop.permute.xlu0 %5626
  %5628 = vrot.lane.b32.xlu0 %v254, 28
  %v5629 = vpop.permute.xlu0 %5628
  %5630 = vrot.lane.b32.xlu0 %v255, 28
  %v5631 = vpop.permute.xlu0 %5630
  %5632 = vrot.lane.b32.xlu0 %v256, 28
  %v5633 = vpop.permute.xlu0 %5632
  %5634 = vrot.lane.b32.xlu0 %v257, 28
  %v5635 = vpop.permute.xlu0 %5634
  %5636 = vrot.lane.b32.xlu0 %v258, 28
  %v5637 = vpop.permute.xlu0 %5636
  %5638 = vrot.lane.b32.xlu0 %v261, 28
  %v5639 = vpop.permute.xlu0 %5638
  %5640 = vrot.lane.b32.xlu0 %v262, 28
  %v5641 = vpop.permute.xlu0 %5640
  %5642 = vrot.lane.b32.xlu0 %v263, 28
  %v5643 = vpop.permute.xlu0 %5642
  %5644 = vrot.lane.b32.xlu0 %v264, 28
  %v5645 = vpop.permute.xlu0 %5644
  %5646 = vrot.lane.b32.xlu0 %v265, 28
  %v5647 = vpop.permute.xlu0 %5646
  %5648 = vrot.lane.b32.xlu0 %v266, 28
  %v5649 = vpop.permute.xlu0 %5648
  %5650 = vrot.lane.b32.xlu0 %v267, 28
  %v5651 = vpop.permute.xlu0 %5650
  %5652 = vrot.lane.b32.xlu0 %v268, 28
  %v5653 = vpop.permute.xlu0 %5652
  %5654 = vrot.lane.b32.xlu0 %v269, 28
  %v5655 = vpop.permute.xlu0 %5654
  %5656 = vrot.lane.b32.xlu0 %v270, 28
  %v5657 = vpop.permute.xlu0 %5656
  %5658 = vrot.lane.b32.xlu0 %v271, 28
  %v5659 = vpop.permute.xlu0 %5658
  %5660 = vrot.lane.b32.xlu0 %v272, 28
  %v5661 = vpop.permute.xlu0 %5660
  %5662 = vrot.lane.b32.xlu0 %v273, 28
  %v5663 = vpop.permute.xlu0 %5662
  %5664 = vrot.lane.b32.xlu0 %v274, 28
  %v5665 = vpop.permute.xlu0 %5664
  %5666 = vrot.lane.b32.xlu0 %v275, 28
  %v5667 = vpop.permute.xlu0 %5666
  %5668 = vrot.lane.b32.xlu0 %v276, 28
  %v5669 = vpop.permute.xlu0 %5668
  %5670 = vrot.lane.b32.xlu0 %v279, 28
  %v5671 = vpop.permute.xlu0 %5670
  %5672 = vrot.lane.b32.xlu0 %v280, 28
  %v5673 = vpop.permute.xlu0 %5672
  %5674 = vrot.lane.b32.xlu0 %v281, 28
  %v5675 = vpop.permute.xlu0 %5674
  %5676 = vrot.lane.b32.xlu0 %v282, 28
  %v5677 = vpop.permute.xlu0 %5676
  %5678 = vrot.lane.b32.xlu0 %v283, 28
  %v5679 = vpop.permute.xlu0 %5678
  %5680 = vrot.lane.b32.xlu0 %v284, 28
  %v5681 = vpop.permute.xlu0 %5680
  %5682 = vrot.lane.b32.xlu0 %v285, 28
  %v5683 = vpop.permute.xlu0 %5682
  %5684 = vrot.lane.b32.xlu0 %v286, 28
  %v5685 = vpop.permute.xlu0 %5684
  %5686 = vrot.lane.b32.xlu0 %v287, 28
  %v5687 = vpop.permute.xlu0 %5686
  %5688 = vrot.lane.b32.xlu0 %v288, 28
  %v5689 = vpop.permute.xlu0 %5688
  %5690 = vrot.lane.b32.xlu0 %v289, 28
  %v5691 = vpop.permute.xlu0 %5690
  %5692 = vrot.lane.b32.xlu0 %v290, 28
  %v5693 = vpop.permute.xlu0 %5692
  %5694 = vrot.lane.b32.xlu0 %v291, 28
  %v5695 = vpop.permute.xlu0 %5694
  %5696 = vrot.lane.b32.xlu0 %v292, 28
  %v5697 = vpop.permute.xlu0 %5696
  %5698 = vrot.lane.b32.xlu0 %v293, 28
  %v5699 = vpop.permute.xlu0 %5698
  %5700 = vrot.lane.b32.xlu0 %v294, 28
  %v5701 = vpop.permute.xlu0 %5700
  %5702 = vrot.lane.b32.xlu0 %v297, 28
  %v5703 = vpop.permute.xlu0 %5702
  %5704 = vrot.lane.b32.xlu0 %v298, 28
  %v5705 = vpop.permute.xlu0 %5704
  %5706 = vrot.lane.b32.xlu0 %v299, 28
  %v5707 = vpop.permute.xlu0 %5706
  %5708 = vrot.lane.b32.xlu0 %v300, 28
  %v5709 = vpop.permute.xlu0 %5708
  %5710 = vrot.lane.b32.xlu0 %v301, 28
  %v5711 = vpop.permute.xlu0 %5710
  %5712 = vrot.lane.b32.xlu0 %v302, 28
  %v5713 = vpop.permute.xlu0 %5712
  %5714 = vrot.lane.b32.xlu0 %v303, 28
  %v5715 = vpop.permute.xlu0 %5714
  %5716 = vrot.lane.b32.xlu0 %v304, 28
  %v5717 = vpop.permute.xlu0 %5716
  %5718 = vrot.lane.b32.xlu0 %v305, 28
  %v5719 = vpop.permute.xlu0 %5718
  %5720 = vrot.lane.b32.xlu0 %v306, 28
  %v5721 = vpop.permute.xlu0 %5720
  %5722 = vrot.lane.b32.xlu0 %v307, 28
  %v5723 = vpop.permute.xlu0 %5722
  %5724 = vrot.lane.b32.xlu0 %v308, 28
  %v5725 = vpop.permute.xlu0 %5724
  %5726 = vrot.lane.b32.xlu0 %v309, 28
  %v5727 = vpop.permute.xlu0 %5726
  %5728 = vrot.lane.b32.xlu0 %v310, 28
  %v5729 = vpop.permute.xlu0 %5728
  %5730 = vrot.lane.b32.xlu0 %v311, 28
  %v5731 = vpop.permute.xlu0 %5730
  %5732 = vrot.lane.b32.xlu0 %v312, 28
  %v5733 = vpop.permute.xlu0 %5732
  %5734 = vrot.lane.b32.xlu0 %v315, 28
  %v5735 = vpop.permute.xlu0 %5734
  %5736 = vrot.lane.b32.xlu0 %v316, 28
  %v5737 = vpop.permute.xlu0 %5736
  %5738 = vrot.lane.b32.xlu0 %v317, 28
  %v5739 = vpop.permute.xlu0 %5738
  %5740 = vrot.lane.b32.xlu0 %v318, 28
  %v5741 = vpop.permute.xlu0 %5740
  %5742 = vrot.lane.b32.xlu0 %v319, 28
  %v5743 = vpop.permute.xlu0 %5742
  %5744 = vrot.lane.b32.xlu0 %v320, 28
  %v5745 = vpop.permute.xlu0 %5744
  %5746 = vrot.lane.b32.xlu0 %v321, 28
  %v5747 = vpop.permute.xlu0 %5746
  %5748 = vrot.lane.b32.xlu0 %v322, 28
  %v5749 = vpop.permute.xlu0 %5748
  %5750 = vrot.lane.b32.xlu0 %v323, 28
  %v5751 = vpop.permute.xlu0 %5750
  %5752 = vrot.lane.b32.xlu0 %v324, 28
  %v5753 = vpop.permute.xlu0 %5752
  %5754 = vrot.lane.b32.xlu0 %v325, 28
  %v5755 = vpop.permute.xlu0 %5754
  %5756 = vrot.lane.b32.xlu0 %v326, 28
  %v5757 = vpop.permute.xlu0 %5756
  %5758 = vrot.lane.b32.xlu0 %v327, 28
  %v5759 = vpop.permute.xlu0 %5758
  %5760 = vrot.lane.b32.xlu0 %v328, 28
  %v5761 = vpop.permute.xlu0 %5760
  %5762 = vrot.lane.b32.xlu0 %v329, 28
  %v5763 = vpop.permute.xlu0 %5762
  %5764 = vrot.lane.b32.xlu0 %v330, 28
  %v5765 = vpop.permute.xlu0 %5764
  %5766 = vrot.lane.b32.xlu0 %v333, 28
  %v5767 = vpop.permute.xlu0 %5766
  %5768 = vrot.lane.b32.xlu0 %v334, 28
  %v5769 = vpop.permute.xlu0 %5768
  %5770 = vrot.lane.b32.xlu0 %v335, 28
  %v5771 = vpop.permute.xlu0 %5770
  %5772 = vrot.lane.b32.xlu0 %v336, 28
  %v5773 = vpop.permute.xlu0 %5772
  %5774 = vrot.lane.b32.xlu0 %v337, 28
  %v5775 = vpop.permute.xlu0 %5774
  %5776 = vrot.lane.b32.xlu0 %v338, 28
  %v5777 = vpop.permute.xlu0 %5776
  %5778 = vrot.lane.b32.xlu0 %v339, 28
  %v5779 = vpop.permute.xlu0 %5778
  %5780 = vrot.lane.b32.xlu0 %v340, 28
  %v5781 = vpop.permute.xlu0 %5780
  %5782 = vrot.lane.b32.xlu0 %v341, 28
  %v5783 = vpop.permute.xlu0 %5782
  %5784 = vrot.lane.b32.xlu0 %v342, 28
  %v5785 = vpop.permute.xlu0 %5784
  %5786 = vrot.lane.b32.xlu0 %v343, 28
  %v5787 = vpop.permute.xlu0 %5786
  %5788 = vrot.lane.b32.xlu0 %v344, 28
  %v5789 = vpop.permute.xlu0 %5788
  %5790 = vrot.lane.b32.xlu0 %v345, 28
  %v5791 = vpop.permute.xlu0 %5790
  %5792 = vrot.lane.b32.xlu0 %v346, 28
  %v5793 = vpop.permute.xlu0 %5792
  %5794 = vrot.lane.b32.xlu0 %v347, 28
  %v5795 = vpop.permute.xlu0 %5794
  %5796 = vrot.lane.b32.xlu0 %v348, 28
  %v5797 = vpop.permute.xlu0 %5796
  %6055 = vrot.lane.b32.xlu0 %v64, 32
  %v6056 = vpop.permute.xlu0 %6055
  %6057 = vrot.lane.b32.xlu0 %v65, 32
  %v6058 = vpop.permute.xlu0 %6057
  %6059 = vrot.lane.b32.xlu0 %v66, 32
  %v6060 = vpop.permute.xlu0 %6059
  %6061 = vrot.lane.b32.xlu0 %v67, 32
  %v6062 = vpop.permute.xlu0 %6061
  %6063 = vrot.lane.b32.xlu0 %v68, 32
  %v6064 = vpop.permute.xlu0 %6063
  %6065 = vrot.lane.b32.xlu0 %v69, 32
  %v6066 = vpop.permute.xlu0 %6065
  %6067 = vrot.lane.b32.xlu0 %v70, 32
  %v6068 = vpop.permute.xlu0 %6067
  %6069 = vrot.lane.b32.xlu0 %v71, 32
  %v6070 = vpop.permute.xlu0 %6069
  %6071 = vrot.lane.b32.xlu0 %v72, 32
  %v6072 = vpop.permute.xlu0 %6071
  %6073 = vrot.lane.b32.xlu0 %v73, 32
  %v6074 = vpop.permute.xlu0 %6073
  %6075 = vrot.lane.b32.xlu0 %v74, 32
  %v6076 = vpop.permute.xlu0 %6075
  %6077 = vrot.lane.b32.xlu0 %v75, 32
  %v6078 = vpop.permute.xlu0 %6077
  %6079 = vrot.lane.b32.xlu0 %v76, 32
  %v6080 = vpop.permute.xlu0 %6079
  %6081 = vrot.lane.b32.xlu0 %v77, 32
  %v6082 = vpop.permute.xlu0 %6081
  %6083 = vrot.lane.b32.xlu0 %v78, 32
  %v6084 = vpop.permute.xlu0 %6083
  %6085 = vrot.lane.b32.xlu0 %v79, 32
  %v6086 = vpop.permute.xlu0 %6085
  %6087 = vrot.lane.b32.xlu0 %v82, 32
  %v6088 = vpop.permute.xlu0 %6087
  %6089 = vrot.lane.b32.xlu0 %v83, 32
  %v6090 = vpop.permute.xlu0 %6089
  %6091 = vrot.lane.b32.xlu0 %v84, 32
  %v6092 = vpop.permute.xlu0 %6091
  %6093 = vrot.lane.b32.xlu0 %v85, 32
  %v6094 = vpop.permute.xlu0 %6093
  %6095 = vrot.lane.b32.xlu0 %v86, 32
  %v6096 = vpop.permute.xlu0 %6095
  %6097 = vrot.lane.b32.xlu0 %v87, 32
  %v6098 = vpop.permute.xlu0 %6097
  %6099 = vrot.lane.b32.xlu0 %v88, 32
  %v6100 = vpop.permute.xlu0 %6099
  %6101 = vrot.lane.b32.xlu0 %v89, 32
  %v6102 = vpop.permute.xlu0 %6101
  %6103 = vrot.lane.b32.xlu0 %v90, 32
  %v6104 = vpop.permute.xlu0 %6103
  %6105 = vrot.lane.b32.xlu0 %v91, 32
  %v6106 = vpop.permute.xlu0 %6105
  %6107 = vrot.lane.b32.xlu0 %v92, 32
  %v6108 = vpop.permute.xlu0 %6107
  %6109 = vrot.lane.b32.xlu0 %v93, 32
  %v6110 = vpop.permute.xlu0 %6109
  %6111 = vrot.lane.b32.xlu0 %v94, 32
  %v6112 = vpop.permute.xlu0 %6111
  %6113 = vrot.lane.b32.xlu0 %v95, 32
  %v6114 = vpop.permute.xlu0 %6113
  %6115 = vrot.lane.b32.xlu0 %v96, 32
  %v6116 = vpop.permute.xlu0 %6115
  %6117 = vrot.lane.b32.xlu0 %v97, 32
  %v6118 = vpop.permute.xlu0 %6117
  %6119 = vrot.lane.b32.xlu0 %v100, 32
  %v6120 = vpop.permute.xlu0 %6119
  %6121 = vrot.lane.b32.xlu0 %v101, 32
  %v6122 = vpop.permute.xlu0 %6121
  %6123 = vrot.lane.b32.xlu0 %v102, 32
  %v6124 = vpop.permute.xlu0 %6123
  %6125 = vrot.lane.b32.xlu0 %v103, 32
  %v6126 = vpop.permute.xlu0 %6125
  %6127 = vrot.lane.b32.xlu0 %v104, 32
  %v6128 = vpop.permute.xlu0 %6127
  %6129 = vrot.lane.b32.xlu0 %v105, 32
  %v6130 = vpop.permute.xlu0 %6129
  %6131 = vrot.lane.b32.xlu0 %v106, 32
  %v6132 = vpop.permute.xlu0 %6131
  %6133 = vrot.lane.b32.xlu0 %v107, 32
  %v6134 = vpop.permute.xlu0 %6133
  %6135 = vrot.lane.b32.xlu0 %v108, 32
  %v6136 = vpop.permute.xlu0 %6135
  %6137 = vrot.lane.b32.xlu0 %v109, 32
  %v6138 = vpop.permute.xlu0 %6137
  %6139 = vrot.lane.b32.xlu0 %v110, 32
  %v6140 = vpop.permute.xlu0 %6139
  %6141 = vrot.lane.b32.xlu0 %v111, 32
  %v6142 = vpop.permute.xlu0 %6141
  %6143 = vrot.lane.b32.xlu0 %v112, 32
  %v6144 = vpop.permute.xlu0 %6143
  %6145 = vrot.lane.b32.xlu0 %v113, 32
  %v6146 = vpop.permute.xlu0 %6145
  %6147 = vrot.lane.b32.xlu0 %v114, 32
  %v6148 = vpop.permute.xlu0 %6147
  %6149 = vrot.lane.b32.xlu0 %v115, 32
  %v6150 = vpop.permute.xlu0 %6149
  %6151 = vrot.lane.b32.xlu0 %v118, 32
  %v6152 = vpop.permute.xlu0 %6151
  %6153 = vrot.lane.b32.xlu0 %v119, 32
  %v6154 = vpop.permute.xlu0 %6153
  %6155 = vrot.lane.b32.xlu0 %v120, 32
  %v6156 = vpop.permute.xlu0 %6155
  %6157 = vrot.lane.b32.xlu0 %v121, 32
  %v6158 = vpop.permute.xlu0 %6157
  %6159 = vrot.lane.b32.xlu0 %v122, 32
  %v6160 = vpop.permute.xlu0 %6159
  %6161 = vrot.lane.b32.xlu0 %v123, 32
  %v6162 = vpop.permute.xlu0 %6161
  %6163 = vrot.lane.b32.xlu0 %v124, 32
  %v6164 = vpop.permute.xlu0 %6163
  %6165 = vrot.lane.b32.xlu0 %v125, 32
  %v6166 = vpop.permute.xlu0 %6165
  %6167 = vrot.lane.b32.xlu0 %v126, 32
  %v6168 = vpop.permute.xlu0 %6167
  %6169 = vrot.lane.b32.xlu0 %v127, 32
  %v6170 = vpop.permute.xlu0 %6169
  %6171 = vrot.lane.b32.xlu0 %v128, 32
  %v6172 = vpop.permute.xlu0 %6171
  %6173 = vrot.lane.b32.xlu0 %v129, 32
  %v6174 = vpop.permute.xlu0 %6173
  %6175 = vrot.lane.b32.xlu0 %v130, 32
  %v6176 = vpop.permute.xlu0 %6175
  %6177 = vrot.lane.b32.xlu0 %v131, 32
  %v6178 = vpop.permute.xlu0 %6177
  %6179 = vrot.lane.b32.xlu0 %v132, 32
  %v6180 = vpop.permute.xlu0 %6179
  %6181 = vrot.lane.b32.xlu0 %v133, 32
  %v6182 = vpop.permute.xlu0 %6181
  %6183 = vrot.lane.b32.xlu0 %v136, 32
  %v6184 = vpop.permute.xlu0 %6183
  %6185 = vrot.lane.b32.xlu0 %v137, 32
  %v6186 = vpop.permute.xlu0 %6185
  %6187 = vrot.lane.b32.xlu0 %v138, 32
  %v6188 = vpop.permute.xlu0 %6187
  %6189 = vrot.lane.b32.xlu0 %v139, 32
  %v6190 = vpop.permute.xlu0 %6189
  %6191 = vrot.lane.b32.xlu0 %v140, 32
  %v6192 = vpop.permute.xlu0 %6191
  %6193 = vrot.lane.b32.xlu0 %v141, 32
  %v6194 = vpop.permute.xlu0 %6193
  %6195 = vrot.lane.b32.xlu0 %v142, 32
  %v6196 = vpop.permute.xlu0 %6195
  %6197 = vrot.lane.b32.xlu0 %v143, 32
  %v6198 = vpop.permute.xlu0 %6197
  %6199 = vrot.lane.b32.xlu0 %v144, 32
  %v6200 = vpop.permute.xlu0 %6199
  %6201 = vrot.lane.b32.xlu0 %v145, 32
  %v6202 = vpop.permute.xlu0 %6201
  %6203 = vrot.lane.b32.xlu0 %v146, 32
  %v6204 = vpop.permute.xlu0 %6203
  %6205 = vrot.lane.b32.xlu0 %v147, 32
  %v6206 = vpop.permute.xlu0 %6205
  %6207 = vrot.lane.b32.xlu0 %v148, 32
  %v6208 = vpop.permute.xlu0 %6207
  %6209 = vrot.lane.b32.xlu0 %v149, 32
  %v6210 = vpop.permute.xlu0 %6209
  %6211 = vrot.lane.b32.xlu0 %v150, 32
  %v6212 = vpop.permute.xlu0 %6211
  %6213 = vrot.lane.b32.xlu0 %v151, 32
  %v6214 = vpop.permute.xlu0 %6213
  %6215 = vrot.lane.b32.xlu0 %v154, 32
  %v6216 = vpop.permute.xlu0 %6215
  %6217 = vrot.lane.b32.xlu0 %v155, 32
  %v6218 = vpop.permute.xlu0 %6217
  %6219 = vrot.lane.b32.xlu0 %v156, 32
  %v6220 = vpop.permute.xlu0 %6219
  %6221 = vrot.lane.b32.xlu0 %v157, 32
  %v6222 = vpop.permute.xlu0 %6221
  %6223 = vrot.lane.b32.xlu0 %v158, 32
  %v6224 = vpop.permute.xlu0 %6223
  %6225 = vrot.lane.b32.xlu0 %v159, 32
  %v6226 = vpop.permute.xlu0 %6225
  %6227 = vrot.lane.b32.xlu0 %v160, 32
  %v6228 = vpop.permute.xlu0 %6227
  %6229 = vrot.lane.b32.xlu0 %v161, 32
  %v6230 = vpop.permute.xlu0 %6229
  %6231 = vrot.lane.b32.xlu0 %v162, 32
  %v6232 = vpop.permute.xlu0 %6231
  %6233 = vrot.lane.b32.xlu0 %v163, 32
  %v6234 = vpop.permute.xlu0 %6233
  %6235 = vrot.lane.b32.xlu0 %v164, 32
  %v6236 = vpop.permute.xlu0 %6235
  %6237 = vrot.lane.b32.xlu0 %v165, 32
  %v6238 = vpop.permute.xlu0 %6237
  %6239 = vrot.lane.b32.xlu0 %v166, 32
  %v6240 = vpop.permute.xlu0 %6239
  %6241 = vrot.lane.b32.xlu0 %v167, 32
  %v6242 = vpop.permute.xlu0 %6241
  %6243 = vrot.lane.b32.xlu0 %v168, 32
  %v6244 = vpop.permute.xlu0 %6243
  %6245 = vrot.lane.b32.xlu0 %v169, 32
  %v6246 = vpop.permute.xlu0 %6245
  %6247 = vrot.lane.b32.xlu0 %v172, 32
  %v6248 = vpop.permute.xlu0 %6247
  %6249 = vrot.lane.b32.xlu0 %v173, 32
  %v6250 = vpop.permute.xlu0 %6249
  %6251 = vrot.lane.b32.xlu0 %v174, 32
  %v6252 = vpop.permute.xlu0 %6251
  %6253 = vrot.lane.b32.xlu0 %v175, 32
  %v6254 = vpop.permute.xlu0 %6253
  %6255 = vrot.lane.b32.xlu0 %v176, 32
  %v6256 = vpop.permute.xlu0 %6255
  %6257 = vrot.lane.b32.xlu0 %v177, 32
  %v6258 = vpop.permute.xlu0 %6257
  %6259 = vrot.lane.b32.xlu0 %v178, 32
  %v6260 = vpop.permute.xlu0 %6259
  %6261 = vrot.lane.b32.xlu0 %v179, 32
  %v6262 = vpop.permute.xlu0 %6261
  %6263 = vrot.lane.b32.xlu0 %v180, 32
  %v6264 = vpop.permute.xlu0 %6263
  %6265 = vrot.lane.b32.xlu0 %v181, 32
  %v6266 = vpop.permute.xlu0 %6265
  %6267 = vrot.lane.b32.xlu0 %v182, 32
  %v6268 = vpop.permute.xlu0 %6267
  %6269 = vrot.lane.b32.xlu0 %v183, 32
  %v6270 = vpop.permute.xlu0 %6269
  %6271 = vrot.lane.b32.xlu0 %v184, 32
  %v6272 = vpop.permute.xlu0 %6271
  %6273 = vrot.lane.b32.xlu0 %v185, 32
  %v6274 = vpop.permute.xlu0 %6273
  %6275 = vrot.lane.b32.xlu0 %v186, 32
  %v6276 = vpop.permute.xlu0 %6275
  %6277 = vrot.lane.b32.xlu0 %v187, 32
  %v6278 = vpop.permute.xlu0 %6277
  %6279 = vrot.lane.b32.xlu0 %v190, 32
  %v6280 = vpop.permute.xlu0 %6279
  %6281 = vrot.lane.b32.xlu0 %v191, 32
  %v6282 = vpop.permute.xlu0 %6281
  %6283 = vrot.lane.b32.xlu0 %v192, 32
  %v6284 = vpop.permute.xlu0 %6283
  %6285 = vrot.lane.b32.xlu0 %v193, 32
  %v6286 = vpop.permute.xlu0 %6285
  %6287 = vrot.lane.b32.xlu0 %v194, 32
  %v6288 = vpop.permute.xlu0 %6287
  %6289 = vrot.lane.b32.xlu0 %v195, 32
  %v6290 = vpop.permute.xlu0 %6289
  %6291 = vrot.lane.b32.xlu0 %v196, 32
  %v6292 = vpop.permute.xlu0 %6291
  %6293 = vrot.lane.b32.xlu0 %v197, 32
  %v6294 = vpop.permute.xlu0 %6293
  %6295 = vrot.lane.b32.xlu0 %v198, 32
  %v6296 = vpop.permute.xlu0 %6295
  %6297 = vrot.lane.b32.xlu0 %v199, 32
  %v6298 = vpop.permute.xlu0 %6297
  %6299 = vrot.lane.b32.xlu0 %v200, 32
  %v6300 = vpop.permute.xlu0 %6299
  %6301 = vrot.lane.b32.xlu0 %v201, 32
  %v6302 = vpop.permute.xlu0 %6301
  %6303 = vrot.lane.b32.xlu0 %v202, 32
  %v6304 = vpop.permute.xlu0 %6303
  %6305 = vrot.lane.b32.xlu0 %v203, 32
  %v6306 = vpop.permute.xlu0 %6305
  %6307 = vrot.lane.b32.xlu0 %v204, 32
  %v6308 = vpop.permute.xlu0 %6307
  %6309 = vrot.lane.b32.xlu0 %v205, 32
  %v6310 = vpop.permute.xlu0 %6309
  %6311 = vrot.lane.b32.xlu0 %v208, 32
  %v6312 = vpop.permute.xlu0 %6311
  %6313 = vrot.lane.b32.xlu0 %v209, 32
  %v6314 = vpop.permute.xlu0 %6313
  %6315 = vrot.lane.b32.xlu0 %v210, 32
  %v6316 = vpop.permute.xlu0 %6315
  %6317 = vrot.lane.b32.xlu0 %v211, 32
  %v6318 = vpop.permute.xlu0 %6317
  %6319 = vrot.lane.b32.xlu0 %v212, 32
  %v6320 = vpop.permute.xlu0 %6319
  %6321 = vrot.lane.b32.xlu0 %v213, 32
  %v6322 = vpop.permute.xlu0 %6321
  %6323 = vrot.lane.b32.xlu0 %v214, 32
  %v6324 = vpop.permute.xlu0 %6323
  %6325 = vrot.lane.b32.xlu0 %v215, 32
  %v6326 = vpop.permute.xlu0 %6325
  %6327 = vrot.lane.b32.xlu0 %v216, 32
  %v6328 = vpop.permute.xlu0 %6327
  %6329 = vrot.lane.b32.xlu0 %v217, 32
  %v6330 = vpop.permute.xlu0 %6329
  %6331 = vrot.lane.b32.xlu0 %v218, 32
  %v6332 = vpop.permute.xlu0 %6331
  %6333 = vrot.lane.b32.xlu0 %v219, 32
  %v6334 = vpop.permute.xlu0 %6333
  %6335 = vrot.lane.b32.xlu0 %v220, 32
  %v6336 = vpop.permute.xlu0 %6335
  %6337 = vrot.lane.b32.xlu0 %v221, 32
  %v6338 = vpop.permute.xlu0 %6337
  %6339 = vrot.lane.b32.xlu0 %v222, 32
  %v6340 = vpop.permute.xlu0 %6339
  %6341 = vrot.lane.b32.xlu0 %v223, 32
  %v6342 = vpop.permute.xlu0 %6341
  %6343 = vrot.lane.b32.xlu0 %v226, 32
  %v6344 = vpop.permute.xlu0 %6343
  %6345 = vrot.lane.b32.xlu0 %v227, 32
  %v6346 = vpop.permute.xlu0 %6345
  %6347 = vrot.lane.b32.xlu0 %v228, 32
  %v6348 = vpop.permute.xlu0 %6347
  %6349 = vrot.lane.b32.xlu0 %v229, 32
  %v6350 = vpop.permute.xlu0 %6349
  %6351 = vrot.lane.b32.xlu0 %v230, 32
  %v6352 = vpop.permute.xlu0 %6351
  %6353 = vrot.lane.b32.xlu0 %v231, 32
  %v6354 = vpop.permute.xlu0 %6353
  %6355 = vrot.lane.b32.xlu0 %v232, 32
  %v6356 = vpop.permute.xlu0 %6355
  %6357 = vrot.lane.b32.xlu0 %v233, 32
  %v6358 = vpop.permute.xlu0 %6357
  %6359 = vrot.lane.b32.xlu0 %v234, 32
  %v6360 = vpop.permute.xlu0 %6359
  %6361 = vrot.lane.b32.xlu0 %v235, 32
  %v6362 = vpop.permute.xlu0 %6361
  %6363 = vrot.lane.b32.xlu0 %v236, 32
  %v6364 = vpop.permute.xlu0 %6363
  %6365 = vrot.lane.b32.xlu0 %v237, 32
  %v6366 = vpop.permute.xlu0 %6365
  %6367 = vrot.lane.b32.xlu0 %v238, 32
  %v6368 = vpop.permute.xlu0 %6367
  %6369 = vrot.lane.b32.xlu0 %v239, 32
  %v6370 = vpop.permute.xlu0 %6369
  %6371 = vrot.lane.b32.xlu0 %v240, 32
  %v6372 = vpop.permute.xlu0 %6371
  %6373 = vrot.lane.b32.xlu0 %v241, 32
  %v6374 = vpop.permute.xlu0 %6373
  %6375 = vrot.lane.b32.xlu0 %v244, 32
  %v6376 = vpop.permute.xlu0 %6375
  %6377 = vrot.lane.b32.xlu0 %v245, 32
  %v6378 = vpop.permute.xlu0 %6377
  %6379 = vrot.lane.b32.xlu0 %v246, 32
  %v6380 = vpop.permute.xlu0 %6379
  %6381 = vrot.lane.b32.xlu0 %v247, 32
  %v6382 = vpop.permute.xlu0 %6381
  %6383 = vrot.lane.b32.xlu0 %v248, 32
  %v6384 = vpop.permute.xlu0 %6383
  %6385 = vrot.lane.b32.xlu0 %v249, 32
  %v6386 = vpop.permute.xlu0 %6385
  %6387 = vrot.lane.b32.xlu0 %v250, 32
  %v6388 = vpop.permute.xlu0 %6387
  %6389 = vrot.lane.b32.xlu0 %v251, 32
  %v6390 = vpop.permute.xlu0 %6389
  %6391 = vrot.lane.b32.xlu0 %v252, 32
  %v6392 = vpop.permute.xlu0 %6391
  %6393 = vrot.lane.b32.xlu0 %v253, 32
  %v6394 = vpop.permute.xlu0 %6393
  %6395 = vrot.lane.b32.xlu0 %v254, 32
  %v6396 = vpop.permute.xlu0 %6395
  %6397 = vrot.lane.b32.xlu0 %v255, 32
  %v6398 = vpop.permute.xlu0 %6397
  %6399 = vrot.lane.b32.xlu0 %v256, 32
  %v6400 = vpop.permute.xlu0 %6399
  %6401 = vrot.lane.b32.xlu0 %v257, 32
  %v6402 = vpop.permute.xlu0 %6401
  %6403 = vrot.lane.b32.xlu0 %v258, 32
  %v6404 = vpop.permute.xlu0 %6403
  %6405 = vrot.lane.b32.xlu0 %v259, 32
  %v6406 = vpop.permute.xlu0 %6405
  %6407 = vrot.lane.b32.xlu0 %v262, 32
  %v6408 = vpop.permute.xlu0 %6407
  %6409 = vrot.lane.b32.xlu0 %v263, 32
  %v6410 = vpop.permute.xlu0 %6409
  %6411 = vrot.lane.b32.xlu0 %v264, 32
  %v6412 = vpop.permute.xlu0 %6411
  %6413 = vrot.lane.b32.xlu0 %v265, 32
  %v6414 = vpop.permute.xlu0 %6413
  %6415 = vrot.lane.b32.xlu0 %v266, 32
  %v6416 = vpop.permute.xlu0 %6415
  %6417 = vrot.lane.b32.xlu0 %v267, 32
  %v6418 = vpop.permute.xlu0 %6417
  %6419 = vrot.lane.b32.xlu0 %v268, 32
  %v6420 = vpop.permute.xlu0 %6419
  %6421 = vrot.lane.b32.xlu0 %v269, 32
  %v6422 = vpop.permute.xlu0 %6421
  %6423 = vrot.lane.b32.xlu0 %v270, 32
  %v6424 = vpop.permute.xlu0 %6423
  %6425 = vrot.lane.b32.xlu0 %v271, 32
  %v6426 = vpop.permute.xlu0 %6425
  %6427 = vrot.lane.b32.xlu0 %v272, 32
  %v6428 = vpop.permute.xlu0 %6427
  %6429 = vrot.lane.b32.xlu0 %v273, 32
  %v6430 = vpop.permute.xlu0 %6429
  %6431 = vrot.lane.b32.xlu0 %v274, 32
  %v6432 = vpop.permute.xlu0 %6431
  %6433 = vrot.lane.b32.xlu0 %v275, 32
  %v6434 = vpop.permute.xlu0 %6433
  %6435 = vrot.lane.b32.xlu0 %v276, 32
  %v6436 = vpop.permute.xlu0 %6435
  %6437 = vrot.lane.b32.xlu0 %v277, 32
  %v6438 = vpop.permute.xlu0 %6437
  %6439 = vrot.lane.b32.xlu0 %v280, 32
  %v6440 = vpop.permute.xlu0 %6439
  %6441 = vrot.lane.b32.xlu0 %v281, 32
  %v6442 = vpop.permute.xlu0 %6441
  %6443 = vrot.lane.b32.xlu0 %v282, 32
  %v6444 = vpop.permute.xlu0 %6443
  %6445 = vrot.lane.b32.xlu0 %v283, 32
  %v6446 = vpop.permute.xlu0 %6445
  %6447 = vrot.lane.b32.xlu0 %v284, 32
  %v6448 = vpop.permute.xlu0 %6447
  %6449 = vrot.lane.b32.xlu0 %v285, 32
  %v6450 = vpop.permute.xlu0 %6449
  %6451 = vrot.lane.b32.xlu0 %v286, 32
  %v6452 = vpop.permute.xlu0 %6451
  %6453 = vrot.lane.b32.xlu0 %v287, 32
  %v6454 = vpop.permute.xlu0 %6453
  %6455 = vrot.lane.b32.xlu0 %v288, 32
  %v6456 = vpop.permute.xlu0 %6455
  %6457 = vrot.lane.b32.xlu0 %v289, 32
  %v6458 = vpop.permute.xlu0 %6457
  %6459 = vrot.lane.b32.xlu0 %v290, 32
  %v6460 = vpop.permute.xlu0 %6459
  %6461 = vrot.lane.b32.xlu0 %v291, 32
  %v6462 = vpop.permute.xlu0 %6461
  %6463 = vrot.lane.b32.xlu0 %v292, 32
  %v6464 = vpop.permute.xlu0 %6463
  %6465 = vrot.lane.b32.xlu0 %v293, 32
  %v6466 = vpop.permute.xlu0 %6465
  %6467 = vrot.lane.b32.xlu0 %v294, 32
  %v6468 = vpop.permute.xlu0 %6467
  %6469 = vrot.lane.b32.xlu0 %v295, 32
  %v6470 = vpop.permute.xlu0 %6469
  %6471 = vrot.lane.b32.xlu0 %v298, 32
  %v6472 = vpop.permute.xlu0 %6471
  %6473 = vrot.lane.b32.xlu0 %v299, 32
  %v6474 = vpop.permute.xlu0 %6473
  %6475 = vrot.lane.b32.xlu0 %v300, 32
  %v6476 = vpop.permute.xlu0 %6475
  %6477 = vrot.lane.b32.xlu0 %v301, 32
  %v6478 = vpop.permute.xlu0 %6477
  %6479 = vrot.lane.b32.xlu0 %v302, 32
  %v6480 = vpop.permute.xlu0 %6479
  %6481 = vrot.lane.b32.xlu0 %v303, 32
  %v6482 = vpop.permute.xlu0 %6481
  %6483 = vrot.lane.b32.xlu0 %v304, 32
  %v6484 = vpop.permute.xlu0 %6483
  %6485 = vrot.lane.b32.xlu0 %v305, 32
  %v6486 = vpop.permute.xlu0 %6485
  %6487 = vrot.lane.b32.xlu0 %v306, 32
  %v6488 = vpop.permute.xlu0 %6487
  %6489 = vrot.lane.b32.xlu0 %v307, 32
  %v6490 = vpop.permute.xlu0 %6489
  %6491 = vrot.lane.b32.xlu0 %v308, 32
  %v6492 = vpop.permute.xlu0 %6491
  %6493 = vrot.lane.b32.xlu0 %v309, 32
  %v6494 = vpop.permute.xlu0 %6493
  %6495 = vrot.lane.b32.xlu0 %v310, 32
  %v6496 = vpop.permute.xlu0 %6495
  %6497 = vrot.lane.b32.xlu0 %v311, 32
  %v6498 = vpop.permute.xlu0 %6497
  %6499 = vrot.lane.b32.xlu0 %v312, 32
  %v6500 = vpop.permute.xlu0 %6499
  %6501 = vrot.lane.b32.xlu0 %v313, 32
  %v6502 = vpop.permute.xlu0 %6501
  %6503 = vrot.lane.b32.xlu0 %v316, 32
  %v6504 = vpop.permute.xlu0 %6503
  %6505 = vrot.lane.b32.xlu0 %v317, 32
  %v6506 = vpop.permute.xlu0 %6505
  %6507 = vrot.lane.b32.xlu0 %v318, 32
  %v6508 = vpop.permute.xlu0 %6507
  %6509 = vrot.lane.b32.xlu0 %v319, 32
  %v6510 = vpop.permute.xlu0 %6509
  %6511 = vrot.lane.b32.xlu0 %v320, 32
  %v6512 = vpop.permute.xlu0 %6511
  %6513 = vrot.lane.b32.xlu0 %v321, 32
  %v6514 = vpop.permute.xlu0 %6513
  %6515 = vrot.lane.b32.xlu0 %v322, 32
  %v6516 = vpop.permute.xlu0 %6515
  %6517 = vrot.lane.b32.xlu0 %v323, 32
  %v6518 = vpop.permute.xlu0 %6517
  %6519 = vrot.lane.b32.xlu0 %v324, 32
  %v6520 = vpop.permute.xlu0 %6519
  %6521 = vrot.lane.b32.xlu0 %v325, 32
  %v6522 = vpop.permute.xlu0 %6521
  %6523 = vrot.lane.b32.xlu0 %v326, 32
  %v6524 = vpop.permute.xlu0 %6523
  %6525 = vrot.lane.b32.xlu0 %v327, 32
  %v6526 = vpop.permute.xlu0 %6525
  %6527 = vrot.lane.b32.xlu0 %v328, 32
  %v6528 = vpop.permute.xlu0 %6527
  %6529 = vrot.lane.b32.xlu0 %v329, 32
  %v6530 = vpop.permute.xlu0 %6529
  %6531 = vrot.lane.b32.xlu0 %v330, 32
  %v6532 = vpop.permute.xlu0 %6531
  %6533 = vrot.lane.b32.xlu0 %v331, 32
  %v6534 = vpop.permute.xlu0 %6533
  %6535 = vrot.lane.b32.xlu0 %v334, 32
  %v6536 = vpop.permute.xlu0 %6535
  %6537 = vrot.lane.b32.xlu0 %v335, 32
  %v6538 = vpop.permute.xlu0 %6537
  %6539 = vrot.lane.b32.xlu0 %v336, 32
  %v6540 = vpop.permute.xlu0 %6539
  %6541 = vrot.lane.b32.xlu0 %v337, 32
  %v6542 = vpop.permute.xlu0 %6541
  %6543 = vrot.lane.b32.xlu0 %v338, 32
  %v6544 = vpop.permute.xlu0 %6543
  %6545 = vrot.lane.b32.xlu0 %v339, 32
  %v6546 = vpop.permute.xlu0 %6545
  %6547 = vrot.lane.b32.xlu0 %v340, 32
  %v6548 = vpop.permute.xlu0 %6547
  %6549 = vrot.lane.b32.xlu0 %v341, 32
  %v6550 = vpop.permute.xlu0 %6549
  %6551 = vrot.lane.b32.xlu0 %v342, 32
  %v6552 = vpop.permute.xlu0 %6551
  %6553 = vrot.lane.b32.xlu0 %v343, 32
  %v6554 = vpop.permute.xlu0 %6553
  %6555 = vrot.lane.b32.xlu0 %v344, 32
  %v6556 = vpop.permute.xlu0 %6555
  %6557 = vrot.lane.b32.xlu0 %v345, 32
  %v6558 = vpop.permute.xlu0 %6557
  %6559 = vrot.lane.b32.xlu0 %v346, 32
  %v6560 = vpop.permute.xlu0 %6559
  %6561 = vrot.lane.b32.xlu0 %v347, 32
  %v6562 = vpop.permute.xlu0 %6561
  %6563 = vrot.lane.b32.xlu0 %v348, 32
  %v6564 = vpop.permute.xlu0 %6563
  %6565 = vrot.lane.b32.xlu0 %v349, 32
  %v6566 = vpop.permute.xlu0 %6565
  %vm6823 = vcmask 31744
  %v6824 = vsel %vm6823, %v26, %v613
  %v6825 = vsel %vm6823, %v27, %v615
  %v6826 = vsel %vm6823, %v28, %v617
  %v6827 = vsel %vm6823, %v29, %v619
  %v6828 = vsel %vm6823, %v30, %v621
  %v6829 = vsel %vm6823, %v31, %v623
  %v6830 = vsel %vm6823, %v32, %v625
  %v6831 = vsel %vm6823, %v33, %v627
  %v6832 = vsel %vm6823, %v34, %v629
  %v6833 = vsel %vm6823, %v35, %v631
  %v6834 = vsel %vm6823, %v36, %v633
  %v6835 = vsel %vm6823, %v37, %v635
  %v6836 = vsel %vm6823, %v38, %v637
  %v6837 = vsel %vm6823, %v39, %v639
  %v6838 = vsel %vm6823, %v40, %v641
  %v6839 = vsel %vm6823, %v41, %v643
  %v6840 = vsel %vm6823, %v44, %v645
  %v6841 = vsel %vm6823, %v45, %v647
  %v6842 = vsel %vm6823, %v46, %v649
  %v6843 = vsel %vm6823, %v47, %v651
  %v6844 = vsel %vm6823, %v48, %v653
  %v6845 = vsel %vm6823, %v49, %v655
  %v6846 = vsel %vm6823, %v50, %v657
  %v6847 = vsel %vm6823, %v51, %v659
  %v6848 = vsel %vm6823, %v52, %v661
  %v6849 = vsel %vm6823, %v53, %v663
  %v6850 = vsel %vm6823, %v54, %v665
  %v6851 = vsel %vm6823, %v55, %v667
  %v6852 = vsel %vm6823, %v56, %v669
  %v6853 = vsel %vm6823, %v57, %v671
  %v6854 = vsel %vm6823, %v58, %v673
  %v6855 = vsel %vm6823, %v59, %v675
  %v6856 = vsel %vm6823, %v62, %v677
  %v6857 = vsel %vm6823, %v63, %v679
  %v6858 = vsel %vm6823, %v64, %v681
  %v6859 = vsel %vm6823, %v65, %v683
  %v6860 = vsel %vm6823, %v66, %v685
  %v6861 = vsel %vm6823, %v67, %v687
  %v6862 = vsel %vm6823, %v68, %v689
  %v6863 = vsel %vm6823, %v69, %v691
  %v6864 = vsel %vm6823, %v70, %v693
  %v6865 = vsel %vm6823, %v71, %v695
  %v6866 = vsel %vm6823, %v72, %v697
  %v6867 = vsel %vm6823, %v73, %v699
  %v6868 = vsel %vm6823, %v74, %v701
  %v6869 = vsel %vm6823, %v75, %v703
  %v6870 = vsel %vm6823, %v76, %v705
  %v6871 = vsel %vm6823, %v77, %v707
  %v6872 = vsel %vm6823, %v80, %v709
  %v6873 = vsel %vm6823, %v81, %v711
  %v6874 = vsel %vm6823, %v82, %v713
  %v6875 = vsel %vm6823, %v83, %v715
  %v6876 = vsel %vm6823, %v84, %v717
  %v6877 = vsel %vm6823, %v85, %v719
  %v6878 = vsel %vm6823, %v86, %v721
  %v6879 = vsel %vm6823, %v87, %v723
  %v6880 = vsel %vm6823, %v88, %v725
  %v6881 = vsel %vm6823, %v89, %v727
  %v6882 = vsel %vm6823, %v90, %v729
  %v6883 = vsel %vm6823, %v91, %v731
  %v6884 = vsel %vm6823, %v92, %v733
  %v6885 = vsel %vm6823, %v93, %v735
  %v6886 = vsel %vm6823, %v94, %v737
  %v6887 = vsel %vm6823, %v95, %v739
  %v6888 = vsel %vm6823, %v98, %v741
  %v6889 = vsel %vm6823, %v99, %v743
  %v6890 = vsel %vm6823, %v100, %v745
  %v6891 = vsel %vm6823, %v101, %v747
  %v6892 = vsel %vm6823, %v102, %v749
  %v6893 = vsel %vm6823, %v103, %v751
  %v6894 = vsel %vm6823, %v104, %v753
  %v6895 = vsel %vm6823, %v105, %v755
  %v6896 = vsel %vm6823, %v106, %v757
  %v6897 = vsel %vm6823, %v107, %v759
  %v6898 = vsel %vm6823, %v108, %v761
  %v6899 = vsel %vm6823, %v109, %v763
  %v6900 = vsel %vm6823, %v110, %v765
  %v6901 = vsel %vm6823, %v111, %v767
  %v6902 = vsel %vm6823, %v112, %v769
  %v6903 = vsel %vm6823, %v113, %v771
  %v6904 = vsel %vm6823, %v116, %v773
  %v6905 = vsel %vm6823, %v117, %v775
  %v6906 = vsel %vm6823, %v118, %v777
  %v6907 = vsel %vm6823, %v119, %v779
  %v6908 = vsel %vm6823, %v120, %v781
  %v6909 = vsel %vm6823, %v121, %v783
  %v6910 = vsel %vm6823, %v122, %v785
  %v6911 = vsel %vm6823, %v123, %v787
  %v6912 = vsel %vm6823, %v124, %v789
  %v6913 = vsel %vm6823, %v125, %v791
  %v6914 = vsel %vm6823, %v126, %v793
  %v6915 = vsel %vm6823, %v127, %v795
  %v6916 = vsel %vm6823, %v128, %v797
  %v6917 = vsel %vm6823, %v129, %v799
  %v6918 = vsel %vm6823, %v130, %v801
  %v6919 = vsel %vm6823, %v131, %v803
  %v6920 = vsel %vm6823, %v134, %v805
  %v6921 = vsel %vm6823, %v135, %v807
  %v6922 = vsel %vm6823, %v136, %v809
  %v6923 = vsel %vm6823, %v137, %v811
  %v6924 = vsel %vm6823, %v138, %v813
  %v6925 = vsel %vm6823, %v139, %v815
  %v6926 = vsel %vm6823, %v140, %v817
  %v6927 = vsel %vm6823, %v141, %v819
  %v6928 = vsel %vm6823, %v142, %v821
  %v6929 = vsel %vm6823, %v143, %v823
  %v6930 = vsel %vm6823, %v144, %v825
  %v6931 = vsel %vm6823, %v145, %v827
  %v6932 = vsel %vm6823, %v146, %v829
  %v6933 = vsel %vm6823, %v147, %v831
  %v6934 = vsel %vm6823, %v148, %v833
  %v6935 = vsel %vm6823, %v149, %v835
  %v6936 = vsel %vm6823, %v152, %v837
  %v6937 = vsel %vm6823, %v153, %v839
  %v6938 = vsel %vm6823, %v154, %v841
  %v6939 = vsel %vm6823, %v155, %v843
  %v6940 = vsel %vm6823, %v156, %v845
  %v6941 = vsel %vm6823, %v157, %v847
  %v6942 = vsel %vm6823, %v158, %v849
  %v6943 = vsel %vm6823, %v159, %v851
  %v6944 = vsel %vm6823, %v160, %v853
  %v6945 = vsel %vm6823, %v161, %v855
  %v6946 = vsel %vm6823, %v162, %v857
  %v6947 = vsel %vm6823, %v163, %v859
  %v6948 = vsel %vm6823, %v164, %v861
  %v6949 = vsel %vm6823, %v165, %v863
  %v6950 = vsel %vm6823, %v166, %v865
  %v6951 = vsel %vm6823, %v167, %v867
  %v6952 = vsel %vm6823, %v170, %v869
  %v6953 = vsel %vm6823, %v171, %v871
  %v6954 = vsel %vm6823, %v172, %v873
  %v6955 = vsel %vm6823, %v173, %v875
  %v6956 = vsel %vm6823, %v174, %v877
  %v6957 = vsel %vm6823, %v175, %v879
  %v6958 = vsel %vm6823, %v176, %v881
  %v6959 = vsel %vm6823, %v177, %v883
  %v6960 = vsel %vm6823, %v178, %v885
  %v6961 = vsel %vm6823, %v179, %v887
  %v6962 = vsel %vm6823, %v180, %v889
  %v6963 = vsel %vm6823, %v181, %v891
  %v6964 = vsel %vm6823, %v182, %v893
  %v6965 = vsel %vm6823, %v183, %v895
  %v6966 = vsel %vm6823, %v184, %v897
  %v6967 = vsel %vm6823, %v185, %v899
  %v6968 = vsel %vm6823, %v188, %v901
  %v6969 = vsel %vm6823, %v189, %v903
  %v6970 = vsel %vm6823, %v190, %v905
  %v6971 = vsel %vm6823, %v191, %v907
  %v6972 = vsel %vm6823, %v192, %v909
  %v6973 = vsel %vm6823, %v193, %v911
  %v6974 = vsel %vm6823, %v194, %v913
  %v6975 = vsel %vm6823, %v195, %v915
  %v6976 = vsel %vm6823, %v196, %v917
  %v6977 = vsel %vm6823, %v197, %v919
  %v6978 = vsel %vm6823, %v198, %v921
  %v6979 = vsel %vm6823, %v199, %v923
  %v6980 = vsel %vm6823, %v200, %v925
  %v6981 = vsel %vm6823, %v201, %v927
  %v6982 = vsel %vm6823, %v202, %v929
  %v6983 = vsel %vm6823, %v203, %v931
  %v6984 = vsel %vm6823, %v206, %v933
  %v6985 = vsel %vm6823, %v207, %v935
  %v6986 = vsel %vm6823, %v208, %v937
  %v6987 = vsel %vm6823, %v209, %v939
  %v6988 = vsel %vm6823, %v210, %v941
  %v6989 = vsel %vm6823, %v211, %v943
  %v6990 = vsel %vm6823, %v212, %v945
  %v6991 = vsel %vm6823, %v213, %v947
  %v6992 = vsel %vm6823, %v214, %v949
  %v6993 = vsel %vm6823, %v215, %v951
  %v6994 = vsel %vm6823, %v216, %v953
  %v6995 = vsel %vm6823, %v217, %v955
  %v6996 = vsel %vm6823, %v218, %v957
  %v6997 = vsel %vm6823, %v219, %v959
  %v6998 = vsel %vm6823, %v220, %v961
  %v6999 = vsel %vm6823, %v221, %v963
  %v7000 = vsel %vm6823, %v224, %v965
  %v7001 = vsel %vm6823, %v225, %v967
  %v7002 = vsel %vm6823, %v226, %v969
  %v7003 = vsel %vm6823, %v227, %v971
  %v7004 = vsel %vm6823, %v228, %v973
  %v7005 = vsel %vm6823, %v229, %v975
  %v7006 = vsel %vm6823, %v230, %v977
  %v7007 = vsel %vm6823, %v231, %v979
  %v7008 = vsel %vm6823, %v232, %v981
  %v7009 = vsel %vm6823, %v233, %v983
  %v7010 = vsel %vm6823, %v234, %v985
  %v7011 = vsel %vm6823, %v235, %v987
  %v7012 = vsel %vm6823, %v236, %v989
  %v7013 = vsel %vm6823, %v237, %v991
  %v7014 = vsel %vm6823, %v238, %v993
  %v7015 = vsel %vm6823, %v239, %v995
  %v7016 = vsel %vm6823, %v242, %v997
  %v7017 = vsel %vm6823, %v243, %v999
  %v7018 = vsel %vm6823, %v244, %v1001
  %v7019 = vsel %vm6823, %v245, %v1003
  %v7020 = vsel %vm6823, %v246, %v1005
  %v7021 = vsel %vm6823, %v247, %v1007
  %v7022 = vsel %vm6823, %v248, %v1009
  %v7023 = vsel %vm6823, %v249, %v1011
  %v7024 = vsel %vm6823, %v250, %v1013
  %v7025 = vsel %vm6823, %v251, %v1015
  %v7026 = vsel %vm6823, %v252, %v1017
  %v7027 = vsel %vm6823, %v253, %v1019
  %v7028 = vsel %vm6823, %v254, %v1021
  %v7029 = vsel %vm6823, %v255, %v1023
  %v7030 = vsel %vm6823, %v256, %v1025
  %v7031 = vsel %vm6823, %v257, %v1027
  %v7032 = vsel %vm6823, %v260, %v1029
  %v7033 = vsel %vm6823, %v261, %v1031
  %v7034 = vsel %vm6823, %v262, %v1033
  %v7035 = vsel %vm6823, %v263, %v1035
  %v7036 = vsel %vm6823, %v264, %v1037
  %v7037 = vsel %vm6823, %v265, %v1039
  %v7038 = vsel %vm6823, %v266, %v1041
  %v7039 = vsel %vm6823, %v267, %v1043
  %v7040 = vsel %vm6823, %v268, %v1045
  %v7041 = vsel %vm6823, %v269, %v1047
  %v7042 = vsel %vm6823, %v270, %v1049
  %v7043 = vsel %vm6823, %v271, %v1051
  %v7044 = vsel %vm6823, %v272, %v1053
  %v7045 = vsel %vm6823, %v273, %v1055
  %v7046 = vsel %vm6823, %v274, %v1057
  %v7047 = vsel %vm6823, %v275, %v1059
  %v7048 = vsel %vm6823, %v278, %v1061
  %v7049 = vsel %vm6823, %v279, %v1063
  %v7050 = vsel %vm6823, %v280, %v1065
  %v7051 = vsel %vm6823, %v281, %v1067
  %v7052 = vsel %vm6823, %v282, %v1069
  %v7053 = vsel %vm6823, %v283, %v1071
  %v7054 = vsel %vm6823, %v284, %v1073
  %v7055 = vsel %vm6823, %v285, %v1075
  %v7056 = vsel %vm6823, %v286, %v1077
  %v7057 = vsel %vm6823, %v287, %v1079
  %v7058 = vsel %vm6823, %v288, %v1081
  %v7059 = vsel %vm6823, %v289, %v1083
  %v7060 = vsel %vm6823, %v290, %v1085
  %v7061 = vsel %vm6823, %v291, %v1087
  %v7062 = vsel %vm6823, %v292, %v1089
  %v7063 = vsel %vm6823, %v293, %v1091
  %v7064 = vsel %vm6823, %v296, %v1093
  %v7065 = vsel %vm6823, %v297, %v1095
  %v7066 = vsel %vm6823, %v298, %v1097
  %v7067 = vsel %vm6823, %v299, %v1099
  %v7068 = vsel %vm6823, %v300, %v1101
  %v7069 = vsel %vm6823, %v301, %v1103
  %v7070 = vsel %vm6823, %v302, %v1105
  %v7071 = vsel %vm6823, %v303, %v1107
  %v7072 = vsel %vm6823, %v304, %v1109
  %v7073 = vsel %vm6823, %v305, %v1111
  %v7074 = vsel %vm6823, %v306, %v1113
  %v7075 = vsel %vm6823, %v307, %v1115
  %v7076 = vsel %vm6823, %v308, %v1117
  %v7077 = vsel %vm6823, %v309, %v1119
  %v7078 = vsel %vm6823, %v310, %v1121
  %v7079 = vsel %vm6823, %v311, %v1123
  %vm7080 = vcmask 64512
  %v7081 = vsel %vm7080, %v6824, %v1397
  %v7082 = vsel %vm7080, %v6825, %v1399
  %v7083 = vsel %vm7080, %v6826, %v1401
  %v7084 = vsel %vm7080, %v6827, %v1403
  %v7085 = vsel %vm7080, %v6828, %v1405
  %v7086 = vsel %vm7080, %v6829, %v1407
  %v7087 = vsel %vm7080, %v6830, %v1409
  %v7088 = vsel %vm7080, %v6831, %v1411
  %v7089 = vsel %vm7080, %v6832, %v1413
  %v7090 = vsel %vm7080, %v6833, %v1415
  %v7091 = vsel %vm7080, %v6834, %v1417
  %v7092 = vsel %vm7080, %v6835, %v1419
  %v7093 = vsel %vm7080, %v6836, %v1421
  %v7094 = vsel %vm7080, %v6837, %v1423
  %v7095 = vsel %vm7080, %v6838, %v1425
  %v7096 = vsel %vm7080, %v6839, %v1427
  %v7097 = vsel %vm7080, %v6840, %v1429
  %v7098 = vsel %vm7080, %v6841, %v1431
  %v7099 = vsel %vm7080, %v6842, %v1433
  %v7100 = vsel %vm7080, %v6843, %v1435
  %v7101 = vsel %vm7080, %v6844, %v1437
  %v7102 = vsel %vm7080, %v6845, %v1439
  %v7103 = vsel %vm7080, %v6846, %v1441
  %v7104 = vsel %vm7080, %v6847, %v1443
  %v7105 = vsel %vm7080, %v6848, %v1445
  %v7106 = vsel %vm7080, %v6849, %v1447
  %v7107 = vsel %vm7080, %v6850, %v1449
  %v7108 = vsel %vm7080, %v6851, %v1451
  %v7109 = vsel %vm7080, %v6852, %v1453
  %v7110 = vsel %vm7080, %v6853, %v1455
  %v7111 = vsel %vm7080, %v6854, %v1457
  %v7112 = vsel %vm7080, %v6855, %v1459
  %v7113 = vsel %vm7080, %v6856, %v1461
  %v7114 = vsel %vm7080, %v6857, %v1463
  %v7115 = vsel %vm7080, %v6858, %v1465
  %v7116 = vsel %vm7080, %v6859, %v1467
  %v7117 = vsel %vm7080, %v6860, %v1469
  %v7118 = vsel %vm7080, %v6861, %v1471
  %v7119 = vsel %vm7080, %v6862, %v1473
  %v7120 = vsel %vm7080, %v6863, %v1475
  %v7121 = vsel %vm7080, %v6864, %v1477
  %v7122 = vsel %vm7080, %v6865, %v1479
  %v7123 = vsel %vm7080, %v6866, %v1481
  %v7124 = vsel %vm7080, %v6867, %v1483
  %v7125 = vsel %vm7080, %v6868, %v1485
  %v7126 = vsel %vm7080, %v6869, %v1487
  %v7127 = vsel %vm7080, %v6870, %v1489
  %v7128 = vsel %vm7080, %v6871, %v1491
  %v7129 = vsel %vm7080, %v6872, %v1493
  %v7130 = vsel %vm7080, %v6873, %v1495
  %v7131 = vsel %vm7080, %v6874, %v1497
  %v7132 = vsel %vm7080, %v6875, %v1499
  %v7133 = vsel %vm7080, %v6876, %v1501
  %v7134 = vsel %vm7080, %v6877, %v1503
  %v7135 = vsel %vm7080, %v6878, %v1505
  %v7136 = vsel %vm7080, %v6879, %v1507
  %v7137 = vsel %vm7080, %v6880, %v1509
  %v7138 = vsel %vm7080, %v6881, %v1511
  %v7139 = vsel %vm7080, %v6882, %v1513
  %v7140 = vsel %vm7080, %v6883, %v1515
  %v7141 = vsel %vm7080, %v6884, %v1517
  %v7142 = vsel %vm7080, %v6885, %v1519
  %v7143 = vsel %vm7080, %v6886, %v1521
  %v7144 = vsel %vm7080, %v6887, %v1523
  %v7145 = vsel %vm7080, %v6888, %v1525
  %v7146 = vsel %vm7080, %v6889, %v1527
  %v7147 = vsel %vm7080, %v6890, %v1529
  %v7148 = vsel %vm7080, %v6891, %v1531
  %v7149 = vsel %vm7080, %v6892, %v1533
  %v7150 = vsel %vm7080, %v6893, %v1535
  %v7151 = vsel %vm7080, %v6894, %v1537
  %v7152 = vsel %vm7080, %v6895, %v1539
  %v7153 = vsel %vm7080, %v6896, %v1541
  %v7154 = vsel %vm7080, %v6897, %v1543
  %v7155 = vsel %vm7080, %v6898, %v1545
  %v7156 = vsel %vm7080, %v6899, %v1547
  %v7157 = vsel %vm7080, %v6900, %v1549
  %v7158 = vsel %vm7080, %v6901, %v1551
  %v7159 = vsel %vm7080, %v6902, %v1553
  %v7160 = vsel %vm7080, %v6903, %v1555
  %v7161 = vsel %vm7080, %v6904, %v1557
  %v7162 = vsel %vm7080, %v6905, %v1559
  %v7163 = vsel %vm7080, %v6906, %v1561
  %v7164 = vsel %vm7080, %v6907, %v1563
  %v7165 = vsel %vm7080, %v6908, %v1565
  %v7166 = vsel %vm7080, %v6909, %v1567
  %v7167 = vsel %vm7080, %v6910, %v1569
  %v7168 = vsel %vm7080, %v6911, %v1571
  %v7169 = vsel %vm7080, %v6912, %v1573
  %v7170 = vsel %vm7080, %v6913, %v1575
  %v7171 = vsel %vm7080, %v6914, %v1577
  %v7172 = vsel %vm7080, %v6915, %v1579
  %v7173 = vsel %vm7080, %v6916, %v1581
  %v7174 = vsel %vm7080, %v6917, %v1583
  %v7175 = vsel %vm7080, %v6918, %v1585
  %v7176 = vsel %vm7080, %v6919, %v1587
  %v7177 = vsel %vm7080, %v6920, %v1589
  %v7178 = vsel %vm7080, %v6921, %v1591
  %v7179 = vsel %vm7080, %v6922, %v1593
  %v7180 = vsel %vm7080, %v6923, %v1595
  %v7181 = vsel %vm7080, %v6924, %v1597
  %v7182 = vsel %vm7080, %v6925, %v1599
  %v7183 = vsel %vm7080, %v6926, %v1601
  %v7184 = vsel %vm7080, %v6927, %v1603
  %v7185 = vsel %vm7080, %v6928, %v1605
  %v7186 = vsel %vm7080, %v6929, %v1607
  %v7187 = vsel %vm7080, %v6930, %v1609
  %v7188 = vsel %vm7080, %v6931, %v1611
  %v7189 = vsel %vm7080, %v6932, %v1613
  %v7190 = vsel %vm7080, %v6933, %v1615
  %v7191 = vsel %vm7080, %v6934, %v1617
  %v7192 = vsel %vm7080, %v6935, %v1619
  %v7193 = vsel %vm7080, %v6936, %v1621
  %v7194 = vsel %vm7080, %v6937, %v1623
  %v7195 = vsel %vm7080, %v6938, %v1625
  %v7196 = vsel %vm7080, %v6939, %v1627
  %v7197 = vsel %vm7080, %v6940, %v1629
  %v7198 = vsel %vm7080, %v6941, %v1631
  %v7199 = vsel %vm7080, %v6942, %v1633
  %v7200 = vsel %vm7080, %v6943, %v1635
  %v7201 = vsel %vm7080, %v6944, %v1637
  %v7202 = vsel %vm7080, %v6945, %v1639
  %v7203 = vsel %vm7080, %v6946, %v1641
  %v7204 = vsel %vm7080, %v6947, %v1643
  %v7205 = vsel %vm7080, %v6948, %v1645
  %v7206 = vsel %vm7080, %v6949, %v1647
  %v7207 = vsel %vm7080, %v6950, %v1649
  %v7208 = vsel %vm7080, %v6951, %v1651
  %v7209 = vsel %vm7080, %v6952, %v1653
  %v7210 = vsel %vm7080, %v6953, %v1655
  %v7211 = vsel %vm7080, %v6954, %v1657
  %v7212 = vsel %vm7080, %v6955, %v1659
  %v7213 = vsel %vm7080, %v6956, %v1661
  %v7214 = vsel %vm7080, %v6957, %v1663
  %v7215 = vsel %vm7080, %v6958, %v1665
  %v7216 = vsel %vm7080, %v6959, %v1667
  %v7217 = vsel %vm7080, %v6960, %v1669
  %v7218 = vsel %vm7080, %v6961, %v1671
  %v7219 = vsel %vm7080, %v6962, %v1673
  %v7220 = vsel %vm7080, %v6963, %v1675
  %v7221 = vsel %vm7080, %v6964, %v1677
  %v7222 = vsel %vm7080, %v6965, %v1679
  %v7223 = vsel %vm7080, %v6966, %v1681
  %v7224 = vsel %vm7080, %v6967, %v1683
  %v7225 = vsel %vm7080, %v6968, %v1685
  %v7226 = vsel %vm7080, %v6969, %v1687
  %v7227 = vsel %vm7080, %v6970, %v1689
  %v7228 = vsel %vm7080, %v6971, %v1691
  %v7229 = vsel %vm7080, %v6972, %v1693
  %v7230 = vsel %vm7080, %v6973, %v1695
  %v7231 = vsel %vm7080, %v6974, %v1697
  %v7232 = vsel %vm7080, %v6975, %v1699
  %v7233 = vsel %vm7080, %v6976, %v1701
  %v7234 = vsel %vm7080, %v6977, %v1703
  %v7235 = vsel %vm7080, %v6978, %v1705
  %v7236 = vsel %vm7080, %v6979, %v1707
  %v7237 = vsel %vm7080, %v6980, %v1709
  %v7238 = vsel %vm7080, %v6981, %v1711
  %v7239 = vsel %vm7080, %v6982, %v1713
  %v7240 = vsel %vm7080, %v6983, %v1715
  %v7241 = vsel %vm7080, %v6984, %v1717
  %v7242 = vsel %vm7080, %v6985, %v1719
  %v7243 = vsel %vm7080, %v6986, %v1721
  %v7244 = vsel %vm7080, %v6987, %v1723
  %v7245 = vsel %vm7080, %v6988, %v1725
  %v7246 = vsel %vm7080, %v6989, %v1727
  %v7247 = vsel %vm7080, %v6990, %v1729
  %v7248 = vsel %vm7080, %v6991, %v1731
  %v7249 = vsel %vm7080, %v6992, %v1733
  %v7250 = vsel %vm7080, %v6993, %v1735
  %v7251 = vsel %vm7080, %v6994, %v1737
  %v7252 = vsel %vm7080, %v6995, %v1739
  %v7253 = vsel %vm7080, %v6996, %v1741
  %v7254 = vsel %vm7080, %v6997, %v1743
  %v7255 = vsel %vm7080, %v6998, %v1745
  %v7256 = vsel %vm7080, %v6999, %v1747
  %v7257 = vsel %vm7080, %v7000, %v1749
  %v7258 = vsel %vm7080, %v7001, %v1751
  %v7259 = vsel %vm7080, %v7002, %v1753
  %v7260 = vsel %vm7080, %v7003, %v1755
  %v7261 = vsel %vm7080, %v7004, %v1757
  %v7262 = vsel %vm7080, %v7005, %v1759
  %v7263 = vsel %vm7080, %v7006, %v1761
  %v7264 = vsel %vm7080, %v7007, %v1763
  %v7265 = vsel %vm7080, %v7008, %v1765
  %v7266 = vsel %vm7080, %v7009, %v1767
  %v7267 = vsel %vm7080, %v7010, %v1769
  %v7268 = vsel %vm7080, %v7011, %v1771
  %v7269 = vsel %vm7080, %v7012, %v1773
  %v7270 = vsel %vm7080, %v7013, %v1775
  %v7271 = vsel %vm7080, %v7014, %v1777
  %v7272 = vsel %vm7080, %v7015, %v1779
  %v7273 = vsel %vm7080, %v7016, %v1781
  %v7274 = vsel %vm7080, %v7017, %v1783
  %v7275 = vsel %vm7080, %v7018, %v1785
  %v7276 = vsel %vm7080, %v7019, %v1787
  %v7277 = vsel %vm7080, %v7020, %v1789
  %v7278 = vsel %vm7080, %v7021, %v1791
  %v7279 = vsel %vm7080, %v7022, %v1793
  %v7280 = vsel %vm7080, %v7023, %v1795
  %v7281 = vsel %vm7080, %v7024, %v1797
  %v7282 = vsel %vm7080, %v7025, %v1799
  %v7283 = vsel %vm7080, %v7026, %v1801
  %v7284 = vsel %vm7080, %v7027, %v1803
  %v7285 = vsel %vm7080, %v7028, %v1805
  %v7286 = vsel %vm7080, %v7029, %v1807
  %v7287 = vsel %vm7080, %v7030, %v1809
  %v7288 = vsel %vm7080, %v7031, %v1811
  %v7289 = vsel %vm7080, %v7032, %v1813
  %v7290 = vsel %vm7080, %v7033, %v1815
  %v7291 = vsel %vm7080, %v7034, %v1817
  %v7292 = vsel %vm7080, %v7035, %v1819
  %v7293 = vsel %vm7080, %v7036, %v1821
  %v7294 = vsel %vm7080, %v7037, %v1823
  %v7295 = vsel %vm7080, %v7038, %v1825
  %v7296 = vsel %vm7080, %v7039, %v1827
  %v7297 = vsel %vm7080, %v7040, %v1829
  %v7298 = vsel %vm7080, %v7041, %v1831
  %v7299 = vsel %vm7080, %v7042, %v1833
  %v7300 = vsel %vm7080, %v7043, %v1835
  %v7301 = vsel %vm7080, %v7044, %v1837
  %v7302 = vsel %vm7080, %v7045, %v1839
  %v7303 = vsel %vm7080, %v7046, %v1841
  %v7304 = vsel %vm7080, %v7047, %v1843
  %v7305 = vsel %vm7080, %v7048, %v1845
  %v7306 = vsel %vm7080, %v7049, %v1847
  %v7307 = vsel %vm7080, %v7050, %v1849
  %v7308 = vsel %vm7080, %v7051, %v1851
  %v7309 = vsel %vm7080, %v7052, %v1853
  %v7310 = vsel %vm7080, %v7053, %v1855
  %v7311 = vsel %vm7080, %v7054, %v1857
  %v7312 = vsel %vm7080, %v7055, %v1859
  %v7313 = vsel %vm7080, %v7056, %v1861
  %v7314 = vsel %vm7080, %v7057, %v1863
  %v7315 = vsel %vm7080, %v7058, %v1865
  %v7316 = vsel %vm7080, %v7059, %v1867
  %v7317 = vsel %vm7080, %v7060, %v1869
  %v7318 = vsel %vm7080, %v7061, %v1871
  %v7319 = vsel %vm7080, %v7062, %v1873
  %v7320 = vsel %vm7080, %v7063, %v1875
  %v7321 = vsel %vm7080, %v7064, %v1877
  %v7322 = vsel %vm7080, %v7065, %v1879
  %v7323 = vsel %vm7080, %v7066, %v1881
  %v7324 = vsel %vm7080, %v7067, %v1883
  %v7325 = vsel %vm7080, %v7068, %v1885
  %v7326 = vsel %vm7080, %v7069, %v1887
  %v7327 = vsel %vm7080, %v7070, %v1889
  %v7328 = vsel %vm7080, %v7071, %v1891
  %v7329 = vsel %vm7080, %v7072, %v1893
  %v7330 = vsel %vm7080, %v7073, %v1895
  %v7331 = vsel %vm7080, %v7074, %v1897
  %v7332 = vsel %vm7080, %v7075, %v1899
  %v7333 = vsel %vm7080, %v7076, %v1901
  %v7334 = vsel %vm7080, %v7077, %v1903
  %v7335 = vsel %vm7080, %v7078, %v1905
  %v7336 = vsel %vm7080, %v7079, %v1907
  %vm7337 = vcmask 97280
  %v7338 = vsel %vm7337, %v7081, %v2196
  %v7339 = vsel %vm7337, %v7082, %v2198
  %v7340 = vsel %vm7337, %v7083, %v2200
  %v7341 = vsel %vm7337, %v7084, %v2202
  %v7342 = vsel %vm7337, %v7085, %v2204
  %v7343 = vsel %vm7337, %v7086, %v2206
  %v7344 = vsel %vm7337, %v7087, %v2208
  %v7345 = vsel %vm7337, %v7088, %v2210
  %v7346 = vsel %vm7337, %v7089, %v2212
  %v7347 = vsel %vm7337, %v7090, %v2214
  %v7348 = vsel %vm7337, %v7091, %v2216
  %v7349 = vsel %vm7337, %v7092, %v2218
  %v7350 = vsel %vm7337, %v7093, %v2220
  %v7351 = vsel %vm7337, %v7094, %v2222
  %v7352 = vsel %vm7337, %v7095, %v2224
  %v7353 = vsel %vm7337, %v7096, %v2226
  %v7354 = vsel %vm7337, %v7097, %v2228
  %v7355 = vsel %vm7337, %v7098, %v2230
  %v7356 = vsel %vm7337, %v7099, %v2232
  %v7357 = vsel %vm7337, %v7100, %v2234
  %v7358 = vsel %vm7337, %v7101, %v2236
  %v7359 = vsel %vm7337, %v7102, %v2238
  %v7360 = vsel %vm7337, %v7103, %v2240
  %v7361 = vsel %vm7337, %v7104, %v2242
  %v7362 = vsel %vm7337, %v7105, %v2244
  %v7363 = vsel %vm7337, %v7106, %v2246
  %v7364 = vsel %vm7337, %v7107, %v2248
  %v7365 = vsel %vm7337, %v7108, %v2250
  %v7366 = vsel %vm7337, %v7109, %v2252
  %v7367 = vsel %vm7337, %v7110, %v2254
  %v7368 = vsel %vm7337, %v7111, %v2256
  %v7369 = vsel %vm7337, %v7112, %v2258
  %v7370 = vsel %vm7337, %v7113, %v2260
  %v7371 = vsel %vm7337, %v7114, %v2262
  %v7372 = vsel %vm7337, %v7115, %v2264
  %v7373 = vsel %vm7337, %v7116, %v2266
  %v7374 = vsel %vm7337, %v7117, %v2268
  %v7375 = vsel %vm7337, %v7118, %v2270
  %v7376 = vsel %vm7337, %v7119, %v2272
  %v7377 = vsel %vm7337, %v7120, %v2274
  %v7378 = vsel %vm7337, %v7121, %v2276
  %v7379 = vsel %vm7337, %v7122, %v2278
  %v7380 = vsel %vm7337, %v7123, %v2280
  %v7381 = vsel %vm7337, %v7124, %v2282
  %v7382 = vsel %vm7337, %v7125, %v2284
  %v7383 = vsel %vm7337, %v7126, %v2286
  %v7384 = vsel %vm7337, %v7127, %v2288
  %v7385 = vsel %vm7337, %v7128, %v2290
  %v7386 = vsel %vm7337, %v7129, %v2292
  %v7387 = vsel %vm7337, %v7130, %v2294
  %v7388 = vsel %vm7337, %v7131, %v2296
  %v7389 = vsel %vm7337, %v7132, %v2298
  %v7390 = vsel %vm7337, %v7133, %v2300
  %v7391 = vsel %vm7337, %v7134, %v2302
  %v7392 = vsel %vm7337, %v7135, %v2304
  %v7393 = vsel %vm7337, %v7136, %v2306
  %v7394 = vsel %vm7337, %v7137, %v2308
  %v7395 = vsel %vm7337, %v7138, %v2310
  %v7396 = vsel %vm7337, %v7139, %v2312
  %v7397 = vsel %vm7337, %v7140, %v2314
  %v7398 = vsel %vm7337, %v7141, %v2316
  %v7399 = vsel %vm7337, %v7142, %v2318
  %v7400 = vsel %vm7337, %v7143, %v2320
  %v7401 = vsel %vm7337, %v7144, %v2322
  %v7402 = vsel %vm7337, %v7145, %v2324
  %v7403 = vsel %vm7337, %v7146, %v2326
  %v7404 = vsel %vm7337, %v7147, %v2328
  %v7405 = vsel %vm7337, %v7148, %v2330
  %v7406 = vsel %vm7337, %v7149, %v2332
  %v7407 = vsel %vm7337, %v7150, %v2334
  %v7408 = vsel %vm7337, %v7151, %v2336
  %v7409 = vsel %vm7337, %v7152, %v2338
  %v7410 = vsel %vm7337, %v7153, %v2340
  %v7411 = vsel %vm7337, %v7154, %v2342
  %v7412 = vsel %vm7337, %v7155, %v2344
  %v7413 = vsel %vm7337, %v7156, %v2346
  %v7414 = vsel %vm7337, %v7157, %v2348
  %v7415 = vsel %vm7337, %v7158, %v2350
  %v7416 = vsel %vm7337, %v7159, %v2352
  %v7417 = vsel %vm7337, %v7160, %v2354
  %v7418 = vsel %vm7337, %v7161, %v2356
  %v7419 = vsel %vm7337, %v7162, %v2358
  %v7420 = vsel %vm7337, %v7163, %v2360
  %v7421 = vsel %vm7337, %v7164, %v2362
  %v7422 = vsel %vm7337, %v7165, %v2364
  %v7423 = vsel %vm7337, %v7166, %v2366
  %v7424 = vsel %vm7337, %v7167, %v2368
  %v7425 = vsel %vm7337, %v7168, %v2370
  %v7426 = vsel %vm7337, %v7169, %v2372
  %v7427 = vsel %vm7337, %v7170, %v2374
  %v7428 = vsel %vm7337, %v7171, %v2376
  %v7429 = vsel %vm7337, %v7172, %v2378
  %v7430 = vsel %vm7337, %v7173, %v2380
  %v7431 = vsel %vm7337, %v7174, %v2382
  %v7432 = vsel %vm7337, %v7175, %v2384
  %v7433 = vsel %vm7337, %v7176, %v2386
  %v7434 = vsel %vm7337, %v7177, %v2388
  %v7435 = vsel %vm7337, %v7178, %v2390
  %v7436 = vsel %vm7337, %v7179, %v2392
  %v7437 = vsel %vm7337, %v7180, %v2394
  %v7438 = vsel %vm7337, %v7181, %v2396
  %v7439 = vsel %vm7337, %v7182, %v2398
  %v7440 = vsel %vm7337, %v7183, %v2400
  %v7441 = vsel %vm7337, %v7184, %v2402
  %v7442 = vsel %vm7337, %v7185, %v2404
  %v7443 = vsel %vm7337, %v7186, %v2406
  %v7444 = vsel %vm7337, %v7187, %v2408
  %v7445 = vsel %vm7337, %v7188, %v2410
  %v7446 = vsel %vm7337, %v7189, %v2412
  %v7447 = vsel %vm7337, %v7190, %v2414
  %v7448 = vsel %vm7337, %v7191, %v2416
  %v7449 = vsel %vm7337, %v7192, %v2418
  %v7450 = vsel %vm7337, %v7193, %v2420
  %v7451 = vsel %vm7337, %v7194, %v2422
  %v7452 = vsel %vm7337, %v7195, %v2424
  %v7453 = vsel %vm7337, %v7196, %v2426
  %v7454 = vsel %vm7337, %v7197, %v2428
  %v7455 = vsel %vm7337, %v7198, %v2430
  %v7456 = vsel %vm7337, %v7199, %v2432
  %v7457 = vsel %vm7337, %v7200, %v2434
  %v7458 = vsel %vm7337, %v7201, %v2436
  %v7459 = vsel %vm7337, %v7202, %v2438
  %v7460 = vsel %vm7337, %v7203, %v2440
  %v7461 = vsel %vm7337, %v7204, %v2442
  %v7462 = vsel %vm7337, %v7205, %v2444
  %v7463 = vsel %vm7337, %v7206, %v2446
  %v7464 = vsel %vm7337, %v7207, %v2448
  %v7465 = vsel %vm7337, %v7208, %v2450
  %v7466 = vsel %vm7337, %v7209, %v2452
  %v7467 = vsel %vm7337, %v7210, %v2454
  %v7468 = vsel %vm7337, %v7211, %v2456
  %v7469 = vsel %vm7337, %v7212, %v2458
  %v7470 = vsel %vm7337, %v7213, %v2460
  %v7471 = vsel %vm7337, %v7214, %v2462
  %v7472 = vsel %vm7337, %v7215, %v2464
  %v7473 = vsel %vm7337, %v7216, %v2466
  %v7474 = vsel %vm7337, %v7217, %v2468
  %v7475 = vsel %vm7337, %v7218, %v2470
  %v7476 = vsel %vm7337, %v7219, %v2472
  %v7477 = vsel %vm7337, %v7220, %v2474
  %v7478 = vsel %vm7337, %v7221, %v2476
  %v7479 = vsel %vm7337, %v7222, %v2478
  %v7480 = vsel %vm7337, %v7223, %v2480
  %v7481 = vsel %vm7337, %v7224, %v2482
  %v7482 = vsel %vm7337, %v7225, %v2484
  %v7483 = vsel %vm7337, %v7226, %v2486
  %v7484 = vsel %vm7337, %v7227, %v2488
  %v7485 = vsel %vm7337, %v7228, %v2490
  %v7486 = vsel %vm7337, %v7229, %v2492
  %v7487 = vsel %vm7337, %v7230, %v2494
  %v7488 = vsel %vm7337, %v7231, %v2496
  %v7489 = vsel %vm7337, %v7232, %v2498
  %v7490 = vsel %vm7337, %v7233, %v2500
  %v7491 = vsel %vm7337, %v7234, %v2502
  %v7492 = vsel %vm7337, %v7235, %v2504
  %v7493 = vsel %vm7337, %v7236, %v2506
  %v7494 = vsel %vm7337, %v7237, %v2508
  %v7495 = vsel %vm7337, %v7238, %v2510
  %v7496 = vsel %vm7337, %v7239, %v2512
  %v7497 = vsel %vm7337, %v7240, %v2514
  %v7498 = vsel %vm7337, %v7241, %v2516
  %v7499 = vsel %vm7337, %v7242, %v2518
  %v7500 = vsel %vm7337, %v7243, %v2520
  %v7501 = vsel %vm7337, %v7244, %v2522
  %v7502 = vsel %vm7337, %v7245, %v2524
  %v7503 = vsel %vm7337, %v7246, %v2526
  %v7504 = vsel %vm7337, %v7247, %v2528
  %v7505 = vsel %vm7337, %v7248, %v2530
  %v7506 = vsel %vm7337, %v7249, %v2532
  %v7507 = vsel %vm7337, %v7250, %v2534
  %v7508 = vsel %vm7337, %v7251, %v2536
  %v7509 = vsel %vm7337, %v7252, %v2538
  %v7510 = vsel %vm7337, %v7253, %v2540
  %v7511 = vsel %vm7337, %v7254, %v2542
  %v7512 = vsel %vm7337, %v7255, %v2544
  %v7513 = vsel %vm7337, %v7256, %v2546
  %v7514 = vsel %vm7337, %v7257, %v2548
  %v7515 = vsel %vm7337, %v7258, %v2550
  %v7516 = vsel %vm7337, %v7259, %v2552
  %v7517 = vsel %vm7337, %v7260, %v2554
  %v7518 = vsel %vm7337, %v7261, %v2556
  %v7519 = vsel %vm7337, %v7262, %v2558
  %v7520 = vsel %vm7337, %v7263, %v2560
  %v7521 = vsel %vm7337, %v7264, %v2562
  %v7522 = vsel %vm7337, %v7265, %v2564
  %v7523 = vsel %vm7337, %v7266, %v2566
  %v7524 = vsel %vm7337, %v7267, %v2568
  %v7525 = vsel %vm7337, %v7268, %v2570
  %v7526 = vsel %vm7337, %v7269, %v2572
  %v7527 = vsel %vm7337, %v7270, %v2574
  %v7528 = vsel %vm7337, %v7271, %v2576
  %v7529 = vsel %vm7337, %v7272, %v2578
  %v7530 = vsel %vm7337, %v7273, %v2580
  %v7531 = vsel %vm7337, %v7274, %v2582
  %v7532 = vsel %vm7337, %v7275, %v2584
  %v7533 = vsel %vm7337, %v7276, %v2586
  %v7534 = vsel %vm7337, %v7277, %v2588
  %v7535 = vsel %vm7337, %v7278, %v2590
  %v7536 = vsel %vm7337, %v7279, %v2592
  %v7537 = vsel %vm7337, %v7280, %v2594
  %v7538 = vsel %vm7337, %v7281, %v2596
  %v7539 = vsel %vm7337, %v7282, %v2598
  %v7540 = vsel %vm7337, %v7283, %v2600
  %v7541 = vsel %vm7337, %v7284, %v2602
  %v7542 = vsel %vm7337, %v7285, %v2604
  %v7543 = vsel %vm7337, %v7286, %v2606
  %v7544 = vsel %vm7337, %v7287, %v2608
  %v7545 = vsel %vm7337, %v7288, %v2610
  %v7546 = vsel %vm7337, %v7289, %v2612
  %v7547 = vsel %vm7337, %v7290, %v2614
  %v7548 = vsel %vm7337, %v7291, %v2616
  %v7549 = vsel %vm7337, %v7292, %v2618
  %v7550 = vsel %vm7337, %v7293, %v2620
  %v7551 = vsel %vm7337, %v7294, %v2622
  %v7552 = vsel %vm7337, %v7295, %v2624
  %v7553 = vsel %vm7337, %v7296, %v2626
  %v7554 = vsel %vm7337, %v7297, %v2628
  %v7555 = vsel %vm7337, %v7298, %v2630
  %v7556 = vsel %vm7337, %v7299, %v2632
  %v7557 = vsel %vm7337, %v7300, %v2634
  %v7558 = vsel %vm7337, %v7301, %v2636
  %v7559 = vsel %vm7337, %v7302, %v2638
  %v7560 = vsel %vm7337, %v7303, %v2640
  %v7561 = vsel %vm7337, %v7304, %v2642
  %v7562 = vsel %vm7337, %v7305, %v2644
  %v7563 = vsel %vm7337, %v7306, %v2646
  %v7564 = vsel %vm7337, %v7307, %v2648
  %v7565 = vsel %vm7337, %v7308, %v2650
  %v7566 = vsel %vm7337, %v7309, %v2652
  %v7567 = vsel %vm7337, %v7310, %v2654
  %v7568 = vsel %vm7337, %v7311, %v2656
  %v7569 = vsel %vm7337, %v7312, %v2658
  %v7570 = vsel %vm7337, %v7313, %v2660
  %v7571 = vsel %vm7337, %v7314, %v2662
  %v7572 = vsel %vm7337, %v7315, %v2664
  %v7573 = vsel %vm7337, %v7316, %v2666
  %v7574 = vsel %vm7337, %v7317, %v2668
  %v7575 = vsel %vm7337, %v7318, %v2670
  %v7576 = vsel %vm7337, %v7319, %v2672
  %v7577 = vsel %vm7337, %v7320, %v2674
  %v7578 = vsel %vm7337, %v7321, %v2676
  %v7579 = vsel %vm7337, %v7322, %v2678
  %v7580 = vsel %vm7337, %v7323, %v2680
  %v7581 = vsel %vm7337, %v7324, %v2682
  %v7582 = vsel %vm7337, %v7325, %v2684
  %v7583 = vsel %vm7337, %v7326, %v2686
  %v7584 = vsel %vm7337, %v7327, %v2688
  %v7585 = vsel %vm7337, %v7328, %v2690
  %v7586 = vsel %vm7337, %v7329, %v2692
  %v7587 = vsel %vm7337, %v7330, %v2694
  %v7588 = vsel %vm7337, %v7331, %v2696
  %v7589 = vsel %vm7337, %v7332, %v2698
  %v7590 = vsel %vm7337, %v7333, %v2700
  %v7591 = vsel %vm7337, %v7334, %v2702
  %v7592 = vsel %vm7337, %v7335, %v2704
  %v7593 = vsel %vm7337, %v7336, %v2706
  %vm7594 = vcmask 130048
  %v7595 = vsel %vm7594, %v7338, %v2965
  %v7596 = vsel %vm7594, %v7339, %v2967
  %v7597 = vsel %vm7594, %v7340, %v2969
  %v7598 = vsel %vm7594, %v7341, %v2971
  %v7599 = vsel %vm7594, %v7342, %v2973
  %v7600 = vsel %vm7594, %v7343, %v2975
  %v7601 = vsel %vm7594, %v7344, %v2977
  %v7602 = vsel %vm7594, %v7345, %v2979
  %v7603 = vsel %vm7594, %v7346, %v2981
  %v7604 = vsel %vm7594, %v7347, %v2983
  %v7605 = vsel %vm7594, %v7348, %v2985
  %v7606 = vsel %vm7594, %v7349, %v2987
  %v7607 = vsel %vm7594, %v7350, %v2989
  %v7608 = vsel %vm7594, %v7351, %v2991
  %v7609 = vsel %vm7594, %v7352, %v2993
  %v7610 = vsel %vm7594, %v7353, %v2995
  %v7611 = vsel %vm7594, %v7354, %v2997
  %v7612 = vsel %vm7594, %v7355, %v2999
  %v7613 = vsel %vm7594, %v7356, %v3001
  %v7614 = vsel %vm7594, %v7357, %v3003
  %v7615 = vsel %vm7594, %v7358, %v3005
  %v7616 = vsel %vm7594, %v7359, %v3007
  %v7617 = vsel %vm7594, %v7360, %v3009
  %v7618 = vsel %vm7594, %v7361, %v3011
  %v7619 = vsel %vm7594, %v7362, %v3013
  %v7620 = vsel %vm7594, %v7363, %v3015
  %v7621 = vsel %vm7594, %v7364, %v3017
  %v7622 = vsel %vm7594, %v7365, %v3019
  %v7623 = vsel %vm7594, %v7366, %v3021
  %v7624 = vsel %vm7594, %v7367, %v3023
  %v7625 = vsel %vm7594, %v7368, %v3025
  %v7626 = vsel %vm7594, %v7369, %v3027
  %v7627 = vsel %vm7594, %v7370, %v3029
  %v7628 = vsel %vm7594, %v7371, %v3031
  %v7629 = vsel %vm7594, %v7372, %v3033
  %v7630 = vsel %vm7594, %v7373, %v3035
  %v7631 = vsel %vm7594, %v7374, %v3037
  %v7632 = vsel %vm7594, %v7375, %v3039
  %v7633 = vsel %vm7594, %v7376, %v3041
  %v7634 = vsel %vm7594, %v7377, %v3043
  %v7635 = vsel %vm7594, %v7378, %v3045
  %v7636 = vsel %vm7594, %v7379, %v3047
  %v7637 = vsel %vm7594, %v7380, %v3049
  %v7638 = vsel %vm7594, %v7381, %v3051
  %v7639 = vsel %vm7594, %v7382, %v3053
  %v7640 = vsel %vm7594, %v7383, %v3055
  %v7641 = vsel %vm7594, %v7384, %v3057
  %v7642 = vsel %vm7594, %v7385, %v3059
  %v7643 = vsel %vm7594, %v7386, %v3061
  %v7644 = vsel %vm7594, %v7387, %v3063
  %v7645 = vsel %vm7594, %v7388, %v3065
  %v7646 = vsel %vm7594, %v7389, %v3067
  %v7647 = vsel %vm7594, %v7390, %v3069
  %v7648 = vsel %vm7594, %v7391, %v3071
  %v7649 = vsel %vm7594, %v7392, %v3073
  %v7650 = vsel %vm7594, %v7393, %v3075
  %v7651 = vsel %vm7594, %v7394, %v3077
  %v7652 = vsel %vm7594, %v7395, %v3079
  %v7653 = vsel %vm7594, %v7396, %v3081
  %v7654 = vsel %vm7594, %v7397, %v3083
  %v7655 = vsel %vm7594, %v7398, %v3085
  %v7656 = vsel %vm7594, %v7399, %v3087
  %v7657 = vsel %vm7594, %v7400, %v3089
  %v7658 = vsel %vm7594, %v7401, %v3091
  %v7659 = vsel %vm7594, %v7402, %v3093
  %v7660 = vsel %vm7594, %v7403, %v3095
  %v7661 = vsel %vm7594, %v7404, %v3097
  %v7662 = vsel %vm7594, %v7405, %v3099
  %v7663 = vsel %vm7594, %v7406, %v3101
  %v7664 = vsel %vm7594, %v7407, %v3103
  %v7665 = vsel %vm7594, %v7408, %v3105
  %v7666 = vsel %vm7594, %v7409, %v3107
  %v7667 = vsel %vm7594, %v7410, %v3109
  %v7668 = vsel %vm7594, %v7411, %v3111
  %v7669 = vsel %vm7594, %v7412, %v3113
  %v7670 = vsel %vm7594, %v7413, %v3115
  %v7671 = vsel %vm7594, %v7414, %v3117
  %v7672 = vsel %vm7594, %v7415, %v3119
  %v7673 = vsel %vm7594, %v7416, %v3121
  %v7674 = vsel %vm7594, %v7417, %v3123
  %v7675 = vsel %vm7594, %v7418, %v3125
  %v7676 = vsel %vm7594, %v7419, %v3127
  %v7677 = vsel %vm7594, %v7420, %v3129
  %v7678 = vsel %vm7594, %v7421, %v3131
  %v7679 = vsel %vm7594, %v7422, %v3133
  %v7680 = vsel %vm7594, %v7423, %v3135
  %v7681 = vsel %vm7594, %v7424, %v3137
  %v7682 = vsel %vm7594, %v7425, %v3139
  %v7683 = vsel %vm7594, %v7426, %v3141
  %v7684 = vsel %vm7594, %v7427, %v3143
  %v7685 = vsel %vm7594, %v7428, %v3145
  %v7686 = vsel %vm7594, %v7429, %v3147
  %v7687 = vsel %vm7594, %v7430, %v3149
  %v7688 = vsel %vm7594, %v7431, %v3151
  %v7689 = vsel %vm7594, %v7432, %v3153
  %v7690 = vsel %vm7594, %v7433, %v3155
  %v7691 = vsel %vm7594, %v7434, %v3157
  %v7692 = vsel %vm7594, %v7435, %v3159
  %v7693 = vsel %vm7594, %v7436, %v3161
  %v7694 = vsel %vm7594, %v7437, %v3163
  %v7695 = vsel %vm7594, %v7438, %v3165
  %v7696 = vsel %vm7594, %v7439, %v3167
  %v7697 = vsel %vm7594, %v7440, %v3169
  %v7698 = vsel %vm7594, %v7441, %v3171
  %v7699 = vsel %vm7594, %v7442, %v3173
  %v7700 = vsel %vm7594, %v7443, %v3175
  %v7701 = vsel %vm7594, %v7444, %v3177
  %v7702 = vsel %vm7594, %v7445, %v3179
  %v7703 = vsel %vm7594, %v7446, %v3181
  %v7704 = vsel %vm7594, %v7447, %v3183
  %v7705 = vsel %vm7594, %v7448, %v3185
  %v7706 = vsel %vm7594, %v7449, %v3187
  %v7707 = vsel %vm7594, %v7450, %v3189
  %v7708 = vsel %vm7594, %v7451, %v3191
  %v7709 = vsel %vm7594, %v7452, %v3193
  %v7710 = vsel %vm7594, %v7453, %v3195
  %v7711 = vsel %vm7594, %v7454, %v3197
  %v7712 = vsel %vm7594, %v7455, %v3199
  %v7713 = vsel %vm7594, %v7456, %v3201
  %v7714 = vsel %vm7594, %v7457, %v3203
  %v7715 = vsel %vm7594, %v7458, %v3205
  %v7716 = vsel %vm7594, %v7459, %v3207
  %v7717 = vsel %vm7594, %v7460, %v3209
  %v7718 = vsel %vm7594, %v7461, %v3211
  %v7719 = vsel %vm7594, %v7462, %v3213
  %v7720 = vsel %vm7594, %v7463, %v3215
  %v7721 = vsel %vm7594, %v7464, %v3217
  %v7722 = vsel %vm7594, %v7465, %v3219
  %v7723 = vsel %vm7594, %v7466, %v3221
  %v7724 = vsel %vm7594, %v7467, %v3223
  %v7725 = vsel %vm7594, %v7468, %v3225
  %v7726 = vsel %vm7594, %v7469, %v3227
  %v7727 = vsel %vm7594, %v7470, %v3229
  %v7728 = vsel %vm7594, %v7471, %v3231
  %v7729 = vsel %vm7594, %v7472, %v3233
  %v7730 = vsel %vm7594, %v7473, %v3235
  %v7731 = vsel %vm7594, %v7474, %v3237
  %v7732 = vsel %vm7594, %v7475, %v3239
  %v7733 = vsel %vm7594, %v7476, %v3241
  %v7734 = vsel %vm7594, %v7477, %v3243
  %v7735 = vsel %vm7594, %v7478, %v3245
  %v7736 = vsel %vm7594, %v7479, %v3247
  %v7737 = vsel %vm7594, %v7480, %v3249
  %v7738 = vsel %vm7594, %v7481, %v3251
  %v7739 = vsel %vm7594, %v7482, %v3253
  %v7740 = vsel %vm7594, %v7483, %v3255
  %v7741 = vsel %vm7594, %v7484, %v3257
  %v7742 = vsel %vm7594, %v7485, %v3259
  %v7743 = vsel %vm7594, %v7486, %v3261
  %v7744 = vsel %vm7594, %v7487, %v3263
  %v7745 = vsel %vm7594, %v7488, %v3265
  %v7746 = vsel %vm7594, %v7489, %v3267
  %v7747 = vsel %vm7594, %v7490, %v3269
  %v7748 = vsel %vm7594, %v7491, %v3271
  %v7749 = vsel %vm7594, %v7492, %v3273
  %v7750 = vsel %vm7594, %v7493, %v3275
  %v7751 = vsel %vm7594, %v7494, %v3277
  %v7752 = vsel %vm7594, %v7495, %v3279
  %v7753 = vsel %vm7594, %v7496, %v3281
  %v7754 = vsel %vm7594, %v7497, %v3283
  %v7755 = vsel %vm7594, %v7498, %v3285
  %v7756 = vsel %vm7594, %v7499, %v3287
  %v7757 = vsel %vm7594, %v7500, %v3289
  %v7758 = vsel %vm7594, %v7501, %v3291
  %v7759 = vsel %vm7594, %v7502, %v3293
  %v7760 = vsel %vm7594, %v7503, %v3295
  %v7761 = vsel %vm7594, %v7504, %v3297
  %v7762 = vsel %vm7594, %v7505, %v3299
  %v7763 = vsel %vm7594, %v7506, %v3301
  %v7764 = vsel %vm7594, %v7507, %v3303
  %v7765 = vsel %vm7594, %v7508, %v3305
  %v7766 = vsel %vm7594, %v7509, %v3307
  %v7767 = vsel %vm7594, %v7510, %v3309
  %v7768 = vsel %vm7594, %v7511, %v3311
  %v7769 = vsel %vm7594, %v7512, %v3313
  %v7770 = vsel %vm7594, %v7513, %v3315
  %v7771 = vsel %vm7594, %v7514, %v3317
  %v7772 = vsel %vm7594, %v7515, %v3319
  %v7773 = vsel %vm7594, %v7516, %v3321
  %v7774 = vsel %vm7594, %v7517, %v3323
  %v7775 = vsel %vm7594, %v7518, %v3325
  %v7776 = vsel %vm7594, %v7519, %v3327
  %v7777 = vsel %vm7594, %v7520, %v3329
  %v7778 = vsel %vm7594, %v7521, %v3331
  %v7779 = vsel %vm7594, %v7522, %v3333
  %v7780 = vsel %vm7594, %v7523, %v3335
  %v7781 = vsel %vm7594, %v7524, %v3337
  %v7782 = vsel %vm7594, %v7525, %v3339
  %v7783 = vsel %vm7594, %v7526, %v3341
  %v7784 = vsel %vm7594, %v7527, %v3343
  %v7785 = vsel %vm7594, %v7528, %v3345
  %v7786 = vsel %vm7594, %v7529, %v3347
  %v7787 = vsel %vm7594, %v7530, %v3349
  %v7788 = vsel %vm7594, %v7531, %v3351
  %v7789 = vsel %vm7594, %v7532, %v3353
  %v7790 = vsel %vm7594, %v7533, %v3355
  %v7791 = vsel %vm7594, %v7534, %v3357
  %v7792 = vsel %vm7594, %v7535, %v3359
  %v7793 = vsel %vm7594, %v7536, %v3361
  %v7794 = vsel %vm7594, %v7537, %v3363
  %v7795 = vsel %vm7594, %v7538, %v3365
  %v7796 = vsel %vm7594, %v7539, %v3367
  %v7797 = vsel %vm7594, %v7540, %v3369
  %v7798 = vsel %vm7594, %v7541, %v3371
  %v7799 = vsel %vm7594, %v7542, %v3373
  %v7800 = vsel %vm7594, %v7543, %v3375
  %v7801 = vsel %vm7594, %v7544, %v3377
  %v7802 = vsel %vm7594, %v7545, %v3379
  %v7803 = vsel %vm7594, %v7546, %v3381
  %v7804 = vsel %vm7594, %v7547, %v3383
  %v7805 = vsel %vm7594, %v7548, %v3385
  %v7806 = vsel %vm7594, %v7549, %v3387
  %v7807 = vsel %vm7594, %v7550, %v3389
  %v7808 = vsel %vm7594, %v7551, %v3391
  %v7809 = vsel %vm7594, %v7552, %v3393
  %v7810 = vsel %vm7594, %v7553, %v3395
  %v7811 = vsel %vm7594, %v7554, %v3397
  %v7812 = vsel %vm7594, %v7555, %v3399
  %v7813 = vsel %vm7594, %v7556, %v3401
  %v7814 = vsel %vm7594, %v7557, %v3403
  %v7815 = vsel %vm7594, %v7558, %v3405
  %v7816 = vsel %vm7594, %v7559, %v3407
  %v7817 = vsel %vm7594, %v7560, %v3409
  %v7818 = vsel %vm7594, %v7561, %v3411
  %v7819 = vsel %vm7594, %v7562, %v3413
  %v7820 = vsel %vm7594, %v7563, %v3415
  %v7821 = vsel %vm7594, %v7564, %v3417
  %v7822 = vsel %vm7594, %v7565, %v3419
  %v7823 = vsel %vm7594, %v7566, %v3421
  %v7824 = vsel %vm7594, %v7567, %v3423
  %v7825 = vsel %vm7594, %v7568, %v3425
  %v7826 = vsel %vm7594, %v7569, %v3427
  %v7827 = vsel %vm7594, %v7570, %v3429
  %v7828 = vsel %vm7594, %v7571, %v3431
  %v7829 = vsel %vm7594, %v7572, %v3433
  %v7830 = vsel %vm7594, %v7573, %v3435
  %v7831 = vsel %vm7594, %v7574, %v3437
  %v7832 = vsel %vm7594, %v7575, %v3439
  %v7833 = vsel %vm7594, %v7576, %v3441
  %v7834 = vsel %vm7594, %v7577, %v3443
  %v7835 = vsel %vm7594, %v7578, %v3445
  %v7836 = vsel %vm7594, %v7579, %v3447
  %v7837 = vsel %vm7594, %v7580, %v3449
  %v7838 = vsel %vm7594, %v7581, %v3451
  %v7839 = vsel %vm7594, %v7582, %v3453
  %v7840 = vsel %vm7594, %v7583, %v3455
  %v7841 = vsel %vm7594, %v7584, %v3457
  %v7842 = vsel %vm7594, %v7585, %v3459
  %v7843 = vsel %vm7594, %v7586, %v3461
  %v7844 = vsel %vm7594, %v7587, %v3463
  %v7845 = vsel %vm7594, %v7588, %v3465
  %v7846 = vsel %vm7594, %v7589, %v3467
  %v7847 = vsel %vm7594, %v7590, %v3469
  %v7848 = vsel %vm7594, %v7591, %v3471
  %v7849 = vsel %vm7594, %v7592, %v3473
  %v7850 = vsel %vm7594, %v7593, %v3475
  %vm7851 = vcmask 162816
  %v7852 = vsel %vm7851, %v7595, %v3734
  %v7853 = vsel %vm7851, %v7596, %v3736
  %v7854 = vsel %vm7851, %v7597, %v3738
  %v7855 = vsel %vm7851, %v7598, %v3740
  %v7856 = vsel %vm7851, %v7599, %v3742
  %v7857 = vsel %vm7851, %v7600, %v3744
  %v7858 = vsel %vm7851, %v7601, %v3746
  %v7859 = vsel %vm7851, %v7602, %v3748
  %v7860 = vsel %vm7851, %v7603, %v3750
  %v7861 = vsel %vm7851, %v7604, %v3752
  %v7862 = vsel %vm7851, %v7605, %v3754
  %v7863 = vsel %vm7851, %v7606, %v3756
  %v7864 = vsel %vm7851, %v7607, %v3758
  %v7865 = vsel %vm7851, %v7608, %v3760
  %v7866 = vsel %vm7851, %v7609, %v3762
  %v7867 = vsel %vm7851, %v7610, %v3764
  %v7868 = vsel %vm7851, %v7611, %v3766
  %v7869 = vsel %vm7851, %v7612, %v3768
  %v7870 = vsel %vm7851, %v7613, %v3770
  %v7871 = vsel %vm7851, %v7614, %v3772
  %v7872 = vsel %vm7851, %v7615, %v3774
  %v7873 = vsel %vm7851, %v7616, %v3776
  %v7874 = vsel %vm7851, %v7617, %v3778
  %v7875 = vsel %vm7851, %v7618, %v3780
  %v7876 = vsel %vm7851, %v7619, %v3782
  %v7877 = vsel %vm7851, %v7620, %v3784
  %v7878 = vsel %vm7851, %v7621, %v3786
  %v7879 = vsel %vm7851, %v7622, %v3788
  %v7880 = vsel %vm7851, %v7623, %v3790
  %v7881 = vsel %vm7851, %v7624, %v3792
  %v7882 = vsel %vm7851, %v7625, %v3794
  %v7883 = vsel %vm7851, %v7626, %v3796
  %v7884 = vsel %vm7851, %v7627, %v3798
  %v7885 = vsel %vm7851, %v7628, %v3800
  %v7886 = vsel %vm7851, %v7629, %v3802
  %v7887 = vsel %vm7851, %v7630, %v3804
  %v7888 = vsel %vm7851, %v7631, %v3806
  %v7889 = vsel %vm7851, %v7632, %v3808
  %v7890 = vsel %vm7851, %v7633, %v3810
  %v7891 = vsel %vm7851, %v7634, %v3812
  %v7892 = vsel %vm7851, %v7635, %v3814
  %v7893 = vsel %vm7851, %v7636, %v3816
  %v7894 = vsel %vm7851, %v7637, %v3818
  %v7895 = vsel %vm7851, %v7638, %v3820
  %v7896 = vsel %vm7851, %v7639, %v3822
  %v7897 = vsel %vm7851, %v7640, %v3824
  %v7898 = vsel %vm7851, %v7641, %v3826
  %v7899 = vsel %vm7851, %v7642, %v3828
  %v7900 = vsel %vm7851, %v7643, %v3830
  %v7901 = vsel %vm7851, %v7644, %v3832
  %v7902 = vsel %vm7851, %v7645, %v3834
  %v7903 = vsel %vm7851, %v7646, %v3836
  %v7904 = vsel %vm7851, %v7647, %v3838
  %v7905 = vsel %vm7851, %v7648, %v3840
  %v7906 = vsel %vm7851, %v7649, %v3842
  %v7907 = vsel %vm7851, %v7650, %v3844
  %v7908 = vsel %vm7851, %v7651, %v3846
  %v7909 = vsel %vm7851, %v7652, %v3848
  %v7910 = vsel %vm7851, %v7653, %v3850
  %v7911 = vsel %vm7851, %v7654, %v3852
  %v7912 = vsel %vm7851, %v7655, %v3854
  %v7913 = vsel %vm7851, %v7656, %v3856
  %v7914 = vsel %vm7851, %v7657, %v3858
  %v7915 = vsel %vm7851, %v7658, %v3860
  %v7916 = vsel %vm7851, %v7659, %v3862
  %v7917 = vsel %vm7851, %v7660, %v3864
  %v7918 = vsel %vm7851, %v7661, %v3866
  %v7919 = vsel %vm7851, %v7662, %v3868
  %v7920 = vsel %vm7851, %v7663, %v3870
  %v7921 = vsel %vm7851, %v7664, %v3872
  %v7922 = vsel %vm7851, %v7665, %v3874
  %v7923 = vsel %vm7851, %v7666, %v3876
  %v7924 = vsel %vm7851, %v7667, %v3878
  %v7925 = vsel %vm7851, %v7668, %v3880
  %v7926 = vsel %vm7851, %v7669, %v3882
  %v7927 = vsel %vm7851, %v7670, %v3884
  %v7928 = vsel %vm7851, %v7671, %v3886
  %v7929 = vsel %vm7851, %v7672, %v3888
  %v7930 = vsel %vm7851, %v7673, %v3890
  %v7931 = vsel %vm7851, %v7674, %v3892
  %v7932 = vsel %vm7851, %v7675, %v3894
  %v7933 = vsel %vm7851, %v7676, %v3896
  %v7934 = vsel %vm7851, %v7677, %v3898
  %v7935 = vsel %vm7851, %v7678, %v3900
  %v7936 = vsel %vm7851, %v7679, %v3902
  %v7937 = vsel %vm7851, %v7680, %v3904
  %v7938 = vsel %vm7851, %v7681, %v3906
  %v7939 = vsel %vm7851, %v7682, %v3908
  %v7940 = vsel %vm7851, %v7683, %v3910
  %v7941 = vsel %vm7851, %v7684, %v3912
  %v7942 = vsel %vm7851, %v7685, %v3914
  %v7943 = vsel %vm7851, %v7686, %v3916
  %v7944 = vsel %vm7851, %v7687, %v3918
  %v7945 = vsel %vm7851, %v7688, %v3920
  %v7946 = vsel %vm7851, %v7689, %v3922
  %v7947 = vsel %vm7851, %v7690, %v3924
  %v7948 = vsel %vm7851, %v7691, %v3926
  %v7949 = vsel %vm7851, %v7692, %v3928
  %v7950 = vsel %vm7851, %v7693, %v3930
  %v7951 = vsel %vm7851, %v7694, %v3932
  %v7952 = vsel %vm7851, %v7695, %v3934
  %v7953 = vsel %vm7851, %v7696, %v3936
  %v7954 = vsel %vm7851, %v7697, %v3938
  %v7955 = vsel %vm7851, %v7698, %v3940
  %v7956 = vsel %vm7851, %v7699, %v3942
  %v7957 = vsel %vm7851, %v7700, %v3944
  %v7958 = vsel %vm7851, %v7701, %v3946
  %v7959 = vsel %vm7851, %v7702, %v3948
  %v7960 = vsel %vm7851, %v7703, %v3950
  %v7961 = vsel %vm7851, %v7704, %v3952
  %v7962 = vsel %vm7851, %v7705, %v3954
  %v7963 = vsel %vm7851, %v7706, %v3956
  %v7964 = vsel %vm7851, %v7707, %v3958
  %v7965 = vsel %vm7851, %v7708, %v3960
  %v7966 = vsel %vm7851, %v7709, %v3962
  %v7967 = vsel %vm7851, %v7710, %v3964
  %v7968 = vsel %vm7851, %v7711, %v3966
  %v7969 = vsel %vm7851, %v7712, %v3968
  %v7970 = vsel %vm7851, %v7713, %v3970
  %v7971 = vsel %vm7851, %v7714, %v3972
  %v7972 = vsel %vm7851, %v7715, %v3974
  %v7973 = vsel %vm7851, %v7716, %v3976
  %v7974 = vsel %vm7851, %v7717, %v3978
  %v7975 = vsel %vm7851, %v7718, %v3980
  %v7976 = vsel %vm7851, %v7719, %v3982
  %v7977 = vsel %vm7851, %v7720, %v3984
  %v7978 = vsel %vm7851, %v7721, %v3986
  %v7979 = vsel %vm7851, %v7722, %v3988
  %v7980 = vsel %vm7851, %v7723, %v3990
  %v7981 = vsel %vm7851, %v7724, %v3992
  %v7982 = vsel %vm7851, %v7725, %v3994
  %v7983 = vsel %vm7851, %v7726, %v3996
  %v7984 = vsel %vm7851, %v7727, %v3998
  %v7985 = vsel %vm7851, %v7728, %v4000
  %v7986 = vsel %vm7851, %v7729, %v4002
  %v7987 = vsel %vm7851, %v7730, %v4004
  %v7988 = vsel %vm7851, %v7731, %v4006
  %v7989 = vsel %vm7851, %v7732, %v4008
  %v7990 = vsel %vm7851, %v7733, %v4010
  %v7991 = vsel %vm7851, %v7734, %v4012
  %v7992 = vsel %vm7851, %v7735, %v4014
  %v7993 = vsel %vm7851, %v7736, %v4016
  %v7994 = vsel %vm7851, %v7737, %v4018
  %v7995 = vsel %vm7851, %v7738, %v4020
  %v7996 = vsel %vm7851, %v7739, %v4022
  %v7997 = vsel %vm7851, %v7740, %v4024
  %v7998 = vsel %vm7851, %v7741, %v4026
  %v7999 = vsel %vm7851, %v7742, %v4028
  %v8000 = vsel %vm7851, %v7743, %v4030
  %v8001 = vsel %vm7851, %v7744, %v4032
  %v8002 = vsel %vm7851, %v7745, %v4034
  %v8003 = vsel %vm7851, %v7746, %v4036
  %v8004 = vsel %vm7851, %v7747, %v4038
  %v8005 = vsel %vm7851, %v7748, %v4040
  %v8006 = vsel %vm7851, %v7749, %v4042
  %v8007 = vsel %vm7851, %v7750, %v4044
  %v8008 = vsel %vm7851, %v7751, %v4046
  %v8009 = vsel %vm7851, %v7752, %v4048
  %v8010 = vsel %vm7851, %v7753, %v4050
  %v8011 = vsel %vm7851, %v7754, %v4052
  %v8012 = vsel %vm7851, %v7755, %v4054
  %v8013 = vsel %vm7851, %v7756, %v4056
  %v8014 = vsel %vm7851, %v7757, %v4058
  %v8015 = vsel %vm7851, %v7758, %v4060
  %v8016 = vsel %vm7851, %v7759, %v4062
  %v8017 = vsel %vm7851, %v7760, %v4064
  %v8018 = vsel %vm7851, %v7761, %v4066
  %v8019 = vsel %vm7851, %v7762, %v4068
  %v8020 = vsel %vm7851, %v7763, %v4070
  %v8021 = vsel %vm7851, %v7764, %v4072
  %v8022 = vsel %vm7851, %v7765, %v4074
  %v8023 = vsel %vm7851, %v7766, %v4076
  %v8024 = vsel %vm7851, %v7767, %v4078
  %v8025 = vsel %vm7851, %v7768, %v4080
  %v8026 = vsel %vm7851, %v7769, %v4082
  %v8027 = vsel %vm7851, %v7770, %v4084
  %v8028 = vsel %vm7851, %v7771, %v4086
  %v8029 = vsel %vm7851, %v7772, %v4088
  %v8030 = vsel %vm7851, %v7773, %v4090
  %v8031 = vsel %vm7851, %v7774, %v4092
  %v8032 = vsel %vm7851, %v7775, %v4094
  %v8033 = vsel %vm7851, %v7776, %v4096
  %v8034 = vsel %vm7851, %v7777, %v4098
  %v8035 = vsel %vm7851, %v7778, %v4100
  %v8036 = vsel %vm7851, %v7779, %v4102
  %v8037 = vsel %vm7851, %v7780, %v4104
  %v8038 = vsel %vm7851, %v7781, %v4106
  %v8039 = vsel %vm7851, %v7782, %v4108
  %v8040 = vsel %vm7851, %v7783, %v4110
  %v8041 = vsel %vm7851, %v7784, %v4112
  %v8042 = vsel %vm7851, %v7785, %v4114
  %v8043 = vsel %vm7851, %v7786, %v4116
  %v8044 = vsel %vm7851, %v7787, %v4118
  %v8045 = vsel %vm7851, %v7788, %v4120
  %v8046 = vsel %vm7851, %v7789, %v4122
  %v8047 = vsel %vm7851, %v7790, %v4124
  %v8048 = vsel %vm7851, %v7791, %v4126
  %v8049 = vsel %vm7851, %v7792, %v4128
  %v8050 = vsel %vm7851, %v7793, %v4130
  %v8051 = vsel %vm7851, %v7794, %v4132
  %v8052 = vsel %vm7851, %v7795, %v4134
  %v8053 = vsel %vm7851, %v7796, %v4136
  %v8054 = vsel %vm7851, %v7797, %v4138
  %v8055 = vsel %vm7851, %v7798, %v4140
  %v8056 = vsel %vm7851, %v7799, %v4142
  %v8057 = vsel %vm7851, %v7800, %v4144
  %v8058 = vsel %vm7851, %v7801, %v4146
  %v8059 = vsel %vm7851, %v7802, %v4148
  %v8060 = vsel %vm7851, %v7803, %v4150
  %v8061 = vsel %vm7851, %v7804, %v4152
  %v8062 = vsel %vm7851, %v7805, %v4154
  %v8063 = vsel %vm7851, %v7806, %v4156
  %v8064 = vsel %vm7851, %v7807, %v4158
  %v8065 = vsel %vm7851, %v7808, %v4160
  %v8066 = vsel %vm7851, %v7809, %v4162
  %v8067 = vsel %vm7851, %v7810, %v4164
  %v8068 = vsel %vm7851, %v7811, %v4166
  %v8069 = vsel %vm7851, %v7812, %v4168
  %v8070 = vsel %vm7851, %v7813, %v4170
  %v8071 = vsel %vm7851, %v7814, %v4172
  %v8072 = vsel %vm7851, %v7815, %v4174
  %v8073 = vsel %vm7851, %v7816, %v4176
  %v8074 = vsel %vm7851, %v7817, %v4178
  %v8075 = vsel %vm7851, %v7818, %v4180
  %v8076 = vsel %vm7851, %v7819, %v4182
  %v8077 = vsel %vm7851, %v7820, %v4184
  %v8078 = vsel %vm7851, %v7821, %v4186
  %v8079 = vsel %vm7851, %v7822, %v4188
  %v8080 = vsel %vm7851, %v7823, %v4190
  %v8081 = vsel %vm7851, %v7824, %v4192
  %v8082 = vsel %vm7851, %v7825, %v4194
  %v8083 = vsel %vm7851, %v7826, %v4196
  %v8084 = vsel %vm7851, %v7827, %v4198
  %v8085 = vsel %vm7851, %v7828, %v4200
  %v8086 = vsel %vm7851, %v7829, %v4202
  %v8087 = vsel %vm7851, %v7830, %v4204
  %v8088 = vsel %vm7851, %v7831, %v4206
  %v8089 = vsel %vm7851, %v7832, %v4208
  %v8090 = vsel %vm7851, %v7833, %v4210
  %v8091 = vsel %vm7851, %v7834, %v4212
  %v8092 = vsel %vm7851, %v7835, %v4214
  %v8093 = vsel %vm7851, %v7836, %v4216
  %v8094 = vsel %vm7851, %v7837, %v4218
  %v8095 = vsel %vm7851, %v7838, %v4220
  %v8096 = vsel %vm7851, %v7839, %v4222
  %v8097 = vsel %vm7851, %v7840, %v4224
  %v8098 = vsel %vm7851, %v7841, %v4226
  %v8099 = vsel %vm7851, %v7842, %v4228
  %v8100 = vsel %vm7851, %v7843, %v4230
  %v8101 = vsel %vm7851, %v7844, %v4232
  %v8102 = vsel %vm7851, %v7845, %v4234
  %v8103 = vsel %vm7851, %v7846, %v4236
  %v8104 = vsel %vm7851, %v7847, %v4238
  %v8105 = vsel %vm7851, %v7848, %v4240
  %v8106 = vsel %vm7851, %v7849, %v4242
  %v8107 = vsel %vm7851, %v7850, %v4244
  %vm8108 = vcmask 195584
  %v8109 = vsel %vm8108, %v7852, %v4518
  %v8110 = vsel %vm8108, %v7853, %v4520
  %v8111 = vsel %vm8108, %v7854, %v4522
  %v8112 = vsel %vm8108, %v7855, %v4524
  %v8113 = vsel %vm8108, %v7856, %v4526
  %v8114 = vsel %vm8108, %v7857, %v4528
  %v8115 = vsel %vm8108, %v7858, %v4530
  %v8116 = vsel %vm8108, %v7859, %v4532
  %v8117 = vsel %vm8108, %v7860, %v4534
  %v8118 = vsel %vm8108, %v7861, %v4536
  %v8119 = vsel %vm8108, %v7862, %v4538
  %v8120 = vsel %vm8108, %v7863, %v4540
  %v8121 = vsel %vm8108, %v7864, %v4542
  %v8122 = vsel %vm8108, %v7865, %v4544
  %v8123 = vsel %vm8108, %v7866, %v4546
  %v8124 = vsel %vm8108, %v7867, %v4548
  %v8125 = vsel %vm8108, %v7868, %v4550
  %v8126 = vsel %vm8108, %v7869, %v4552
  %v8127 = vsel %vm8108, %v7870, %v4554
  %v8128 = vsel %vm8108, %v7871, %v4556
  %v8129 = vsel %vm8108, %v7872, %v4558
  %v8130 = vsel %vm8108, %v7873, %v4560
  %v8131 = vsel %vm8108, %v7874, %v4562
  %v8132 = vsel %vm8108, %v7875, %v4564
  %v8133 = vsel %vm8108, %v7876, %v4566
  %v8134 = vsel %vm8108, %v7877, %v4568
  %v8135 = vsel %vm8108, %v7878, %v4570
  %v8136 = vsel %vm8108, %v7879, %v4572
  %v8137 = vsel %vm8108, %v7880, %v4574
  %v8138 = vsel %vm8108, %v7881, %v4576
  %v8139 = vsel %vm8108, %v7882, %v4578
  %v8140 = vsel %vm8108, %v7883, %v4580
  %v8141 = vsel %vm8108, %v7884, %v4582
  %v8142 = vsel %vm8108, %v7885, %v4584
  %v8143 = vsel %vm8108, %v7886, %v4586
  %v8144 = vsel %vm8108, %v7887, %v4588
  %v8145 = vsel %vm8108, %v7888, %v4590
  %v8146 = vsel %vm8108, %v7889, %v4592
  %v8147 = vsel %vm8108, %v7890, %v4594
  %v8148 = vsel %vm8108, %v7891, %v4596
  %v8149 = vsel %vm8108, %v7892, %v4598
  %v8150 = vsel %vm8108, %v7893, %v4600
  %v8151 = vsel %vm8108, %v7894, %v4602
  %v8152 = vsel %vm8108, %v7895, %v4604
  %v8153 = vsel %vm8108, %v7896, %v4606
  %v8154 = vsel %vm8108, %v7897, %v4608
  %v8155 = vsel %vm8108, %v7898, %v4610
  %v8156 = vsel %vm8108, %v7899, %v4612
  %v8157 = vsel %vm8108, %v7900, %v4614
  %v8158 = vsel %vm8108, %v7901, %v4616
  %v8159 = vsel %vm8108, %v7902, %v4618
  %v8160 = vsel %vm8108, %v7903, %v4620
  %v8161 = vsel %vm8108, %v7904, %v4622
  %v8162 = vsel %vm8108, %v7905, %v4624
  %v8163 = vsel %vm8108, %v7906, %v4626
  %v8164 = vsel %vm8108, %v7907, %v4628
  %v8165 = vsel %vm8108, %v7908, %v4630
  %v8166 = vsel %vm8108, %v7909, %v4632
  %v8167 = vsel %vm8108, %v7910, %v4634
  %v8168 = vsel %vm8108, %v7911, %v4636
  %v8169 = vsel %vm8108, %v7912, %v4638
  %v8170 = vsel %vm8108, %v7913, %v4640
  %v8171 = vsel %vm8108, %v7914, %v4642
  %v8172 = vsel %vm8108, %v7915, %v4644
  %v8173 = vsel %vm8108, %v7916, %v4646
  %v8174 = vsel %vm8108, %v7917, %v4648
  %v8175 = vsel %vm8108, %v7918, %v4650
  %v8176 = vsel %vm8108, %v7919, %v4652
  %v8177 = vsel %vm8108, %v7920, %v4654
  %v8178 = vsel %vm8108, %v7921, %v4656
  %v8179 = vsel %vm8108, %v7922, %v4658
  %v8180 = vsel %vm8108, %v7923, %v4660
  %v8181 = vsel %vm8108, %v7924, %v4662
  %v8182 = vsel %vm8108, %v7925, %v4664
  %v8183 = vsel %vm8108, %v7926, %v4666
  %v8184 = vsel %vm8108, %v7927, %v4668
  %v8185 = vsel %vm8108, %v7928, %v4670
  %v8186 = vsel %vm8108, %v7929, %v4672
  %v8187 = vsel %vm8108, %v7930, %v4674
  %v8188 = vsel %vm8108, %v7931, %v4676
  %v8189 = vsel %vm8108, %v7932, %v4678
  %v8190 = vsel %vm8108, %v7933, %v4680
  %v8191 = vsel %vm8108, %v7934, %v4682
  %v8192 = vsel %vm8108, %v7935, %v4684
  %v8193 = vsel %vm8108, %v7936, %v4686
  %v8194 = vsel %vm8108, %v7937, %v4688
  %v8195 = vsel %vm8108, %v7938, %v4690
  %v8196 = vsel %vm8108, %v7939, %v4692
  %v8197 = vsel %vm8108, %v7940, %v4694
  %v8198 = vsel %vm8108, %v7941, %v4696
  %v8199 = vsel %vm8108, %v7942, %v4698
  %v8200 = vsel %vm8108, %v7943, %v4700
  %v8201 = vsel %vm8108, %v7944, %v4702
  %v8202 = vsel %vm8108, %v7945, %v4704
  %v8203 = vsel %vm8108, %v7946, %v4706
  %v8204 = vsel %vm8108, %v7947, %v4708
  %v8205 = vsel %vm8108, %v7948, %v4710
  %v8206 = vsel %vm8108, %v7949, %v4712
  %v8207 = vsel %vm8108, %v7950, %v4714
  %v8208 = vsel %vm8108, %v7951, %v4716
  %v8209 = vsel %vm8108, %v7952, %v4718
  %v8210 = vsel %vm8108, %v7953, %v4720
  %v8211 = vsel %vm8108, %v7954, %v4722
  %v8212 = vsel %vm8108, %v7955, %v4724
  %v8213 = vsel %vm8108, %v7956, %v4726
  %v8214 = vsel %vm8108, %v7957, %v4728
  %v8215 = vsel %vm8108, %v7958, %v4730
  %v8216 = vsel %vm8108, %v7959, %v4732
  %v8217 = vsel %vm8108, %v7960, %v4734
  %v8218 = vsel %vm8108, %v7961, %v4736
  %v8219 = vsel %vm8108, %v7962, %v4738
  %v8220 = vsel %vm8108, %v7963, %v4740
  %v8221 = vsel %vm8108, %v7964, %v4742
  %v8222 = vsel %vm8108, %v7965, %v4744
  %v8223 = vsel %vm8108, %v7966, %v4746
  %v8224 = vsel %vm8108, %v7967, %v4748
  %v8225 = vsel %vm8108, %v7968, %v4750
  %v8226 = vsel %vm8108, %v7969, %v4752
  %v8227 = vsel %vm8108, %v7970, %v4754
  %v8228 = vsel %vm8108, %v7971, %v4756
  %v8229 = vsel %vm8108, %v7972, %v4758
  %v8230 = vsel %vm8108, %v7973, %v4760
  %v8231 = vsel %vm8108, %v7974, %v4762
  %v8232 = vsel %vm8108, %v7975, %v4764
  %v8233 = vsel %vm8108, %v7976, %v4766
  %v8234 = vsel %vm8108, %v7977, %v4768
  %v8235 = vsel %vm8108, %v7978, %v4770
  %v8236 = vsel %vm8108, %v7979, %v4772
  %v8237 = vsel %vm8108, %v7980, %v4774
  %v8238 = vsel %vm8108, %v7981, %v4776
  %v8239 = vsel %vm8108, %v7982, %v4778
  %v8240 = vsel %vm8108, %v7983, %v4780
  %v8241 = vsel %vm8108, %v7984, %v4782
  %v8242 = vsel %vm8108, %v7985, %v4784
  %v8243 = vsel %vm8108, %v7986, %v4786
  %v8244 = vsel %vm8108, %v7987, %v4788
  %v8245 = vsel %vm8108, %v7988, %v4790
  %v8246 = vsel %vm8108, %v7989, %v4792
  %v8247 = vsel %vm8108, %v7990, %v4794
  %v8248 = vsel %vm8108, %v7991, %v4796
  %v8249 = vsel %vm8108, %v7992, %v4798
  %v8250 = vsel %vm8108, %v7993, %v4800
  %v8251 = vsel %vm8108, %v7994, %v4802
  %v8252 = vsel %vm8108, %v7995, %v4804
  %v8253 = vsel %vm8108, %v7996, %v4806
  %v8254 = vsel %vm8108, %v7997, %v4808
  %v8255 = vsel %vm8108, %v7998, %v4810
  %v8256 = vsel %vm8108, %v7999, %v4812
  %v8257 = vsel %vm8108, %v8000, %v4814
  %v8258 = vsel %vm8108, %v8001, %v4816
  %v8259 = vsel %vm8108, %v8002, %v4818
  %v8260 = vsel %vm8108, %v8003, %v4820
  %v8261 = vsel %vm8108, %v8004, %v4822
  %v8262 = vsel %vm8108, %v8005, %v4824
  %v8263 = vsel %vm8108, %v8006, %v4826
  %v8264 = vsel %vm8108, %v8007, %v4828
  %v8265 = vsel %vm8108, %v8008, %v4830
  %v8266 = vsel %vm8108, %v8009, %v4832
  %v8267 = vsel %vm8108, %v8010, %v4834
  %v8268 = vsel %vm8108, %v8011, %v4836
  %v8269 = vsel %vm8108, %v8012, %v4838
  %v8270 = vsel %vm8108, %v8013, %v4840
  %v8271 = vsel %vm8108, %v8014, %v4842
  %v8272 = vsel %vm8108, %v8015, %v4844
  %v8273 = vsel %vm8108, %v8016, %v4846
  %v8274 = vsel %vm8108, %v8017, %v4848
  %v8275 = vsel %vm8108, %v8018, %v4850
  %v8276 = vsel %vm8108, %v8019, %v4852
  %v8277 = vsel %vm8108, %v8020, %v4854
  %v8278 = vsel %vm8108, %v8021, %v4856
  %v8279 = vsel %vm8108, %v8022, %v4858
  %v8280 = vsel %vm8108, %v8023, %v4860
  %v8281 = vsel %vm8108, %v8024, %v4862
  %v8282 = vsel %vm8108, %v8025, %v4864
  %v8283 = vsel %vm8108, %v8026, %v4866
  %v8284 = vsel %vm8108, %v8027, %v4868
  %v8285 = vsel %vm8108, %v8028, %v4870
  %v8286 = vsel %vm8108, %v8029, %v4872
  %v8287 = vsel %vm8108, %v8030, %v4874
  %v8288 = vsel %vm8108, %v8031, %v4876
  %v8289 = vsel %vm8108, %v8032, %v4878
  %v8290 = vsel %vm8108, %v8033, %v4880
  %v8291 = vsel %vm8108, %v8034, %v4882
  %v8292 = vsel %vm8108, %v8035, %v4884
  %v8293 = vsel %vm8108, %v8036, %v4886
  %v8294 = vsel %vm8108, %v8037, %v4888
  %v8295 = vsel %vm8108, %v8038, %v4890
  %v8296 = vsel %vm8108, %v8039, %v4892
  %v8297 = vsel %vm8108, %v8040, %v4894
  %v8298 = vsel %vm8108, %v8041, %v4896
  %v8299 = vsel %vm8108, %v8042, %v4898
  %v8300 = vsel %vm8108, %v8043, %v4900
  %v8301 = vsel %vm8108, %v8044, %v4902
  %v8302 = vsel %vm8108, %v8045, %v4904
  %v8303 = vsel %vm8108, %v8046, %v4906
  %v8304 = vsel %vm8108, %v8047, %v4908
  %v8305 = vsel %vm8108, %v8048, %v4910
  %v8306 = vsel %vm8108, %v8049, %v4912
  %v8307 = vsel %vm8108, %v8050, %v4914
  %v8308 = vsel %vm8108, %v8051, %v4916
  %v8309 = vsel %vm8108, %v8052, %v4918
  %v8310 = vsel %vm8108, %v8053, %v4920
  %v8311 = vsel %vm8108, %v8054, %v4922
  %v8312 = vsel %vm8108, %v8055, %v4924
  %v8313 = vsel %vm8108, %v8056, %v4926
  %v8314 = vsel %vm8108, %v8057, %v4928
  %v8315 = vsel %vm8108, %v8058, %v4930
  %v8316 = vsel %vm8108, %v8059, %v4932
  %v8317 = vsel %vm8108, %v8060, %v4934
  %v8318 = vsel %vm8108, %v8061, %v4936
  %v8319 = vsel %vm8108, %v8062, %v4938
  %v8320 = vsel %vm8108, %v8063, %v4940
  %v8321 = vsel %vm8108, %v8064, %v4942
  %v8322 = vsel %vm8108, %v8065, %v4944
  %v8323 = vsel %vm8108, %v8066, %v4946
  %v8324 = vsel %vm8108, %v8067, %v4948
  %v8325 = vsel %vm8108, %v8068, %v4950
  %v8326 = vsel %vm8108, %v8069, %v4952
  %v8327 = vsel %vm8108, %v8070, %v4954
  %v8328 = vsel %vm8108, %v8071, %v4956
  %v8329 = vsel %vm8108, %v8072, %v4958
  %v8330 = vsel %vm8108, %v8073, %v4960
  %v8331 = vsel %vm8108, %v8074, %v4962
  %v8332 = vsel %vm8108, %v8075, %v4964
  %v8333 = vsel %vm8108, %v8076, %v4966
  %v8334 = vsel %vm8108, %v8077, %v4968
  %v8335 = vsel %vm8108, %v8078, %v4970
  %v8336 = vsel %vm8108, %v8079, %v4972
  %v8337 = vsel %vm8108, %v8080, %v4974
  %v8338 = vsel %vm8108, %v8081, %v4976
  %v8339 = vsel %vm8108, %v8082, %v4978
  %v8340 = vsel %vm8108, %v8083, %v4980
  %v8341 = vsel %vm8108, %v8084, %v4982
  %v8342 = vsel %vm8108, %v8085, %v4984
  %v8343 = vsel %vm8108, %v8086, %v4986
  %v8344 = vsel %vm8108, %v8087, %v4988
  %v8345 = vsel %vm8108, %v8088, %v4990
  %v8346 = vsel %vm8108, %v8089, %v4992
  %v8347 = vsel %vm8108, %v8090, %v4994
  %v8348 = vsel %vm8108, %v8091, %v4996
  %v8349 = vsel %vm8108, %v8092, %v4998
  %v8350 = vsel %vm8108, %v8093, %v5000
  %v8351 = vsel %vm8108, %v8094, %v5002
  %v8352 = vsel %vm8108, %v8095, %v5004
  %v8353 = vsel %vm8108, %v8096, %v5006
  %v8354 = vsel %vm8108, %v8097, %v5008
  %v8355 = vsel %vm8108, %v8098, %v5010
  %v8356 = vsel %vm8108, %v8099, %v5012
  %v8357 = vsel %vm8108, %v8100, %v5014
  %v8358 = vsel %vm8108, %v8101, %v5016
  %v8359 = vsel %vm8108, %v8102, %v5018
  %v8360 = vsel %vm8108, %v8103, %v5020
  %v8361 = vsel %vm8108, %v8104, %v5022
  %v8362 = vsel %vm8108, %v8105, %v5024
  %v8363 = vsel %vm8108, %v8106, %v5026
  %v8364 = vsel %vm8108, %v8107, %v5028
  %vm8365 = vcmask 228352
  %v8366 = vsel %vm8365, %v8109, %v5287
  %v8367 = vsel %vm8365, %v8110, %v5289
  %v8368 = vsel %vm8365, %v8111, %v5291
  %v8369 = vsel %vm8365, %v8112, %v5293
  %v8370 = vsel %vm8365, %v8113, %v5295
  %v8371 = vsel %vm8365, %v8114, %v5297
  %v8372 = vsel %vm8365, %v8115, %v5299
  %v8373 = vsel %vm8365, %v8116, %v5301
  %v8374 = vsel %vm8365, %v8117, %v5303
  %v8375 = vsel %vm8365, %v8118, %v5305
  %v8376 = vsel %vm8365, %v8119, %v5307
  %v8377 = vsel %vm8365, %v8120, %v5309
  %v8378 = vsel %vm8365, %v8121, %v5311
  %v8379 = vsel %vm8365, %v8122, %v5313
  %v8380 = vsel %vm8365, %v8123, %v5315
  %v8381 = vsel %vm8365, %v8124, %v5317
  %v8382 = vsel %vm8365, %v8125, %v5319
  %v8383 = vsel %vm8365, %v8126, %v5321
  %v8384 = vsel %vm8365, %v8127, %v5323
  %v8385 = vsel %vm8365, %v8128, %v5325
  %v8386 = vsel %vm8365, %v8129, %v5327
  %v8387 = vsel %vm8365, %v8130, %v5329
  %v8388 = vsel %vm8365, %v8131, %v5331
  %v8389 = vsel %vm8365, %v8132, %v5333
  %v8390 = vsel %vm8365, %v8133, %v5335
  %v8391 = vsel %vm8365, %v8134, %v5337
  %v8392 = vsel %vm8365, %v8135, %v5339
  %v8393 = vsel %vm8365, %v8136, %v5341
  %v8394 = vsel %vm8365, %v8137, %v5343
  %v8395 = vsel %vm8365, %v8138, %v5345
  %v8396 = vsel %vm8365, %v8139, %v5347
  %v8397 = vsel %vm8365, %v8140, %v5349
  %v8398 = vsel %vm8365, %v8141, %v5351
  %v8399 = vsel %vm8365, %v8142, %v5353
  %v8400 = vsel %vm8365, %v8143, %v5355
  %v8401 = vsel %vm8365, %v8144, %v5357
  %v8402 = vsel %vm8365, %v8145, %v5359
  %v8403 = vsel %vm8365, %v8146, %v5361
  %v8404 = vsel %vm8365, %v8147, %v5363
  %v8405 = vsel %vm8365, %v8148, %v5365
  %v8406 = vsel %vm8365, %v8149, %v5367
  %v8407 = vsel %vm8365, %v8150, %v5369
  %v8408 = vsel %vm8365, %v8151, %v5371
  %v8409 = vsel %vm8365, %v8152, %v5373
  %v8410 = vsel %vm8365, %v8153, %v5375
  %v8411 = vsel %vm8365, %v8154, %v5377
  %v8412 = vsel %vm8365, %v8155, %v5379
  %v8413 = vsel %vm8365, %v8156, %v5381
  %v8414 = vsel %vm8365, %v8157, %v5383
  %v8415 = vsel %vm8365, %v8158, %v5385
  %v8416 = vsel %vm8365, %v8159, %v5387
  %v8417 = vsel %vm8365, %v8160, %v5389
  %v8418 = vsel %vm8365, %v8161, %v5391
  %v8419 = vsel %vm8365, %v8162, %v5393
  %v8420 = vsel %vm8365, %v8163, %v5395
  %v8421 = vsel %vm8365, %v8164, %v5397
  %v8422 = vsel %vm8365, %v8165, %v5399
  %v8423 = vsel %vm8365, %v8166, %v5401
  %v8424 = vsel %vm8365, %v8167, %v5403
  %v8425 = vsel %vm8365, %v8168, %v5405
  %v8426 = vsel %vm8365, %v8169, %v5407
  %v8427 = vsel %vm8365, %v8170, %v5409
  %v8428 = vsel %vm8365, %v8171, %v5411
  %v8429 = vsel %vm8365, %v8172, %v5413
  %v8430 = vsel %vm8365, %v8173, %v5415
  %v8431 = vsel %vm8365, %v8174, %v5417
  %v8432 = vsel %vm8365, %v8175, %v5419
  %v8433 = vsel %vm8365, %v8176, %v5421
  %v8434 = vsel %vm8365, %v8177, %v5423
  %v8435 = vsel %vm8365, %v8178, %v5425
  %v8436 = vsel %vm8365, %v8179, %v5427
  %v8437 = vsel %vm8365, %v8180, %v5429
  %v8438 = vsel %vm8365, %v8181, %v5431
  %v8439 = vsel %vm8365, %v8182, %v5433
  %v8440 = vsel %vm8365, %v8183, %v5435
  %v8441 = vsel %vm8365, %v8184, %v5437
  %v8442 = vsel %vm8365, %v8185, %v5439
  %v8443 = vsel %vm8365, %v8186, %v5441
  %v8444 = vsel %vm8365, %v8187, %v5443
  %v8445 = vsel %vm8365, %v8188, %v5445
  %v8446 = vsel %vm8365, %v8189, %v5447
  %v8447 = vsel %vm8365, %v8190, %v5449
  %v8448 = vsel %vm8365, %v8191, %v5451
  %v8449 = vsel %vm8365, %v8192, %v5453
  %v8450 = vsel %vm8365, %v8193, %v5455
  %v8451 = vsel %vm8365, %v8194, %v5457
  %v8452 = vsel %vm8365, %v8195, %v5459
  %v8453 = vsel %vm8365, %v8196, %v5461
  %v8454 = vsel %vm8365, %v8197, %v5463
  %v8455 = vsel %vm8365, %v8198, %v5465
  %v8456 = vsel %vm8365, %v8199, %v5467
  %v8457 = vsel %vm8365, %v8200, %v5469
  %v8458 = vsel %vm8365, %v8201, %v5471
  %v8459 = vsel %vm8365, %v8202, %v5473
  %v8460 = vsel %vm8365, %v8203, %v5475
  %v8461 = vsel %vm8365, %v8204, %v5477
  %v8462 = vsel %vm8365, %v8205, %v5479
  %v8463 = vsel %vm8365, %v8206, %v5481
  %v8464 = vsel %vm8365, %v8207, %v5483
  %v8465 = vsel %vm8365, %v8208, %v5485
  %v8466 = vsel %vm8365, %v8209, %v5487
  %v8467 = vsel %vm8365, %v8210, %v5489
  %v8468 = vsel %vm8365, %v8211, %v5491
  %v8469 = vsel %vm8365, %v8212, %v5493
  %v8470 = vsel %vm8365, %v8213, %v5495
  %v8471 = vsel %vm8365, %v8214, %v5497
  %v8472 = vsel %vm8365, %v8215, %v5499
  %v8473 = vsel %vm8365, %v8216, %v5501
  %v8474 = vsel %vm8365, %v8217, %v5503
  %v8475 = vsel %vm8365, %v8218, %v5505
  %v8476 = vsel %vm8365, %v8219, %v5507
  %v8477 = vsel %vm8365, %v8220, %v5509
  %v8478 = vsel %vm8365, %v8221, %v5511
  %v8479 = vsel %vm8365, %v8222, %v5513
  %v8480 = vsel %vm8365, %v8223, %v5515
  %v8481 = vsel %vm8365, %v8224, %v5517
  %v8482 = vsel %vm8365, %v8225, %v5519
  %v8483 = vsel %vm8365, %v8226, %v5521
  %v8484 = vsel %vm8365, %v8227, %v5523
  %v8485 = vsel %vm8365, %v8228, %v5525
  %v8486 = vsel %vm8365, %v8229, %v5527
  %v8487 = vsel %vm8365, %v8230, %v5529
  %v8488 = vsel %vm8365, %v8231, %v5531
  %v8489 = vsel %vm8365, %v8232, %v5533
  %v8490 = vsel %vm8365, %v8233, %v5535
  %v8491 = vsel %vm8365, %v8234, %v5537
  %v8492 = vsel %vm8365, %v8235, %v5539
  %v8493 = vsel %vm8365, %v8236, %v5541
  %v8494 = vsel %vm8365, %v8237, %v5543
  %v8495 = vsel %vm8365, %v8238, %v5545
  %v8496 = vsel %vm8365, %v8239, %v5547
  %v8497 = vsel %vm8365, %v8240, %v5549
  %v8498 = vsel %vm8365, %v8241, %v5551
  %v8499 = vsel %vm8365, %v8242, %v5553
  %v8500 = vsel %vm8365, %v8243, %v5555
  %v8501 = vsel %vm8365, %v8244, %v5557
  %v8502 = vsel %vm8365, %v8245, %v5559
  %v8503 = vsel %vm8365, %v8246, %v5561
  %v8504 = vsel %vm8365, %v8247, %v5563
  %v8505 = vsel %vm8365, %v8248, %v5565
  %v8506 = vsel %vm8365, %v8249, %v5567
  %v8507 = vsel %vm8365, %v8250, %v5569
  %v8508 = vsel %vm8365, %v8251, %v5571
  %v8509 = vsel %vm8365, %v8252, %v5573
  %v8510 = vsel %vm8365, %v8253, %v5575
  %v8511 = vsel %vm8365, %v8254, %v5577
  %v8512 = vsel %vm8365, %v8255, %v5579
  %v8513 = vsel %vm8365, %v8256, %v5581
  %v8514 = vsel %vm8365, %v8257, %v5583
  %v8515 = vsel %vm8365, %v8258, %v5585
  %v8516 = vsel %vm8365, %v8259, %v5587
  %v8517 = vsel %vm8365, %v8260, %v5589
  %v8518 = vsel %vm8365, %v8261, %v5591
  %v8519 = vsel %vm8365, %v8262, %v5593
  %v8520 = vsel %vm8365, %v8263, %v5595
  %v8521 = vsel %vm8365, %v8264, %v5597
  %v8522 = vsel %vm8365, %v8265, %v5599
  %v8523 = vsel %vm8365, %v8266, %v5601
  %v8524 = vsel %vm8365, %v8267, %v5603
  %v8525 = vsel %vm8365, %v8268, %v5605
  %v8526 = vsel %vm8365, %v8269, %v5607
  %v8527 = vsel %vm8365, %v8270, %v5609
  %v8528 = vsel %vm8365, %v8271, %v5611
  %v8529 = vsel %vm8365, %v8272, %v5613
  %v8530 = vsel %vm8365, %v8273, %v5615
  %v8531 = vsel %vm8365, %v8274, %v5617
  %v8532 = vsel %vm8365, %v8275, %v5619
  %v8533 = vsel %vm8365, %v8276, %v5621
  %v8534 = vsel %vm8365, %v8277, %v5623
  %v8535 = vsel %vm8365, %v8278, %v5625
  %v8536 = vsel %vm8365, %v8279, %v5627
  %v8537 = vsel %vm8365, %v8280, %v5629
  %v8538 = vsel %vm8365, %v8281, %v5631
  %v8539 = vsel %vm8365, %v8282, %v5633
  %v8540 = vsel %vm8365, %v8283, %v5635
  %v8541 = vsel %vm8365, %v8284, %v5637
  %v8542 = vsel %vm8365, %v8285, %v5639
  %v8543 = vsel %vm8365, %v8286, %v5641
  %v8544 = vsel %vm8365, %v8287, %v5643
  %v8545 = vsel %vm8365, %v8288, %v5645
  %v8546 = vsel %vm8365, %v8289, %v5647
  %v8547 = vsel %vm8365, %v8290, %v5649
  %v8548 = vsel %vm8365, %v8291, %v5651
  %v8549 = vsel %vm8365, %v8292, %v5653
  %v8550 = vsel %vm8365, %v8293, %v5655
  %v8551 = vsel %vm8365, %v8294, %v5657
  %v8552 = vsel %vm8365, %v8295, %v5659
  %v8553 = vsel %vm8365, %v8296, %v5661
  %v8554 = vsel %vm8365, %v8297, %v5663
  %v8555 = vsel %vm8365, %v8298, %v5665
  %v8556 = vsel %vm8365, %v8299, %v5667
  %v8557 = vsel %vm8365, %v8300, %v5669
  %v8558 = vsel %vm8365, %v8301, %v5671
  %v8559 = vsel %vm8365, %v8302, %v5673
  %v8560 = vsel %vm8365, %v8303, %v5675
  %v8561 = vsel %vm8365, %v8304, %v5677
  %v8562 = vsel %vm8365, %v8305, %v5679
  %v8563 = vsel %vm8365, %v8306, %v5681
  %v8564 = vsel %vm8365, %v8307, %v5683
  %v8565 = vsel %vm8365, %v8308, %v5685
  %v8566 = vsel %vm8365, %v8309, %v5687
  %v8567 = vsel %vm8365, %v8310, %v5689
  %v8568 = vsel %vm8365, %v8311, %v5691
  %v8569 = vsel %vm8365, %v8312, %v5693
  %v8570 = vsel %vm8365, %v8313, %v5695
  %v8571 = vsel %vm8365, %v8314, %v5697
  %v8572 = vsel %vm8365, %v8315, %v5699
  %v8573 = vsel %vm8365, %v8316, %v5701
  %v8574 = vsel %vm8365, %v8317, %v5703
  %v8575 = vsel %vm8365, %v8318, %v5705
  %v8576 = vsel %vm8365, %v8319, %v5707
  %v8577 = vsel %vm8365, %v8320, %v5709
  %v8578 = vsel %vm8365, %v8321, %v5711
  %v8579 = vsel %vm8365, %v8322, %v5713
  %v8580 = vsel %vm8365, %v8323, %v5715
  %v8581 = vsel %vm8365, %v8324, %v5717
  %v8582 = vsel %vm8365, %v8325, %v5719
  %v8583 = vsel %vm8365, %v8326, %v5721
  %v8584 = vsel %vm8365, %v8327, %v5723
  %v8585 = vsel %vm8365, %v8328, %v5725
  %v8586 = vsel %vm8365, %v8329, %v5727
  %v8587 = vsel %vm8365, %v8330, %v5729
  %v8588 = vsel %vm8365, %v8331, %v5731
  %v8589 = vsel %vm8365, %v8332, %v5733
  %v8590 = vsel %vm8365, %v8333, %v5735
  %v8591 = vsel %vm8365, %v8334, %v5737
  %v8592 = vsel %vm8365, %v8335, %v5739
  %v8593 = vsel %vm8365, %v8336, %v5741
  %v8594 = vsel %vm8365, %v8337, %v5743
  %v8595 = vsel %vm8365, %v8338, %v5745
  %v8596 = vsel %vm8365, %v8339, %v5747
  %v8597 = vsel %vm8365, %v8340, %v5749
  %v8598 = vsel %vm8365, %v8341, %v5751
  %v8599 = vsel %vm8365, %v8342, %v5753
  %v8600 = vsel %vm8365, %v8343, %v5755
  %v8601 = vsel %vm8365, %v8344, %v5757
  %v8602 = vsel %vm8365, %v8345, %v5759
  %v8603 = vsel %vm8365, %v8346, %v5761
  %v8604 = vsel %vm8365, %v8347, %v5763
  %v8605 = vsel %vm8365, %v8348, %v5765
  %v8606 = vsel %vm8365, %v8349, %v5767
  %v8607 = vsel %vm8365, %v8350, %v5769
  %v8608 = vsel %vm8365, %v8351, %v5771
  %v8609 = vsel %vm8365, %v8352, %v5773
  %v8610 = vsel %vm8365, %v8353, %v5775
  %v8611 = vsel %vm8365, %v8354, %v5777
  %v8612 = vsel %vm8365, %v8355, %v5779
  %v8613 = vsel %vm8365, %v8356, %v5781
  %v8614 = vsel %vm8365, %v8357, %v5783
  %v8615 = vsel %vm8365, %v8358, %v5785
  %v8616 = vsel %vm8365, %v8359, %v5787
  %v8617 = vsel %vm8365, %v8360, %v5789
  %v8618 = vsel %vm8365, %v8361, %v5791
  %v8619 = vsel %vm8365, %v8362, %v5793
  %v8620 = vsel %vm8365, %v8363, %v5795
  %v8621 = vsel %vm8365, %v8364, %v5797
  %vm8622 = vcmask 261120
  %v8623 = vsel %vm8622, %v8366, %v6056
  %v8624 = vsel %vm8622, %v8367, %v6058
  %v8625 = vsel %vm8622, %v8368, %v6060
  %v8626 = vsel %vm8622, %v8369, %v6062
  %v8627 = vsel %vm8622, %v8370, %v6064
  %v8628 = vsel %vm8622, %v8371, %v6066
  %v8629 = vsel %vm8622, %v8372, %v6068
  %v8630 = vsel %vm8622, %v8373, %v6070
  %v8631 = vsel %vm8622, %v8374, %v6072
  %v8632 = vsel %vm8622, %v8375, %v6074
  %v8633 = vsel %vm8622, %v8376, %v6076
  %v8634 = vsel %vm8622, %v8377, %v6078
  %v8635 = vsel %vm8622, %v8378, %v6080
  %v8636 = vsel %vm8622, %v8379, %v6082
  %v8637 = vsel %vm8622, %v8380, %v6084
  %v8638 = vsel %vm8622, %v8381, %v6086
  %v8639 = vsel %vm8622, %v8382, %v6088
  %v8640 = vsel %vm8622, %v8383, %v6090
  %v8641 = vsel %vm8622, %v8384, %v6092
  %v8642 = vsel %vm8622, %v8385, %v6094
  %v8643 = vsel %vm8622, %v8386, %v6096
  %v8644 = vsel %vm8622, %v8387, %v6098
  %v8645 = vsel %vm8622, %v8388, %v6100
  %v8646 = vsel %vm8622, %v8389, %v6102
  %v8647 = vsel %vm8622, %v8390, %v6104
  %v8648 = vsel %vm8622, %v8391, %v6106
  %v8649 = vsel %vm8622, %v8392, %v6108
  %v8650 = vsel %vm8622, %v8393, %v6110
  %v8651 = vsel %vm8622, %v8394, %v6112
  %v8652 = vsel %vm8622, %v8395, %v6114
  %v8653 = vsel %vm8622, %v8396, %v6116
  %v8654 = vsel %vm8622, %v8397, %v6118
  %v8655 = vsel %vm8622, %v8398, %v6120
  %v8656 = vsel %vm8622, %v8399, %v6122
  %v8657 = vsel %vm8622, %v8400, %v6124
  %v8658 = vsel %vm8622, %v8401, %v6126
  %v8659 = vsel %vm8622, %v8402, %v6128
  %v8660 = vsel %vm8622, %v8403, %v6130
  %v8661 = vsel %vm8622, %v8404, %v6132
  %v8662 = vsel %vm8622, %v8405, %v6134
  %v8663 = vsel %vm8622, %v8406, %v6136
  %v8664 = vsel %vm8622, %v8407, %v6138
  %v8665 = vsel %vm8622, %v8408, %v6140
  %v8666 = vsel %vm8622, %v8409, %v6142
  %v8667 = vsel %vm8622, %v8410, %v6144
  %v8668 = vsel %vm8622, %v8411, %v6146
  %v8669 = vsel %vm8622, %v8412, %v6148
  %v8670 = vsel %vm8622, %v8413, %v6150
  %v8671 = vsel %vm8622, %v8414, %v6152
  %v8672 = vsel %vm8622, %v8415, %v6154
  %v8673 = vsel %vm8622, %v8416, %v6156
  %v8674 = vsel %vm8622, %v8417, %v6158
  %v8675 = vsel %vm8622, %v8418, %v6160
  %v8676 = vsel %vm8622, %v8419, %v6162
  %v8677 = vsel %vm8622, %v8420, %v6164
  %v8678 = vsel %vm8622, %v8421, %v6166
  %v8679 = vsel %vm8622, %v8422, %v6168
  %v8680 = vsel %vm8622, %v8423, %v6170
  %v8681 = vsel %vm8622, %v8424, %v6172
  %v8682 = vsel %vm8622, %v8425, %v6174
  %v8683 = vsel %vm8622, %v8426, %v6176
  %v8684 = vsel %vm8622, %v8427, %v6178
  %v8685 = vsel %vm8622, %v8428, %v6180
  %v8686 = vsel %vm8622, %v8429, %v6182
  %v8687 = vsel %vm8622, %v8430, %v6184
  %v8688 = vsel %vm8622, %v8431, %v6186
  %v8689 = vsel %vm8622, %v8432, %v6188
  %v8690 = vsel %vm8622, %v8433, %v6190
  %v8691 = vsel %vm8622, %v8434, %v6192
  %v8692 = vsel %vm8622, %v8435, %v6194
  %v8693 = vsel %vm8622, %v8436, %v6196
  %v8694 = vsel %vm8622, %v8437, %v6198
  %v8695 = vsel %vm8622, %v8438, %v6200
  %v8696 = vsel %vm8622, %v8439, %v6202
  %v8697 = vsel %vm8622, %v8440, %v6204
  %v8698 = vsel %vm8622, %v8441, %v6206
  %v8699 = vsel %vm8622, %v8442, %v6208
  %v8700 = vsel %vm8622, %v8443, %v6210
  %v8701 = vsel %vm8622, %v8444, %v6212
  %v8702 = vsel %vm8622, %v8445, %v6214
  %v8703 = vsel %vm8622, %v8446, %v6216
  %v8704 = vsel %vm8622, %v8447, %v6218
  %v8705 = vsel %vm8622, %v8448, %v6220
  %v8706 = vsel %vm8622, %v8449, %v6222
  %v8707 = vsel %vm8622, %v8450, %v6224
  %v8708 = vsel %vm8622, %v8451, %v6226
  %v8709 = vsel %vm8622, %v8452, %v6228
  %v8710 = vsel %vm8622, %v8453, %v6230
  %v8711 = vsel %vm8622, %v8454, %v6232
  %v8712 = vsel %vm8622, %v8455, %v6234
  %v8713 = vsel %vm8622, %v8456, %v6236
  %v8714 = vsel %vm8622, %v8457, %v6238
  %v8715 = vsel %vm8622, %v8458, %v6240
  %v8716 = vsel %vm8622, %v8459, %v6242
  %v8717 = vsel %vm8622, %v8460, %v6244
  %v8718 = vsel %vm8622, %v8461, %v6246
  %v8719 = vsel %vm8622, %v8462, %v6248
  %v8720 = vsel %vm8622, %v8463, %v6250
  %v8721 = vsel %vm8622, %v8464, %v6252
  %v8722 = vsel %vm8622, %v8465, %v6254
  %v8723 = vsel %vm8622, %v8466, %v6256
  %v8724 = vsel %vm8622, %v8467, %v6258
  %v8725 = vsel %vm8622, %v8468, %v6260
  %v8726 = vsel %vm8622, %v8469, %v6262
  %v8727 = vsel %vm8622, %v8470, %v6264
  %v8728 = vsel %vm8622, %v8471, %v6266
  %v8729 = vsel %vm8622, %v8472, %v6268
  %v8730 = vsel %vm8622, %v8473, %v6270
  %v8731 = vsel %vm8622, %v8474, %v6272
  %v8732 = vsel %vm8622, %v8475, %v6274
  %v8733 = vsel %vm8622, %v8476, %v6276
  %v8734 = vsel %vm8622, %v8477, %v6278
  %v8735 = vsel %vm8622, %v8478, %v6280
  %v8736 = vsel %vm8622, %v8479, %v6282
  %v8737 = vsel %vm8622, %v8480, %v6284
  %v8738 = vsel %vm8622, %v8481, %v6286
  %v8739 = vsel %vm8622, %v8482, %v6288
  %v8740 = vsel %vm8622, %v8483, %v6290
  %v8741 = vsel %vm8622, %v8484, %v6292
  %v8742 = vsel %vm8622, %v8485, %v6294
  %v8743 = vsel %vm8622, %v8486, %v6296
  %v8744 = vsel %vm8622, %v8487, %v6298
  %v8745 = vsel %vm8622, %v8488, %v6300
  %v8746 = vsel %vm8622, %v8489, %v6302
  %v8747 = vsel %vm8622, %v8490, %v6304
  %v8748 = vsel %vm8622, %v8491, %v6306
  %v8749 = vsel %vm8622, %v8492, %v6308
  %v8750 = vsel %vm8622, %v8493, %v6310
  %v8751 = vsel %vm8622, %v8494, %v6312
  %v8752 = vsel %vm8622, %v8495, %v6314
  %v8753 = vsel %vm8622, %v8496, %v6316
  %v8754 = vsel %vm8622, %v8497, %v6318
  %v8755 = vsel %vm8622, %v8498, %v6320
  %v8756 = vsel %vm8622, %v8499, %v6322
  %v8757 = vsel %vm8622, %v8500, %v6324
  %v8758 = vsel %vm8622, %v8501, %v6326
  %v8759 = vsel %vm8622, %v8502, %v6328
  %v8760 = vsel %vm8622, %v8503, %v6330
  %v8761 = vsel %vm8622, %v8504, %v6332
  %v8762 = vsel %vm8622, %v8505, %v6334
  %v8763 = vsel %vm8622, %v8506, %v6336
  %v8764 = vsel %vm8622, %v8507, %v6338
  %v8765 = vsel %vm8622, %v8508, %v6340
  %v8766 = vsel %vm8622, %v8509, %v6342
  %v8767 = vsel %vm8622, %v8510, %v6344
  %v8768 = vsel %vm8622, %v8511, %v6346
  %v8769 = vsel %vm8622, %v8512, %v6348
  %v8770 = vsel %vm8622, %v8513, %v6350
  %v8771 = vsel %vm8622, %v8514, %v6352
  %v8772 = vsel %vm8622, %v8515, %v6354
  %v8773 = vsel %vm8622, %v8516, %v6356
  %v8774 = vsel %vm8622, %v8517, %v6358
  %v8775 = vsel %vm8622, %v8518, %v6360
  %v8776 = vsel %vm8622, %v8519, %v6362
  %v8777 = vsel %vm8622, %v8520, %v6364
  %v8778 = vsel %vm8622, %v8521, %v6366
  %v8779 = vsel %vm8622, %v8522, %v6368
  %v8780 = vsel %vm8622, %v8523, %v6370
  %v8781 = vsel %vm8622, %v8524, %v6372
  %v8782 = vsel %vm8622, %v8525, %v6374
  %v8783 = vsel %vm8622, %v8526, %v6376
  %v8784 = vsel %vm8622, %v8527, %v6378
  %v8785 = vsel %vm8622, %v8528, %v6380
  %v8786 = vsel %vm8622, %v8529, %v6382
  %v8787 = vsel %vm8622, %v8530, %v6384
  %v8788 = vsel %vm8622, %v8531, %v6386
  %v8789 = vsel %vm8622, %v8532, %v6388
  %v8790 = vsel %vm8622, %v8533, %v6390
  %v8791 = vsel %vm8622, %v8534, %v6392
  %v8792 = vsel %vm8622, %v8535, %v6394
  %v8793 = vsel %vm8622, %v8536, %v6396
  %v8794 = vsel %vm8622, %v8537, %v6398
  %v8795 = vsel %vm8622, %v8538, %v6400
  %v8796 = vsel %vm8622, %v8539, %v6402
  %v8797 = vsel %vm8622, %v8540, %v6404
  %v8798 = vsel %vm8622, %v8541, %v6406
  %v8799 = vsel %vm8622, %v8542, %v6408
  %v8800 = vsel %vm8622, %v8543, %v6410
  %v8801 = vsel %vm8622, %v8544, %v6412
  %v8802 = vsel %vm8622, %v8545, %v6414
  %v8803 = vsel %vm8622, %v8546, %v6416
  %v8804 = vsel %vm8622, %v8547, %v6418
  %v8805 = vsel %vm8622, %v8548, %v6420
  %v8806 = vsel %vm8622, %v8549, %v6422
  %v8807 = vsel %vm8622, %v8550, %v6424
  %v8808 = vsel %vm8622, %v8551, %v6426
  %v8809 = vsel %vm8622, %v8552, %v6428
  %v8810 = vsel %vm8622, %v8553, %v6430
  %v8811 = vsel %vm8622, %v8554, %v6432
  %v8812 = vsel %vm8622, %v8555, %v6434
  %v8813 = vsel %vm8622, %v8556, %v6436
  %v8814 = vsel %vm8622, %v8557, %v6438
  %v8815 = vsel %vm8622, %v8558, %v6440
  %v8816 = vsel %vm8622, %v8559, %v6442
  %v8817 = vsel %vm8622, %v8560, %v6444
  %v8818 = vsel %vm8622, %v8561, %v6446
  %v8819 = vsel %vm8622, %v8562, %v6448
  %v8820 = vsel %vm8622, %v8563, %v6450
  %v8821 = vsel %vm8622, %v8564, %v6452
  %v8822 = vsel %vm8622, %v8565, %v6454
  %v8823 = vsel %vm8622, %v8566, %v6456
  %v8824 = vsel %vm8622, %v8567, %v6458
  %v8825 = vsel %vm8622, %v8568, %v6460
  %v8826 = vsel %vm8622, %v8569, %v6462
  %v8827 = vsel %vm8622, %v8570, %v6464
  %v8828 = vsel %vm8622, %v8571, %v6466
  %v8829 = vsel %vm8622, %v8572, %v6468
  %v8830 = vsel %vm8622, %v8573, %v6470
  %v8831 = vsel %vm8622, %v8574, %v6472
  %v8832 = vsel %vm8622, %v8575, %v6474
  %v8833 = vsel %vm8622, %v8576, %v6476
  %v8834 = vsel %vm8622, %v8577, %v6478
  %v8835 = vsel %vm8622, %v8578, %v6480
  %v8836 = vsel %vm8622, %v8579, %v6482
  %v8837 = vsel %vm8622, %v8580, %v6484
  %v8838 = vsel %vm8622, %v8581, %v6486
  %v8839 = vsel %vm8622, %v8582, %v6488
  %v8840 = vsel %vm8622, %v8583, %v6490
  %v8841 = vsel %vm8622, %v8584, %v6492
  %v8842 = vsel %vm8622, %v8585, %v6494
  %v8843 = vsel %vm8622, %v8586, %v6496
  %v8844 = vsel %vm8622, %v8587, %v6498
  %v8845 = vsel %vm8622, %v8588, %v6500
  %v8846 = vsel %vm8622, %v8589, %v6502
  %v8847 = vsel %vm8622, %v8590, %v6504
  %v8848 = vsel %vm8622, %v8591, %v6506
  %v8849 = vsel %vm8622, %v8592, %v6508
  %v8850 = vsel %vm8622, %v8593, %v6510
  %v8851 = vsel %vm8622, %v8594, %v6512
  %v8852 = vsel %vm8622, %v8595, %v6514
  %v8853 = vsel %vm8622, %v8596, %v6516
  %v8854 = vsel %vm8622, %v8597, %v6518
  %v8855 = vsel %vm8622, %v8598, %v6520
  %v8856 = vsel %vm8622, %v8599, %v6522
  %v8857 = vsel %vm8622, %v8600, %v6524
  %v8858 = vsel %vm8622, %v8601, %v6526
  %v8859 = vsel %vm8622, %v8602, %v6528
  %v8860 = vsel %vm8622, %v8603, %v6530
  %v8861 = vsel %vm8622, %v8604, %v6532
  %v8862 = vsel %vm8622, %v8605, %v6534
  %v8863 = vsel %vm8622, %v8606, %v6536
  %v8864 = vsel %vm8622, %v8607, %v6538
  %v8865 = vsel %vm8622, %v8608, %v6540
  %v8866 = vsel %vm8622, %v8609, %v6542
  %v8867 = vsel %vm8622, %v8610, %v6544
  %v8868 = vsel %vm8622, %v8611, %v6546
  %v8869 = vsel %vm8622, %v8612, %v6548
  %v8870 = vsel %vm8622, %v8613, %v6550
  %v8871 = vsel %vm8622, %v8614, %v6552
  %v8872 = vsel %vm8622, %v8615, %v6554
  %v8873 = vsel %vm8622, %v8616, %v6556
  %v8874 = vsel %vm8622, %v8617, %v6558
  %v8875 = vsel %vm8622, %v8618, %v6560
  %v8876 = vsel %vm8622, %v8619, %v6562
  %v8877 = vsel %vm8622, %v8620, %v6564
  %v8878 = vsel %vm8622, %v8621, %v6566
  %v8880 = vlaneseq
  %v8881 = vshrl.u32 %v8880, 7
  %v8882 = vsub.s32 0, %v8881
  %v8883 = vrot.slane %v355, %v8882
  %vm8885 = vcmask 293888
  %v8887 = vsel %vm8885, %v8623, 0
  %v8890 = vsel %vm8885, %v8624, 0
  %v8893 = vsel %vm8885, %v8625, 0
  %v8896 = vsel %vm8885, %v8626, 0
  %v8899 = vsel %vm8885, %v8627, 0
  %v8902 = vsel %vm8885, %v8628, 0
  %v8905 = vsel %vm8885, %v8629, 0
  %v8908 = vsel %vm8885, %v8630, 0
  %v8911 = vsel %vm8885, %v8631, 0
  %v8914 = vsel %vm8885, %v8632, 0
  %v8917 = vsel %vm8885, %v8633, 0
  %v8920 = vsel %vm8885, %v8634, 0
  %v8923 = vsel %vm8885, %v8635, 0
  %v8926 = vsel %vm8885, %v8636, 0
  %v8929 = vsel %vm8885, %v8637, 0
  %v8932 = vsel %vm8885, %v8638, 0
  %v8935 = vsel %vm8885, %v8639, 0
  %v8938 = vsel %vm8885, %v8640, 0
  %v8941 = vsel %vm8885, %v8641, 0
  %v8944 = vsel %vm8885, %v8642, 0
  %v8947 = vsel %vm8885, %v8643, 0
  %v8950 = vsel %vm8885, %v8644, 0
  %v8953 = vsel %vm8885, %v8645, 0
  %v8956 = vsel %vm8885, %v8646, 0
  %v8959 = vsel %vm8885, %v8647, 0
  %v8962 = vsel %vm8885, %v8648, 0
  %v8965 = vsel %vm8885, %v8649, 0
  %v8968 = vsel %vm8885, %v8650, 0
  %v8971 = vsel %vm8885, %v8651, 0
  %v8974 = vsel %vm8885, %v8652, 0
  %v8977 = vsel %vm8885, %v8653, 0
  %v8980 = vsel %vm8885, %v8654, 0
  %v8983 = vsel %vm8885, %v8655, 0
  %v8986 = vsel %vm8885, %v8656, 0
  %v8989 = vsel %vm8885, %v8657, 0
  %v8992 = vsel %vm8885, %v8658, 0
  %v8995 = vsel %vm8885, %v8659, 0
  %v8998 = vsel %vm8885, %v8660, 0
  %v9001 = vsel %vm8885, %v8661, 0
  %v9004 = vsel %vm8885, %v8662, 0
  %v9007 = vsel %vm8885, %v8663, 0
  %v9010 = vsel %vm8885, %v8664, 0
  %v9013 = vsel %vm8885, %v8665, 0
  %v9016 = vsel %vm8885, %v8666, 0
  %v9019 = vsel %vm8885, %v8667, 0
  %v9022 = vsel %vm8885, %v8668, 0
  %v9025 = vsel %vm8885, %v8669, 0
  %v9028 = vsel %vm8885, %v8670, 0
  %v9031 = vsel %vm8885, %v8671, 0
  %v9034 = vsel %vm8885, %v8672, 0
  %v9037 = vsel %vm8885, %v8673, 0
  %v9040 = vsel %vm8885, %v8674, 0
  %v9043 = vsel %vm8885, %v8675, 0
  %v9046 = vsel %vm8885, %v8676, 0
  %v9049 = vsel %vm8885, %v8677, 0
  %v9052 = vsel %vm8885, %v8678, 0
  %v9055 = vsel %vm8885, %v8679, 0
  %v9058 = vsel %vm8885, %v8680, 0
  %v9061 = vsel %vm8885, %v8681, 0
  %v9064 = vsel %vm8885, %v8682, 0
  %v9067 = vsel %vm8885, %v8683, 0
  %v9070 = vsel %vm8885, %v8684, 0
  %v9073 = vsel %vm8885, %v8685, 0
  %v9076 = vsel %vm8885, %v8686, 0
  %v9079 = vsel %vm8885, %v8687, 0
  %v9082 = vsel %vm8885, %v8688, 0
  %v9085 = vsel %vm8885, %v8689, 0
  %v9088 = vsel %vm8885, %v8690, 0
  %v9091 = vsel %vm8885, %v8691, 0
  %v9094 = vsel %vm8885, %v8692, 0
  %v9097 = vsel %vm8885, %v8693, 0
  %v9100 = vsel %vm8885, %v8694, 0
  %v9103 = vsel %vm8885, %v8695, 0
  %v9106 = vsel %vm8885, %v8696, 0
  %v9109 = vsel %vm8885, %v8697, 0
  %v9112 = vsel %vm8885, %v8698, 0
  %v9115 = vsel %vm8885, %v8699, 0
  %v9118 = vsel %vm8885, %v8700, 0
  %v9121 = vsel %vm8885, %v8701, 0
  %v9124 = vsel %vm8885, %v8702, 0
  %v9127 = vsel %vm8885, %v8703, 0
  %v9130 = vsel %vm8885, %v8704, 0
  %v9133 = vsel %vm8885, %v8705, 0
  %v9136 = vsel %vm8885, %v8706, 0
  %v9139 = vsel %vm8885, %v8707, 0
  %v9142 = vsel %vm8885, %v8708, 0
  %v9145 = vsel %vm8885, %v8709, 0
  %v9148 = vsel %vm8885, %v8710, 0
  %v9151 = vsel %vm8885, %v8711, 0
  %v9154 = vsel %vm8885, %v8712, 0
  %v9157 = vsel %vm8885, %v8713, 0
  %v9160 = vsel %vm8885, %v8714, 0
  %v9163 = vsel %vm8885, %v8715, 0
  %v9166 = vsel %vm8885, %v8716, 0
  %v9169 = vsel %vm8885, %v8717, 0
  %v9172 = vsel %vm8885, %v8718, 0
  %v9175 = vsel %vm8885, %v8719, 0
  %v9178 = vsel %vm8885, %v8720, 0
  %v9181 = vsel %vm8885, %v8721, 0
  %v9184 = vsel %vm8885, %v8722, 0
  %v9187 = vsel %vm8885, %v8723, 0
  %v9190 = vsel %vm8885, %v8724, 0
  %v9193 = vsel %vm8885, %v8725, 0
  %v9196 = vsel %vm8885, %v8726, 0
  %v9199 = vsel %vm8885, %v8727, 0
  %v9202 = vsel %vm8885, %v8728, 0
  %v9205 = vsel %vm8885, %v8729, 0
  %v9208 = vsel %vm8885, %v8730, 0
  %v9211 = vsel %vm8885, %v8731, 0
  %v9214 = vsel %vm8885, %v8732, 0
  %v9217 = vsel %vm8885, %v8733, 0
  %v9220 = vsel %vm8885, %v8734, 0
  %v9223 = vsel %vm8885, %v8735, 0
  %v9226 = vsel %vm8885, %v8736, 0
  %v9229 = vsel %vm8885, %v8737, 0
  %v9232 = vsel %vm8885, %v8738, 0
  %v9235 = vsel %vm8885, %v8739, 0
  %v9238 = vsel %vm8885, %v8740, 0
  %v9241 = vsel %vm8885, %v8741, 0
  %v9244 = vsel %vm8885, %v8742, 0
  %v9247 = vsel %vm8885, %v8743, 0
  %v9250 = vsel %vm8885, %v8744, 0
  %v9253 = vsel %vm8885, %v8745, 0
  %v9256 = vsel %vm8885, %v8746, 0
  %v9259 = vsel %vm8885, %v8747, 0
  %v9262 = vsel %vm8885, %v8748, 0
  %v9265 = vsel %vm8885, %v8749, 0
  %v9268 = vsel %vm8885, %v8750, 0
  %v9271 = vsel %vm8885, %v8751, 0
  %v9274 = vsel %vm8885, %v8752, 0
  %v9277 = vsel %vm8885, %v8753, 0
  %v9280 = vsel %vm8885, %v8754, 0
  %v9283 = vsel %vm8885, %v8755, 0
  %v9286 = vsel %vm8885, %v8756, 0
  %v9289 = vsel %vm8885, %v8757, 0
  %v9292 = vsel %vm8885, %v8758, 0
  %v9295 = vsel %vm8885, %v8759, 0
  %v9298 = vsel %vm8885, %v8760, 0
  %v9301 = vsel %vm8885, %v8761, 0
  %v9304 = vsel %vm8885, %v8762, 0
  %v9307 = vsel %vm8885, %v8763, 0
  %v9310 = vsel %vm8885, %v8764, 0
  %v9313 = vsel %vm8885, %v8765, 0
  %v9316 = vsel %vm8885, %v8766, 0
  %v9319 = vsel %vm8885, %v8767, 0
  %v9322 = vsel %vm8885, %v8768, 0
  %v9325 = vsel %vm8885, %v8769, 0
  %v9328 = vsel %vm8885, %v8770, 0
  %v9331 = vsel %vm8885, %v8771, 0
  %v9334 = vsel %vm8885, %v8772, 0
  %v9337 = vsel %vm8885, %v8773, 0
  %v9340 = vsel %vm8885, %v8774, 0
  %v9343 = vsel %vm8885, %v8775, 0
  %v9346 = vsel %vm8885, %v8776, 0
  %v9349 = vsel %vm8885, %v8777, 0
  %v9352 = vsel %vm8885, %v8778, 0
  %v9355 = vsel %vm8885, %v8779, 0
  %v9358 = vsel %vm8885, %v8780, 0
  %v9361 = vsel %vm8885, %v8781, 0
  %v9364 = vsel %vm8885, %v8782, 0
  %v9367 = vsel %vm8885, %v8783, 0
  %v9370 = vsel %vm8885, %v8784, 0
  %v9373 = vsel %vm8885, %v8785, 0
  %v9376 = vsel %vm8885, %v8786, 0
  %v9379 = vsel %vm8885, %v8787, 0
  %v9382 = vsel %vm8885, %v8788, 0
  %v9385 = vsel %vm8885, %v8789, 0
  %v9388 = vsel %vm8885, %v8790, 0
  %v9391 = vsel %vm8885, %v8791, 0
  %v9394 = vsel %vm8885, %v8792, 0
  %v9397 = vsel %vm8885, %v8793, 0
  %v9400 = vsel %vm8885, %v8794, 0
  %v9403 = vsel %vm8885, %v8795, 0
  %v9406 = vsel %vm8885, %v8796, 0
  %v9409 = vsel %vm8885, %v8797, 0
  %v9412 = vsel %vm8885, %v8798, 0
  %v9415 = vsel %vm8885, %v8799, 0
  %v9418 = vsel %vm8885, %v8800, 0
  %v9421 = vsel %vm8885, %v8801, 0
  %v9424 = vsel %vm8885, %v8802, 0
  %v9427 = vsel %vm8885, %v8803, 0
  %v9430 = vsel %vm8885, %v8804, 0
  %v9433 = vsel %vm8885, %v8805, 0
  %v9436 = vsel %vm8885, %v8806, 0
  %v9439 = vsel %vm8885, %v8807, 0
  %v9442 = vsel %vm8885, %v8808, 0
  %v9445 = vsel %vm8885, %v8809, 0
  %v9448 = vsel %vm8885, %v8810, 0
  %v9451 = vsel %vm8885, %v8811, 0
  %v9454 = vsel %vm8885, %v8812, 0
  %v9457 = vsel %vm8885, %v8813, 0
  %v9460 = vsel %vm8885, %v8814, 0
  %v9463 = vsel %vm8885, %v8815, 0
  %v9466 = vsel %vm8885, %v8816, 0
  %v9469 = vsel %vm8885, %v8817, 0
  %v9472 = vsel %vm8885, %v8818, 0
  %v9475 = vsel %vm8885, %v8819, 0
  %v9478 = vsel %vm8885, %v8820, 0
  %v9481 = vsel %vm8885, %v8821, 0
  %v9484 = vsel %vm8885, %v8822, 0
  %v9487 = vsel %vm8885, %v8823, 0
  %v9490 = vsel %vm8885, %v8824, 0
  %v9493 = vsel %vm8885, %v8825, 0
  %v9496 = vsel %vm8885, %v8826, 0
  %v9499 = vsel %vm8885, %v8827, 0
  %v9502 = vsel %vm8885, %v8828, 0
  %v9505 = vsel %vm8885, %v8829, 0
  %v9508 = vsel %vm8885, %v8830, 0
  %v9511 = vsel %vm8885, %v8831, 0
  %v9514 = vsel %vm8885, %v8832, 0
  %v9517 = vsel %vm8885, %v8833, 0
  %v9520 = vsel %vm8885, %v8834, 0
  %v9523 = vsel %vm8885, %v8835, 0
  %v9526 = vsel %vm8885, %v8836, 0
  %v9529 = vsel %vm8885, %v8837, 0
  %v9532 = vsel %vm8885, %v8838, 0
  %v9535 = vsel %vm8885, %v8839, 0
  %v9538 = vsel %vm8885, %v8840, 0
  %v9541 = vsel %vm8885, %v8841, 0
  %v9544 = vsel %vm8885, %v8842, 0
  %v9547 = vsel %vm8885, %v8843, 0
  %v9550 = vsel %vm8885, %v8844, 0
  %v9553 = vsel %vm8885, %v8845, 0
  %v9556 = vsel %vm8885, %v8846, 0
  %v9559 = vsel %vm8885, %v8847, 0
  %v9562 = vsel %vm8885, %v8848, 0
  %v9565 = vsel %vm8885, %v8849, 0
  %v9568 = vsel %vm8885, %v8850, 0
  %v9571 = vsel %vm8885, %v8851, 0
  %v9574 = vsel %vm8885, %v8852, 0
  %v9577 = vsel %vm8885, %v8853, 0
  %v9580 = vsel %vm8885, %v8854, 0
  %v9583 = vsel %vm8885, %v8855, 0
  %v9586 = vsel %vm8885, %v8856, 0
  %v9589 = vsel %vm8885, %v8857, 0
  %v9592 = vsel %vm8885, %v8858, 0
  %v9595 = vsel %vm8885, %v8859, 0
  %v9598 = vsel %vm8885, %v8860, 0
  %v9601 = vsel %vm8885, %v8861, 0
  %v9604 = vsel %vm8885, %v8862, 0
  %v9607 = vsel %vm8885, %v8863, 0
  %v9610 = vsel %vm8885, %v8864, 0
  %v9613 = vsel %vm8885, %v8865, 0
  %v9616 = vsel %vm8885, %v8866, 0
  %v9619 = vsel %vm8885, %v8867, 0
  %v9622 = vsel %vm8885, %v8868, 0
  %v9625 = vsel %vm8885, %v8869, 0
  %v9628 = vsel %vm8885, %v8870, 0
  %v9631 = vsel %vm8885, %v8871, 0
  %v9634 = vsel %vm8885, %v8872, 0
  %v9637 = vsel %vm8885, %v8873, 0
  %v9640 = vsel %vm8885, %v8874, 0
  %v9643 = vsel %vm8885, %v8875, 0
  %v9646 = vsel %vm8885, %v8876, 0
  %v9649 = vsel %vm8885, %v8877, 0
  %v9652 = vsel %vm8885, %v8878, 0
  %vm9654 = vcmask 1043456
  %v9656 = vsel %vm9654, %v354, 0
  %9658 = vmatprep.subr.mxu0 0.0
  %9659 = vmatpush1.msra.mxu0 %v350
  %9660 = vmatprep.subr.mxu0 0.0
  %9661 = vmatpush1.msra.mxu0 %v351
  %9662 = vmatprep.subr.mxu0 0.0
  %9663 = vmatpush1.msra.mxu0 %v352
  %9664 = vmatprep.subr.mxu0 0.0
  %9665 = vmatpush1.msra.mxu0 %v353
  %9666 = vmatprep.subr.mxu0 0.0
  %9667 = vmatpush1.msra.mxu0 %v9656
  %9668 = vmatprep.subr.mxu0 0.0
  %9669 = vmatpush1.msra.mxu0 0.0
  %9670 = vmatprep.subr.mxu0 0.0
  %9671 = vmatpush1.msra.mxu0 0.0
  %9672 = vmatprep.subr.mxu0 0.0
  %9673 = vmatpush1.msra.mxu0 0.0
  %9674 = vmatprep.subr.mxu0 0.0
  %9675 = vmatpush1.msra.mxu0 0.0
  %9676 = vmatprep.subr.mxu0 0.0
  %9677 = vmatpush1.msra.mxu0 0.0
  %9678 = vmatprep.subr.mxu0 0.0
  %9679 = vmatpush1.msra.mxu0 0.0
  %9680 = vmatprep.subr.mxu0 0.0
  %9681 = vmatpush1.msra.mxu0 0.0
  %9682 = vmatprep.subr.mxu0 0.0
  %9683 = vmatpush1.msra.mxu0 0.0
  %9684 = vmatprep.subr.mxu0 0.0
  %9685 = vmatpush1.msra.mxu0 0.0
  %9686 = vmatprep.subr.mxu0 0.0
  %9687 = vmatpush1.msra.mxu0 0.0
  %9688 = vmatprep.subr.mxu0 0.0
  %9689 = vmatpush1.msra.mxu0 0.0
  %9690 = vmatprep.subr.mxu0 0.0
  %9691 = vmatpush1.msra.mxu0 0.0
  %9692 = vmatprep.subr.mxu0 0.0
  %9693 = vmatpush1.msra.mxu0 0.0
  %9694 = vmatprep.subr.mxu0 0.0
  %9695 = vmatpush1.msra.mxu0 0.0
  %9696 = vmatprep.subr.mxu0 0.0
  %9697 = vmatpush1.msra.mxu0 0.0
  %9698 = vmatprep.subr.mxu0 0.0
  %9699 = vmatpush1.msra.mxu0 0.0
  %9700 = vmatprep.subr.mxu0 0.0
  %9701 = vmatpush1.msra.mxu0 0.0
  %9702 = vmatprep.subr.mxu0 0.0
  %9703 = vmatpush1.msra.mxu0 0.0
  %9704 = vmatprep.subr.mxu0 0.0
  %9705 = vmatpush1.msra.mxu0 0.0
  %9706 = vmatprep.subr.mxu0 0.0
  %9707 = vmatpush1.msra.mxu0 0.0
  %9708 = vmatprep.subr.mxu0 0.0
  %9709 = vmatpush1.msra.mxu0 0.0
  %9710 = vmatprep.subr.mxu0 0.0
  %9711 = vmatpush1.msra.mxu0 0.0
  %9712 = vmatprep.subr.mxu0 0.0
  %9713 = vmatpush1.msra.mxu0 0.0
  %9714 = vmatprep.subr.mxu0 0.0
  %9715 = vmatpush1.msra.mxu0 0.0
  %9716 = vmatprep.subr.mxu0 0.0
  %9717 = vmatpush1.msra.mxu0 0.0
  %9718 = vmatprep.subr.mxu0 0.0
  %9719 = vmatpush1.msra.mxu0 0.0
  %9720 = vmatprep.subr.mxu0 0.0
  %9721 = vmatpush1.msra.mxu0 0.0
  %9722 = vmatprep.mubr.f32.mxu0 0.0
  %9723 = vmatmul.mubr.f32.gmra.mrb[0].mxu0 %v8887
  %v9724 = vpop.f32.mrb[0].mxu0
  %v9725 = vadd.f32 %v8883, %v9724
  %v9726 = vpop.f32.mrb[0].mxu0
  %9727 = vmatprep.mubr.f32.mxu0 0.0
  %9728 = vmatmul.mubr.f32.gmra.mrb[0].mxu0 %v8890
  %v9729 = vpop.f32.mrb[0].mxu0
  %v9730 = vadd.f32 %v8883, %v9729
  %v9731 = vpop.f32.mrb[0].mxu0
  %9732 = vmatprep.mubr.f32.mxu0 0.0
  %9733 = vmatmul.mubr.f32.gmra.mrb[0].mxu0 %v8893
  %v9734 = vpop.f32.mrb[0].mxu0
  %v9735 = vadd.f32 %v8883, %v9734
  %v9736 = vpop.f32.mrb[0].mxu0
  %9737 = vmatprep.mubr.f32.mxu0 0.0
  %9738 = vmatmul.mubr.f32.gmra.mrb[0].mxu0 %v8896
  %v9739 = vpop.f32.mrb[0].mxu0
  %v9740 = vadd.f32 %v8883, %v9739
  %v9741 = vpop.f32.mrb[0].mxu0
  %9742 = vmatprep.mubr.f32.mxu0 0.0
  %9743 = vmatmul.mubr.f32.gmra.mrb[0].mxu0 %v8899
  %v9744 = vpop.f32.mrb[0].mxu0
  %v9745 = vadd.f32 %v8883, %v9744
  %v9746 = vpop.f32.mrb[0].mxu0
  %9747 = vmatprep.mubr.f32.mxu0 0.0
  %9748 = vmatmul.mubr.f32.gmra.mrb[0].mxu0 %v8902
  %v9749 = vpop.f32.mrb[0].mxu0
  %v9750 = vadd.f32 %v8883, %v9749
  %v9751 = vpop.f32.mrb[0].mxu0
  %9752 = vmatprep.mubr.f32.mxu0 0.0
  %9753 = vmatmul.mubr.f32.gmra.mrb[0].mxu0 %v8905
  %v9754 = vpop.f32.mrb[0].mxu0
  %v9755 = vadd.f32 %v8883, %v9754
  %v9756 = vpop.f32.mrb[0].mxu0
  %9757 = vmatprep.mubr.f32.mxu0 0.0
  %9758 = vmatmul.mubr.f32.gmra.mrb[0].mxu0 %v8908
  %v9759 = vpop.f32.mrb[0].mxu0
  %v9760 = vadd.f32 %v8883, %v9759
  %v9761 = vpop.f32.mrb[0].mxu0
  %9762 = vmatprep.mubr.f32.mxu0 0.0
  %9763 = vmatmul.mubr.f32.gmra.mrb[0].mxu0 %v8911
  %v9764 = vpop.f32.mrb[0].mxu0
  %v9765 = vadd.f32 %v8883, %v9764
  %v9766 = vpop.f32.mrb[0].mxu0
  %9767 = vmatprep.mubr.f32.mxu0 0.0
  %9768 = vmatmul.mubr.f32.gmra.mrb[0].mxu0 %v8914
  %v9769 = vpop.f32.mrb[0].mxu0
  %v9770 = vadd.f32 %v8883, %v9769
  %v9771 = vpop.f32.mrb[0].mxu0
  %9772 = vmatprep.mubr.f32.mxu0 0.0
  %9773 = vmatmul.mubr.f32.gmra.mrb[0].mxu0 %v8917
  %v9774 = vpop.f32.mrb[0].mxu0
  %v9775 = vadd.f32 %v8883, %v9774
  %v9776 = vpop.f32.mrb[0].mxu0
  %9777 = vmatprep.mubr.f32.mxu0 0.0
  %9778 = vmatmul.mubr.f32.gmra.mrb[0].mxu0 %v8920
  %v9779 = vpop.f32.mrb[0].mxu0
  %v9780 = vadd.f32 %v8883, %v9779
  %v9781 = vpop.f32.mrb[0].mxu0
  %9782 = vmatprep.mubr.f32.mxu0 0.0
  %9783 = vmatmul.mubr.f32.gmra.mrb[0].mxu0 %v8923
  %v9784 = vpop.f32.mrb[0].mxu0
  %v9785 = vadd.f32 %v8883, %v9784
  %v9786 = vpop.f32.mrb[0].mxu0
  %9787 = vmatprep.mubr.f32.mxu0 0.0
  %9788 = vmatmul.mubr.f32.gmra.mrb[0].mxu0 %v8926
  %v9789 = vpop.f32.mrb[0].mxu0
  %v9790 = vadd.f32 %v8883, %v9789
  %v9791 = vpop.f32.mrb[0].mxu0
  %9792 = vmatprep.mubr.f32.mxu0 0.0
  %9793 = vmatmul.mubr.f32.gmra.mrb[0].mxu0 %v8929
  %v9794 = vpop.f32.mrb[0].mxu0
  %v9795 = vadd.f32 %v8883, %v9794
  %v9796 = vpop.f32.mrb[0].mxu0
  %9797 = vmatprep.mubr.f32.mxu0 0.0
  %9798 = vmatmul.mubr.f32.gmra.mrb[0].mxu0 %v8932
  %v9799 = vpop.f32.mrb[0].mxu0
  %v9800 = vadd.f32 %v8883, %v9799
  %v9801 = vpop.f32.mrb[0].mxu0
  %9802 = vmatprep.mubr.f32.mxu0 0.0
  %9803 = vmatmul.mubr.f32.gmra.mrb[0].mxu0 %v8935
  %v9804 = vpop.f32.mrb[0].mxu0
  %v9805 = vadd.f32 %v8883, %v9804
  %v9806 = vpop.f32.mrb[0].mxu0
  %9807 = vmatprep.mubr.f32.mxu0 0.0
  %9808 = vmatmul.mubr.f32.gmra.mrb[0].mxu0 %v8938
  %v9809 = vpop.f32.mrb[0].mxu0
  %v9810 = vadd.f32 %v8883, %v9809
  %v9811 = vpop.f32.mrb[0].mxu0
  %9812 = vmatprep.mubr.f32.mxu0 0.0
  %9813 = vmatmul.mubr.f32.gmra.mrb[0].mxu0 %v8941
  %v9814 = vpop.f32.mrb[0].mxu0
  %v9815 = vadd.f32 %v8883, %v9814
  %v9816 = vpop.f32.mrb[0].mxu0
  %9817 = vmatprep.mubr.f32.mxu0 0.0
  %9818 = vmatmul.mubr.f32.gmra.mrb[0].mxu0 %v8944
  %v9819 = vpop.f32.mrb[0].mxu0
  %v9820 = vadd.f32 %v8883, %v9819
  %v9821 = vpop.f32.mrb[0].mxu0
  %9822 = vmatprep.mubr.f32.mxu0 0.0
  %9823 = vmatmul.mubr.f32.gmra.mrb[0].mxu0 %v8947
  %v9824 = vpop.f32.mrb[0].mxu0
  %v9825 = vadd.f32 %v8883, %v9824
  %v9826 = vpop.f32.mrb[0].mxu0
  %9827 = vmatprep.mubr.f32.mxu0 0.0
  %9828 = vmatmul.mubr.f32.gmra.mrb[0].mxu0 %v8950
  %v9829 = vpop.f32.mrb[0].mxu0
  %v9830 = vadd.f32 %v8883, %v9829
  %v9831 = vpop.f32.mrb[0].mxu0
  %9832 = vmatprep.mubr.f32.mxu0 0.0
  %9833 = vmatmul.mubr.f32.gmra.mrb[0].mxu0 %v8953
  %v9834 = vpop.f32.mrb[0].mxu0
  %v9835 = vadd.f32 %v8883, %v9834
  %v9836 = vpop.f32.mrb[0].mxu0
  %9837 = vmatprep.mubr.f32.mxu0 0.0
  %9838 = vmatmul.mubr.f32.gmra.mrb[0].mxu0 %v8956
  %v9839 = vpop.f32.mrb[0].mxu0
  %v9840 = vadd.f32 %v8883, %v9839
  %v9841 = vpop.f32.mrb[0].mxu0
  %9842 = vmatprep.mubr.f32.mxu0 0.0
  %9843 = vmatmul.mubr.f32.gmra.mrb[0].mxu0 %v8959
  %v9844 = vpop.f32.mrb[0].mxu0
  %v9845 = vadd.f32 %v8883, %v9844
  %v9846 = vpop.f32.mrb[0].mxu0
  %9847 = vmatprep.mubr.f32.mxu0 0.0
  %9848 = vmatmul.mubr.f32.gmra.mrb[0].mxu0 %v8962
  %v9849 = vpop.f32.mrb[0].mxu0
  %v9850 = vadd.f32 %v8883, %v9849
  %v9851 = vpop.f32.mrb[0].mxu0
  %9852 = vmatprep.mubr.f32.mxu0 0.0
  %9853 = vmatmul.mubr.f32.gmra.mrb[0].mxu0 %v8965
  %v9854 = vpop.f32.mrb[0].mxu0
  %v9855 = vadd.f32 %v8883, %v9854
  %v9856 = vpop.f32.mrb[0].mxu0
  %9857 = vmatprep.mubr.f32.mxu0 0.0
  %9858 = vmatmul.mubr.f32.gmra.mrb[0].mxu0 %v8968
  %v9859 = vpop.f32.mrb[0].mxu0
  %v9860 = vadd.f32 %v8883, %v9859
  %v9861 = vpop.f32.mrb[0].mxu0
  %9862 = vmatprep.mubr.f32.mxu0 0.0
  %9863 = vmatmul.mubr.f32.gmra.mrb[0].mxu0 %v8971
  %v9864 = vpop.f32.mrb[0].mxu0
  %v9865 = vadd.f32 %v8883, %v9864
  %v9866 = vpop.f32.mrb[0].mxu0
  %9867 = vmatprep.mubr.f32.mxu0 0.0
  %9868 = vmatmul.mubr.f32.gmra.mrb[0].mxu0 %v8974
  %v9869 = vpop.f32.mrb[0].mxu0
  %v9870 = vadd.f32 %v8883, %v9869
  %v9871 = vpop.f32.mrb[0].mxu0
  %9872 = vmatprep.mubr.f32.mxu0 0.0
  %9873 = vmatmul.mubr.f32.gmra.mrb[0].mxu0 %v8977
  %v9874 = vpop.f32.mrb[0].mxu0
  %v9875 = vadd.f32 %v8883, %v9874
  %v9876 = vpop.f32.mrb[0].mxu0
  %9877 = vmatprep.mubr.f32.mxu0 0.0
  %9878 = vmatmul.mubr.f32.gmra.mrb[0].mxu0 %v8980
  %v9879 = vpop.f32.mrb[0].mxu0
  %v9880 = vadd.f32 %v8883, %v9879
  %v9881 = vpop.f32.mrb[0].mxu0
  %9882 = vmatprep.mubr.f32.mxu0 0.0
  %9883 = vmatmul.mubr.f32.gmra.mrb[0].mxu0 %v8983
  %v9884 = vpop.f32.mrb[0].mxu0
  %v9885 = vadd.f32 %v8883, %v9884
  %v9886 = vpop.f32.mrb[0].mxu0
  %9887 = vmatprep.mubr.f32.mxu0 0.0
  %9888 = vmatmul.mubr.f32.gmra.mrb[0].mxu0 %v8986
  %v9889 = vpop.f32.mrb[0].mxu0
  %v9890 = vadd.f32 %v8883, %v9889
  %v9891 = vpop.f32.mrb[0].mxu0
  %9892 = vmatprep.mubr.f32.mxu0 0.0
  %9893 = vmatmul.mubr.f32.gmra.mrb[0].mxu0 %v8989
  %v9894 = vpop.f32.mrb[0].mxu0
  %v9895 = vadd.f32 %v8883, %v9894
  %v9896 = vpop.f32.mrb[0].mxu0
  %9897 = vmatprep.mubr.f32.mxu0 0.0
  %9898 = vmatmul.mubr.f32.gmra.mrb[0].mxu0 %v8992
  %v9899 = vpop.f32.mrb[0].mxu0
  %v9900 = vadd.f32 %v8883, %v9899
  %v9901 = vpop.f32.mrb[0].mxu0
  %9902 = vmatprep.mubr.f32.mxu0 0.0
  %9903 = vmatmul.mubr.f32.gmra.mrb[0].mxu0 %v8995
  %v9904 = vpop.f32.mrb[0].mxu0
  %v9905 = vadd.f32 %v8883, %v9904
  %v9906 = vpop.f32.mrb[0].mxu0
  %9907 = vmatprep.mubr.f32.mxu0 0.0
  %9908 = vmatmul.mubr.f32.gmra.mrb[0].mxu0 %v8998
  %v9909 = vpop.f32.mrb[0].mxu0
  %v9910 = vadd.f32 %v8883, %v9909
  %v9911 = vpop.f32.mrb[0].mxu0
  %9912 = vmatprep.mubr.f32.mxu0 0.0
  %9913 = vmatmul.mubr.f32.gmra.mrb[0].mxu0 %v9001
  %v9914 = vpop.f32.mrb[0].mxu0
  %v9915 = vadd.f32 %v8883, %v9914
  %v9916 = vpop.f32.mrb[0].mxu0
  %9917 = vmatprep.mubr.f32.mxu0 0.0
  %9918 = vmatmul.mubr.f32.gmra.mrb[0].mxu0 %v9004
  %v9919 = vpop.f32.mrb[0].mxu0
  %v9920 = vadd.f32 %v8883, %v9919
  %v9921 = vpop.f32.mrb[0].mxu0
  %9922 = vmatprep.mubr.f32.mxu0 0.0
  %9923 = vmatmul.mubr.f32.gmra.mrb[0].mxu0 %v9007
  %v9924 = vpop.f32.mrb[0].mxu0
  %v9925 = vadd.f32 %v8883, %v9924
  %v9926 = vpop.f32.mrb[0].mxu0
  %9927 = vmatprep.mubr.f32.mxu0 0.0
  %9928 = vmatmul.mubr.f32.gmra.mrb[0].mxu0 %v9010
  %v9929 = vpop.f32.mrb[0].mxu0
  %v9930 = vadd.f32 %v8883, %v9929
  %v9931 = vpop.f32.mrb[0].mxu0
  %9932 = vmatprep.mubr.f32.mxu0 0.0
  %9933 = vmatmul.mubr.f32.gmra.mrb[0].mxu0 %v9013
  %v9934 = vpop.f32.mrb[0].mxu0
  %v9935 = vadd.f32 %v8883, %v9934
  %v9936 = vpop.f32.mrb[0].mxu0
  %9937 = vmatprep.mubr.f32.mxu0 0.0
  %9938 = vmatmul.mubr.f32.gmra.mrb[0].mxu0 %v9016
  %v9939 = vpop.f32.mrb[0].mxu0
  %v9940 = vadd.f32 %v8883, %v9939
  %v9941 = vpop.f32.mrb[0].mxu0
  %9942 = vmatprep.mubr.f32.mxu0 0.0
  %9943 = vmatmul.mubr.f32.gmra.mrb[0].mxu0 %v9019
  %v9944 = vpop.f32.mrb[0].mxu0
  %v9945 = vadd.f32 %v8883, %v9944
  %v9946 = vpop.f32.mrb[0].mxu0
  %9947 = vmatprep.mubr.f32.mxu0 0.0
  %9948 = vmatmul.mubr.f32.gmra.mrb[0].mxu0 %v9022
  %v9949 = vpop.f32.mrb[0].mxu0
  %v9950 = vadd.f32 %v8883, %v9949
  %v9951 = vpop.f32.mrb[0].mxu0
  %9952 = vmatprep.mubr.f32.mxu0 0.0
  %9953 = vmatmul.mubr.f32.gmra.mrb[0].mxu0 %v9025
  %v9954 = vpop.f32.mrb[0].mxu0
  %v9955 = vadd.f32 %v8883, %v9954
  %v9956 = vpop.f32.mrb[0].mxu0
  %9957 = vmatprep.mubr.f32.mxu0 0.0
  %9958 = vmatmul.mubr.f32.gmra.mrb[0].mxu0 %v9028
  %v9959 = vpop.f32.mrb[0].mxu0
  %v9960 = vadd.f32 %v8883, %v9959
  %v9961 = vpop.f32.mrb[0].mxu0
  %9962 = vmatprep.mubr.f32.mxu0 0.0
  %9963 = vmatmul.mubr.f32.gmra.mrb[0].mxu0 %v9031
  %v9964 = vpop.f32.mrb[0].mxu0
  %v9965 = vadd.f32 %v8883, %v9964
  %v9966 = vpop.f32.mrb[0].mxu0
  %9967 = vmatprep.mubr.f32.mxu0 0.0
  %9968 = vmatmul.mubr.f32.gmra.mrb[0].mxu0 %v9034
  %v9969 = vpop.f32.mrb[0].mxu0
  %v9970 = vadd.f32 %v8883, %v9969
  %v9971 = vpop.f32.mrb[0].mxu0
  %9972 = vmatprep.mubr.f32.mxu0 0.0
  %9973 = vmatmul.mubr.f32.gmra.mrb[0].mxu0 %v9037
  %v9974 = vpop.f32.mrb[0].mxu0
  %v9975 = vadd.f32 %v8883, %v9974
  %v9976 = vpop.f32.mrb[0].mxu0
  %9977 = vmatprep.mubr.f32.mxu0 0.0
  %9978 = vmatmul.mubr.f32.gmra.mrb[0].mxu0 %v9040
  %v9979 = vpop.f32.mrb[0].mxu0
  %v9980 = vadd.f32 %v8883, %v9979
  %v9981 = vpop.f32.mrb[0].mxu0
  %9982 = vmatprep.mubr.f32.mxu0 0.0
  %9983 = vmatmul.mubr.f32.gmra.mrb[0].mxu0 %v9043
  %v9984 = vpop.f32.mrb[0].mxu0
  %v9985 = vadd.f32 %v8883, %v9984
  %v9986 = vpop.f32.mrb[0].mxu0
  %9987 = vmatprep.mubr.f32.mxu0 0.0
  %9988 = vmatmul.mubr.f32.gmra.mrb[0].mxu0 %v9046
  %v9989 = vpop.f32.mrb[0].mxu0
  %v9990 = vadd.f32 %v8883, %v9989
  %v9991 = vpop.f32.mrb[0].mxu0
  %9992 = vmatprep.mubr.f32.mxu0 0.0
  %9993 = vmatmul.mubr.f32.gmra.mrb[0].mxu0 %v9049
  %v9994 = vpop.f32.mrb[0].mxu0
  %v9995 = vadd.f32 %v8883, %v9994
  %v9996 = vpop.f32.mrb[0].mxu0
  %9997 = vmatprep.mubr.f32.mxu0 0.0
  %9998 = vmatmul.mubr.f32.gmra.mrb[0].mxu0 %v9052
  %v9999 = vpop.f32.mrb[0].mxu0
  %v10000 = vadd.f32 %v8883, %v9999
  %v10001 = vpop.f32.mrb[0].mxu0
  %10002 = vmatprep.mubr.f32.mxu0 0.0
  %10003 = vmatmul.mubr.f32.gmra.mrb[0].mxu0 %v9055
  %v10004 = vpop.f32.mrb[0].mxu0
  %v10005 = vadd.f32 %v8883, %v10004
  %v10006 = vpop.f32.mrb[0].mxu0
  %10007 = vmatprep.mubr.f32.mxu0 0.0
  %10008 = vmatmul.mubr.f32.gmra.mrb[0].mxu0 %v9058
  %v10009 = vpop.f32.mrb[0].mxu0
  %v10010 = vadd.f32 %v8883, %v10009
  %v10011 = vpop.f32.mrb[0].mxu0
  %10012 = vmatprep.mubr.f32.mxu0 0.0
  %10013 = vmatmul.mubr.f32.gmra.mrb[0].mxu0 %v9061
  %v10014 = vpop.f32.mrb[0].mxu0
  %v10015 = vadd.f32 %v8883, %v10014
  %v10016 = vpop.f32.mrb[0].mxu0
  %10017 = vmatprep.mubr.f32.mxu0 0.0
  %10018 = vmatmul.mubr.f32.gmra.mrb[0].mxu0 %v9064
  %v10019 = vpop.f32.mrb[0].mxu0
  %v10020 = vadd.f32 %v8883, %v10019
  %v10021 = vpop.f32.mrb[0].mxu0
  %10022 = vmatprep.mubr.f32.mxu0 0.0
  %10023 = vmatmul.mubr.f32.gmra.mrb[0].mxu0 %v9067
  %v10024 = vpop.f32.mrb[0].mxu0
  %v10025 = vadd.f32 %v8883, %v10024
  %v10026 = vpop.f32.mrb[0].mxu0
  %10027 = vmatprep.mubr.f32.mxu0 0.0
  %10028 = vmatmul.mubr.f32.gmra.mrb[0].mxu0 %v9070
  %v10029 = vpop.f32.mrb[0].mxu0
  %v10030 = vadd.f32 %v8883, %v10029
  %v10031 = vpop.f32.mrb[0].mxu0
  %10032 = vmatprep.mubr.f32.mxu0 0.0
  %10033 = vmatmul.mubr.f32.gmra.mrb[0].mxu0 %v9073
  %v10034 = vpop.f32.mrb[0].mxu0
  %v10035 = vadd.f32 %v8883, %v10034
  %v10036 = vpop.f32.mrb[0].mxu0
  %10037 = vmatprep.mubr.f32.mxu0 0.0
  %10038 = vmatmul.mubr.f32.gmra.mrb[0].mxu0 %v9076
  %v10039 = vpop.f32.mrb[0].mxu0
  %v10040 = vadd.f32 %v8883, %v10039
  %v10041 = vpop.f32.mrb[0].mxu0
  %10042 = vmatprep.mubr.f32.mxu0 0.0
  %10043 = vmatmul.mubr.f32.gmra.mrb[0].mxu0 %v9079
  %v10044 = vpop.f32.mrb[0].mxu0
  %v10045 = vadd.f32 %v8883, %v10044
  %v10046 = vpop.f32.mrb[0].mxu0
  %10047 = vmatprep.mubr.f32.mxu0 0.0
  %10048 = vmatmul.mubr.f32.gmra.mrb[0].mxu0 %v9082
  %v10049 = vpop.f32.mrb[0].mxu0
  %v10050 = vadd.f32 %v8883, %v10049
  %v10051 = vpop.f32.mrb[0].mxu0
  %10052 = vmatprep.mubr.f32.mxu0 0.0
  %10053 = vmatmul.mubr.f32.gmra.mrb[0].mxu0 %v9085
  %v10054 = vpop.f32.mrb[0].mxu0
  %v10055 = vadd.f32 %v8883, %v10054
  %v10056 = vpop.f32.mrb[0].mxu0
  %10057 = vmatprep.mubr.f32.mxu0 0.0
  %10058 = vmatmul.mubr.f32.gmra.mrb[0].mxu0 %v9088
  %v10059 = vpop.f32.mrb[0].mxu0
  %v10060 = vadd.f32 %v8883, %v10059
  %v10061 = vpop.f32.mrb[0].mxu0
  %10062 = vmatprep.mubr.f32.mxu0 0.0
  %10063 = vmatmul.mubr.f32.gmra.mrb[0].mxu0 %v9091
  %v10064 = vpop.f32.mrb[0].mxu0
  %v10065 = vadd.f32 %v8883, %v10064
  %v10066 = vpop.f32.mrb[0].mxu0
  %10067 = vmatprep.mubr.f32.mxu0 0.0
  %10068 = vmatmul.mubr.f32.gmra.mrb[0].mxu0 %v9094
  %v10069 = vpop.f32.mrb[0].mxu0
  %v10070 = vadd.f32 %v8883, %v10069
  %v10071 = vpop.f32.mrb[0].mxu0
  %10072 = vmatprep.mubr.f32.mxu0 0.0
  %10073 = vmatmul.mubr.f32.gmra.mrb[0].mxu0 %v9097
  %v10074 = vpop.f32.mrb[0].mxu0
  %v10075 = vadd.f32 %v8883, %v10074
  %v10076 = vpop.f32.mrb[0].mxu0
  %10077 = vmatprep.mubr.f32.mxu0 0.0
  %10078 = vmatmul.mubr.f32.gmra.mrb[0].mxu0 %v9100
  %v10079 = vpop.f32.mrb[0].mxu0
  %v10080 = vadd.f32 %v8883, %v10079
  %v10081 = vpop.f32.mrb[0].mxu0
  %10082 = vmatprep.mubr.f32.mxu0 0.0
  %10083 = vmatmul.mubr.f32.gmra.mrb[0].mxu0 %v9103
  %v10084 = vpop.f32.mrb[0].mxu0
  %v10085 = vadd.f32 %v8883, %v10084
  %v10086 = vpop.f32.mrb[0].mxu0
  %10087 = vmatprep.mubr.f32.mxu0 0.0
  %10088 = vmatmul.mubr.f32.gmra.mrb[0].mxu0 %v9106
  %v10089 = vpop.f32.mrb[0].mxu0
  %v10090 = vadd.f32 %v8883, %v10089
  %v10091 = vpop.f32.mrb[0].mxu0
  %10092 = vmatprep.mubr.f32.mxu0 0.0
  %10093 = vmatmul.mubr.f32.gmra.mrb[0].mxu0 %v9109
  %v10094 = vpop.f32.mrb[0].mxu0
  %v10095 = vadd.f32 %v8883, %v10094
  %v10096 = vpop.f32.mrb[0].mxu0
  %10097 = vmatprep.mubr.f32.mxu0 0.0
  %10098 = vmatmul.mubr.f32.gmra.mrb[0].mxu0 %v9112
  %v10099 = vpop.f32.mrb[0].mxu0
  %v10100 = vadd.f32 %v8883, %v10099
  %v10101 = vpop.f32.mrb[0].mxu0
  %10102 = vmatprep.mubr.f32.mxu0 0.0
  %10103 = vmatmul.mubr.f32.gmra.mrb[0].mxu0 %v9115
  %v10104 = vpop.f32.mrb[0].mxu0
  %v10105 = vadd.f32 %v8883, %v10104
  %v10106 = vpop.f32.mrb[0].mxu0
  %10107 = vmatprep.mubr.f32.mxu0 0.0
  %10108 = vmatmul.mubr.f32.gmra.mrb[0].mxu0 %v9118
  %v10109 = vpop.f32.mrb[0].mxu0
  %v10110 = vadd.f32 %v8883, %v10109
  %v10111 = vpop.f32.mrb[0].mxu0
  %10112 = vmatprep.mubr.f32.mxu0 0.0
  %10113 = vmatmul.mubr.f32.gmra.mrb[0].mxu0 %v9121
  %v10114 = vpop.f32.mrb[0].mxu0
  %v10115 = vadd.f32 %v8883, %v10114
  %v10116 = vpop.f32.mrb[0].mxu0
  %10117 = vmatprep.mubr.f32.mxu0 0.0
  %10118 = vmatmul.mubr.f32.gmra.mrb[0].mxu0 %v9124
  %v10119 = vpop.f32.mrb[0].mxu0
  %v10120 = vadd.f32 %v8883, %v10119
  %v10121 = vpop.f32.mrb[0].mxu0
  %10122 = vmatprep.mubr.f32.mxu0 0.0
  %10123 = vmatmul.mubr.f32.gmra.mrb[0].mxu0 %v9127
  %v10124 = vpop.f32.mrb[0].mxu0
  %v10125 = vadd.f32 %v8883, %v10124
  %v10126 = vpop.f32.mrb[0].mxu0
  %10127 = vmatprep.mubr.f32.mxu0 0.0
  %10128 = vmatmul.mubr.f32.gmra.mrb[0].mxu0 %v9130
  %v10129 = vpop.f32.mrb[0].mxu0
  %v10130 = vadd.f32 %v8883, %v10129
  %v10131 = vpop.f32.mrb[0].mxu0
  %10132 = vmatprep.mubr.f32.mxu0 0.0
  %10133 = vmatmul.mubr.f32.gmra.mrb[0].mxu0 %v9133
  %v10134 = vpop.f32.mrb[0].mxu0
  %v10135 = vadd.f32 %v8883, %v10134
  %v10136 = vpop.f32.mrb[0].mxu0
  %10137 = vmatprep.mubr.f32.mxu0 0.0
  %10138 = vmatmul.mubr.f32.gmra.mrb[0].mxu0 %v9136
  %v10139 = vpop.f32.mrb[0].mxu0
  %v10140 = vadd.f32 %v8883, %v10139
  %v10141 = vpop.f32.mrb[0].mxu0
  %10142 = vmatprep.mubr.f32.mxu0 0.0
  %10143 = vmatmul.mubr.f32.gmra.mrb[0].mxu0 %v9139
  %v10144 = vpop.f32.mrb[0].mxu0
  %v10145 = vadd.f32 %v8883, %v10144
  %v10146 = vpop.f32.mrb[0].mxu0
  %10147 = vmatprep.mubr.f32.mxu0 0.0
  %10148 = vmatmul.mubr.f32.gmra.mrb[0].mxu0 %v9142
  %v10149 = vpop.f32.mrb[0].mxu0
  %v10150 = vadd.f32 %v8883, %v10149
  %v10151 = vpop.f32.mrb[0].mxu0
  %10152 = vmatprep.mubr.f32.mxu0 0.0
  %10153 = vmatmul.mubr.f32.gmra.mrb[0].mxu0 %v9145
  %v10154 = vpop.f32.mrb[0].mxu0
  %v10155 = vadd.f32 %v8883, %v10154
  %v10156 = vpop.f32.mrb[0].mxu0
  %10157 = vmatprep.mubr.f32.mxu0 0.0
  %10158 = vmatmul.mubr.f32.gmra.mrb[0].mxu0 %v9148
  %v10159 = vpop.f32.mrb[0].mxu0
  %v10160 = vadd.f32 %v8883, %v10159
  %v10161 = vpop.f32.mrb[0].mxu0
  %10162 = vmatprep.mubr.f32.mxu0 0.0
  %10163 = vmatmul.mubr.f32.gmra.mrb[0].mxu0 %v9151
  %v10164 = vpop.f32.mrb[0].mxu0
  %v10165 = vadd.f32 %v8883, %v10164
  %v10166 = vpop.f32.mrb[0].mxu0
  %10167 = vmatprep.mubr.f32.mxu0 0.0
  %10168 = vmatmul.mubr.f32.gmra.mrb[0].mxu0 %v9154
  %v10169 = vpop.f32.mrb[0].mxu0
  %v10170 = vadd.f32 %v8883, %v10169
  %v10171 = vpop.f32.mrb[0].mxu0
  %10172 = vmatprep.mubr.f32.mxu0 0.0
  %10173 = vmatmul.mubr.f32.gmra.mrb[0].mxu0 %v9157
  %v10174 = vpop.f32.mrb[0].mxu0
  %v10175 = vadd.f32 %v8883, %v10174
  %v10176 = vpop.f32.mrb[0].mxu0
  %10177 = vmatprep.mubr.f32.mxu0 0.0
  %10178 = vmatmul.mubr.f32.gmra.mrb[0].mxu0 %v9160
  %v10179 = vpop.f32.mrb[0].mxu0
  %v10180 = vadd.f32 %v8883, %v10179
  %v10181 = vpop.f32.mrb[0].mxu0
  %10182 = vmatprep.mubr.f32.mxu0 0.0
  %10183 = vmatmul.mubr.f32.gmra.mrb[0].mxu0 %v9163
  %v10184 = vpop.f32.mrb[0].mxu0
  %v10185 = vadd.f32 %v8883, %v10184
  %v10186 = vpop.f32.mrb[0].mxu0
  %10187 = vmatprep.mubr.f32.mxu0 0.0
  %10188 = vmatmul.mubr.f32.gmra.mrb[0].mxu0 %v9166
  %v10189 = vpop.f32.mrb[0].mxu0
  %v10190 = vadd.f32 %v8883, %v10189
  %v10191 = vpop.f32.mrb[0].mxu0
  %10192 = vmatprep.mubr.f32.mxu0 0.0
  %10193 = vmatmul.mubr.f32.gmra.mrb[0].mxu0 %v9169
  %v10194 = vpop.f32.mrb[0].mxu0
  %v10195 = vadd.f32 %v8883, %v10194
  %v10196 = vpop.f32.mrb[0].mxu0
  %10197 = vmatprep.mubr.f32.mxu0 0.0
  %10198 = vmatmul.mubr.f32.gmra.mrb[0].mxu0 %v9172
  %v10199 = vpop.f32.mrb[0].mxu0
  %v10200 = vadd.f32 %v8883, %v10199
  %v10201 = vpop.f32.mrb[0].mxu0
  %10202 = vmatprep.mubr.f32.mxu0 0.0
  %10203 = vmatmul.mubr.f32.gmra.mrb[0].mxu0 %v9175
  %v10204 = vpop.f32.mrb[0].mxu0
  %v10205 = vadd.f32 %v8883, %v10204
  %v10206 = vpop.f32.mrb[0].mxu0
  %10207 = vmatprep.mubr.f32.mxu0 0.0
  %10208 = vmatmul.mubr.f32.gmra.mrb[0].mxu0 %v9178
  %v10209 = vpop.f32.mrb[0].mxu0
  %v10210 = vadd.f32 %v8883, %v10209
  %v10211 = vpop.f32.mrb[0].mxu0
  %10212 = vmatprep.mubr.f32.mxu0 0.0
  %10213 = vmatmul.mubr.f32.gmra.mrb[0].mxu0 %v9181
  %v10214 = vpop.f32.mrb[0].mxu0
  %v10215 = vadd.f32 %v8883, %v10214
  %v10216 = vpop.f32.mrb[0].mxu0
  %10217 = vmatprep.mubr.f32.mxu0 0.0
  %10218 = vmatmul.mubr.f32.gmra.mrb[0].mxu0 %v9184
  %v10219 = vpop.f32.mrb[0].mxu0
  %v10220 = vadd.f32 %v8883, %v10219
  %v10221 = vpop.f32.mrb[0].mxu0
  %10222 = vmatprep.mubr.f32.mxu0 0.0
  %10223 = vmatmul.mubr.f32.gmra.mrb[0].mxu0 %v9187
  %v10224 = vpop.f32.mrb[0].mxu0
  %v10225 = vadd.f32 %v8883, %v10224
  %v10226 = vpop.f32.mrb[0].mxu0
  %10227 = vmatprep.mubr.f32.mxu0 0.0
  %10228 = vmatmul.mubr.f32.gmra.mrb[0].mxu0 %v9190
  %v10229 = vpop.f32.mrb[0].mxu0
  %v10230 = vadd.f32 %v8883, %v10229
  %v10231 = vpop.f32.mrb[0].mxu0
  %10232 = vmatprep.mubr.f32.mxu0 0.0
  %10233 = vmatmul.mubr.f32.gmra.mrb[0].mxu0 %v9193
  %v10234 = vpop.f32.mrb[0].mxu0
  %v10235 = vadd.f32 %v8883, %v10234
  %v10236 = vpop.f32.mrb[0].mxu0
  %10237 = vmatprep.mubr.f32.mxu0 0.0
  %10238 = vmatmul.mubr.f32.gmra.mrb[0].mxu0 %v9196
  %v10239 = vpop.f32.mrb[0].mxu0
  %v10240 = vadd.f32 %v8883, %v10239
  %v10241 = vpop.f32.mrb[0].mxu0
  %10242 = vmatprep.mubr.f32.mxu0 0.0
  %10243 = vmatmul.mubr.f32.gmra.mrb[0].mxu0 %v9199
  %v10244 = vpop.f32.mrb[0].mxu0
  %v10245 = vadd.f32 %v8883, %v10244
  %v10246 = vpop.f32.mrb[0].mxu0
  %10247 = vmatprep.mubr.f32.mxu0 0.0
  %10248 = vmatmul.mubr.f32.gmra.mrb[0].mxu0 %v9202
  %v10249 = vpop.f32.mrb[0].mxu0
  %v10250 = vadd.f32 %v8883, %v10249
  %v10251 = vpop.f32.mrb[0].mxu0
  %10252 = vmatprep.mubr.f32.mxu0 0.0
  %10253 = vmatmul.mubr.f32.gmra.mrb[0].mxu0 %v9205
  %v10254 = vpop.f32.mrb[0].mxu0
  %v10255 = vadd.f32 %v8883, %v10254
  %v10256 = vpop.f32.mrb[0].mxu0
  %10257 = vmatprep.mubr.f32.mxu0 0.0
  %10258 = vmatmul.mubr.f32.gmra.mrb[0].mxu0 %v9208
  %v10259 = vpop.f32.mrb[0].mxu0
  %v10260 = vadd.f32 %v8883, %v10259
  %v10261 = vpop.f32.mrb[0].mxu0
  %10262 = vmatprep.mubr.f32.mxu0 0.0
  %10263 = vmatmul.mubr.f32.gmra.mrb[0].mxu0 %v9211
  %v10264 = vpop.f32.mrb[0].mxu0
  %v10265 = vadd.f32 %v8883, %v10264
  %v10266 = vpop.f32.mrb[0].mxu0
  %10267 = vmatprep.mubr.f32.mxu0 0.0
  %10268 = vmatmul.mubr.f32.gmra.mrb[0].mxu0 %v9214
  %v10269 = vpop.f32.mrb[0].mxu0
  %v10270 = vadd.f32 %v8883, %v10269
  %v10271 = vpop.f32.mrb[0].mxu0
  %10272 = vmatprep.mubr.f32.mxu0 0.0
  %10273 = vmatmul.mubr.f32.gmra.mrb[0].mxu0 %v9217
  %v10274 = vpop.f32.mrb[0].mxu0
  %v10275 = vadd.f32 %v8883, %v10274
  %v10276 = vpop.f32.mrb[0].mxu0
  %10277 = vmatprep.mubr.f32.mxu0 0.0
  %10278 = vmatmul.mubr.f32.gmra.mrb[0].mxu0 %v9220
  %v10279 = vpop.f32.mrb[0].mxu0
  %v10280 = vadd.f32 %v8883, %v10279
  %v10281 = vpop.f32.mrb[0].mxu0
  %10282 = vmatprep.mubr.f32.mxu0 0.0
  %10283 = vmatmul.mubr.f32.gmra.mrb[0].mxu0 %v9223
  %v10284 = vpop.f32.mrb[0].mxu0
  %v10285 = vadd.f32 %v8883, %v10284
  %v10286 = vpop.f32.mrb[0].mxu0
  %10287 = vmatprep.mubr.f32.mxu0 0.0
  %10288 = vmatmul.mubr.f32.gmra.mrb[0].mxu0 %v9226
  %v10289 = vpop.f32.mrb[0].mxu0
  %v10290 = vadd.f32 %v8883, %v10289
  %v10291 = vpop.f32.mrb[0].mxu0
  %10292 = vmatprep.mubr.f32.mxu0 0.0
  %10293 = vmatmul.mubr.f32.gmra.mrb[0].mxu0 %v9229
  %v10294 = vpop.f32.mrb[0].mxu0
  %v10295 = vadd.f32 %v8883, %v10294
  %v10296 = vpop.f32.mrb[0].mxu0
  %10297 = vmatprep.mubr.f32.mxu0 0.0
  %10298 = vmatmul.mubr.f32.gmra.mrb[0].mxu0 %v9232
  %v10299 = vpop.f32.mrb[0].mxu0
  %v10300 = vadd.f32 %v8883, %v10299
  %v10301 = vpop.f32.mrb[0].mxu0
  %10302 = vmatprep.mubr.f32.mxu0 0.0
  %10303 = vmatmul.mubr.f32.gmra.mrb[0].mxu0 %v9235
  %v10304 = vpop.f32.mrb[0].mxu0
  %v10305 = vadd.f32 %v8883, %v10304
  %v10306 = vpop.f32.mrb[0].mxu0
  %10307 = vmatprep.mubr.f32.mxu0 0.0
  %10308 = vmatmul.mubr.f32.gmra.mrb[0].mxu0 %v9238
  %v10309 = vpop.f32.mrb[0].mxu0
  %v10310 = vadd.f32 %v8883, %v10309
  %v10311 = vpop.f32.mrb[0].mxu0
  %10312 = vmatprep.mubr.f32.mxu0 0.0
  %10313 = vmatmul.mubr.f32.gmra.mrb[0].mxu0 %v9241
  %v10314 = vpop.f32.mrb[0].mxu0
  %v10315 = vadd.f32 %v8883, %v10314
  %v10316 = vpop.f32.mrb[0].mxu0
  %10317 = vmatprep.mubr.f32.mxu0 0.0
  %10318 = vmatmul.mubr.f32.gmra.mrb[0].mxu0 %v9244
  %v10319 = vpop.f32.mrb[0].mxu0
  %v10320 = vadd.f32 %v8883, %v10319
  %v10321 = vpop.f32.mrb[0].mxu0
  %10322 = vmatprep.mubr.f32.mxu0 0.0
  %10323 = vmatmul.mubr.f32.gmra.mrb[0].mxu0 %v9247
  %v10324 = vpop.f32.mrb[0].mxu0
  %v10325 = vadd.f32 %v8883, %v10324
  %v10326 = vpop.f32.mrb[0].mxu0
  %10327 = vmatprep.mubr.f32.mxu0 0.0
  %10328 = vmatmul.mubr.f32.gmra.mrb[0].mxu0 %v9250
  %v10329 = vpop.f32.mrb[0].mxu0
  %v10330 = vadd.f32 %v8883, %v10329
  %v10331 = vpop.f32.mrb[0].mxu0
  %10332 = vmatprep.mubr.f32.mxu0 0.0
  %10333 = vmatmul.mubr.f32.gmra.mrb[0].mxu0 %v9253
  %v10334 = vpop.f32.mrb[0].mxu0
  %v10335 = vadd.f32 %v8883, %v10334
  %v10336 = vpop.f32.mrb[0].mxu0
  %10337 = vmatprep.mubr.f32.mxu0 0.0
  %10338 = vmatmul.mubr.f32.gmra.mrb[0].mxu0 %v9256
  %v10339 = vpop.f32.mrb[0].mxu0
  %v10340 = vadd.f32 %v8883, %v10339
  %v10341 = vpop.f32.mrb[0].mxu0
  %10342 = vmatprep.mubr.f32.mxu0 0.0
  %10343 = vmatmul.mubr.f32.gmra.mrb[0].mxu0 %v9259
  %v10344 = vpop.f32.mrb[0].mxu0
  %v10345 = vadd.f32 %v8883, %v10344
  %v10346 = vpop.f32.mrb[0].mxu0
  %10347 = vmatprep.mubr.f32.mxu0 0.0
  %10348 = vmatmul.mubr.f32.gmra.mrb[0].mxu0 %v9262
  %v10349 = vpop.f32.mrb[0].mxu0
  %v10350 = vadd.f32 %v8883, %v10349
  %v10351 = vpop.f32.mrb[0].mxu0
  %10352 = vmatprep.mubr.f32.mxu0 0.0
  %10353 = vmatmul.mubr.f32.gmra.mrb[0].mxu0 %v9265
  %v10354 = vpop.f32.mrb[0].mxu0
  %v10355 = vadd.f32 %v8883, %v10354
  %v10356 = vpop.f32.mrb[0].mxu0
  %10357 = vmatprep.mubr.f32.mxu0 0.0
  %10358 = vmatmul.mubr.f32.gmra.mrb[0].mxu0 %v9268
  %v10359 = vpop.f32.mrb[0].mxu0
  %v10360 = vadd.f32 %v8883, %v10359
  %v10361 = vpop.f32.mrb[0].mxu0
  %10362 = vmatprep.mubr.f32.mxu0 0.0
  %10363 = vmatmul.mubr.f32.gmra.mrb[0].mxu0 %v9271
  %v10364 = vpop.f32.mrb[0].mxu0
  %v10365 = vadd.f32 %v8883, %v10364
  %v10366 = vpop.f32.mrb[0].mxu0
  %10367 = vmatprep.mubr.f32.mxu0 0.0
  %10368 = vmatmul.mubr.f32.gmra.mrb[0].mxu0 %v9274
  %v10369 = vpop.f32.mrb[0].mxu0
  %v10370 = vadd.f32 %v8883, %v10369
  %v10371 = vpop.f32.mrb[0].mxu0
  %10372 = vmatprep.mubr.f32.mxu0 0.0
  %10373 = vmatmul.mubr.f32.gmra.mrb[0].mxu0 %v9277
  %v10374 = vpop.f32.mrb[0].mxu0
  %v10375 = vadd.f32 %v8883, %v10374
  %v10376 = vpop.f32.mrb[0].mxu0
  %10377 = vmatprep.mubr.f32.mxu0 0.0
  %10378 = vmatmul.mubr.f32.gmra.mrb[0].mxu0 %v9280
  %v10379 = vpop.f32.mrb[0].mxu0
  %v10380 = vadd.f32 %v8883, %v10379
  %v10381 = vpop.f32.mrb[0].mxu0
  %10382 = vmatprep.mubr.f32.mxu0 0.0
  %10383 = vmatmul.mubr.f32.gmra.mrb[0].mxu0 %v9283
  %v10384 = vpop.f32.mrb[0].mxu0
  %v10385 = vadd.f32 %v8883, %v10384
  %v10386 = vpop.f32.mrb[0].mxu0
  %10387 = vmatprep.mubr.f32.mxu0 0.0
  %10388 = vmatmul.mubr.f32.gmra.mrb[0].mxu0 %v9286
  %v10389 = vpop.f32.mrb[0].mxu0
  %v10390 = vadd.f32 %v8883, %v10389
  %v10391 = vpop.f32.mrb[0].mxu0
  %10392 = vmatprep.mubr.f32.mxu0 0.0
  %10393 = vmatmul.mubr.f32.gmra.mrb[0].mxu0 %v9289
  %v10394 = vpop.f32.mrb[0].mxu0
  %v10395 = vadd.f32 %v8883, %v10394
  %v10396 = vpop.f32.mrb[0].mxu0
  %10397 = vmatprep.mubr.f32.mxu0 0.0
  %10398 = vmatmul.mubr.f32.gmra.mrb[0].mxu0 %v9292
  %v10399 = vpop.f32.mrb[0].mxu0
  %v10400 = vadd.f32 %v8883, %v10399
  %v10401 = vpop.f32.mrb[0].mxu0
  %10402 = vmatprep.mubr.f32.mxu0 0.0
  %10403 = vmatmul.mubr.f32.gmra.mrb[0].mxu0 %v9295
  %v10404 = vpop.f32.mrb[0].mxu0
  %v10405 = vadd.f32 %v8883, %v10404
  %v10406 = vpop.f32.mrb[0].mxu0
  %10407 = vmatprep.mubr.f32.mxu0 0.0
  %10408 = vmatmul.mubr.f32.gmra.mrb[0].mxu0 %v9298
  %v10409 = vpop.f32.mrb[0].mxu0
  %v10410 = vadd.f32 %v8883, %v10409
  %v10411 = vpop.f32.mrb[0].mxu0
  %10412 = vmatprep.mubr.f32.mxu0 0.0
  %10413 = vmatmul.mubr.f32.gmra.mrb[0].mxu0 %v9301
  %v10414 = vpop.f32.mrb[0].mxu0
  %v10415 = vadd.f32 %v8883, %v10414
  %v10416 = vpop.f32.mrb[0].mxu0
  %10417 = vmatprep.mubr.f32.mxu0 0.0
  %10418 = vmatmul.mubr.f32.gmra.mrb[0].mxu0 %v9304
  %v10419 = vpop.f32.mrb[0].mxu0
  %v10420 = vadd.f32 %v8883, %v10419
  %v10421 = vpop.f32.mrb[0].mxu0
  %10422 = vmatprep.mubr.f32.mxu0 0.0
  %10423 = vmatmul.mubr.f32.gmra.mrb[0].mxu0 %v9307
  %v10424 = vpop.f32.mrb[0].mxu0
  %v10425 = vadd.f32 %v8883, %v10424
  %v10426 = vpop.f32.mrb[0].mxu0
  %10427 = vmatprep.mubr.f32.mxu0 0.0
  %10428 = vmatmul.mubr.f32.gmra.mrb[0].mxu0 %v9310
  %v10429 = vpop.f32.mrb[0].mxu0
  %v10430 = vadd.f32 %v8883, %v10429
  %v10431 = vpop.f32.mrb[0].mxu0
  %10432 = vmatprep.mubr.f32.mxu0 0.0
  %10433 = vmatmul.mubr.f32.gmra.mrb[0].mxu0 %v9313
  %v10434 = vpop.f32.mrb[0].mxu0
  %v10435 = vadd.f32 %v8883, %v10434
  %v10436 = vpop.f32.mrb[0].mxu0
  %10437 = vmatprep.mubr.f32.mxu0 0.0
  %10438 = vmatmul.mubr.f32.gmra.mrb[0].mxu0 %v9316
  %v10439 = vpop.f32.mrb[0].mxu0
  %v10440 = vadd.f32 %v8883, %v10439
  %v10441 = vpop.f32.mrb[0].mxu0
  %10442 = vmatprep.mubr.f32.mxu0 0.0
  %10443 = vmatmul.mubr.f32.gmra.mrb[0].mxu0 %v9319
  %v10444 = vpop.f32.mrb[0].mxu0
  %v10445 = vadd.f32 %v8883, %v10444
  %v10446 = vpop.f32.mrb[0].mxu0
  %10447 = vmatprep.mubr.f32.mxu0 0.0
  %10448 = vmatmul.mubr.f32.gmra.mrb[0].mxu0 %v9322
  %v10449 = vpop.f32.mrb[0].mxu0
  %v10450 = vadd.f32 %v8883, %v10449
  %v10451 = vpop.f32.mrb[0].mxu0
  %10452 = vmatprep.mubr.f32.mxu0 0.0
  %10453 = vmatmul.mubr.f32.gmra.mrb[0].mxu0 %v9325
  %v10454 = vpop.f32.mrb[0].mxu0
  %v10455 = vadd.f32 %v8883, %v10454
  %v10456 = vpop.f32.mrb[0].mxu0
  %10457 = vmatprep.mubr.f32.mxu0 0.0
  %10458 = vmatmul.mubr.f32.gmra.mrb[0].mxu0 %v9328
  %v10459 = vpop.f32.mrb[0].mxu0
  %v10460 = vadd.f32 %v8883, %v10459
  %v10461 = vpop.f32.mrb[0].mxu0
  %10462 = vmatprep.mubr.f32.mxu0 0.0
  %10463 = vmatmul.mubr.f32.gmra.mrb[0].mxu0 %v9331
  %v10464 = vpop.f32.mrb[0].mxu0
  %v10465 = vadd.f32 %v8883, %v10464
  %v10466 = vpop.f32.mrb[0].mxu0
  %10467 = vmatprep.mubr.f32.mxu0 0.0
  %10468 = vmatmul.mubr.f32.gmra.mrb[0].mxu0 %v9334
  %v10469 = vpop.f32.mrb[0].mxu0
  %v10470 = vadd.f32 %v8883, %v10469
  %v10471 = vpop.f32.mrb[0].mxu0
  %10472 = vmatprep.mubr.f32.mxu0 0.0
  %10473 = vmatmul.mubr.f32.gmra.mrb[0].mxu0 %v9337
  %v10474 = vpop.f32.mrb[0].mxu0
  %v10475 = vadd.f32 %v8883, %v10474
  %v10476 = vpop.f32.mrb[0].mxu0
  %10477 = vmatprep.mubr.f32.mxu0 0.0
  %10478 = vmatmul.mubr.f32.gmra.mrb[0].mxu0 %v9340
  %v10479 = vpop.f32.mrb[0].mxu0
  %v10480 = vadd.f32 %v8883, %v10479
  %v10481 = vpop.f32.mrb[0].mxu0
  %10482 = vmatprep.mubr.f32.mxu0 0.0
  %10483 = vmatmul.mubr.f32.gmra.mrb[0].mxu0 %v9343
  %v10484 = vpop.f32.mrb[0].mxu0
  %v10485 = vadd.f32 %v8883, %v10484
  %v10486 = vpop.f32.mrb[0].mxu0
  %10487 = vmatprep.mubr.f32.mxu0 0.0
  %10488 = vmatmul.mubr.f32.gmra.mrb[0].mxu0 %v9346
  %v10489 = vpop.f32.mrb[0].mxu0
  %v10490 = vadd.f32 %v8883, %v10489
  %v10491 = vpop.f32.mrb[0].mxu0
  %10492 = vmatprep.mubr.f32.mxu0 0.0
  %10493 = vmatmul.mubr.f32.gmra.mrb[0].mxu0 %v9349
  %v10494 = vpop.f32.mrb[0].mxu0
  %v10495 = vadd.f32 %v8883, %v10494
  %v10496 = vpop.f32.mrb[0].mxu0
  %10497 = vmatprep.mubr.f32.mxu0 0.0
  %10498 = vmatmul.mubr.f32.gmra.mrb[0].mxu0 %v9352
  %v10499 = vpop.f32.mrb[0].mxu0
  %v10500 = vadd.f32 %v8883, %v10499
  %v10501 = vpop.f32.mrb[0].mxu0
  %10502 = vmatprep.mubr.f32.mxu0 0.0
  %10503 = vmatmul.mubr.f32.gmra.mrb[0].mxu0 %v9355
  %v10504 = vpop.f32.mrb[0].mxu0
  %v10505 = vadd.f32 %v8883, %v10504
  %v10506 = vpop.f32.mrb[0].mxu0
  %10507 = vmatprep.mubr.f32.mxu0 0.0
  %10508 = vmatmul.mubr.f32.gmra.mrb[0].mxu0 %v9358
  %v10509 = vpop.f32.mrb[0].mxu0
  %v10510 = vadd.f32 %v8883, %v10509
  %v10511 = vpop.f32.mrb[0].mxu0
  %10512 = vmatprep.mubr.f32.mxu0 0.0
  %10513 = vmatmul.mubr.f32.gmra.mrb[0].mxu0 %v9361
  %v10514 = vpop.f32.mrb[0].mxu0
  %v10515 = vadd.f32 %v8883, %v10514
  %v10516 = vpop.f32.mrb[0].mxu0
  %10517 = vmatprep.mubr.f32.mxu0 0.0
  %10518 = vmatmul.mubr.f32.gmra.mrb[0].mxu0 %v9364
  %v10519 = vpop.f32.mrb[0].mxu0
  %v10520 = vadd.f32 %v8883, %v10519
  %v10521 = vpop.f32.mrb[0].mxu0
  %10522 = vmatprep.mubr.f32.mxu0 0.0
  %10523 = vmatmul.mubr.f32.gmra.mrb[0].mxu0 %v9367
  %v10524 = vpop.f32.mrb[0].mxu0
  %v10525 = vadd.f32 %v8883, %v10524
  %v10526 = vpop.f32.mrb[0].mxu0
  %10527 = vmatprep.mubr.f32.mxu0 0.0
  %10528 = vmatmul.mubr.f32.gmra.mrb[0].mxu0 %v9370
  %v10529 = vpop.f32.mrb[0].mxu0
  %v10530 = vadd.f32 %v8883, %v10529
  %v10531 = vpop.f32.mrb[0].mxu0
  %10532 = vmatprep.mubr.f32.mxu0 0.0
  %10533 = vmatmul.mubr.f32.gmra.mrb[0].mxu0 %v9373
  %v10534 = vpop.f32.mrb[0].mxu0
  %v10535 = vadd.f32 %v8883, %v10534
  %v10536 = vpop.f32.mrb[0].mxu0
  %10537 = vmatprep.mubr.f32.mxu0 0.0
  %10538 = vmatmul.mubr.f32.gmra.mrb[0].mxu0 %v9376
  %v10539 = vpop.f32.mrb[0].mxu0
  %v10540 = vadd.f32 %v8883, %v10539
  %v10541 = vpop.f32.mrb[0].mxu0
  %10542 = vmatprep.mubr.f32.mxu0 0.0
  %10543 = vmatmul.mubr.f32.gmra.mrb[0].mxu0 %v9379
  %v10544 = vpop.f32.mrb[0].mxu0
  %v10545 = vadd.f32 %v8883, %v10544
  %v10546 = vpop.f32.mrb[0].mxu0
  %10547 = vmatprep.mubr.f32.mxu0 0.0
  %10548 = vmatmul.mubr.f32.gmra.mrb[0].mxu0 %v9382
  %v10549 = vpop.f32.mrb[0].mxu0
  %v10550 = vadd.f32 %v8883, %v10549
  %v10551 = vpop.f32.mrb[0].mxu0
  %10552 = vmatprep.mubr.f32.mxu0 0.0
  %10553 = vmatmul.mubr.f32.gmra.mrb[0].mxu0 %v9385
  %v10554 = vpop.f32.mrb[0].mxu0
  %v10555 = vadd.f32 %v8883, %v10554
  %v10556 = vpop.f32.mrb[0].mxu0
  %10557 = vmatprep.mubr.f32.mxu0 0.0
  %10558 = vmatmul.mubr.f32.gmra.mrb[0].mxu0 %v9388
  %v10559 = vpop.f32.mrb[0].mxu0
  %v10560 = vadd.f32 %v8883, %v10559
  %v10561 = vpop.f32.mrb[0].mxu0
  %10562 = vmatprep.mubr.f32.mxu0 0.0
  %10563 = vmatmul.mubr.f32.gmra.mrb[0].mxu0 %v9391
  %v10564 = vpop.f32.mrb[0].mxu0
  %v10565 = vadd.f32 %v8883, %v10564
  %v10566 = vpop.f32.mrb[0].mxu0
  %10567 = vmatprep.mubr.f32.mxu0 0.0
  %10568 = vmatmul.mubr.f32.gmra.mrb[0].mxu0 %v9394
  %v10569 = vpop.f32.mrb[0].mxu0
  %v10570 = vadd.f32 %v8883, %v10569
  %v10571 = vpop.f32.mrb[0].mxu0
  %10572 = vmatprep.mubr.f32.mxu0 0.0
  %10573 = vmatmul.mubr.f32.gmra.mrb[0].mxu0 %v9397
  %v10574 = vpop.f32.mrb[0].mxu0
  %v10575 = vadd.f32 %v8883, %v10574
  %v10576 = vpop.f32.mrb[0].mxu0
  %10577 = vmatprep.mubr.f32.mxu0 0.0
  %10578 = vmatmul.mubr.f32.gmra.mrb[0].mxu0 %v9400
  %v10579 = vpop.f32.mrb[0].mxu0
  %v10580 = vadd.f32 %v8883, %v10579
  %v10581 = vpop.f32.mrb[0].mxu0
  %10582 = vmatprep.mubr.f32.mxu0 0.0
  %10583 = vmatmul.mubr.f32.gmra.mrb[0].mxu0 %v9403
  %v10584 = vpop.f32.mrb[0].mxu0
  %v10585 = vadd.f32 %v8883, %v10584
  %v10586 = vpop.f32.mrb[0].mxu0
  %10587 = vmatprep.mubr.f32.mxu0 0.0
  %10588 = vmatmul.mubr.f32.gmra.mrb[0].mxu0 %v9406
  %v10589 = vpop.f32.mrb[0].mxu0
  %v10590 = vadd.f32 %v8883, %v10589
  %v10591 = vpop.f32.mrb[0].mxu0
  %10592 = vmatprep.mubr.f32.mxu0 0.0
  %10593 = vmatmul.mubr.f32.gmra.mrb[0].mxu0 %v9409
  %v10594 = vpop.f32.mrb[0].mxu0
  %v10595 = vadd.f32 %v8883, %v10594
  %v10596 = vpop.f32.mrb[0].mxu0
  %10597 = vmatprep.mubr.f32.mxu0 0.0
  %10598 = vmatmul.mubr.f32.gmra.mrb[0].mxu0 %v9412
  %v10599 = vpop.f32.mrb[0].mxu0
  %v10600 = vadd.f32 %v8883, %v10599
  %v10601 = vpop.f32.mrb[0].mxu0
  %10602 = vmatprep.mubr.f32.mxu0 0.0
  %10603 = vmatmul.mubr.f32.gmra.mrb[0].mxu0 %v9415
  %v10604 = vpop.f32.mrb[0].mxu0
  %v10605 = vadd.f32 %v8883, %v10604
  %v10606 = vpop.f32.mrb[0].mxu0
  %10607 = vmatprep.mubr.f32.mxu0 0.0
  %10608 = vmatmul.mubr.f32.gmra.mrb[0].mxu0 %v9418
  %v10609 = vpop.f32.mrb[0].mxu0
  %v10610 = vadd.f32 %v8883, %v10609
  %v10611 = vpop.f32.mrb[0].mxu0
  %10612 = vmatprep.mubr.f32.mxu0 0.0
  %10613 = vmatmul.mubr.f32.gmra.mrb[0].mxu0 %v9421
  %v10614 = vpop.f32.mrb[0].mxu0
  %v10615 = vadd.f32 %v8883, %v10614
  %v10616 = vpop.f32.mrb[0].mxu0
  %10617 = vmatprep.mubr.f32.mxu0 0.0
  %10618 = vmatmul.mubr.f32.gmra.mrb[0].mxu0 %v9424
  %v10619 = vpop.f32.mrb[0].mxu0
  %v10620 = vadd.f32 %v8883, %v10619
  %v10621 = vpop.f32.mrb[0].mxu0
  %10622 = vmatprep.mubr.f32.mxu0 0.0
  %10623 = vmatmul.mubr.f32.gmra.mrb[0].mxu0 %v9427
  %v10624 = vpop.f32.mrb[0].mxu0
  %v10625 = vadd.f32 %v8883, %v10624
  %v10626 = vpop.f32.mrb[0].mxu0
  %10627 = vmatprep.mubr.f32.mxu0 0.0
  %10628 = vmatmul.mubr.f32.gmra.mrb[0].mxu0 %v9430
  %v10629 = vpop.f32.mrb[0].mxu0
  %v10630 = vadd.f32 %v8883, %v10629
  %v10631 = vpop.f32.mrb[0].mxu0
  %10632 = vmatprep.mubr.f32.mxu0 0.0
  %10633 = vmatmul.mubr.f32.gmra.mrb[0].mxu0 %v9433
  %v10634 = vpop.f32.mrb[0].mxu0
  %v10635 = vadd.f32 %v8883, %v10634
  %v10636 = vpop.f32.mrb[0].mxu0
  %10637 = vmatprep.mubr.f32.mxu0 0.0
  %10638 = vmatmul.mubr.f32.gmra.mrb[0].mxu0 %v9436
  %v10639 = vpop.f32.mrb[0].mxu0
  %v10640 = vadd.f32 %v8883, %v10639
  %v10641 = vpop.f32.mrb[0].mxu0
  %10642 = vmatprep.mubr.f32.mxu0 0.0
  %10643 = vmatmul.mubr.f32.gmra.mrb[0].mxu0 %v9439
  %v10644 = vpop.f32.mrb[0].mxu0
  %v10645 = vadd.f32 %v8883, %v10644
  %v10646 = vpop.f32.mrb[0].mxu0
  %10647 = vmatprep.mubr.f32.mxu0 0.0
  %10648 = vmatmul.mubr.f32.gmra.mrb[0].mxu0 %v9442
  %v10649 = vpop.f32.mrb[0].mxu0
  %v10650 = vadd.f32 %v8883, %v10649
  %v10651 = vpop.f32.mrb[0].mxu0
  %10652 = vmatprep.mubr.f32.mxu0 0.0
  %10653 = vmatmul.mubr.f32.gmra.mrb[0].mxu0 %v9445
  %v10654 = vpop.f32.mrb[0].mxu0
  %v10655 = vadd.f32 %v8883, %v10654
  %v10656 = vpop.f32.mrb[0].mxu0
  %10657 = vmatprep.mubr.f32.mxu0 0.0
  %10658 = vmatmul.mubr.f32.gmra.mrb[0].mxu0 %v9448
  %v10659 = vpop.f32.mrb[0].mxu0
  %v10660 = vadd.f32 %v8883, %v10659
  %v10661 = vpop.f32.mrb[0].mxu0
  %10662 = vmatprep.mubr.f32.mxu0 0.0
  %10663 = vmatmul.mubr.f32.gmra.mrb[0].mxu0 %v9451
  %v10664 = vpop.f32.mrb[0].mxu0
  %v10665 = vadd.f32 %v8883, %v10664
  %v10666 = vpop.f32.mrb[0].mxu0
  %10667 = vmatprep.mubr.f32.mxu0 0.0
  %10668 = vmatmul.mubr.f32.gmra.mrb[0].mxu0 %v9454
  %v10669 = vpop.f32.mrb[0].mxu0
  %v10670 = vadd.f32 %v8883, %v10669
  %v10671 = vpop.f32.mrb[0].mxu0
  %10672 = vmatprep.mubr.f32.mxu0 0.0
  %10673 = vmatmul.mubr.f32.gmra.mrb[0].mxu0 %v9457
  %v10674 = vpop.f32.mrb[0].mxu0
  %v10675 = vadd.f32 %v8883, %v10674
  %v10676 = vpop.f32.mrb[0].mxu0
  %10677 = vmatprep.mubr.f32.mxu0 0.0
  %10678 = vmatmul.mubr.f32.gmra.mrb[0].mxu0 %v9460
  %v10679 = vpop.f32.mrb[0].mxu0
  %v10680 = vadd.f32 %v8883, %v10679
  %v10681 = vpop.f32.mrb[0].mxu0
  %10682 = vmatprep.mubr.f32.mxu0 0.0
  %10683 = vmatmul.mubr.f32.gmra.mrb[0].mxu0 %v9463
  %v10684 = vpop.f32.mrb[0].mxu0
  %v10685 = vadd.f32 %v8883, %v10684
  %v10686 = vpop.f32.mrb[0].mxu0
  %10687 = vmatprep.mubr.f32.mxu0 0.0
  %10688 = vmatmul.mubr.f32.gmra.mrb[0].mxu0 %v9466
  %v10689 = vpop.f32.mrb[0].mxu0
  %v10690 = vadd.f32 %v8883, %v10689
  %v10691 = vpop.f32.mrb[0].mxu0
  %10692 = vmatprep.mubr.f32.mxu0 0.0
  %10693 = vmatmul.mubr.f32.gmra.mrb[0].mxu0 %v9469
  %v10694 = vpop.f32.mrb[0].mxu0
  %v10695 = vadd.f32 %v8883, %v10694
  %v10696 = vpop.f32.mrb[0].mxu0
  %10697 = vmatprep.mubr.f32.mxu0 0.0
  %10698 = vmatmul.mubr.f32.gmra.mrb[0].mxu0 %v9472
  %v10699 = vpop.f32.mrb[0].mxu0
  %v10700 = vadd.f32 %v8883, %v10699
  %v10701 = vpop.f32.mrb[0].mxu0
  %10702 = vmatprep.mubr.f32.mxu0 0.0
  %10703 = vmatmul.mubr.f32.gmra.mrb[0].mxu0 %v9475
  %v10704 = vpop.f32.mrb[0].mxu0
  %v10705 = vadd.f32 %v8883, %v10704
  %v10706 = vpop.f32.mrb[0].mxu0
  %10707 = vmatprep.mubr.f32.mxu0 0.0
  %10708 = vmatmul.mubr.f32.gmra.mrb[0].mxu0 %v9478
  %v10709 = vpop.f32.mrb[0].mxu0
  %v10710 = vadd.f32 %v8883, %v10709
  %v10711 = vpop.f32.mrb[0].mxu0
  %10712 = vmatprep.mubr.f32.mxu0 0.0
  %10713 = vmatmul.mubr.f32.gmra.mrb[0].mxu0 %v9481
  %v10714 = vpop.f32.mrb[0].mxu0
  %v10715 = vadd.f32 %v8883, %v10714
  %v10716 = vpop.f32.mrb[0].mxu0
  %10717 = vmatprep.mubr.f32.mxu0 0.0
  %10718 = vmatmul.mubr.f32.gmra.mrb[0].mxu0 %v9484
  %v10719 = vpop.f32.mrb[0].mxu0
  %v10720 = vadd.f32 %v8883, %v10719
  %v10721 = vpop.f32.mrb[0].mxu0
  %10722 = vmatprep.mubr.f32.mxu0 0.0
  %10723 = vmatmul.mubr.f32.gmra.mrb[0].mxu0 %v9487
  %v10724 = vpop.f32.mrb[0].mxu0
  %v10725 = vadd.f32 %v8883, %v10724
  %v10726 = vpop.f32.mrb[0].mxu0
  %10727 = vmatprep.mubr.f32.mxu0 0.0
  %10728 = vmatmul.mubr.f32.gmra.mrb[0].mxu0 %v9490
  %v10729 = vpop.f32.mrb[0].mxu0
  %v10730 = vadd.f32 %v8883, %v10729
  %v10731 = vpop.f32.mrb[0].mxu0
  %10732 = vmatprep.mubr.f32.mxu0 0.0
  %10733 = vmatmul.mubr.f32.gmra.mrb[0].mxu0 %v9493
  %v10734 = vpop.f32.mrb[0].mxu0
  %v10735 = vadd.f32 %v8883, %v10734
  %v10736 = vpop.f32.mrb[0].mxu0
  %10737 = vmatprep.mubr.f32.mxu0 0.0
  %10738 = vmatmul.mubr.f32.gmra.mrb[0].mxu0 %v9496
  %v10739 = vpop.f32.mrb[0].mxu0
  %v10740 = vadd.f32 %v8883, %v10739
  %v10741 = vpop.f32.mrb[0].mxu0
  %10742 = vmatprep.mubr.f32.mxu0 0.0
  %10743 = vmatmul.mubr.f32.gmra.mrb[0].mxu0 %v9499
  %v10744 = vpop.f32.mrb[0].mxu0
  %v10745 = vadd.f32 %v8883, %v10744
  %v10746 = vpop.f32.mrb[0].mxu0
  %10747 = vmatprep.mubr.f32.mxu0 0.0
  %10748 = vmatmul.mubr.f32.gmra.mrb[0].mxu0 %v9502
  %v10749 = vpop.f32.mrb[0].mxu0
  %v10750 = vadd.f32 %v8883, %v10749
  %v10751 = vpop.f32.mrb[0].mxu0
  %10752 = vmatprep.mubr.f32.mxu0 0.0
  %10753 = vmatmul.mubr.f32.gmra.mrb[0].mxu0 %v9505
  %v10754 = vpop.f32.mrb[0].mxu0
  %v10755 = vadd.f32 %v8883, %v10754
  %v10756 = vpop.f32.mrb[0].mxu0
  %10757 = vmatprep.mubr.f32.mxu0 0.0
  %10758 = vmatmul.mubr.f32.gmra.mrb[0].mxu0 %v9508
  %v10759 = vpop.f32.mrb[0].mxu0
  %v10760 = vadd.f32 %v8883, %v10759
  %v10761 = vpop.f32.mrb[0].mxu0
  %10762 = vmatprep.mubr.f32.mxu0 0.0
  %10763 = vmatmul.mubr.f32.gmra.mrb[0].mxu0 %v9511
  %v10764 = vpop.f32.mrb[0].mxu0
  %v10765 = vadd.f32 %v8883, %v10764
  %v10766 = vpop.f32.mrb[0].mxu0
  %10767 = vmatprep.mubr.f32.mxu0 0.0
  %10768 = vmatmul.mubr.f32.gmra.mrb[0].mxu0 %v9514
  %v10769 = vpop.f32.mrb[0].mxu0
  %v10770 = vadd.f32 %v8883, %v10769
  %v10771 = vpop.f32.mrb[0].mxu0
  %10772 = vmatprep.mubr.f32.mxu0 0.0
  %10773 = vmatmul.mubr.f32.gmra.mrb[0].mxu0 %v9517
  %v10774 = vpop.f32.mrb[0].mxu0
  %v10775 = vadd.f32 %v8883, %v10774
  %v10776 = vpop.f32.mrb[0].mxu0
  %10777 = vmatprep.mubr.f32.mxu0 0.0
  %10778 = vmatmul.mubr.f32.gmra.mrb[0].mxu0 %v9520
  %v10779 = vpop.f32.mrb[0].mxu0
  %v10780 = vadd.f32 %v8883, %v10779
  %v10781 = vpop.f32.mrb[0].mxu0
  %10782 = vmatprep.mubr.f32.mxu0 0.0
  %10783 = vmatmul.mubr.f32.gmra.mrb[0].mxu0 %v9523
  %v10784 = vpop.f32.mrb[0].mxu0
  %v10785 = vadd.f32 %v8883, %v10784
  %v10786 = vpop.f32.mrb[0].mxu0
  %10787 = vmatprep.mubr.f32.mxu0 0.0
  %10788 = vmatmul.mubr.f32.gmra.mrb[0].mxu0 %v9526
  %v10789 = vpop.f32.mrb[0].mxu0
  %v10790 = vadd.f32 %v8883, %v10789
  %v10791 = vpop.f32.mrb[0].mxu0
  %10792 = vmatprep.mubr.f32.mxu0 0.0
  %10793 = vmatmul.mubr.f32.gmra.mrb[0].mxu0 %v9529
  %v10794 = vpop.f32.mrb[0].mxu0
  %v10795 = vadd.f32 %v8883, %v10794
  %v10796 = vpop.f32.mrb[0].mxu0
  %10797 = vmatprep.mubr.f32.mxu0 0.0
  %10798 = vmatmul.mubr.f32.gmra.mrb[0].mxu0 %v9532
  %v10799 = vpop.f32.mrb[0].mxu0
  %v10800 = vadd.f32 %v8883, %v10799
  %v10801 = vpop.f32.mrb[0].mxu0
  %10802 = vmatprep.mubr.f32.mxu0 0.0
  %10803 = vmatmul.mubr.f32.gmra.mrb[0].mxu0 %v9535
  %v10804 = vpop.f32.mrb[0].mxu0
  %v10805 = vadd.f32 %v8883, %v10804
  %v10806 = vpop.f32.mrb[0].mxu0
  %10807 = vmatprep.mubr.f32.mxu0 0.0
  %10808 = vmatmul.mubr.f32.gmra.mrb[0].mxu0 %v9538
  %v10809 = vpop.f32.mrb[0].mxu0
  %v10810 = vadd.f32 %v8883, %v10809
  %v10811 = vpop.f32.mrb[0].mxu0
  %10812 = vmatprep.mubr.f32.mxu0 0.0
  %10813 = vmatmul.mubr.f32.gmra.mrb[0].mxu0 %v9541
  %v10814 = vpop.f32.mrb[0].mxu0
  %v10815 = vadd.f32 %v8883, %v10814
  %v10816 = vpop.f32.mrb[0].mxu0
  %10817 = vmatprep.mubr.f32.mxu0 0.0
  %10818 = vmatmul.mubr.f32.gmra.mrb[0].mxu0 %v9544
  %v10819 = vpop.f32.mrb[0].mxu0
  %v10820 = vadd.f32 %v8883, %v10819
  %v10821 = vpop.f32.mrb[0].mxu0
  %10822 = vmatprep.mubr.f32.mxu0 0.0
  %10823 = vmatmul.mubr.f32.gmra.mrb[0].mxu0 %v9547
  %v10824 = vpop.f32.mrb[0].mxu0
  %v10825 = vadd.f32 %v8883, %v10824
  %v10826 = vpop.f32.mrb[0].mxu0
  %10827 = vmatprep.mubr.f32.mxu0 0.0
  %10828 = vmatmul.mubr.f32.gmra.mrb[0].mxu0 %v9550
  %v10829 = vpop.f32.mrb[0].mxu0
  %v10830 = vadd.f32 %v8883, %v10829
  %v10831 = vpop.f32.mrb[0].mxu0
  %10832 = vmatprep.mubr.f32.mxu0 0.0
  %10833 = vmatmul.mubr.f32.gmra.mrb[0].mxu0 %v9553
  %v10834 = vpop.f32.mrb[0].mxu0
  %v10835 = vadd.f32 %v8883, %v10834
  %v10836 = vpop.f32.mrb[0].mxu0
  %10837 = vmatprep.mubr.f32.mxu0 0.0
  %10838 = vmatmul.mubr.f32.gmra.mrb[0].mxu0 %v9556
  %v10839 = vpop.f32.mrb[0].mxu0
  %v10840 = vadd.f32 %v8883, %v10839
  %v10841 = vpop.f32.mrb[0].mxu0
  %10842 = vmatprep.mubr.f32.mxu0 0.0
  %10843 = vmatmul.mubr.f32.gmra.mrb[0].mxu0 %v9559
  %v10844 = vpop.f32.mrb[0].mxu0
  %v10845 = vadd.f32 %v8883, %v10844
  %v10846 = vpop.f32.mrb[0].mxu0
  %10847 = vmatprep.mubr.f32.mxu0 0.0
  %10848 = vmatmul.mubr.f32.gmra.mrb[0].mxu0 %v9562
  %v10849 = vpop.f32.mrb[0].mxu0
  %v10850 = vadd.f32 %v8883, %v10849
  %v10851 = vpop.f32.mrb[0].mxu0
  %10852 = vmatprep.mubr.f32.mxu0 0.0
  %10853 = vmatmul.mubr.f32.gmra.mrb[0].mxu0 %v9565
  %v10854 = vpop.f32.mrb[0].mxu0
  %v10855 = vadd.f32 %v8883, %v10854
  %v10856 = vpop.f32.mrb[0].mxu0
  %10857 = vmatprep.mubr.f32.mxu0 0.0
  %10858 = vmatmul.mubr.f32.gmra.mrb[0].mxu0 %v9568
  %v10859 = vpop.f32.mrb[0].mxu0
  %v10860 = vadd.f32 %v8883, %v10859
  %v10861 = vpop.f32.mrb[0].mxu0
  %10862 = vmatprep.mubr.f32.mxu0 0.0
  %10863 = vmatmul.mubr.f32.gmra.mrb[0].mxu0 %v9571
  %v10864 = vpop.f32.mrb[0].mxu0
  %v10865 = vadd.f32 %v8883, %v10864
  %v10866 = vpop.f32.mrb[0].mxu0
  %10867 = vmatprep.mubr.f32.mxu0 0.0
  %10868 = vmatmul.mubr.f32.gmra.mrb[0].mxu0 %v9574
  %v10869 = vpop.f32.mrb[0].mxu0
  %v10870 = vadd.f32 %v8883, %v10869
  %v10871 = vpop.f32.mrb[0].mxu0
  %10872 = vmatprep.mubr.f32.mxu0 0.0
  %10873 = vmatmul.mubr.f32.gmra.mrb[0].mxu0 %v9577
  %v10874 = vpop.f32.mrb[0].mxu0
  %v10875 = vadd.f32 %v8883, %v10874
  %v10876 = vpop.f32.mrb[0].mxu0
  %10877 = vmatprep.mubr.f32.mxu0 0.0
  %10878 = vmatmul.mubr.f32.gmra.mrb[0].mxu0 %v9580
  %v10879 = vpop.f32.mrb[0].mxu0
  %v10880 = vadd.f32 %v8883, %v10879
  %v10881 = vpop.f32.mrb[0].mxu0
  %10882 = vmatprep.mubr.f32.mxu0 0.0
  %10883 = vmatmul.mubr.f32.gmra.mrb[0].mxu0 %v9583
  %v10884 = vpop.f32.mrb[0].mxu0
  %v10885 = vadd.f32 %v8883, %v10884
  %v10886 = vpop.f32.mrb[0].mxu0
  %10887 = vmatprep.mubr.f32.mxu0 0.0
  %10888 = vmatmul.mubr.f32.gmra.mrb[0].mxu0 %v9586
  %v10889 = vpop.f32.mrb[0].mxu0
  %v10890 = vadd.f32 %v8883, %v10889
  %v10891 = vpop.f32.mrb[0].mxu0
  %10892 = vmatprep.mubr.f32.mxu0 0.0
  %10893 = vmatmul.mubr.f32.gmra.mrb[0].mxu0 %v9589
  %v10894 = vpop.f32.mrb[0].mxu0
  %v10895 = vadd.f32 %v8883, %v10894
  %v10896 = vpop.f32.mrb[0].mxu0
  %10897 = vmatprep.mubr.f32.mxu0 0.0
  %10898 = vmatmul.mubr.f32.gmra.mrb[0].mxu0 %v9592
  %v10899 = vpop.f32.mrb[0].mxu0
  %v10900 = vadd.f32 %v8883, %v10899
  %v10901 = vpop.f32.mrb[0].mxu0
  %10902 = vmatprep.mubr.f32.mxu0 0.0
  %10903 = vmatmul.mubr.f32.gmra.mrb[0].mxu0 %v9595
  %v10904 = vpop.f32.mrb[0].mxu0
  %v10905 = vadd.f32 %v8883, %v10904
  %v10906 = vpop.f32.mrb[0].mxu0
  %10907 = vmatprep.mubr.f32.mxu0 0.0
  %10908 = vmatmul.mubr.f32.gmra.mrb[0].mxu0 %v9598
  %v10909 = vpop.f32.mrb[0].mxu0
  %v10910 = vadd.f32 %v8883, %v10909
  %v10911 = vpop.f32.mrb[0].mxu0
  %10912 = vmatprep.mubr.f32.mxu0 0.0
  %10913 = vmatmul.mubr.f32.gmra.mrb[0].mxu0 %v9601
  %v10914 = vpop.f32.mrb[0].mxu0
  %v10915 = vadd.f32 %v8883, %v10914
  %v10916 = vpop.f32.mrb[0].mxu0
  %10917 = vmatprep.mubr.f32.mxu0 0.0
  %10918 = vmatmul.mubr.f32.gmra.mrb[0].mxu0 %v9604
  %v10919 = vpop.f32.mrb[0].mxu0
  %v10920 = vadd.f32 %v8883, %v10919
  %v10921 = vpop.f32.mrb[0].mxu0
  %10922 = vmatprep.mubr.f32.mxu0 0.0
  %10923 = vmatmul.mubr.f32.gmra.mrb[0].mxu0 %v9607
  %v10924 = vpop.f32.mrb[0].mxu0
  %v10925 = vadd.f32 %v8883, %v10924
  %v10926 = vpop.f32.mrb[0].mxu0
  %10927 = vmatprep.mubr.f32.mxu0 0.0
  %10928 = vmatmul.mubr.f32.gmra.mrb[0].mxu0 %v9610
  %v10929 = vpop.f32.mrb[0].mxu0
  %v10930 = vadd.f32 %v8883, %v10929
  %v10931 = vpop.f32.mrb[0].mxu0
  %10932 = vmatprep.mubr.f32.mxu0 0.0
  %10933 = vmatmul.mubr.f32.gmra.mrb[0].mxu0 %v9613
  %v10934 = vpop.f32.mrb[0].mxu0
  %v10935 = vadd.f32 %v8883, %v10934
  %v10936 = vpop.f32.mrb[0].mxu0
  %10937 = vmatprep.mubr.f32.mxu0 0.0
  %10938 = vmatmul.mubr.f32.gmra.mrb[0].mxu0 %v9616
  %v10939 = vpop.f32.mrb[0].mxu0
  %v10940 = vadd.f32 %v8883, %v10939
  %v10941 = vpop.f32.mrb[0].mxu0
  %10942 = vmatprep.mubr.f32.mxu0 0.0
  %10943 = vmatmul.mubr.f32.gmra.mrb[0].mxu0 %v9619
  %v10944 = vpop.f32.mrb[0].mxu0
  %v10945 = vadd.f32 %v8883, %v10944
  %v10946 = vpop.f32.mrb[0].mxu0
  %10947 = vmatprep.mubr.f32.mxu0 0.0
  %10948 = vmatmul.mubr.f32.gmra.mrb[0].mxu0 %v9622
  %v10949 = vpop.f32.mrb[0].mxu0
  %v10950 = vadd.f32 %v8883, %v10949
  %v10951 = vpop.f32.mrb[0].mxu0
  %10952 = vmatprep.mubr.f32.mxu0 0.0
  %10953 = vmatmul.mubr.f32.gmra.mrb[0].mxu0 %v9625
  %v10954 = vpop.f32.mrb[0].mxu0
  %v10955 = vadd.f32 %v8883, %v10954
  %v10956 = vpop.f32.mrb[0].mxu0
  %10957 = vmatprep.mubr.f32.mxu0 0.0
  %10958 = vmatmul.mubr.f32.gmra.mrb[0].mxu0 %v9628
  %v10959 = vpop.f32.mrb[0].mxu0
  %v10960 = vadd.f32 %v8883, %v10959
  %v10961 = vpop.f32.mrb[0].mxu0
  %10962 = vmatprep.mubr.f32.mxu0 0.0
  %10963 = vmatmul.mubr.f32.gmra.mrb[0].mxu0 %v9631
  %v10964 = vpop.f32.mrb[0].mxu0
  %v10965 = vadd.f32 %v8883, %v10964
  %v10966 = vpop.f32.mrb[0].mxu0
  %10967 = vmatprep.mubr.f32.mxu0 0.0
  %10968 = vmatmul.mubr.f32.gmra.mrb[0].mxu0 %v9634
  %v10969 = vpop.f32.mrb[0].mxu0
  %v10970 = vadd.f32 %v8883, %v10969
  %v10971 = vpop.f32.mrb[0].mxu0
  %10972 = vmatprep.mubr.f32.mxu0 0.0
  %10973 = vmatmul.mubr.f32.gmra.mrb[0].mxu0 %v9637
  %v10974 = vpop.f32.mrb[0].mxu0
  %v10975 = vadd.f32 %v8883, %v10974
  %v10976 = vpop.f32.mrb[0].mxu0
  %10977 = vmatprep.mubr.f32.mxu0 0.0
  %10978 = vmatmul.mubr.f32.gmra.mrb[0].mxu0 %v9640
  %v10979 = vpop.f32.mrb[0].mxu0
  %v10980 = vadd.f32 %v8883, %v10979
  %v10981 = vpop.f32.mrb[0].mxu0
  %10982 = vmatprep.mubr.f32.mxu0 0.0
  %10983 = vmatmul.mubr.f32.gmra.mrb[0].mxu0 %v9643
  %v10984 = vpop.f32.mrb[0].mxu0
  %v10985 = vadd.f32 %v8883, %v10984
  %v10986 = vpop.f32.mrb[0].mxu0
  %10987 = vmatprep.mubr.f32.mxu0 0.0
  %10988 = vmatmul.mubr.f32.gmra.mrb[0].mxu0 %v9646
  %v10989 = vpop.f32.mrb[0].mxu0
  %v10990 = vadd.f32 %v8883, %v10989
  %v10991 = vpop.f32.mrb[0].mxu0
  %10992 = vmatprep.mubr.f32.mxu0 0.0
  %10993 = vmatmul.mubr.f32.gmra.mrb[0].mxu0 %v9649
  %v10994 = vpop.f32.mrb[0].mxu0
  %v10995 = vadd.f32 %v8883, %v10994
  %v10996 = vpop.f32.mrb[0].mxu0
  %10997 = vmatprep.mubr.f32.mxu0 0.0
  %10998 = vmatmul.mubr.f32.gmra.mrb[0].mxu0 %v9652
  %v10999 = vpop.f32.mrb[0].mxu0
  %v11000 = vadd.f32 %v8883, %v10999
  %v11001 = vpop.f32.mrb[0].mxu0
  %11002 = vdwg.mxu0
  %v11003 = vmax.f32 %v9725, 0.0
  %v11004 = vmax.f32 %v9730, 0.0
  %v11005 = vmax.f32 %v9735, 0.0
  %v11006 = vmax.f32 %v9740, 0.0
  %v11007 = vmax.f32 %v9745, 0.0
  %v11008 = vmax.f32 %v9750, 0.0
  %v11009 = vmax.f32 %v9755, 0.0
  %v11010 = vmax.f32 %v9760, 0.0
  %v11011 = vmax.f32 %v9765, 0.0
  %v11012 = vmax.f32 %v9770, 0.0
  %v11013 = vmax.f32 %v9775, 0.0
  %v11014 = vmax.f32 %v9780, 0.0
  %v11015 = vmax.f32 %v9785, 0.0
  %v11016 = vmax.f32 %v9790, 0.0
  %v11017 = vmax.f32 %v9795, 0.0
  %v11018 = vmax.f32 %v9800, 0.0
  %v11019 = vmax.f32 %v9805, 0.0
  %v11020 = vmax.f32 %v9810, 0.0
  %v11021 = vmax.f32 %v9815, 0.0
  %v11022 = vmax.f32 %v9820, 0.0
  %v11023 = vmax.f32 %v9825, 0.0
  %v11024 = vmax.f32 %v9830, 0.0
  %v11025 = vmax.f32 %v9835, 0.0
  %v11026 = vmax.f32 %v9840, 0.0
  %v11027 = vmax.f32 %v9845, 0.0
  %v11028 = vmax.f32 %v9850, 0.0
  %v11029 = vmax.f32 %v9855, 0.0
  %v11030 = vmax.f32 %v9860, 0.0
  %v11031 = vmax.f32 %v9865, 0.0
  %v11032 = vmax.f32 %v9870, 0.0
  %v11033 = vmax.f32 %v9875, 0.0
  %v11034 = vmax.f32 %v9880, 0.0
  %v11035 = vmax.f32 %v9885, 0.0
  %v11036 = vmax.f32 %v9890, 0.0
  %v11037 = vmax.f32 %v9895, 0.0
  %v11038 = vmax.f32 %v9900, 0.0
  %v11039 = vmax.f32 %v9905, 0.0
  %v11040 = vmax.f32 %v9910, 0.0
  %v11041 = vmax.f32 %v9915, 0.0
  %v11042 = vmax.f32 %v9920, 0.0
  %v11043 = vmax.f32 %v9925, 0.0
  %v11044 = vmax.f32 %v9930, 0.0
  %v11045 = vmax.f32 %v9935, 0.0
  %v11046 = vmax.f32 %v9940, 0.0
  %v11047 = vmax.f32 %v9945, 0.0
  %v11048 = vmax.f32 %v9950, 0.0
  %v11049 = vmax.f32 %v9955, 0.0
  %v11050 = vmax.f32 %v9960, 0.0
  %v11051 = vmax.f32 %v9965, 0.0
  %v11052 = vmax.f32 %v9970, 0.0
  %v11053 = vmax.f32 %v9975, 0.0
  %v11054 = vmax.f32 %v9980, 0.0
  %v11055 = vmax.f32 %v9985, 0.0
  %v11056 = vmax.f32 %v9990, 0.0
  %v11057 = vmax.f32 %v9995, 0.0
  %v11058 = vmax.f32 %v10000, 0.0
  %v11059 = vmax.f32 %v10005, 0.0
  %v11060 = vmax.f32 %v10010, 0.0
  %v11061 = vmax.f32 %v10015, 0.0
  %v11062 = vmax.f32 %v10020, 0.0
  %v11063 = vmax.f32 %v10025, 0.0
  %v11064 = vmax.f32 %v10030, 0.0
  %v11065 = vmax.f32 %v10035, 0.0
  %v11066 = vmax.f32 %v10040, 0.0
  %v11067 = vmax.f32 %v10045, 0.0
  %v11068 = vmax.f32 %v10050, 0.0
  %v11069 = vmax.f32 %v10055, 0.0
  %v11070 = vmax.f32 %v10060, 0.0
  %v11071 = vmax.f32 %v10065, 0.0
  %v11072 = vmax.f32 %v10070, 0.0
  %v11073 = vmax.f32 %v10075, 0.0
  %v11074 = vmax.f32 %v10080, 0.0
  %v11075 = vmax.f32 %v10085, 0.0
  %v11076 = vmax.f32 %v10090, 0.0
  %v11077 = vmax.f32 %v10095, 0.0
  %v11078 = vmax.f32 %v10100, 0.0
  %v11079 = vmax.f32 %v10105, 0.0
  %v11080 = vmax.f32 %v10110, 0.0
  %v11081 = vmax.f32 %v10115, 0.0
  %v11082 = vmax.f32 %v10120, 0.0
  %v11083 = vmax.f32 %v10125, 0.0
  %v11084 = vmax.f32 %v10130, 0.0
  %v11085 = vmax.f32 %v10135, 0.0
  %v11086 = vmax.f32 %v10140, 0.0
  %v11087 = vmax.f32 %v10145, 0.0
  %v11088 = vmax.f32 %v10150, 0.0
  %v11089 = vmax.f32 %v10155, 0.0
  %v11090 = vmax.f32 %v10160, 0.0
  %v11091 = vmax.f32 %v10165, 0.0
  %v11092 = vmax.f32 %v10170, 0.0
  %v11093 = vmax.f32 %v10175, 0.0
  %v11094 = vmax.f32 %v10180, 0.0
  %v11095 = vmax.f32 %v10185, 0.0
  %v11096 = vmax.f32 %v10190, 0.0
  %v11097 = vmax.f32 %v10195, 0.0
  %v11098 = vmax.f32 %v10200, 0.0
  %v11099 = vmax.f32 %v10205, 0.0
  %v11100 = vmax.f32 %v10210, 0.0
  %v11101 = vmax.f32 %v10215, 0.0
  %v11102 = vmax.f32 %v10220, 0.0
  %v11103 = vmax.f32 %v10225, 0.0
  %v11104 = vmax.f32 %v10230, 0.0
  %v11105 = vmax.f32 %v10235, 0.0
  %v11106 = vmax.f32 %v10240, 0.0
  %v11107 = vmax.f32 %v10245, 0.0
  %v11108 = vmax.f32 %v10250, 0.0
  %v11109 = vmax.f32 %v10255, 0.0
  %v11110 = vmax.f32 %v10260, 0.0
  %v11111 = vmax.f32 %v10265, 0.0
  %v11112 = vmax.f32 %v10270, 0.0
  %v11113 = vmax.f32 %v10275, 0.0
  %v11114 = vmax.f32 %v10280, 0.0
  %v11115 = vmax.f32 %v10285, 0.0
  %v11116 = vmax.f32 %v10290, 0.0
  %v11117 = vmax.f32 %v10295, 0.0
  %v11118 = vmax.f32 %v10300, 0.0
  %v11119 = vmax.f32 %v10305, 0.0
  %v11120 = vmax.f32 %v10310, 0.0
  %v11121 = vmax.f32 %v10315, 0.0
  %v11122 = vmax.f32 %v10320, 0.0
  %v11123 = vmax.f32 %v10325, 0.0
  %v11124 = vmax.f32 %v10330, 0.0
  %v11125 = vmax.f32 %v10335, 0.0
  %v11126 = vmax.f32 %v10340, 0.0
  %v11127 = vmax.f32 %v10345, 0.0
  %v11128 = vmax.f32 %v10350, 0.0
  %v11129 = vmax.f32 %v10355, 0.0
  %v11130 = vmax.f32 %v10360, 0.0
  %v11131 = vmax.f32 %v10365, 0.0
  %v11132 = vmax.f32 %v10370, 0.0
  %v11133 = vmax.f32 %v10375, 0.0
  %v11134 = vmax.f32 %v10380, 0.0
  %v11135 = vmax.f32 %v10385, 0.0
  %v11136 = vmax.f32 %v10390, 0.0
  %v11137 = vmax.f32 %v10395, 0.0
  %v11138 = vmax.f32 %v10400, 0.0
  %v11139 = vmax.f32 %v10405, 0.0
  %v11140 = vmax.f32 %v10410, 0.0
  %v11141 = vmax.f32 %v10415, 0.0
  %v11142 = vmax.f32 %v10420, 0.0
  %v11143 = vmax.f32 %v10425, 0.0
  %v11144 = vmax.f32 %v10430, 0.0
  %v11145 = vmax.f32 %v10435, 0.0
  %v11146 = vmax.f32 %v10440, 0.0
  %v11147 = vmax.f32 %v10445, 0.0
  %v11148 = vmax.f32 %v10450, 0.0
  %v11149 = vmax.f32 %v10455, 0.0
  %v11150 = vmax.f32 %v10460, 0.0
  %v11151 = vmax.f32 %v10465, 0.0
  %v11152 = vmax.f32 %v10470, 0.0
  %v11153 = vmax.f32 %v10475, 0.0
  %v11154 = vmax.f32 %v10480, 0.0
  %v11155 = vmax.f32 %v10485, 0.0
  %v11156 = vmax.f32 %v10490, 0.0
  %v11157 = vmax.f32 %v10495, 0.0
  %v11158 = vmax.f32 %v10500, 0.0
  %v11159 = vmax.f32 %v10505, 0.0
  %v11160 = vmax.f32 %v10510, 0.0
  %v11161 = vmax.f32 %v10515, 0.0
  %v11162 = vmax.f32 %v10520, 0.0
  %v11163 = vmax.f32 %v10525, 0.0
  %v11164 = vmax.f32 %v10530, 0.0
  %v11165 = vmax.f32 %v10535, 0.0
  %v11166 = vmax.f32 %v10540, 0.0
  %v11167 = vmax.f32 %v10545, 0.0
  %v11168 = vmax.f32 %v10550, 0.0
  %v11169 = vmax.f32 %v10555, 0.0
  %v11170 = vmax.f32 %v10560, 0.0
  %v11171 = vmax.f32 %v10565, 0.0
  %v11172 = vmax.f32 %v10570, 0.0
  %v11173 = vmax.f32 %v10575, 0.0
  %v11174 = vmax.f32 %v10580, 0.0
  %v11175 = vmax.f32 %v10585, 0.0
  %v11176 = vmax.f32 %v10590, 0.0
  %v11177 = vmax.f32 %v10595, 0.0
  %v11178 = vmax.f32 %v10600, 0.0
  %v11179 = vmax.f32 %v10605, 0.0
  %v11180 = vmax.f32 %v10610, 0.0
  %v11181 = vmax.f32 %v10615, 0.0
  %v11182 = vmax.f32 %v10620, 0.0
  %v11183 = vmax.f32 %v10625, 0.0
  %v11184 = vmax.f32 %v10630, 0.0
  %v11185 = vmax.f32 %v10635, 0.0
  %v11186 = vmax.f32 %v10640, 0.0
  %v11187 = vmax.f32 %v10645, 0.0
  %v11188 = vmax.f32 %v10650, 0.0
  %v11189 = vmax.f32 %v10655, 0.0
  %v11190 = vmax.f32 %v10660, 0.0
  %v11191 = vmax.f32 %v10665, 0.0
  %v11192 = vmax.f32 %v10670, 0.0
  %v11193 = vmax.f32 %v10675, 0.0
  %v11194 = vmax.f32 %v10680, 0.0
  %v11195 = vmax.f32 %v10685, 0.0
  %v11196 = vmax.f32 %v10690, 0.0
  %v11197 = vmax.f32 %v10695, 0.0
  %v11198 = vmax.f32 %v10700, 0.0
  %v11199 = vmax.f32 %v10705, 0.0
  %v11200 = vmax.f32 %v10710, 0.0
  %v11201 = vmax.f32 %v10715, 0.0
  %v11202 = vmax.f32 %v10720, 0.0
  %v11203 = vmax.f32 %v10725, 0.0
  %v11204 = vmax.f32 %v10730, 0.0
  %v11205 = vmax.f32 %v10735, 0.0
  %v11206 = vmax.f32 %v10740, 0.0
  %v11207 = vmax.f32 %v10745, 0.0
  %v11208 = vmax.f32 %v10750, 0.0
  %v11209 = vmax.f32 %v10755, 0.0
  %v11210 = vmax.f32 %v10760, 0.0
  %v11211 = vmax.f32 %v10765, 0.0
  %v11212 = vmax.f32 %v10770, 0.0
  %v11213 = vmax.f32 %v10775, 0.0
  %v11214 = vmax.f32 %v10780, 0.0
  %v11215 = vmax.f32 %v10785, 0.0
  %v11216 = vmax.f32 %v10790, 0.0
  %v11217 = vmax.f32 %v10795, 0.0
  %v11218 = vmax.f32 %v10800, 0.0
  %v11219 = vmax.f32 %v10805, 0.0
  %v11220 = vmax.f32 %v10810, 0.0
  %v11221 = vmax.f32 %v10815, 0.0
  %v11222 = vmax.f32 %v10820, 0.0
  %v11223 = vmax.f32 %v10825, 0.0
  %v11224 = vmax.f32 %v10830, 0.0
  %v11225 = vmax.f32 %v10835, 0.0
  %v11226 = vmax.f32 %v10840, 0.0
  %v11227 = vmax.f32 %v10845, 0.0
  %v11228 = vmax.f32 %v10850, 0.0
  %v11229 = vmax.f32 %v10855, 0.0
  %v11230 = vmax.f32 %v10860, 0.0
  %v11231 = vmax.f32 %v10865, 0.0
  %v11232 = vmax.f32 %v10870, 0.0
  %v11233 = vmax.f32 %v10875, 0.0
  %v11234 = vmax.f32 %v10880, 0.0
  %v11235 = vmax.f32 %v10885, 0.0
  %v11236 = vmax.f32 %v10890, 0.0
  %v11237 = vmax.f32 %v10895, 0.0
  %v11238 = vmax.f32 %v10900, 0.0
  %v11239 = vmax.f32 %v10905, 0.0
  %v11240 = vmax.f32 %v10910, 0.0
  %v11241 = vmax.f32 %v10915, 0.0
  %v11242 = vmax.f32 %v10920, 0.0
  %v11243 = vmax.f32 %v10925, 0.0
  %v11244 = vmax.f32 %v10930, 0.0
  %v11245 = vmax.f32 %v10935, 0.0
  %v11246 = vmax.f32 %v10940, 0.0
  %v11247 = vmax.f32 %v10945, 0.0
  %v11248 = vmax.f32 %v10950, 0.0
  %v11249 = vmax.f32 %v10955, 0.0
  %v11250 = vmax.f32 %v10960, 0.0
  %v11251 = vmax.f32 %v10965, 0.0
  %v11252 = vmax.f32 %v10970, 0.0
  %v11253 = vmax.f32 %v10975, 0.0
  %v11254 = vmax.f32 %v10980, 0.0
  %v11255 = vmax.f32 %v10985, 0.0
  %v11256 = vmax.f32 %v10990, 0.0
  %v11257 = vmax.f32 %v10995, 0.0
  %v11258 = vmax.f32 %v11000, 0.0
  %v11259 = vmax.f32 %v11003, %v11019
  %v11260 = vmax.f32 %v11004, %v11020
  %v11261 = vmax.f32 %v11005, %v11021
  %v11262 = vmax.f32 %v11006, %v11022
  %v11263 = vmax.f32 %v11007, %v11023
  %v11264 = vmax.f32 %v11008, %v11024
  %v11265 = vmax.f32 %v11009, %v11025
  %v11266 = vmax.f32 %v11010, %v11026
  %v11267 = vmax.f32 %v11011, %v11027
  %v11268 = vmax.f32 %v11012, %v11028
  %v11269 = vmax.f32 %v11013, %v11029
  %v11270 = vmax.f32 %v11014, %v11030
  %v11271 = vmax.f32 %v11015, %v11031
  %v11272 = vmax.f32 %v11016, %v11032
  %v11273 = vmax.f32 %v11017, %v11033
  %v11274 = vmax.f32 %v11018, %v11034
  %v11275 = vmax.f32 %v11035, %v11051
  %v11276 = vmax.f32 %v11036, %v11052
  %v11277 = vmax.f32 %v11037, %v11053
  %v11278 = vmax.f32 %v11038, %v11054
  %v11279 = vmax.f32 %v11039, %v11055
  %v11280 = vmax.f32 %v11040, %v11056
  %v11281 = vmax.f32 %v11041, %v11057
  %v11282 = vmax.f32 %v11042, %v11058
  %v11283 = vmax.f32 %v11043, %v11059
  %v11284 = vmax.f32 %v11044, %v11060
  %v11285 = vmax.f32 %v11045, %v11061
  %v11286 = vmax.f32 %v11046, %v11062
  %v11287 = vmax.f32 %v11047, %v11063
  %v11288 = vmax.f32 %v11048, %v11064
  %v11289 = vmax.f32 %v11049, %v11065
  %v11290 = vmax.f32 %v11050, %v11066
  %v11291 = vmax.f32 %v11067, %v11083
  %v11292 = vmax.f32 %v11068, %v11084
  %v11293 = vmax.f32 %v11069, %v11085
  %v11294 = vmax.f32 %v11070, %v11086
  %v11295 = vmax.f32 %v11071, %v11087
  %v11296 = vmax.f32 %v11072, %v11088
  %v11297 = vmax.f32 %v11073, %v11089
  %v11298 = vmax.f32 %v11074, %v11090
  %v11299 = vmax.f32 %v11075, %v11091
  %v11300 = vmax.f32 %v11076, %v11092
  %v11301 = vmax.f32 %v11077, %v11093
  %v11302 = vmax.f32 %v11078, %v11094
  %v11303 = vmax.f32 %v11079, %v11095
  %v11304 = vmax.f32 %v11080, %v11096
  %v11305 = vmax.f32 %v11081, %v11097
  %v11306 = vmax.f32 %v11082, %v11098
  %v11307 = vmax.f32 %v11099, %v11115
  %v11308 = vmax.f32 %v11100, %v11116
  %v11309 = vmax.f32 %v11101, %v11117
  %v11310 = vmax.f32 %v11102, %v11118
  %v11311 = vmax.f32 %v11103, %v11119
  %v11312 = vmax.f32 %v11104, %v11120
  %v11313 = vmax.f32 %v11105, %v11121
  %v11314 = vmax.f32 %v11106, %v11122
  %v11315 = vmax.f32 %v11107, %v11123
  %v11316 = vmax.f32 %v11108, %v11124
  %v11317 = vmax.f32 %v11109, %v11125
  %v11318 = vmax.f32 %v11110, %v11126
  %v11319 = vmax.f32 %v11111, %v11127
  %v11320 = vmax.f32 %v11112, %v11128
  %v11321 = vmax.f32 %v11113, %v11129
  %v11322 = vmax.f32 %v11114, %v11130
  %v11323 = vmax.f32 %v11131, %v11147
  %v11324 = vmax.f32 %v11132, %v11148
  %v11325 = vmax.f32 %v11133, %v11149
  %v11326 = vmax.f32 %v11134, %v11150
  %v11327 = vmax.f32 %v11135, %v11151
  %v11328 = vmax.f32 %v11136, %v11152
  %v11329 = vmax.f32 %v11137, %v11153
  %v11330 = vmax.f32 %v11138, %v11154
  %v11331 = vmax.f32 %v11139, %v11155
  %v11332 = vmax.f32 %v11140, %v11156
  %v11333 = vmax.f32 %v11141, %v11157
  %v11334 = vmax.f32 %v11142, %v11158
  %v11335 = vmax.f32 %v11143, %v11159
  %v11336 = vmax.f32 %v11144, %v11160
  %v11337 = vmax.f32 %v11145, %v11161
  %v11338 = vmax.f32 %v11146, %v11162
  %v11339 = vmax.f32 %v11163, %v11179
  %v11340 = vmax.f32 %v11164, %v11180
  %v11341 = vmax.f32 %v11165, %v11181
  %v11342 = vmax.f32 %v11166, %v11182
  %v11343 = vmax.f32 %v11167, %v11183
  %v11344 = vmax.f32 %v11168, %v11184
  %v11345 = vmax.f32 %v11169, %v11185
  %v11346 = vmax.f32 %v11170, %v11186
  %v11347 = vmax.f32 %v11171, %v11187
  %v11348 = vmax.f32 %v11172, %v11188
  %v11349 = vmax.f32 %v11173, %v11189
  %v11350 = vmax.f32 %v11174, %v11190
  %v11351 = vmax.f32 %v11175, %v11191
  %v11352 = vmax.f32 %v11176, %v11192
  %v11353 = vmax.f32 %v11177, %v11193
  %v11354 = vmax.f32 %v11178, %v11194
  %v11355 = vmax.f32 %v11195, %v11211
  %v11356 = vmax.f32 %v11196, %v11212
  %v11357 = vmax.f32 %v11197, %v11213
  %v11358 = vmax.f32 %v11198, %v11214
  %v11359 = vmax.f32 %v11199, %v11215
  %v11360 = vmax.f32 %v11200, %v11216
  %v11361 = vmax.f32 %v11201, %v11217
  %v11362 = vmax.f32 %v11202, %v11218
  %v11363 = vmax.f32 %v11203, %v11219
  %v11364 = vmax.f32 %v11204, %v11220
  %v11365 = vmax.f32 %v11205, %v11221
  %v11366 = vmax.f32 %v11206, %v11222
  %v11367 = vmax.f32 %v11207, %v11223
  %v11368 = vmax.f32 %v11208, %v11224
  %v11369 = vmax.f32 %v11209, %v11225
  %v11370 = vmax.f32 %v11210, %v11226
  %v11371 = vmax.f32 %v11227, %v11243
  %v11372 = vmax.f32 %v11228, %v11244
  %v11373 = vmax.f32 %v11229, %v11245
  %v11374 = vmax.f32 %v11230, %v11246
  %v11375 = vmax.f32 %v11231, %v11247
  %v11376 = vmax.f32 %v11232, %v11248
  %v11377 = vmax.f32 %v11233, %v11249
  %v11378 = vmax.f32 %v11234, %v11250
  %v11379 = vmax.f32 %v11235, %v11251
  %v11380 = vmax.f32 %v11236, %v11252
  %v11381 = vmax.f32 %v11237, %v11253
  %v11382 = vmax.f32 %v11238, %v11254
  %v11383 = vmax.f32 %v11239, %v11255
  %v11384 = vmax.f32 %v11240, %v11256
  %v11385 = vmax.f32 %v11241, %v11257
  %v11386 = vmax.f32 %v11242, %v11258
  %v11387 = vmax.f32 %v11259, %v11260
  %v11388 = vmax.f32 %v11261, %v11262
  %v11389 = vmax.f32 %v11263, %v11264
  %v11390 = vmax.f32 %v11265, %v11266
  %v11391 = vmax.f32 %v11267, %v11268
  %v11392 = vmax.f32 %v11269, %v11270
  %v11393 = vmax.f32 %v11271, %v11272
  %v11394 = vmax.f32 %v11273, %v11274
  %v11395 = vmax.f32 %v11275, %v11276
  %v11396 = vmax.f32 %v11277, %v11278
  %v11397 = vmax.f32 %v11279, %v11280
  %v11398 = vmax.f32 %v11281, %v11282
  %v11399 = vmax.f32 %v11283, %v11284
  %v11400 = vmax.f32 %v11285, %v11286
  %v11401 = vmax.f32 %v11287, %v11288
  %v11402 = vmax.f32 %v11289, %v11290
  %v11403 = vmax.f32 %v11291, %v11292
  %v11404 = vmax.f32 %v11293, %v11294
  %v11405 = vmax.f32 %v11295, %v11296
  %v11406 = vmax.f32 %v11297, %v11298
  %v11407 = vmax.f32 %v11299, %v11300
  %v11408 = vmax.f32 %v11301, %v11302
  %v11409 = vmax.f32 %v11303, %v11304
  %v11410 = vmax.f32 %v11305, %v11306
  %v11411 = vmax.f32 %v11307, %v11308
  %v11412 = vmax.f32 %v11309, %v11310
  %v11413 = vmax.f32 %v11311, %v11312
  %v11414 = vmax.f32 %v11313, %v11314
  %v11415 = vmax.f32 %v11315, %v11316
  %v11416 = vmax.f32 %v11317, %v11318
  %v11417 = vmax.f32 %v11319, %v11320
  %v11418 = vmax.f32 %v11321, %v11322
  %v11419 = vmax.f32 %v11323, %v11324
  %v11420 = vmax.f32 %v11325, %v11326
  %v11421 = vmax.f32 %v11327, %v11328
  %v11422 = vmax.f32 %v11329, %v11330
  %v11423 = vmax.f32 %v11331, %v11332
  %v11424 = vmax.f32 %v11333, %v11334
  %v11425 = vmax.f32 %v11335, %v11336
  %v11426 = vmax.f32 %v11337, %v11338
  %v11427 = vmax.f32 %v11339, %v11340
  %v11428 = vmax.f32 %v11341, %v11342
  %v11429 = vmax.f32 %v11343, %v11344
  %v11430 = vmax.f32 %v11345, %v11346
  %v11431 = vmax.f32 %v11347, %v11348
  %v11432 = vmax.f32 %v11349, %v11350
  %v11433 = vmax.f32 %v11351, %v11352
  %v11434 = vmax.f32 %v11353, %v11354
  %v11435 = vmax.f32 %v11355, %v11356
  %v11436 = vmax.f32 %v11357, %v11358
  %v11437 = vmax.f32 %v11359, %v11360
  %v11438 = vmax.f32 %v11361, %v11362
  %v11439 = vmax.f32 %v11363, %v11364
  %v11440 = vmax.f32 %v11365, %v11366
  %v11441 = vmax.f32 %v11367, %v11368
  %v11442 = vmax.f32 %v11369, %v11370
  %v11443 = vmax.f32 %v11371, %v11372
  %v11444 = vmax.f32 %v11373, %v11374
  %v11445 = vmax.f32 %v11375, %v11376
  %v11446 = vmax.f32 %v11377, %v11378
  %v11447 = vmax.f32 %v11379, %v11380
  %v11448 = vmax.f32 %v11381, %v11382
  %v11449 = vmax.f32 %v11383, %v11384
  %v11450 = vmax.f32 %v11385, %v11386
  %v11451 = vld [vmem:[%s3] sm:$0xff]
  %v11452 = vld [vmem:[%s3 + $0x8] sm:$0xff]
  %v11453 = vld [vmem:[%s3 + $0x10] sm:$0xff]
  %v11454 = vld [vmem:[%s3 + $0x18] sm:$0xff]
  %v11455 = vld [vmem:[%s3 + $0x20] sm:$0xff]
  %v11456 = vld [vmem:[%s3 + $0x28] sm:$0xff]
  %v11457 = vld [vmem:[%s3 + $0x30] sm:$0xff]
  %v11458 = vld [vmem:[%s3 + $0x38] sm:$0xff]
  %v11459 = vld [vmem:[%s3 + $0x40] sm:$0xff]
  %v11460 = vld [vmem:[%s4] sm:$0x1]
  %11518 = vrot.lane.b32.xlu0 0.0, 8
  %v11519 = vpop.permute.xlu0 %11518
  %11520 = vrot.lane.b32.xlu0 %v11387, 8
  %v11521 = vpop.permute.xlu0 %11520
  %11522 = vrot.lane.b32.xlu0 %v11388, 8
  %v11523 = vpop.permute.xlu0 %11522
  %11524 = vrot.lane.b32.xlu0 %v11389, 8
  %v11525 = vpop.permute.xlu0 %11524
  %11526 = vrot.lane.b32.xlu0 %v11390, 8
  %v11527 = vpop.permute.xlu0 %11526
  %11528 = vrot.lane.b32.xlu0 %v11391, 8
  %v11529 = vpop.permute.xlu0 %11528
  %11530 = vrot.lane.b32.xlu0 %v11392, 8
  %v11531 = vpop.permute.xlu0 %11530
  %11532 = vrot.lane.b32.xlu0 %v11393, 8
  %v11533 = vpop.permute.xlu0 %11532
  %11534 = vrot.lane.b32.xlu0 %v11394, 8
  %v11535 = vpop.permute.xlu0 %11534
  %11536 = vrot.lane.b32.xlu0 %v11395, 8
  %v11537 = vpop.permute.xlu0 %11536
  %11538 = vrot.lane.b32.xlu0 %v11396, 8
  %v11539 = vpop.permute.xlu0 %11538
  %11540 = vrot.lane.b32.xlu0 %v11397, 8
  %v11541 = vpop.permute.xlu0 %11540
  %11542 = vrot.lane.b32.xlu0 %v11398, 8
  %v11543 = vpop.permute.xlu0 %11542
  %11544 = vrot.lane.b32.xlu0 %v11399, 8
  %v11545 = vpop.permute.xlu0 %11544
  %11546 = vrot.lane.b32.xlu0 %v11400, 8
  %v11547 = vpop.permute.xlu0 %11546
  %11548 = vrot.lane.b32.xlu0 %v11401, 8
  %v11549 = vpop.permute.xlu0 %11548
  %11550 = vrot.lane.b32.xlu0 %v11402, 8
  %v11551 = vpop.permute.xlu0 %11550
  %11552 = vrot.lane.b32.xlu0 %v11403, 8
  %v11553 = vpop.permute.xlu0 %11552
  %11554 = vrot.lane.b32.xlu0 %v11404, 8
  %v11555 = vpop.permute.xlu0 %11554
  %11556 = vrot.lane.b32.xlu0 %v11405, 8
  %v11557 = vpop.permute.xlu0 %11556
  %11558 = vrot.lane.b32.xlu0 %v11406, 8
  %v11559 = vpop.permute.xlu0 %11558
  %11560 = vrot.lane.b32.xlu0 %v11407, 8
  %v11561 = vpop.permute.xlu0 %11560
  %11562 = vrot.lane.b32.xlu0 %v11408, 8
  %v11563 = vpop.permute.xlu0 %11562
  %11564 = vrot.lane.b32.xlu0 %v11409, 8
  %v11565 = vpop.permute.xlu0 %11564
  %11566 = vrot.lane.b32.xlu0 %v11410, 8
  %v11567 = vpop.permute.xlu0 %11566
  %11568 = vrot.lane.b32.xlu0 %v11411, 8
  %v11569 = vpop.permute.xlu0 %11568
  %11570 = vrot.lane.b32.xlu0 %v11412, 8
  %v11571 = vpop.permute.xlu0 %11570
  %11572 = vrot.lane.b32.xlu0 %v11413, 8
  %v11573 = vpop.permute.xlu0 %11572
  %11574 = vrot.lane.b32.xlu0 %v11414, 8
  %v11575 = vpop.permute.xlu0 %11574
  %11576 = vrot.lane.b32.xlu0 %v11415, 8
  %v11577 = vpop.permute.xlu0 %11576
  %11578 = vrot.lane.b32.xlu0 %v11416, 8
  %v11579 = vpop.permute.xlu0 %11578
  %11580 = vrot.lane.b32.xlu0 %v11417, 8
  %v11581 = vpop.permute.xlu0 %11580
  %11582 = vrot.lane.b32.xlu0 %v11418, 8
  %v11583 = vpop.permute.xlu0 %11582
  %11584 = vrot.lane.b32.xlu0 %v11419, 8
  %v11585 = vpop.permute.xlu0 %11584
  %11586 = vrot.lane.b32.xlu0 %v11420, 8
  %v11587 = vpop.permute.xlu0 %11586
  %11588 = vrot.lane.b32.xlu0 %v11421, 8
  %v11589 = vpop.permute.xlu0 %11588
  %11590 = vrot.lane.b32.xlu0 %v11422, 8
  %v11591 = vpop.permute.xlu0 %11590
  %11592 = vrot.lane.b32.xlu0 %v11423, 8
  %v11593 = vpop.permute.xlu0 %11592
  %11594 = vrot.lane.b32.xlu0 %v11424, 8
  %v11595 = vpop.permute.xlu0 %11594
  %11596 = vrot.lane.b32.xlu0 %v11425, 8
  %v11597 = vpop.permute.xlu0 %11596
  %11598 = vrot.lane.b32.xlu0 %v11426, 8
  %v11599 = vpop.permute.xlu0 %11598
  %11600 = vrot.lane.b32.xlu0 %v11427, 8
  %v11601 = vpop.permute.xlu0 %11600
  %11602 = vrot.lane.b32.xlu0 %v11428, 8
  %v11603 = vpop.permute.xlu0 %11602
  %11604 = vrot.lane.b32.xlu0 %v11429, 8
  %v11605 = vpop.permute.xlu0 %11604
  %11606 = vrot.lane.b32.xlu0 %v11430, 8
  %v11607 = vpop.permute.xlu0 %11606
  %11608 = vrot.lane.b32.xlu0 %v11431, 8
  %v11609 = vpop.permute.xlu0 %11608
  %11610 = vrot.lane.b32.xlu0 %v11432, 8
  %v11611 = vpop.permute.xlu0 %11610
  %11612 = vrot.lane.b32.xlu0 %v11433, 8
  %v11613 = vpop.permute.xlu0 %11612
  %11614 = vrot.lane.b32.xlu0 %v11434, 8
  %v11615 = vpop.permute.xlu0 %11614
  %11616 = vrot.lane.b32.xlu0 %v11435, 8
  %v11617 = vpop.permute.xlu0 %11616
  %11618 = vrot.lane.b32.xlu0 %v11436, 8
  %v11619 = vpop.permute.xlu0 %11618
  %11620 = vrot.lane.b32.xlu0 %v11437, 8
  %v11621 = vpop.permute.xlu0 %11620
  %11622 = vrot.lane.b32.xlu0 %v11438, 8
  %v11623 = vpop.permute.xlu0 %11622
  %11624 = vrot.lane.b32.xlu0 %v11439, 8
  %v11625 = vpop.permute.xlu0 %11624
  %11626 = vrot.lane.b32.xlu0 %v11440, 8
  %v11627 = vpop.permute.xlu0 %11626
  %11628 = vrot.lane.b32.xlu0 %v11441, 8
  %v11629 = vpop.permute.xlu0 %11628
  %11630 = vrot.lane.b32.xlu0 %v11442, 8
  %v11631 = vpop.permute.xlu0 %11630
  %11689 = vrot.lane.b32.xlu0 0.0, 16
  %v11690 = vpop.permute.xlu0 %11689
  %11691 = vrot.lane.b32.xlu0 %v11388, 16
  %v11692 = vpop.permute.xlu0 %11691
  %11693 = vrot.lane.b32.xlu0 %v11389, 16
  %v11694 = vpop.permute.xlu0 %11693
  %11695 = vrot.lane.b32.xlu0 %v11390, 16
  %v11696 = vpop.permute.xlu0 %11695
  %11697 = vrot.lane.b32.xlu0 %v11391, 16
  %v11698 = vpop.permute.xlu0 %11697
  %11699 = vrot.lane.b32.xlu0 %v11392, 16
  %v11700 = vpop.permute.xlu0 %11699
  %11701 = vrot.lane.b32.xlu0 %v11393, 16
  %v11702 = vpop.permute.xlu0 %11701
  %11703 = vrot.lane.b32.xlu0 %v11394, 16
  %v11704 = vpop.permute.xlu0 %11703
  %11705 = vrot.lane.b32.xlu0 %v11396, 16
  %v11706 = vpop.permute.xlu0 %11705
  %11707 = vrot.lane.b32.xlu0 %v11397, 16
  %v11708 = vpop.permute.xlu0 %11707
  %11709 = vrot.lane.b32.xlu0 %v11398, 16
  %v11710 = vpop.permute.xlu0 %11709
  %11711 = vrot.lane.b32.xlu0 %v11399, 16
  %v11712 = vpop.permute.xlu0 %11711
  %11713 = vrot.lane.b32.xlu0 %v11400, 16
  %v11714 = vpop.permute.xlu0 %11713
  %11715 = vrot.lane.b32.xlu0 %v11401, 16
  %v11716 = vpop.permute.xlu0 %11715
  %11717 = vrot.lane.b32.xlu0 %v11402, 16
  %v11718 = vpop.permute.xlu0 %11717
  %11719 = vrot.lane.b32.xlu0 %v11404, 16
  %v11720 = vpop.permute.xlu0 %11719
  %11721 = vrot.lane.b32.xlu0 %v11405, 16
  %v11722 = vpop.permute.xlu0 %11721
  %11723 = vrot.lane.b32.xlu0 %v11406, 16
  %v11724 = vpop.permute.xlu0 %11723
  %11725 = vrot.lane.b32.xlu0 %v11407, 16
  %v11726 = vpop.permute.xlu0 %11725
  %11727 = vrot.lane.b32.xlu0 %v11408, 16
  %v11728 = vpop.permute.xlu0 %11727
  %11729 = vrot.lane.b32.xlu0 %v11409, 16
  %v11730 = vpop.permute.xlu0 %11729
  %11731 = vrot.lane.b32.xlu0 %v11410, 16
  %v11732 = vpop.permute.xlu0 %11731
  %11733 = vrot.lane.b32.xlu0 %v11412, 16
  %v11734 = vpop.permute.xlu0 %11733
  %11735 = vrot.lane.b32.xlu0 %v11413, 16
  %v11736 = vpop.permute.xlu0 %11735
  %11737 = vrot.lane.b32.xlu0 %v11414, 16
  %v11738 = vpop.permute.xlu0 %11737
  %11739 = vrot.lane.b32.xlu0 %v11415, 16
  %v11740 = vpop.permute.xlu0 %11739
  %11741 = vrot.lane.b32.xlu0 %v11416, 16
  %v11742 = vpop.permute.xlu0 %11741
  %11743 = vrot.lane.b32.xlu0 %v11417, 16
  %v11744 = vpop.permute.xlu0 %11743
  %11745 = vrot.lane.b32.xlu0 %v11418, 16
  %v11746 = vpop.permute.xlu0 %11745
  %11747 = vrot.lane.b32.xlu0 %v11420, 16
  %v11748 = vpop.permute.xlu0 %11747
  %11749 = vrot.lane.b32.xlu0 %v11421, 16
  %v11750 = vpop.permute.xlu0 %11749
  %11751 = vrot.lane.b32.xlu0 %v11422, 16
  %v11752 = vpop.permute.xlu0 %11751
  %11753 = vrot.lane.b32.xlu0 %v11423, 16
  %v11754 = vpop.permute.xlu0 %11753
  %11755 = vrot.lane.b32.xlu0 %v11424, 16
  %v11756 = vpop.permute.xlu0 %11755
  %11757 = vrot.lane.b32.xlu0 %v11425, 16
  %v11758 = vpop.permute.xlu0 %11757
  %11759 = vrot.lane.b32.xlu0 %v11426, 16
  %v11760 = vpop.permute.xlu0 %11759
  %11761 = vrot.lane.b32.xlu0 %v11428, 16
  %v11762 = vpop.permute.xlu0 %11761
  %11763 = vrot.lane.b32.xlu0 %v11429, 16
  %v11764 = vpop.permute.xlu0 %11763
  %11765 = vrot.lane.b32.xlu0 %v11430, 16
  %v11766 = vpop.permute.xlu0 %11765
  %11767 = vrot.lane.b32.xlu0 %v11431, 16
  %v11768 = vpop.permute.xlu0 %11767
  %11769 = vrot.lane.b32.xlu0 %v11432, 16
  %v11770 = vpop.permute.xlu0 %11769
  %11771 = vrot.lane.b32.xlu0 %v11433, 16
  %v11772 = vpop.permute.xlu0 %11771
  %11773 = vrot.lane.b32.xlu0 %v11434, 16
  %v11774 = vpop.permute.xlu0 %11773
  %11775 = vrot.lane.b32.xlu0 %v11436, 16
  %v11776 = vpop.permute.xlu0 %11775
  %11777 = vrot.lane.b32.xlu0 %v11437, 16
  %v11778 = vpop.permute.xlu0 %11777
  %11779 = vrot.lane.b32.xlu0 %v11438, 16
  %v11780 = vpop.permute.xlu0 %11779
  %11781 = vrot.lane.b32.xlu0 %v11439, 16
  %v11782 = vpop.permute.xlu0 %11781
  %11783 = vrot.lane.b32.xlu0 %v11440, 16
  %v11784 = vpop.permute.xlu0 %11783
  %11785 = vrot.lane.b32.xlu0 %v11441, 16
  %v11786 = vpop.permute.xlu0 %11785
  %11787 = vrot.lane.b32.xlu0 %v11442, 16
  %v11788 = vpop.permute.xlu0 %11787
  %11846 = vrot.lane.b32.xlu0 0.0, 24
  %v11847 = vpop.permute.xlu0 %11846
  %11848 = vrot.lane.b32.xlu0 %v11387, 24
  %v11849 = vpop.permute.xlu0 %11848
  %11850 = vrot.lane.b32.xlu0 %v11388, 24
  %v11851 = vpop.permute.xlu0 %11850
  %11852 = vrot.lane.b32.xlu0 %v11389, 24
  %v11853 = vpop.permute.xlu0 %11852
  %11854 = vrot.lane.b32.xlu0 %v11390, 24
  %v11855 = vpop.permute.xlu0 %11854
  %11856 = vrot.lane.b32.xlu0 %v11391, 24
  %v11857 = vpop.permute.xlu0 %11856
  %11858 = vrot.lane.b32.xlu0 %v11392, 24
  %v11859 = vpop.permute.xlu0 %11858
  %11860 = vrot.lane.b32.xlu0 %v11393, 24
  %v11861 = vpop.permute.xlu0 %11860
  %11862 = vrot.lane.b32.xlu0 %v11395, 24
  %v11863 = vpop.permute.xlu0 %11862
  %11864 = vrot.lane.b32.xlu0 %v11396, 24
  %v11865 = vpop.permute.xlu0 %11864
  %11866 = vrot.lane.b32.xlu0 %v11397, 24
  %v11867 = vpop.permute.xlu0 %11866
  %11868 = vrot.lane.b32.xlu0 %v11398, 24
  %v11869 = vpop.permute.xlu0 %11868
  %11870 = vrot.lane.b32.xlu0 %v11399, 24
  %v11871 = vpop.permute.xlu0 %11870
  %11872 = vrot.lane.b32.xlu0 %v11400, 24
  %v11873 = vpop.permute.xlu0 %11872
  %11874 = vrot.lane.b32.xlu0 %v11401, 24
  %v11875 = vpop.permute.xlu0 %11874
  %11876 = vrot.lane.b32.xlu0 %v11403, 24
  %v11877 = vpop.permute.xlu0 %11876
  %11878 = vrot.lane.b32.xlu0 %v11404, 24
  %v11879 = vpop.permute.xlu0 %11878
  %11880 = vrot.lane.b32.xlu0 %v11405, 24
  %v11881 = vpop.permute.xlu0 %11880
  %11882 = vrot.lane.b32.xlu0 %v11406, 24
  %v11883 = vpop.permute.xlu0 %11882
  %11884 = vrot.lane.b32.xlu0 %v11407, 24
  %v11885 = vpop.permute.xlu0 %11884
  %11886 = vrot.lane.b32.xlu0 %v11408, 24
  %v11887 = vpop.permute.xlu0 %11886
  %11888 = vrot.lane.b32.xlu0 %v11409, 24
  %v11889 = vpop.permute.xlu0 %11888
  %11890 = vrot.lane.b32.xlu0 %v11411, 24
  %v11891 = vpop.permute.xlu0 %11890
  %11892 = vrot.lane.b32.xlu0 %v11412, 24
  %v11893 = vpop.permute.xlu0 %11892
  %11894 = vrot.lane.b32.xlu0 %v11413, 24
  %v11895 = vpop.permute.xlu0 %11894
  %11896 = vrot.lane.b32.xlu0 %v11414, 24
  %v11897 = vpop.permute.xlu0 %11896
  %11898 = vrot.lane.b32.xlu0 %v11415, 24
  %v11899 = vpop.permute.xlu0 %11898
  %11900 = vrot.lane.b32.xlu0 %v11416, 24
  %v11901 = vpop.permute.xlu0 %11900
  %11902 = vrot.lane.b32.xlu0 %v11417, 24
  %v11903 = vpop.permute.xlu0 %11902
  %11904 = vrot.lane.b32.xlu0 %v11419, 24
  %v11905 = vpop.permute.xlu0 %11904
  %11906 = vrot.lane.b32.xlu0 %v11420, 24
  %v11907 = vpop.permute.xlu0 %11906
  %11908 = vrot.lane.b32.xlu0 %v11421, 24
  %v11909 = vpop.permute.xlu0 %11908
  %11910 = vrot.lane.b32.xlu0 %v11422, 24
  %v11911 = vpop.permute.xlu0 %11910
  %11912 = vrot.lane.b32.xlu0 %v11423, 24
  %v11913 = vpop.permute.xlu0 %11912
  %11914 = vrot.lane.b32.xlu0 %v11424, 24
  %v11915 = vpop.permute.xlu0 %11914
  %11916 = vrot.lane.b32.xlu0 %v11425, 24
  %v11917 = vpop.permute.xlu0 %11916
  %11918 = vrot.lane.b32.xlu0 %v11427, 24
  %v11919 = vpop.permute.xlu0 %11918
  %11920 = vrot.lane.b32.xlu0 %v11428, 24
  %v11921 = vpop.permute.xlu0 %11920
  %11922 = vrot.lane.b32.xlu0 %v11429, 24
  %v11923 = vpop.permute.xlu0 %11922
  %11924 = vrot.lane.b32.xlu0 %v11430, 24
  %v11925 = vpop.permute.xlu0 %11924
  %11926 = vrot.lane.b32.xlu0 %v11431, 24
  %v11927 = vpop.permute.xlu0 %11926
  %11928 = vrot.lane.b32.xlu0 %v11432, 24
  %v11929 = vpop.permute.xlu0 %11928
  %11930 = vrot.lane.b32.xlu0 %v11433, 24
  %v11931 = vpop.permute.xlu0 %11930
  %11932 = vrot.lane.b32.xlu0 %v11435, 24
  %v11933 = vpop.permute.xlu0 %11932
  %11934 = vrot.lane.b32.xlu0 %v11436, 24
  %v11935 = vpop.permute.xlu0 %11934
  %11936 = vrot.lane.b32.xlu0 %v11437, 24
  %v11937 = vpop.permute.xlu0 %11936
  %11938 = vrot.lane.b32.xlu0 %v11438, 24
  %v11939 = vpop.permute.xlu0 %11938
  %11940 = vrot.lane.b32.xlu0 %v11439, 24
  %v11941 = vpop.permute.xlu0 %11940
  %11942 = vrot.lane.b32.xlu0 %v11440, 24
  %v11943 = vpop.permute.xlu0 %11942
  %11944 = vrot.lane.b32.xlu0 %v11441, 24
  %v11945 = vpop.permute.xlu0 %11944
  %11946 = vrot.lane.b32.xlu0 %v11443, 24
  %v11947 = vpop.permute.xlu0 %11946
  %11948 = vrot.lane.b32.xlu0 %v11444, 24
  %v11949 = vpop.permute.xlu0 %11948
  %11950 = vrot.lane.b32.xlu0 %v11445, 24
  %v11951 = vpop.permute.xlu0 %11950
  %11952 = vrot.lane.b32.xlu0 %v11446, 24
  %v11953 = vpop.permute.xlu0 %11952
  %11954 = vrot.lane.b32.xlu0 %v11447, 24
  %v11955 = vpop.permute.xlu0 %11954
  %11956 = vrot.lane.b32.xlu0 %v11448, 24
  %v11957 = vpop.permute.xlu0 %11956
  %11958 = vrot.lane.b32.xlu0 %v11449, 24
  %v11959 = vpop.permute.xlu0 %11958
  %12018 = vrot.lane.b32.xlu0 %v11387, 32
  %v12019 = vpop.permute.xlu0 %12018
  %12020 = vrot.lane.b32.xlu0 %v11388, 32
  %v12021 = vpop.permute.xlu0 %12020
  %12022 = vrot.lane.b32.xlu0 %v11389, 32
  %v12023 = vpop.permute.xlu0 %12022
  %12024 = vrot.lane.b32.xlu0 %v11390, 32
  %v12025 = vpop.permute.xlu0 %12024
  %12026 = vrot.lane.b32.xlu0 %v11391, 32
  %v12027 = vpop.permute.xlu0 %12026
  %12028 = vrot.lane.b32.xlu0 %v11392, 32
  %v12029 = vpop.permute.xlu0 %12028
  %12030 = vrot.lane.b32.xlu0 %v11393, 32
  %v12031 = vpop.permute.xlu0 %12030
  %12032 = vrot.lane.b32.xlu0 %v11394, 32
  %v12033 = vpop.permute.xlu0 %12032
  %12034 = vrot.lane.b32.xlu0 %v11395, 32
  %v12035 = vpop.permute.xlu0 %12034
  %12036 = vrot.lane.b32.xlu0 %v11396, 32
  %v12037 = vpop.permute.xlu0 %12036
  %12038 = vrot.lane.b32.xlu0 %v11397, 32
  %v12039 = vpop.permute.xlu0 %12038
  %12040 = vrot.lane.b32.xlu0 %v11398, 32
  %v12041 = vpop.permute.xlu0 %12040
  %12042 = vrot.lane.b32.xlu0 %v11399, 32
  %v12043 = vpop.permute.xlu0 %12042
  %12044 = vrot.lane.b32.xlu0 %v11400, 32
  %v12045 = vpop.permute.xlu0 %12044
  %12046 = vrot.lane.b32.xlu0 %v11401, 32
  %v12047 = vpop.permute.xlu0 %12046
  %12048 = vrot.lane.b32.xlu0 %v11402, 32
  %v12049 = vpop.permute.xlu0 %12048
  %12050 = vrot.lane.b32.xlu0 %v11403, 32
  %v12051 = vpop.permute.xlu0 %12050
  %12052 = vrot.lane.b32.xlu0 %v11404, 32
  %v12053 = vpop.permute.xlu0 %12052
  %12054 = vrot.lane.b32.xlu0 %v11405, 32
  %v12055 = vpop.permute.xlu0 %12054
  %12056 = vrot.lane.b32.xlu0 %v11406, 32
  %v12057 = vpop.permute.xlu0 %12056
  %12058 = vrot.lane.b32.xlu0 %v11407, 32
  %v12059 = vpop.permute.xlu0 %12058
  %12060 = vrot.lane.b32.xlu0 %v11408, 32
  %v12061 = vpop.permute.xlu0 %12060
  %12062 = vrot.lane.b32.xlu0 %v11409, 32
  %v12063 = vpop.permute.xlu0 %12062
  %12064 = vrot.lane.b32.xlu0 %v11410, 32
  %v12065 = vpop.permute.xlu0 %12064
  %12066 = vrot.lane.b32.xlu0 %v11411, 32
  %v12067 = vpop.permute.xlu0 %12066
  %12068 = vrot.lane.b32.xlu0 %v11412, 32
  %v12069 = vpop.permute.xlu0 %12068
  %12070 = vrot.lane.b32.xlu0 %v11413, 32
  %v12071 = vpop.permute.xlu0 %12070
  %12072 = vrot.lane.b32.xlu0 %v11414, 32
  %v12073 = vpop.permute.xlu0 %12072
  %12074 = vrot.lane.b32.xlu0 %v11415, 32
  %v12075 = vpop.permute.xlu0 %12074
  %12076 = vrot.lane.b32.xlu0 %v11416, 32
  %v12077 = vpop.permute.xlu0 %12076
  %12078 = vrot.lane.b32.xlu0 %v11417, 32
  %v12079 = vpop.permute.xlu0 %12078
  %12080 = vrot.lane.b32.xlu0 %v11418, 32
  %v12081 = vpop.permute.xlu0 %12080
  %12082 = vrot.lane.b32.xlu0 %v11419, 32
  %v12083 = vpop.permute.xlu0 %12082
  %12084 = vrot.lane.b32.xlu0 %v11420, 32
  %v12085 = vpop.permute.xlu0 %12084
  %12086 = vrot.lane.b32.xlu0 %v11421, 32
  %v12087 = vpop.permute.xlu0 %12086
  %12088 = vrot.lane.b32.xlu0 %v11422, 32
  %v12089 = vpop.permute.xlu0 %12088
  %12090 = vrot.lane.b32.xlu0 %v11423, 32
  %v12091 = vpop.permute.xlu0 %12090
  %12092 = vrot.lane.b32.xlu0 %v11424, 32
  %v12093 = vpop.permute.xlu0 %12092
  %12094 = vrot.lane.b32.xlu0 %v11425, 32
  %v12095 = vpop.permute.xlu0 %12094
  %12096 = vrot.lane.b32.xlu0 %v11426, 32
  %v12097 = vpop.permute.xlu0 %12096
  %12098 = vrot.lane.b32.xlu0 %v11427, 32
  %v12099 = vpop.permute.xlu0 %12098
  %12100 = vrot.lane.b32.xlu0 %v11428, 32
  %v12101 = vpop.permute.xlu0 %12100
  %12102 = vrot.lane.b32.xlu0 %v11429, 32
  %v12103 = vpop.permute.xlu0 %12102
  %12104 = vrot.lane.b32.xlu0 %v11430, 32
  %v12105 = vpop.permute.xlu0 %12104
  %12106 = vrot.lane.b32.xlu0 %v11431, 32
  %v12107 = vpop.permute.xlu0 %12106
  %12108 = vrot.lane.b32.xlu0 %v11432, 32
  %v12109 = vpop.permute.xlu0 %12108
  %12110 = vrot.lane.b32.xlu0 %v11433, 32
  %v12111 = vpop.permute.xlu0 %12110
  %12112 = vrot.lane.b32.xlu0 %v11434, 32
  %v12113 = vpop.permute.xlu0 %12112
  %12114 = vrot.lane.b32.xlu0 %v11435, 32
  %v12115 = vpop.permute.xlu0 %12114
  %12116 = vrot.lane.b32.xlu0 %v11436, 32
  %v12117 = vpop.permute.xlu0 %12116
  %12118 = vrot.lane.b32.xlu0 %v11437, 32
  %v12119 = vpop.permute.xlu0 %12118
  %12120 = vrot.lane.b32.xlu0 %v11438, 32
  %v12121 = vpop.permute.xlu0 %12120
  %12122 = vrot.lane.b32.xlu0 %v11439, 32
  %v12123 = vpop.permute.xlu0 %12122
  %12124 = vrot.lane.b32.xlu0 %v11440, 32
  %v12125 = vpop.permute.xlu0 %12124
  %12126 = vrot.lane.b32.xlu0 %v11441, 32
  %v12127 = vpop.permute.xlu0 %12126
  %12128 = vrot.lane.b32.xlu0 %v11442, 32
  %v12129 = vpop.permute.xlu0 %12128
  %12130 = vrot.lane.b32.xlu0 %v11443, 32
  %v12131 = vpop.permute.xlu0 %12130
  %12132 = vrot.lane.b32.xlu0 %v11444, 32
  %v12133 = vpop.permute.xlu0 %12132
  %12134 = vrot.lane.b32.xlu0 %v11445, 32
  %v12135 = vpop.permute.xlu0 %12134
  %12136 = vrot.lane.b32.xlu0 %v11446, 32
  %v12137 = vpop.permute.xlu0 %12136
  %12138 = vrot.lane.b32.xlu0 %v11447, 32
  %v12139 = vpop.permute.xlu0 %12138
  %12140 = vrot.lane.b32.xlu0 %v11448, 32
  %v12141 = vpop.permute.xlu0 %12140
  %12142 = vrot.lane.b32.xlu0 %v11449, 32
  %v12143 = vpop.permute.xlu0 %12142
  %12144 = vrot.lane.b32.xlu0 %v11450, 32
  %v12145 = vpop.permute.xlu0 %12144
  %12210 = vrot.lane.b32.xlu0 %v11388, 40
  %v12211 = vpop.permute.xlu0 %12210
  %12212 = vrot.lane.b32.xlu0 %v11389, 40
  %v12213 = vpop.permute.xlu0 %12212
  %12214 = vrot.lane.b32.xlu0 %v11390, 40
  %v12215 = vpop.permute.xlu0 %12214
  %12216 = vrot.lane.b32.xlu0 %v11391, 40
  %v12217 = vpop.permute.xlu0 %12216
  %12218 = vrot.lane.b32.xlu0 %v11392, 40
  %v12219 = vpop.permute.xlu0 %12218
  %12220 = vrot.lane.b32.xlu0 %v11393, 40
  %v12221 = vpop.permute.xlu0 %12220
  %12222 = vrot.lane.b32.xlu0 %v11394, 40
  %v12223 = vpop.permute.xlu0 %12222
  %12224 = vrot.lane.b32.xlu0 0.0, 40
  %v12225 = vpop.permute.xlu0 %12224
  %12226 = vrot.lane.b32.xlu0 %v11396, 40
  %v12227 = vpop.permute.xlu0 %12226
  %12228 = vrot.lane.b32.xlu0 %v11397, 40
  %v12229 = vpop.permute.xlu0 %12228
  %12230 = vrot.lane.b32.xlu0 %v11398, 40
  %v12231 = vpop.permute.xlu0 %12230
  %12232 = vrot.lane.b32.xlu0 %v11399, 40
  %v12233 = vpop.permute.xlu0 %12232
  %12234 = vrot.lane.b32.xlu0 %v11400, 40
  %v12235 = vpop.permute.xlu0 %12234
  %12236 = vrot.lane.b32.xlu0 %v11401, 40
  %v12237 = vpop.permute.xlu0 %12236
  %12238 = vrot.lane.b32.xlu0 %v11402, 40
  %v12239 = vpop.permute.xlu0 %12238
  %12240 = vrot.lane.b32.xlu0 %v11404, 40
  %v12241 = vpop.permute.xlu0 %12240
  %12242 = vrot.lane.b32.xlu0 %v11405, 40
  %v12243 = vpop.permute.xlu0 %12242
  %12244 = vrot.lane.b32.xlu0 %v11406, 40
  %v12245 = vpop.permute.xlu0 %12244
  %12246 = vrot.lane.b32.xlu0 %v11407, 40
  %v12247 = vpop.permute.xlu0 %12246
  %12248 = vrot.lane.b32.xlu0 %v11408, 40
  %v12249 = vpop.permute.xlu0 %12248
  %12250 = vrot.lane.b32.xlu0 %v11409, 40
  %v12251 = vpop.permute.xlu0 %12250
  %12252 = vrot.lane.b32.xlu0 %v11410, 40
  %v12253 = vpop.permute.xlu0 %12252
  %12254 = vrot.lane.b32.xlu0 %v11412, 40
  %v12255 = vpop.permute.xlu0 %12254
  %12256 = vrot.lane.b32.xlu0 %v11413, 40
  %v12257 = vpop.permute.xlu0 %12256
  %12258 = vrot.lane.b32.xlu0 %v11414, 40
  %v12259 = vpop.permute.xlu0 %12258
  %12260 = vrot.lane.b32.xlu0 %v11415, 40
  %v12261 = vpop.permute.xlu0 %12260
  %12262 = vrot.lane.b32.xlu0 %v11416, 40
  %v12263 = vpop.permute.xlu0 %12262
  %12264 = vrot.lane.b32.xlu0 %v11417, 40
  %v12265 = vpop.permute.xlu0 %12264
  %12266 = vrot.lane.b32.xlu0 %v11418, 40
  %v12267 = vpop.permute.xlu0 %12266
  %12268 = vrot.lane.b32.xlu0 %v11420, 40
  %v12269 = vpop.permute.xlu0 %12268
  %12270 = vrot.lane.b32.xlu0 %v11421, 40
  %v12271 = vpop.permute.xlu0 %12270
  %12272 = vrot.lane.b32.xlu0 %v11422, 40
  %v12273 = vpop.permute.xlu0 %12272
  %12274 = vrot.lane.b32.xlu0 %v11423, 40
  %v12275 = vpop.permute.xlu0 %12274
  %12276 = vrot.lane.b32.xlu0 %v11424, 40
  %v12277 = vpop.permute.xlu0 %12276
  %12278 = vrot.lane.b32.xlu0 %v11425, 40
  %v12279 = vpop.permute.xlu0 %12278
  %12280 = vrot.lane.b32.xlu0 %v11426, 40
  %v12281 = vpop.permute.xlu0 %12280
  %12282 = vrot.lane.b32.xlu0 %v11428, 40
  %v12283 = vpop.permute.xlu0 %12282
  %12284 = vrot.lane.b32.xlu0 %v11429, 40
  %v12285 = vpop.permute.xlu0 %12284
  %12286 = vrot.lane.b32.xlu0 %v11430, 40
  %v12287 = vpop.permute.xlu0 %12286
  %12288 = vrot.lane.b32.xlu0 %v11431, 40
  %v12289 = vpop.permute.xlu0 %12288
  %12290 = vrot.lane.b32.xlu0 %v11432, 40
  %v12291 = vpop.permute.xlu0 %12290
  %12292 = vrot.lane.b32.xlu0 %v11433, 40
  %v12293 = vpop.permute.xlu0 %12292
  %12294 = vrot.lane.b32.xlu0 %v11434, 40
  %v12295 = vpop.permute.xlu0 %12294
  %12296 = vrot.lane.b32.xlu0 %v11436, 40
  %v12297 = vpop.permute.xlu0 %12296
  %12298 = vrot.lane.b32.xlu0 %v11437, 40
  %v12299 = vpop.permute.xlu0 %12298
  %12300 = vrot.lane.b32.xlu0 %v11438, 40
  %v12301 = vpop.permute.xlu0 %12300
  %12302 = vrot.lane.b32.xlu0 %v11439, 40
  %v12303 = vpop.permute.xlu0 %12302
  %12304 = vrot.lane.b32.xlu0 %v11440, 40
  %v12305 = vpop.permute.xlu0 %12304
  %12306 = vrot.lane.b32.xlu0 %v11441, 40
  %v12307 = vpop.permute.xlu0 %12306
  %12308 = vrot.lane.b32.xlu0 %v11442, 40
  %v12309 = vpop.permute.xlu0 %12308
  %12310 = vrot.lane.b32.xlu0 %v11444, 40
  %v12311 = vpop.permute.xlu0 %12310
  %12312 = vrot.lane.b32.xlu0 %v11445, 40
  %v12313 = vpop.permute.xlu0 %12312
  %12314 = vrot.lane.b32.xlu0 %v11446, 40
  %v12315 = vpop.permute.xlu0 %12314
  %12316 = vrot.lane.b32.xlu0 %v11447, 40
  %v12317 = vpop.permute.xlu0 %12316
  %12318 = vrot.lane.b32.xlu0 %v11448, 40
  %v12319 = vpop.permute.xlu0 %12318
  %12320 = vrot.lane.b32.xlu0 %v11449, 40
  %v12321 = vpop.permute.xlu0 %12320
  %12322 = vrot.lane.b32.xlu0 %v11450, 40
  %v12323 = vpop.permute.xlu0 %12322
  %12381 = vrot.lane.b32.xlu0 0.0, 48
  %v12382 = vpop.permute.xlu0 %12381
  %12383 = vrot.lane.b32.xlu0 %v11395, 48
  %v12384 = vpop.permute.xlu0 %12383
  %12385 = vrot.lane.b32.xlu0 %v11396, 48
  %v12386 = vpop.permute.xlu0 %12385
  %12387 = vrot.lane.b32.xlu0 %v11397, 48
  %v12388 = vpop.permute.xlu0 %12387
  %12389 = vrot.lane.b32.xlu0 %v11398, 48
  %v12390 = vpop.permute.xlu0 %12389
  %12391 = vrot.lane.b32.xlu0 %v11399, 48
  %v12392 = vpop.permute.xlu0 %12391
  %12393 = vrot.lane.b32.xlu0 %v11400, 48
  %v12394 = vpop.permute.xlu0 %12393
  %12395 = vrot.lane.b32.xlu0 %v11401, 48
  %v12396 = vpop.permute.xlu0 %12395
  %12397 = vrot.lane.b32.xlu0 %v11403, 48
  %v12398 = vpop.permute.xlu0 %12397
  %12399 = vrot.lane.b32.xlu0 %v11404, 48
  %v12400 = vpop.permute.xlu0 %12399
  %12401 = vrot.lane.b32.xlu0 %v11405, 48
  %v12402 = vpop.permute.xlu0 %12401
  %12403 = vrot.lane.b32.xlu0 %v11406, 48
  %v12404 = vpop.permute.xlu0 %12403
  %12405 = vrot.lane.b32.xlu0 %v11407, 48
  %v12406 = vpop.permute.xlu0 %12405
  %12407 = vrot.lane.b32.xlu0 %v11408, 48
  %v12408 = vpop.permute.xlu0 %12407
  %12409 = vrot.lane.b32.xlu0 %v11409, 48
  %v12410 = vpop.permute.xlu0 %12409
  %12411 = vrot.lane.b32.xlu0 %v11411, 48
  %v12412 = vpop.permute.xlu0 %12411
  %12413 = vrot.lane.b32.xlu0 %v11412, 48
  %v12414 = vpop.permute.xlu0 %12413
  %12415 = vrot.lane.b32.xlu0 %v11413, 48
  %v12416 = vpop.permute.xlu0 %12415
  %12417 = vrot.lane.b32.xlu0 %v11414, 48
  %v12418 = vpop.permute.xlu0 %12417
  %12419 = vrot.lane.b32.xlu0 %v11415, 48
  %v12420 = vpop.permute.xlu0 %12419
  %12421 = vrot.lane.b32.xlu0 %v11416, 48
  %v12422 = vpop.permute.xlu0 %12421
  %12423 = vrot.lane.b32.xlu0 %v11417, 48
  %v12424 = vpop.permute.xlu0 %12423
  %12425 = vrot.lane.b32.xlu0 %v11419, 48
  %v12426 = vpop.permute.xlu0 %12425
  %12427 = vrot.lane.b32.xlu0 %v11420, 48
  %v12428 = vpop.permute.xlu0 %12427
  %12429 = vrot.lane.b32.xlu0 %v11421, 48
  %v12430 = vpop.permute.xlu0 %12429
  %12431 = vrot.lane.b32.xlu0 %v11422, 48
  %v12432 = vpop.permute.xlu0 %12431
  %12433 = vrot.lane.b32.xlu0 %v11423, 48
  %v12434 = vpop.permute.xlu0 %12433
  %12435 = vrot.lane.b32.xlu0 %v11424, 48
  %v12436 = vpop.permute.xlu0 %12435
  %12437 = vrot.lane.b32.xlu0 %v11425, 48
  %v12438 = vpop.permute.xlu0 %12437
  %12439 = vrot.lane.b32.xlu0 %v11427, 48
  %v12440 = vpop.permute.xlu0 %12439
  %12441 = vrot.lane.b32.xlu0 %v11428, 48
  %v12442 = vpop.permute.xlu0 %12441
  %12443 = vrot.lane.b32.xlu0 %v11429, 48
  %v12444 = vpop.permute.xlu0 %12443
  %12445 = vrot.lane.b32.xlu0 %v11430, 48
  %v12446 = vpop.permute.xlu0 %12445
  %12447 = vrot.lane.b32.xlu0 %v11431, 48
  %v12448 = vpop.permute.xlu0 %12447
  %12449 = vrot.lane.b32.xlu0 %v11432, 48
  %v12450 = vpop.permute.xlu0 %12449
  %12451 = vrot.lane.b32.xlu0 %v11433, 48
  %v12452 = vpop.permute.xlu0 %12451
  %12453 = vrot.lane.b32.xlu0 %v11435, 48
  %v12454 = vpop.permute.xlu0 %12453
  %12455 = vrot.lane.b32.xlu0 %v11436, 48
  %v12456 = vpop.permute.xlu0 %12455
  %12457 = vrot.lane.b32.xlu0 %v11437, 48
  %v12458 = vpop.permute.xlu0 %12457
  %12459 = vrot.lane.b32.xlu0 %v11438, 48
  %v12460 = vpop.permute.xlu0 %12459
  %12461 = vrot.lane.b32.xlu0 %v11439, 48
  %v12462 = vpop.permute.xlu0 %12461
  %12463 = vrot.lane.b32.xlu0 %v11440, 48
  %v12464 = vpop.permute.xlu0 %12463
  %12465 = vrot.lane.b32.xlu0 %v11441, 48
  %v12466 = vpop.permute.xlu0 %12465
  %12467 = vrot.lane.b32.xlu0 %v11443, 48
  %v12468 = vpop.permute.xlu0 %12467
  %12469 = vrot.lane.b32.xlu0 %v11444, 48
  %v12470 = vpop.permute.xlu0 %12469
  %12471 = vrot.lane.b32.xlu0 %v11445, 48
  %v12472 = vpop.permute.xlu0 %12471
  %12473 = vrot.lane.b32.xlu0 %v11446, 48
  %v12474 = vpop.permute.xlu0 %12473
  %12475 = vrot.lane.b32.xlu0 %v11447, 48
  %v12476 = vpop.permute.xlu0 %12475
  %12477 = vrot.lane.b32.xlu0 %v11448, 48
  %v12478 = vpop.permute.xlu0 %12477
  %12479 = vrot.lane.b32.xlu0 %v11449, 48
  %v12480 = vpop.permute.xlu0 %12479
  %12531 = vrot.lane.b32.xlu0 %v11395, 56
  %v12532 = vpop.permute.xlu0 %12531
  %12533 = vrot.lane.b32.xlu0 %v11396, 56
  %v12534 = vpop.permute.xlu0 %12533
  %12535 = vrot.lane.b32.xlu0 %v11397, 56
  %v12536 = vpop.permute.xlu0 %12535
  %12537 = vrot.lane.b32.xlu0 %v11398, 56
  %v12538 = vpop.permute.xlu0 %12537
  %12539 = vrot.lane.b32.xlu0 %v11399, 56
  %v12540 = vpop.permute.xlu0 %12539
  %12541 = vrot.lane.b32.xlu0 %v11400, 56
  %v12542 = vpop.permute.xlu0 %12541
  %12543 = vrot.lane.b32.xlu0 %v11401, 56
  %v12544 = vpop.permute.xlu0 %12543
  %12545 = vrot.lane.b32.xlu0 %v11402, 56
  %v12546 = vpop.permute.xlu0 %12545
  %12547 = vrot.lane.b32.xlu0 %v11403, 56
  %v12548 = vpop.permute.xlu0 %12547
  %12549 = vrot.lane.b32.xlu0 %v11404, 56
  %v12550 = vpop.permute.xlu0 %12549
  %12551 = vrot.lane.b32.xlu0 %v11405, 56
  %v12552 = vpop.permute.xlu0 %12551
  %12553 = vrot.lane.b32.xlu0 %v11406, 56
  %v12554 = vpop.permute.xlu0 %12553
  %12555 = vrot.lane.b32.xlu0 %v11407, 56
  %v12556 = vpop.permute.xlu0 %12555
  %12557 = vrot.lane.b32.xlu0 %v11408, 56
  %v12558 = vpop.permute.xlu0 %12557
  %12559 = vrot.lane.b32.xlu0 %v11409, 56
  %v12560 = vpop.permute.xlu0 %12559
  %12561 = vrot.lane.b32.xlu0 %v11410, 56
  %v12562 = vpop.permute.xlu0 %12561
  %12563 = vrot.lane.b32.xlu0 %v11411, 56
  %v12564 = vpop.permute.xlu0 %12563
  %12565 = vrot.lane.b32.xlu0 %v11412, 56
  %v12566 = vpop.permute.xlu0 %12565
  %12567 = vrot.lane.b32.xlu0 %v11413, 56
  %v12568 = vpop.permute.xlu0 %12567
  %12569 = vrot.lane.b32.xlu0 %v11414, 56
  %v12570 = vpop.permute.xlu0 %12569
  %12571 = vrot.lane.b32.xlu0 %v11415, 56
  %v12572 = vpop.permute.xlu0 %12571
  %12573 = vrot.lane.b32.xlu0 %v11416, 56
  %v12574 = vpop.permute.xlu0 %12573
  %12575 = vrot.lane.b32.xlu0 %v11417, 56
  %v12576 = vpop.permute.xlu0 %12575
  %12577 = vrot.lane.b32.xlu0 %v11418, 56
  %v12578 = vpop.permute.xlu0 %12577
  %12579 = vrot.lane.b32.xlu0 %v11419, 56
  %v12580 = vpop.permute.xlu0 %12579
  %12581 = vrot.lane.b32.xlu0 %v11420, 56
  %v12582 = vpop.permute.xlu0 %12581
  %12583 = vrot.lane.b32.xlu0 %v11421, 56
  %v12584 = vpop.permute.xlu0 %12583
  %12585 = vrot.lane.b32.xlu0 %v11422, 56
  %v12586 = vpop.permute.xlu0 %12585
  %12587 = vrot.lane.b32.xlu0 %v11423, 56
  %v12588 = vpop.permute.xlu0 %12587
  %12589 = vrot.lane.b32.xlu0 %v11424, 56
  %v12590 = vpop.permute.xlu0 %12589
  %12591 = vrot.lane.b32.xlu0 %v11425, 56
  %v12592 = vpop.permute.xlu0 %12591
  %12593 = vrot.lane.b32.xlu0 %v11426, 56
  %v12594 = vpop.permute.xlu0 %12593
  %12595 = vrot.lane.b32.xlu0 %v11427, 56
  %v12596 = vpop.permute.xlu0 %12595
  %12597 = vrot.lane.b32.xlu0 %v11428, 56
  %v12598 = vpop.permute.xlu0 %12597
  %12599 = vrot.lane.b32.xlu0 %v11429, 56
  %v12600 = vpop.permute.xlu0 %12599
  %12601 = vrot.lane.b32.xlu0 %v11430, 56
  %v12602 = vpop.permute.xlu0 %12601
  %12603 = vrot.lane.b32.xlu0 %v11431, 56
  %v12604 = vpop.permute.xlu0 %12603
  %12605 = vrot.lane.b32.xlu0 %v11432, 56
  %v12606 = vpop.permute.xlu0 %12605
  %12607 = vrot.lane.b32.xlu0 %v11433, 56
  %v12608 = vpop.permute.xlu0 %12607
  %12609 = vrot.lane.b32.xlu0 %v11434, 56
  %v12610 = vpop.permute.xlu0 %12609
  %12611 = vrot.lane.b32.xlu0 %v11435, 56
  %v12612 = vpop.permute.xlu0 %12611
  %12613 = vrot.lane.b32.xlu0 %v11436, 56
  %v12614 = vpop.permute.xlu0 %12613
  %12615 = vrot.lane.b32.xlu0 %v11437, 56
  %v12616 = vpop.permute.xlu0 %12615
  %12617 = vrot.lane.b32.xlu0 %v11438, 56
  %v12618 = vpop.permute.xlu0 %12617
  %12619 = vrot.lane.b32.xlu0 %v11439, 56
  %v12620 = vpop.permute.xlu0 %12619
  %12621 = vrot.lane.b32.xlu0 %v11440, 56
  %v12622 = vpop.permute.xlu0 %12621
  %12623 = vrot.lane.b32.xlu0 %v11441, 56
  %v12624 = vpop.permute.xlu0 %12623
  %12625 = vrot.lane.b32.xlu0 %v11442, 56
  %v12626 = vpop.permute.xlu0 %12625
  %12627 = vrot.lane.b32.xlu0 %v11443, 56
  %v12628 = vpop.permute.xlu0 %12627
  %12629 = vrot.lane.b32.xlu0 %v11444, 56
  %v12630 = vpop.permute.xlu0 %12629
  %12631 = vrot.lane.b32.xlu0 %v11445, 56
  %v12632 = vpop.permute.xlu0 %12631
  %12633 = vrot.lane.b32.xlu0 %v11446, 56
  %v12634 = vpop.permute.xlu0 %12633
  %12635 = vrot.lane.b32.xlu0 %v11447, 56
  %v12636 = vpop.permute.xlu0 %12635
  %12637 = vrot.lane.b32.xlu0 %v11448, 56
  %v12638 = vpop.permute.xlu0 %12637
  %12639 = vrot.lane.b32.xlu0 %v11449, 56
  %v12640 = vpop.permute.xlu0 %12639
  %12641 = vrot.lane.b32.xlu0 %v11450, 56
  %v12642 = vpop.permute.xlu0 %12641
  %12643 = vrot.lane.b32.xlu0 0.0, 56
  %v12644 = vpop.permute.xlu0 %12643
  %12702 = vrot.lane.b32.xlu0 %v11396, 64
  %v12703 = vpop.permute.xlu0 %12702
  %12704 = vrot.lane.b32.xlu0 %v11397, 64
  %v12705 = vpop.permute.xlu0 %12704
  %12706 = vrot.lane.b32.xlu0 %v11398, 64
  %v12707 = vpop.permute.xlu0 %12706
  %12708 = vrot.lane.b32.xlu0 %v11399, 64
  %v12709 = vpop.permute.xlu0 %12708
  %12710 = vrot.lane.b32.xlu0 %v11400, 64
  %v12711 = vpop.permute.xlu0 %12710
  %12712 = vrot.lane.b32.xlu0 %v11401, 64
  %v12713 = vpop.permute.xlu0 %12712
  %12714 = vrot.lane.b32.xlu0 %v11402, 64
  %v12715 = vpop.permute.xlu0 %12714
  %12716 = vrot.lane.b32.xlu0 0.0, 64
  %v12717 = vpop.permute.xlu0 %12716
  %12718 = vrot.lane.b32.xlu0 %v11404, 64
  %v12719 = vpop.permute.xlu0 %12718
  %12720 = vrot.lane.b32.xlu0 %v11405, 64
  %v12721 = vpop.permute.xlu0 %12720
  %12722 = vrot.lane.b32.xlu0 %v11406, 64
  %v12723 = vpop.permute.xlu0 %12722
  %12724 = vrot.lane.b32.xlu0 %v11407, 64
  %v12725 = vpop.permute.xlu0 %12724
  %12726 = vrot.lane.b32.xlu0 %v11408, 64
  %v12727 = vpop.permute.xlu0 %12726
  %12728 = vrot.lane.b32.xlu0 %v11409, 64
  %v12729 = vpop.permute.xlu0 %12728
  %12730 = vrot.lane.b32.xlu0 %v11410, 64
  %v12731 = vpop.permute.xlu0 %12730
  %12732 = vrot.lane.b32.xlu0 %v11412, 64
  %v12733 = vpop.permute.xlu0 %12732
  %12734 = vrot.lane.b32.xlu0 %v11413, 64
  %v12735 = vpop.permute.xlu0 %12734
  %12736 = vrot.lane.b32.xlu0 %v11414, 64
  %v12737 = vpop.permute.xlu0 %12736
  %12738 = vrot.lane.b32.xlu0 %v11415, 64
  %v12739 = vpop.permute.xlu0 %12738
  %12740 = vrot.lane.b32.xlu0 %v11416, 64
  %v12741 = vpop.permute.xlu0 %12740
  %12742 = vrot.lane.b32.xlu0 %v11417, 64
  %v12743 = vpop.permute.xlu0 %12742
  %12744 = vrot.lane.b32.xlu0 %v11418, 64
  %v12745 = vpop.permute.xlu0 %12744
  %12746 = vrot.lane.b32.xlu0 %v11420, 64
  %v12747 = vpop.permute.xlu0 %12746
  %12748 = vrot.lane.b32.xlu0 %v11421, 64
  %v12749 = vpop.permute.xlu0 %12748
  %12750 = vrot.lane.b32.xlu0 %v11422, 64
  %v12751 = vpop.permute.xlu0 %12750
  %12752 = vrot.lane.b32.xlu0 %v11423, 64
  %v12753 = vpop.permute.xlu0 %12752
  %12754 = vrot.lane.b32.xlu0 %v11424, 64
  %v12755 = vpop.permute.xlu0 %12754
  %12756 = vrot.lane.b32.xlu0 %v11425, 64
  %v12757 = vpop.permute.xlu0 %12756
  %12758 = vrot.lane.b32.xlu0 %v11426, 64
  %v12759 = vpop.permute.xlu0 %12758
  %12760 = vrot.lane.b32.xlu0 %v11428, 64
  %v12761 = vpop.permute.xlu0 %12760
  %12762 = vrot.lane.b32.xlu0 %v11429, 64
  %v12763 = vpop.permute.xlu0 %12762
  %12764 = vrot.lane.b32.xlu0 %v11430, 64
  %v12765 = vpop.permute.xlu0 %12764
  %12766 = vrot.lane.b32.xlu0 %v11431, 64
  %v12767 = vpop.permute.xlu0 %12766
  %12768 = vrot.lane.b32.xlu0 %v11432, 64
  %v12769 = vpop.permute.xlu0 %12768
  %12770 = vrot.lane.b32.xlu0 %v11433, 64
  %v12771 = vpop.permute.xlu0 %12770
  %12772 = vrot.lane.b32.xlu0 %v11434, 64
  %v12773 = vpop.permute.xlu0 %12772
  %12774 = vrot.lane.b32.xlu0 %v11436, 64
  %v12775 = vpop.permute.xlu0 %12774
  %12776 = vrot.lane.b32.xlu0 %v11437, 64
  %v12777 = vpop.permute.xlu0 %12776
  %12778 = vrot.lane.b32.xlu0 %v11438, 64
  %v12779 = vpop.permute.xlu0 %12778
  %12780 = vrot.lane.b32.xlu0 %v11439, 64
  %v12781 = vpop.permute.xlu0 %12780
  %12782 = vrot.lane.b32.xlu0 %v11440, 64
  %v12783 = vpop.permute.xlu0 %12782
  %12784 = vrot.lane.b32.xlu0 %v11441, 64
  %v12785 = vpop.permute.xlu0 %12784
  %12786 = vrot.lane.b32.xlu0 %v11442, 64
  %v12787 = vpop.permute.xlu0 %12786
  %12788 = vrot.lane.b32.xlu0 %v11444, 64
  %v12789 = vpop.permute.xlu0 %12788
  %12790 = vrot.lane.b32.xlu0 %v11445, 64
  %v12791 = vpop.permute.xlu0 %12790
  %12792 = vrot.lane.b32.xlu0 %v11446, 64
  %v12793 = vpop.permute.xlu0 %12792
  %12794 = vrot.lane.b32.xlu0 %v11447, 64
  %v12795 = vpop.permute.xlu0 %12794
  %12796 = vrot.lane.b32.xlu0 %v11448, 64
  %v12797 = vpop.permute.xlu0 %12796
  %12798 = vrot.lane.b32.xlu0 %v11449, 64
  %v12799 = vpop.permute.xlu0 %12798
  %12800 = vrot.lane.b32.xlu0 %v11450, 64
  %v12801 = vpop.permute.xlu0 %12800
  %v12852 = vsel %vm7080, 0.0, %v11519
  %v12853 = vsel %vm7080, 0.0, %v11521
  %v12854 = vsel %vm7080, %v11387, %v11523
  %v12855 = vsel %vm7080, %v11388, %v11525
  %v12856 = vsel %vm7080, %v11389, %v11527
  %v12857 = vsel %vm7080, %v11390, %v11529
  %v12858 = vsel %vm7080, %v11391, %v11531
  %v12859 = vsel %vm7080, %v11392, %v11533
  %v12860 = vsel %vm7080, %v11393, %v11535
  %v12861 = vsel %vm7080, 0.0, %v11537
  %v12862 = vsel %vm7080, %v11395, %v11539
  %v12863 = vsel %vm7080, %v11396, %v11541
  %v12864 = vsel %vm7080, %v11397, %v11543
  %v12865 = vsel %vm7080, %v11398, %v11545
  %v12866 = vsel %vm7080, %v11399, %v11547
  %v12867 = vsel %vm7080, %v11400, %v11549
  %v12868 = vsel %vm7080, %v11401, %v11551
  %v12869 = vsel %vm7080, 0.0, %v11553
  %v12870 = vsel %vm7080, %v11403, %v11555
  %v12871 = vsel %vm7080, %v11404, %v11557
  %v12872 = vsel %vm7080, %v11405, %v11559
  %v12873 = vsel %vm7080, %v11406, %v11561
  %v12874 = vsel %vm7080, %v11407, %v11563
  %v12875 = vsel %vm7080, %v11408, %v11565
  %v12876 = vsel %vm7080, %v11409, %v11567
  %v12877 = vsel %vm7080, 0.0, %v11569
  %v12878 = vsel %vm7080, %v11411, %v11571
  %v12879 = vsel %vm7080, %v11412, %v11573
  %v12880 = vsel %vm7080, %v11413, %v11575
  %v12881 = vsel %vm7080, %v11414, %v11577
  %v12882 = vsel %vm7080, %v11415, %v11579
  %v12883 = vsel %vm7080, %v11416, %v11581
  %v12884 = vsel %vm7080, %v11417, %v11583
  %v12885 = vsel %vm7080, 0.0, %v11585
  %v12886 = vsel %vm7080, %v11419, %v11587
  %v12887 = vsel %vm7080, %v11420, %v11589
  %v12888 = vsel %vm7080, %v11421, %v11591
  %v12889 = vsel %vm7080, %v11422, %v11593
  %v12890 = vsel %vm7080, %v11423, %v11595
  %v12891 = vsel %vm7080, %v11424, %v11597
  %v12892 = vsel %vm7080, %v11425, %v11599
  %v12893 = vsel %vm7080, 0.0, %v11601
  %v12894 = vsel %vm7080, %v11427, %v11603
  %v12895 = vsel %vm7080, %v11428, %v11605
  %v12896 = vsel %vm7080, %v11429, %v11607
  %v12897 = vsel %vm7080, %v11430, %v11609
  %v12898 = vsel %vm7080, %v11431, %v11611
  %v12899 = vsel %vm7080, %v11432, %v11613
  %v12900 = vsel %vm7080, %v11433, %v11615
  %v12901 = vsel %vm7080, 0.0, %v11617
  %v12902 = vsel %vm7080, %v11435, %v11619
  %v12903 = vsel %vm7080, %v11436, %v11621
  %v12904 = vsel %vm7080, %v11437, %v11623
  %v12905 = vsel %vm7080, %v11438, %v11625
  %v12906 = vsel %vm7080, %v11439, %v11627
  %v12907 = vsel %vm7080, %v11440, %v11629
  %v12908 = vsel %vm7080, %v11441, %v11631
  %v12909 = vsel %vm7594, %v12852, %v11690
  %v12910 = vsel %vm7594, %v12853, %v11692
  %v12911 = vsel %vm7594, %v12854, %v11694
  %v12912 = vsel %vm7594, %v12855, %v11696
  %v12913 = vsel %vm7594, %v12856, %v11698
  %v12914 = vsel %vm7594, %v12857, %v11700
  %v12915 = vsel %vm7594, %v12858, %v11702
  %v12916 = vsel %vm7594, %v12859, %v11704
  %v12917 = vsel %vm7594, %v12860, %v11690
  %v12918 = vsel %vm7594, %v12861, %v11706
  %v12919 = vsel %vm7594, %v12862, %v11708
  %v12920 = vsel %vm7594, %v12863, %v11710
  %v12921 = vsel %vm7594, %v12864, %v11712
  %v12922 = vsel %vm7594, %v12865, %v11714
  %v12923 = vsel %vm7594, %v12866, %v11716
  %v12924 = vsel %vm7594, %v12867, %v11718
  %v12925 = vsel %vm7594, %v12868, %v11690
  %v12926 = vsel %vm7594, %v12869, %v11720
  %v12927 = vsel %vm7594, %v12870, %v11722
  %v12928 = vsel %vm7594, %v12871, %v11724
  %v12929 = vsel %vm7594, %v12872, %v11726
  %v12930 = vsel %vm7594, %v12873, %v11728
  %v12931 = vsel %vm7594, %v12874, %v11730
  %v12932 = vsel %vm7594, %v12875, %v11732
  %v12933 = vsel %vm7594, %v12876, %v11690
  %v12934 = vsel %vm7594, %v12877, %v11734
  %v12935 = vsel %vm7594, %v12878, %v11736
  %v12936 = vsel %vm7594, %v12879, %v11738
  %v12937 = vsel %vm7594, %v12880, %v11740
  %v12938 = vsel %vm7594, %v12881, %v11742
  %v12939 = vsel %vm7594, %v12882, %v11744
  %v12940 = vsel %vm7594, %v12883, %v11746
  %v12941 = vsel %vm7594, %v12884, %v11690
  %v12942 = vsel %vm7594, %v12885, %v11748
  %v12943 = vsel %vm7594, %v12886, %v11750
  %v12944 = vsel %vm7594, %v12887, %v11752
  %v12945 = vsel %vm7594, %v12888, %v11754
  %v12946 = vsel %vm7594, %v12889, %v11756
  %v12947 = vsel %vm7594, %v12890, %v11758
  %v12948 = vsel %vm7594, %v12891, %v11760
  %v12949 = vsel %vm7594, %v12892, %v11690
  %v12950 = vsel %vm7594, %v12893, %v11762
  %v12951 = vsel %vm7594, %v12894, %v11764
  %v12952 = vsel %vm7594, %v12895, %v11766
  %v12953 = vsel %vm7594, %v12896, %v11768
  %v12954 = vsel %vm7594, %v12897, %v11770
  %v12955 = vsel %vm7594, %v12898, %v11772
  %v12956 = vsel %vm7594, %v12899, %v11774
  %v12957 = vsel %vm7594, %v12900, %v11690
  %v12958 = vsel %vm7594, %v12901, %v11776
  %v12959 = vsel %vm7594, %v12902, %v11778
  %v12960 = vsel %vm7594, %v12903, %v11780
  %v12961 = vsel %vm7594, %v12904, %v11782
  %v12962 = vsel %vm7594, %v12905, %v11784
  %v12963 = vsel %vm7594, %v12906, %v11786
  %v12964 = vsel %vm7594, %v12907, %v11788
  %v12965 = vsel %vm7594, %v12908, %v11690
  %v12966 = vsel %vm8108, %v12909, %v11847
  %v12967 = vsel %vm8108, %v12909, %v11849
  %v12968 = vsel %vm8108, %v12909, %v11851
  %v12969 = vsel %vm8108, %v12909, %v11853
  %v12970 = vsel %vm8108, %v12909, %v11855
  %v12971 = vsel %vm8108, %v12909, %v11857
  %v12972 = vsel %vm8108, %v12909, %v11859
  %v12973 = vsel %vm8108, %v12909, %v11861
  %v12974 = vsel %vm8108, %v12910, %v11847
  %v12975 = vsel %vm8108, %v12911, %v11863
  %v12976 = vsel %vm8108, %v12912, %v11865
  %v12977 = vsel %vm8108, %v12913, %v11867
  %v12978 = vsel %vm8108, %v12914, %v11869
  %v12979 = vsel %vm8108, %v12915, %v11871
  %v12980 = vsel %vm8108, %v12916, %v11873
  %v12981 = vsel %vm8108, %v12917, %v11875
  %v12982 = vsel %vm8108, %v12918, %v11847
  %v12983 = vsel %vm8108, %v12919, %v11877
  %v12984 = vsel %vm8108, %v12920, %v11879
  %v12985 = vsel %vm8108, %v12921, %v11881
  %v12986 = vsel %vm8108, %v12922, %v11883
  %v12987 = vsel %vm8108, %v12923, %v11885
  %v12988 = vsel %vm8108, %v12924, %v11887
  %v12989 = vsel %vm8108, %v12925, %v11889
  %v12990 = vsel %vm8108, %v12926, %v11847
  %v12991 = vsel %vm8108, %v12927, %v11891
  %v12992 = vsel %vm8108, %v12928, %v11893
  %v12993 = vsel %vm8108, %v12929, %v11895
  %v12994 = vsel %vm8108, %v12930, %v11897
  %v12995 = vsel %vm8108, %v12931, %v11899
  %v12996 = vsel %vm8108, %v12932, %v11901
  %v12997 = vsel %vm8108, %v12933, %v11903
  %v12998 = vsel %vm8108, %v12934, %v11847
  %v12999 = vsel %vm8108, %v12935, %v11905
  %v13000 = vsel %vm8108, %v12936, %v11907
  %v13001 = vsel %vm8108, %v12937, %v11909
  %v13002 = vsel %vm8108, %v12938, %v11911
  %v13003 = vsel %vm8108, %v12939, %v11913
  %v13004 = vsel %vm8108, %v12940, %v11915
  %v13005 = vsel %vm8108, %v12941, %v11917
  %v13006 = vsel %vm8108, %v12942, %v11847
  %v13007 = vsel %vm8108, %v12943, %v11919
  %v13008 = vsel %vm8108, %v12944, %v11921
  %v13009 = vsel %vm8108, %v12945, %v11923
  %v13010 = vsel %vm8108, %v12946, %v11925
  %v13011 = vsel %vm8108, %v12947, %v11927
  %v13012 = vsel %vm8108, %v12948, %v11929
  %v13013 = vsel %vm8108, %v12949, %v11931
  %v13014 = vsel %vm8108, %v12950, %v11847
  %v13015 = vsel %vm8108, %v12951, %v11933
  %v13016 = vsel %vm8108, %v12952, %v11935
  %v13017 = vsel %vm8108, %v12953, %v11937
  %v13018 = vsel %vm8108, %v12954, %v11939
  %v13019 = vsel %vm8108, %v12955, %v11941
  %v13020 = vsel %vm8108, %v12956, %v11943
  %v13021 = vsel %vm8108, %v12957, %v11945
  %v13022 = vsel %vm8108, %v12958, %v11847
  %v13023 = vsel %vm8108, %v12959, %v11947
  %v13024 = vsel %vm8108, %v12960, %v11949
  %v13025 = vsel %vm8108, %v12961, %v11951
  %v13026 = vsel %vm8108, %v12962, %v11953
  %v13027 = vsel %vm8108, %v12963, %v11955
  %v13028 = vsel %vm8108, %v12964, %v11957
  %v13029 = vsel %vm8108, %v12965, %v11959
  %v13030 = vsel %vm8622, %v12966, %v12019
  %v13031 = vsel %vm8622, %v12967, %v12021
  %v13032 = vsel %vm8622, %v12968, %v12023
  %v13033 = vsel %vm8622, %v12969, %v12025
  %v13034 = vsel %vm8622, %v12970, %v12027
  %v13035 = vsel %vm8622, %v12971, %v12029
  %v13036 = vsel %vm8622, %v12972, %v12031
  %v13037 = vsel %vm8622, %v12973, %v12033
  %v13038 = vsel %vm8622, %v12974, %v12035
  %v13039 = vsel %vm8622, %v12975, %v12037
  %v13040 = vsel %vm8622, %v12976, %v12039
  %v13041 = vsel %vm8622, %v12977, %v12041
  %v13042 = vsel %vm8622, %v12978, %v12043
  %v13043 = vsel %vm8622, %v12979, %v12045
  %v13044 = vsel %vm8622, %v12980, %v12047
  %v13045 = vsel %vm8622, %v12981, %v12049
  %v13046 = vsel %vm8622, %v12982, %v12051
  %v13047 = vsel %vm8622, %v12983, %v12053
  %v13048 = vsel %vm8622, %v12984, %v12055
  %v13049 = vsel %vm8622, %v12985, %v12057
  %v13050 = vsel %vm8622, %v12986, %v12059
  %v13051 = vsel %vm8622, %v12987, %v12061
  %v13052 = vsel %vm8622, %v12988, %v12063
  %v13053 = vsel %vm8622, %v12989, %v12065
  %v13054 = vsel %vm8622, %v12990, %v12067
  %v13055 = vsel %vm8622, %v12991, %v12069
  %v13056 = vsel %vm8622, %v12992, %v12071
  %v13057 = vsel %vm8622, %v12993, %v12073
  %v13058 = vsel %vm8622, %v12994, %v12075
  %v13059 = vsel %vm8622, %v12995, %v12077
  %v13060 = vsel %vm8622, %v12996, %v12079
  %v13061 = vsel %vm8622, %v12997, %v12081
  %v13062 = vsel %vm8622, %v12998, %v12083
  %v13063 = vsel %vm8622, %v12999, %v12085
  %v13064 = vsel %vm8622, %v13000, %v12087
  %v13065 = vsel %vm8622, %v13001, %v12089
  %v13066 = vsel %vm8622, %v13002, %v12091
  %v13067 = vsel %vm8622, %v13003, %v12093
  %v13068 = vsel %vm8622, %v13004, %v12095
  %v13069 = vsel %vm8622, %v13005, %v12097
  %v13070 = vsel %vm8622, %v13006, %v12099
  %v13071 = vsel %vm8622, %v13007, %v12101
  %v13072 = vsel %vm8622, %v13008, %v12103
  %v13073 = vsel %vm8622, %v13009, %v12105
  %v13074 = vsel %vm8622, %v13010, %v12107
  %v13075 = vsel %vm8622, %v13011, %v12109
  %v13076 = vsel %vm8622, %v13012, %v12111
  %v13077 = vsel %vm8622, %v13013, %v12113
  %v13078 = vsel %vm8622, %v13014, %v12115
  %v13079 = vsel %vm8622, %v13015, %v12117
  %v13080 = vsel %vm8622, %v13016, %v12119
  %v13081 = vsel %vm8622, %v13017, %v12121
  %v13082 = vsel %vm8622, %v13018, %v12123
  %v13083 = vsel %vm8622, %v13019, %v12125
  %v13084 = vsel %vm8622, %v13020, %v12127
  %v13085 = vsel %vm8622, %v13021, %v12129
  %v13086 = vsel %vm8622, %v13022, %v12131
  %v13087 = vsel %vm8622, %v13023, %v12133
  %v13088 = vsel %vm8622, %v13024, %v12135
  %v13089 = vsel %vm8622, %v13025, %v12137
  %v13090 = vsel %vm8622, %v13026, %v12139
  %v13091 = vsel %vm8622, %v13027, %v12141
  %v13092 = vsel %vm8622, %v13028, %v12143
  %v13093 = vsel %vm8622, %v13029, %v12145
  %vm13094 = vcmask 326656
  %v13095 = vsel %vm13094, %v13030, %v12211
  %v13096 = vsel %vm13094, %v13031, %v12213
  %v13097 = vsel %vm13094, %v13032, %v12215
  %v13098 = vsel %vm13094, %v13033, %v12217
  %v13099 = vsel %vm13094, %v13034, %v12219
  %v13100 = vsel %vm13094, %v13035, %v12221
  %v13101 = vsel %vm13094, %v13036, %v12223
  %v13102 = vsel %vm13094, %v13037, %v12225
  %v13103 = vsel %vm13094, %v13038, %v12227
  %v13104 = vsel %vm13094, %v13039, %v12229
  %v13105 = vsel %vm13094, %v13040, %v12231
  %v13106 = vsel %vm13094, %v13041, %v12233
  %v13107 = vsel %vm13094, %v13042, %v12235
  %v13108 = vsel %vm13094, %v13043, %v12237
  %v13109 = vsel %vm13094, %v13044, %v12239
  %v13110 = vsel %vm13094, %v13045, %v12225
  %v13111 = vsel %vm13094, %v13046, %v12241
  %v13112 = vsel %vm13094, %v13047, %v12243
  %v13113 = vsel %vm13094, %v13048, %v12245
  %v13114 = vsel %vm13094, %v13049, %v12247
  %v13115 = vsel %vm13094, %v13050, %v12249
  %v13116 = vsel %vm13094, %v13051, %v12251
  %v13117 = vsel %vm13094, %v13052, %v12253
  %v13118 = vsel %vm13094, %v13053, %v12225
  %v13119 = vsel %vm13094, %v13054, %v12255
  %v13120 = vsel %vm13094, %v13055, %v12257
  %v13121 = vsel %vm13094, %v13056, %v12259
  %v13122 = vsel %vm13094, %v13057, %v12261
  %v13123 = vsel %vm13094, %v13058, %v12263
  %v13124 = vsel %vm13094, %v13059, %v12265
  %v13125 = vsel %vm13094, %v13060, %v12267
  %v13126 = vsel %vm13094, %v13061, %v12225
  %v13127 = vsel %vm13094, %v13062, %v12269
  %v13128 = vsel %vm13094, %v13063, %v12271
  %v13129 = vsel %vm13094, %v13064, %v12273
  %v13130 = vsel %vm13094, %v13065, %v12275
  %v13131 = vsel %vm13094, %v13066, %v12277
  %v13132 = vsel %vm13094, %v13067, %v12279
  %v13133 = vsel %vm13094, %v13068, %v12281
  %v13134 = vsel %vm13094, %v13069, %v12225
  %v13135 = vsel %vm13094, %v13070, %v12283
  %v13136 = vsel %vm13094, %v13071, %v12285
  %v13137 = vsel %vm13094, %v13072, %v12287
  %v13138 = vsel %vm13094, %v13073, %v12289
  %v13139 = vsel %vm13094, %v13074, %v12291
  %v13140 = vsel %vm13094, %v13075, %v12293
  %v13141 = vsel %vm13094, %v13076, %v12295
  %v13142 = vsel %vm13094, %v13077, %v12225
  %v13143 = vsel %vm13094, %v13078, %v12297
  %v13144 = vsel %vm13094, %v13079, %v12299
  %v13145 = vsel %vm13094, %v13080, %v12301
  %v13146 = vsel %vm13094, %v13081, %v12303
  %v13147 = vsel %vm13094, %v13082, %v12305
  %v13148 = vsel %vm13094, %v13083, %v12307
  %v13149 = vsel %vm13094, %v13084, %v12309
  %v13150 = vsel %vm13094, %v13085, %v12225
  %v13151 = vsel %vm13094, %v13086, %v12311
  %v13152 = vsel %vm13094, %v13087, %v12313
  %v13153 = vsel %vm13094, %v13088, %v12315
  %v13154 = vsel %vm13094, %v13089, %v12317
  %v13155 = vsel %vm13094, %v13090, %v12319
  %v13156 = vsel %vm13094, %v13091, %v12321
  %v13157 = vsel %vm13094, %v13092, %v12323
  %v13158 = vsel %vm13094, %v13093, %v12225
  %vm13159 = vcmask 392192
  %v13160 = vsel %vm13159, %v13095, %v12382
  %v13161 = vsel %vm13159, %v13096, %v12384
  %v13162 = vsel %vm13159, %v13097, %v12386
  %v13163 = vsel %vm13159, %v13098, %v12388
  %v13164 = vsel %vm13159, %v13099, %v12390
  %v13165 = vsel %vm13159, %v13100, %v12392
  %v13166 = vsel %vm13159, %v13101, %v12394
  %v13167 = vsel %vm13159, %v13102, %v12396
  %v13168 = vsel %vm13159, %v13103, %v12382
  %v13169 = vsel %vm13159, %v13104, %v12398
  %v13170 = vsel %vm13159, %v13105, %v12400
  %v13171 = vsel %vm13159, %v13106, %v12402
  %v13172 = vsel %vm13159, %v13107, %v12404
  %v13173 = vsel %vm13159, %v13108, %v12406
  %v13174 = vsel %vm13159, %v13109, %v12408
  %v13175 = vsel %vm13159, %v13110, %v12410
  %v13176 = vsel %vm13159, %v13111, %v12382
  %v13177 = vsel %vm13159, %v13112, %v12412
  %v13178 = vsel %vm13159, %v13113, %v12414
  %v13179 = vsel %vm13159, %v13114, %v12416
  %v13180 = vsel %vm13159, %v13115, %v12418
  %v13181 = vsel %vm13159, %v13116, %v12420
  %v13182 = vsel %vm13159, %v13117, %v12422
  %v13183 = vsel %vm13159, %v13118, %v12424
  %v13184 = vsel %vm13159, %v13119, %v12382
  %v13185 = vsel %vm13159, %v13120, %v12426
  %v13186 = vsel %vm13159, %v13121, %v12428
  %v13187 = vsel %vm13159, %v13122, %v12430
  %v13188 = vsel %vm13159, %v13123, %v12432
  %v13189 = vsel %vm13159, %v13124, %v12434
  %v13190 = vsel %vm13159, %v13125, %v12436
  %v13191 = vsel %vm13159, %v13126, %v12438
  %v13192 = vsel %vm13159, %v13127, %v12382
  %v13193 = vsel %vm13159, %v13128, %v12440
  %v13194 = vsel %vm13159, %v13129, %v12442
  %v13195 = vsel %vm13159, %v13130, %v12444
  %v13196 = vsel %vm13159, %v13131, %v12446
  %v13197 = vsel %vm13159, %v13132, %v12448
  %v13198 = vsel %vm13159, %v13133, %v12450
  %v13199 = vsel %vm13159, %v13134, %v12452
  %v13200 = vsel %vm13159, %v13135, %v12382
  %v13201 = vsel %vm13159, %v13136, %v12454
  %v13202 = vsel %vm13159, %v13137, %v12456
  %v13203 = vsel %vm13159, %v13138, %v12458
  %v13204 = vsel %vm13159, %v13139, %v12460
  %v13205 = vsel %vm13159, %v13140, %v12462
  %v13206 = vsel %vm13159, %v13141, %v12464
  %v13207 = vsel %vm13159, %v13142, %v12466
  %v13208 = vsel %vm13159, %v13143, %v12382
  %v13209 = vsel %vm13159, %v13144, %v12468
  %v13210 = vsel %vm13159, %v13145, %v12470
  %v13211 = vsel %vm13159, %v13146, %v12472
  %v13212 = vsel %vm13159, %v13147, %v12474
  %v13213 = vsel %vm13159, %v13148, %v12476
  %v13214 = vsel %vm13159, %v13149, %v12478
  %v13215 = vsel %vm13159, %v13150, %v12480
  %v13216 = vsel %vm13159, %v13151, %v12382
  %v13217 = vsel %vm13159, %v13152, %v12382
  %v13218 = vsel %vm13159, %v13153, %v12382
  %v13219 = vsel %vm13159, %v13154, %v12382
  %v13220 = vsel %vm13159, %v13155, %v12382
  %v13221 = vsel %vm13159, %v13156, %v12382
  %v13222 = vsel %vm13159, %v13157, %v12382
  %v13223 = vsel %vm13159, %v13158, %v12382
  %vm13224 = vcmask 457728
  %v13225 = vsel %vm13224, %v13160, %v12532
  %v13226 = vsel %vm13224, %v13161, %v12534
  %v13227 = vsel %vm13224, %v13162, %v12536
  %v13228 = vsel %vm13224, %v13163, %v12538
  %v13229 = vsel %vm13224, %v13164, %v12540
  %v13230 = vsel %vm13224, %v13165, %v12542
  %v13231 = vsel %vm13224, %v13166, %v12544
  %v13232 = vsel %vm13224, %v13167, %v12546
  %v13233 = vsel %vm13224, %v13168, %v12548
  %v13234 = vsel %vm13224, %v13169, %v12550
  %v13235 = vsel %vm13224, %v13170, %v12552
  %v13236 = vsel %vm13224, %v13171, %v12554
  %v13237 = vsel %vm13224, %v13172, %v12556
  %v13238 = vsel %vm13224, %v13173, %v12558
  %v13239 = vsel %vm13224, %v13174, %v12560
  %v13240 = vsel %vm13224, %v13175, %v12562
  %v13241 = vsel %vm13224, %v13176, %v12564
  %v13242 = vsel %vm13224, %v13177, %v12566
  %v13243 = vsel %vm13224, %v13178, %v12568
  %v13244 = vsel %vm13224, %v13179, %v12570
  %v13245 = vsel %vm13224, %v13180, %v12572
  %v13246 = vsel %vm13224, %v13181, %v12574
  %v13247 = vsel %vm13224, %v13182, %v12576
  %v13248 = vsel %vm13224, %v13183, %v12578
  %v13249 = vsel %vm13224, %v13184, %v12580
  %v13250 = vsel %vm13224, %v13185, %v12582
  %v13251 = vsel %vm13224, %v13186, %v12584
  %v13252 = vsel %vm13224, %v13187, %v12586
  %v13253 = vsel %vm13224, %v13188, %v12588
  %v13254 = vsel %vm13224, %v13189, %v12590
  %v13255 = vsel %vm13224, %v13190, %v12592
  %v13256 = vsel %vm13224, %v13191, %v12594
  %v13257 = vsel %vm13224, %v13192, %v12596
  %v13258 = vsel %vm13224, %v13193, %v12598
  %v13259 = vsel %vm13224, %v13194, %v12600
  %v13260 = vsel %vm13224, %v13195, %v12602
  %v13261 = vsel %vm13224, %v13196, %v12604
  %v13262 = vsel %vm13224, %v13197, %v12606
  %v13263 = vsel %vm13224, %v13198, %v12608
  %v13264 = vsel %vm13224, %v13199, %v12610
  %v13265 = vsel %vm13224, %v13200, %v12612
  %v13266 = vsel %vm13224, %v13201, %v12614
  %v13267 = vsel %vm13224, %v13202, %v12616
  %v13268 = vsel %vm13224, %v13203, %v12618
  %v13269 = vsel %vm13224, %v13204, %v12620
  %v13270 = vsel %vm13224, %v13205, %v12622
  %v13271 = vsel %vm13224, %v13206, %v12624
  %v13272 = vsel %vm13224, %v13207, %v12626
  %v13273 = vsel %vm13224, %v13208, %v12628
  %v13274 = vsel %vm13224, %v13209, %v12630
  %v13275 = vsel %vm13224, %v13210, %v12632
  %v13276 = vsel %vm13224, %v13211, %v12634
  %v13277 = vsel %vm13224, %v13212, %v12636
  %v13278 = vsel %vm13224, %v13213, %v12638
  %v13279 = vsel %vm13224, %v13214, %v12640
  %v13280 = vsel %vm13224, %v13215, %v12642
  %v13281 = vsel %vm13224, %v13216, %v12644
  %v13282 = vsel %vm13224, %v13217, %v12644
  %v13283 = vsel %vm13224, %v13218, %v12644
  %v13284 = vsel %vm13224, %v13219, %v12644
  %v13285 = vsel %vm13224, %v13220, %v12644
  %v13286 = vsel %vm13224, %v13221, %v12644
  %v13287 = vsel %vm13224, %v13222, %v12644
  %v13288 = vsel %vm13224, %v13223, %v12644
  %vm13289 = vcmask 523264
  %v13290 = vsel %vm13289, %v13225, %v12703
  %v13291 = vsel %vm13289, %v13226, %v12705
  %v13292 = vsel %vm13289, %v13227, %v12707
  %v13293 = vsel %vm13289, %v13228, %v12709
  %v13294 = vsel %vm13289, %v13229, %v12711
  %v13295 = vsel %vm13289, %v13230, %v12713
  %v13296 = vsel %vm13289, %v13231, %v12715
  %v13297 = vsel %vm13289, %v13232, %v12717
  %v13298 = vsel %vm13289, %v13233, %v12719
  %v13299 = vsel %vm13289, %v13234, %v12721
  %v13300 = vsel %vm13289, %v13235, %v12723
  %v13301 = vsel %vm13289, %v13236, %v12725
  %v13302 = vsel %vm13289, %v13237, %v12727
  %v13303 = vsel %vm13289, %v13238, %v12729
  %v13304 = vsel %vm13289, %v13239, %v12731
  %v13305 = vsel %vm13289, %v13240, %v12717
  %v13306 = vsel %vm13289, %v13241, %v12733
  %v13307 = vsel %vm13289, %v13242, %v12735
  %v13308 = vsel %vm13289, %v13243, %v12737
  %v13309 = vsel %vm13289, %v13244, %v12739
  %v13310 = vsel %vm13289, %v13245, %v12741
  %v13311 = vsel %vm13289, %v13246, %v12743
  %v13312 = vsel %vm13289, %v13247, %v12745
  %v13313 = vsel %vm13289, %v13248, %v12717
  %v13314 = vsel %vm13289, %v13249, %v12747
  %v13315 = vsel %vm13289, %v13250, %v12749
  %v13316 = vsel %vm13289, %v13251, %v12751
  %v13317 = vsel %vm13289, %v13252, %v12753
  %v13318 = vsel %vm13289, %v13253, %v12755
  %v13319 = vsel %vm13289, %v13254, %v12757
  %v13320 = vsel %vm13289, %v13255, %v12759
  %v13321 = vsel %vm13289, %v13256, %v12717
  %v13322 = vsel %vm13289, %v13257, %v12761
  %v13323 = vsel %vm13289, %v13258, %v12763
  %v13324 = vsel %vm13289, %v13259, %v12765
  %v13325 = vsel %vm13289, %v13260, %v12767
  %v13326 = vsel %vm13289, %v13261, %v12769
  %v13327 = vsel %vm13289, %v13262, %v12771
  %v13328 = vsel %vm13289, %v13263, %v12773
  %v13329 = vsel %vm13289, %v13264, %v12717
  %v13330 = vsel %vm13289, %v13265, %v12775
  %v13331 = vsel %vm13289, %v13266, %v12777
  %v13332 = vsel %vm13289, %v13267, %v12779
  %v13333 = vsel %vm13289, %v13268, %v12781
  %v13334 = vsel %vm13289, %v13269, %v12783
  %v13335 = vsel %vm13289, %v13270, %v12785
  %v13336 = vsel %vm13289, %v13271, %v12787
  %v13337 = vsel %vm13289, %v13272, %v12717
  %v13338 = vsel %vm13289, %v13273, %v12789
  %v13339 = vsel %vm13289, %v13274, %v12791
  %v13340 = vsel %vm13289, %v13275, %v12793
  %v13341 = vsel %vm13289, %v13276, %v12795
  %v13342 = vsel %vm13289, %v13277, %v12797
  %v13343 = vsel %vm13289, %v13278, %v12799
  %v13344 = vsel %vm13289, %v13279, %v12801
  %v13345 = vsel %vm13289, %v13280, %v12717
  %v13346 = vsel %vm13289, %v13281, %v12717
  %v13347 = vsel %vm13289, %v13282, %v12717
  %v13348 = vsel %vm13289, %v13283, %v12717
  %v13349 = vsel %vm13289, %v13284, %v12717
  %v13350 = vsel %vm13289, %v13285, %v12717
  %v13351 = vsel %vm13289, %v13286, %v12717
  %v13352 = vsel %vm13289, %v13287, %v12717
  %v13353 = vsel %vm13289, %v13288, %v12717
  %v13355 = vlaneseq
  %v13356 = vshrl.u32 %v13355, 7
  %v13357 = vsub.s32 0, %v13356
  %v13358 = vrot.slane %v11460, %v13357
  %vm13360 = vcmask 588800
  %v13362 = vsel %vm13360, %v13290, 0
  %v13365 = vsel %vm13360, %v13291, 0
  %v13368 = vsel %vm13360, %v13292, 0
  %v13371 = vsel %vm13360, %v13293, 0
  %v13374 = vsel %vm13360, %v13294, 0
  %v13377 = vsel %vm13360, %v13295, 0
  %v13380 = vsel %vm13360, %v13296, 0
  %v13383 = vsel %vm13360, %v13297, 0
  %v13386 = vsel %vm13360, %v13298, 0
  %v13389 = vsel %vm13360, %v13299, 0
  %v13392 = vsel %vm13360, %v13300, 0
  %v13395 = vsel %vm13360, %v13301, 0
  %v13398 = vsel %vm13360, %v13302, 0
  %v13401 = vsel %vm13360, %v13303, 0
  %v13404 = vsel %vm13360, %v13304, 0
  %v13407 = vsel %vm13360, %v13305, 0
  %v13410 = vsel %vm13360, %v13306, 0
  %v13413 = vsel %vm13360, %v13307, 0
  %v13416 = vsel %vm13360, %v13308, 0
  %v13419 = vsel %vm13360, %v13309, 0
  %v13422 = vsel %vm13360, %v13310, 0
  %v13425 = vsel %vm13360, %v13311, 0
  %v13428 = vsel %vm13360, %v13312, 0
  %v13431 = vsel %vm13360, %v13313, 0
  %v13434 = vsel %vm13360, %v13314, 0
  %v13437 = vsel %vm13360, %v13315, 0
  %v13440 = vsel %vm13360, %v13316, 0
  %v13443 = vsel %vm13360, %v13317, 0
  %v13446 = vsel %vm13360, %v13318, 0
  %v13449 = vsel %vm13360, %v13319, 0
  %v13452 = vsel %vm13360, %v13320, 0
  %v13455 = vsel %vm13360, %v13321, 0
  %v13458 = vsel %vm13360, %v13322, 0
  %v13461 = vsel %vm13360, %v13323, 0
  %v13464 = vsel %vm13360, %v13324, 0
  %v13467 = vsel %vm13360, %v13325, 0
  %v13470 = vsel %vm13360, %v13326, 0
  %v13473 = vsel %vm13360, %v13327, 0
  %v13476 = vsel %vm13360, %v13328, 0
  %v13479 = vsel %vm13360, %v13329, 0
  %v13482 = vsel %vm13360, %v13330, 0
  %v13485 = vsel %vm13360, %v13331, 0
  %v13488 = vsel %vm13360, %v13332, 0
  %v13491 = vsel %vm13360, %v13333, 0
  %v13494 = vsel %vm13360, %v13334, 0
  %v13497 = vsel %vm13360, %v13335, 0
  %v13500 = vsel %vm13360, %v13336, 0
  %v13503 = vsel %vm13360, %v13337, 0
  %v13506 = vsel %vm13360, %v13338, 0
  %v13509 = vsel %vm13360, %v13339, 0
  %v13512 = vsel %vm13360, %v13340, 0
  %v13515 = vsel %vm13360, %v13341, 0
  %v13518 = vsel %vm13360, %v13342, 0
  %v13521 = vsel %vm13360, %v13343, 0
  %v13524 = vsel %vm13360, %v13344, 0
  %v13527 = vsel %vm13360, %v13345, 0
  %v13530 = vsel %vm13360, %v13346, 0
  %v13533 = vsel %vm13360, %v13347, 0
  %v13536 = vsel %vm13360, %v13348, 0
  %v13539 = vsel %vm13360, %v13349, 0
  %v13542 = vsel %vm13360, %v13350, 0
  %v13545 = vsel %vm13360, %v13351, 0
  %v13548 = vsel %vm13360, %v13352, 0
  %v13551 = vsel %vm13360, %v13353, 0
  %13553 = vmatprep.subr.mxu0 0.0
  %13554 = vmatpush1.msra.mxu0 %v11451
  %13555 = vmatprep.subr.mxu0 0.0
  %13556 = vmatpush1.msra.mxu0 %v11452
  %13557 = vmatprep.subr.mxu0 0.0
  %13558 = vmatpush1.msra.mxu0 %v11453
  %13559 = vmatprep.subr.mxu0 0.0
  %13560 = vmatpush1.msra.mxu0 %v11454
  %13561 = vmatprep.subr.mxu0 0.0
  %13562 = vmatpush1.msra.mxu0 %v11455
  %13563 = vmatprep.subr.mxu0 0.0
  %13564 = vmatpush1.msra.mxu0 %v11456
  %13565 = vmatprep.subr.mxu0 0.0
  %13566 = vmatpush1.msra.mxu0 %v11457
  %13567 = vmatprep.subr.mxu0 0.0
  %13568 = vmatpush1.msra.mxu0 %v11458
  %13569 = vmatprep.subr.mxu0 0.0
  %13570 = vmatpush1.msra.mxu0 %v11459
  %13571 = vmatprep.subr.mxu0 0.0
  %13572 = vmatpush1.msra.mxu0 0.0
  %13573 = vmatprep.subr.mxu0 0.0
  %13574 = vmatpush1.msra.mxu0 0.0
  %13575 = vmatprep.subr.mxu0 0.0
  %13576 = vmatpush1.msra.mxu0 0.0
  %13577 = vmatprep.subr.mxu0 0.0
  %13578 = vmatpush1.msra.mxu0 0.0
  %13579 = vmatprep.subr.mxu0 0.0
  %13580 = vmatpush1.msra.mxu0 0.0
  %13581 = vmatprep.subr.mxu0 0.0
  %13582 = vmatpush1.msra.mxu0 0.0
  %13583 = vmatprep.subr.mxu0 0.0
  %13584 = vmatpush1.msra.mxu0 0.0
  %13585 = vmatprep.subr.mxu0 0.0
  %13586 = vmatpush1.msra.mxu0 0.0
  %13587 = vmatprep.subr.mxu0 0.0
  %13588 = vmatpush1.msra.mxu0 0.0
  %13589 = vmatprep.subr.mxu0 0.0
  %13590 = vmatpush1.msra.mxu0 0.0
  %13591 = vmatprep.subr.mxu0 0.0
  %13592 = vmatpush1.msra.mxu0 0.0
  %13593 = vmatprep.subr.mxu0 0.0
  %13594 = vmatpush1.msra.mxu0 0.0
  %13595 = vmatprep.subr.mxu0 0.0
  %13596 = vmatpush1.msra.mxu0 0.0
  %13597 = vmatprep.subr.mxu0 0.0
  %13598 = vmatpush1.msra.mxu0 0.0
  %13599 = vmatprep.subr.mxu0 0.0
  %13600 = vmatpush1.msra.mxu0 0.0
  %13601 = vmatprep.subr.mxu0 0.0
  %13602 = vmatpush1.msra.mxu0 0.0
  %13603 = vmatprep.subr.mxu0 0.0
  %13604 = vmatpush1.msra.mxu0 0.0
  %13605 = vmatprep.subr.mxu0 0.0
  %13606 = vmatpush1.msra.mxu0 0.0
  %13607 = vmatprep.subr.mxu0 0.0
  %13608 = vmatpush1.msra.mxu0 0.0
  %13609 = vmatprep.subr.mxu0 0.0
  %13610 = vmatpush1.msra.mxu0 0.0
  %13611 = vmatprep.subr.mxu0 0.0
  %13612 = vmatpush1.msra.mxu0 0.0
  %13613 = vmatprep.subr.mxu0 0.0
  %13614 = vmatpush1.msra.mxu0 0.0
  %13615 = vmatprep.subr.mxu0 0.0
  %13616 = vmatpush1.msra.mxu0 0.0
  %13617 = vmatprep.mubr.f32.mxu0 0.0
  %13618 = vmatmul.mubr.f32.gmra.mrb[0].mxu0 %v13362
  %v13619 = vpop.f32.mrb[0].mxu0
  %v13620 = vadd.f32 %v13358, %v13619
  %v13621 = vpop.f32.mrb[0].mxu0
  %13622 = vmatprep.mubr.f32.mxu0 0.0
  %13623 = vmatmul.mubr.f32.gmra.mrb[0].mxu0 %v13365
  %v13624 = vpop.f32.mrb[0].mxu0
  %v13625 = vadd.f32 %v13358, %v13624
  %v13626 = vpop.f32.mrb[0].mxu0
  %13627 = vmatprep.mubr.f32.mxu0 0.0
  %13628 = vmatmul.mubr.f32.gmra.mrb[0].mxu0 %v13368
  %v13629 = vpop.f32.mrb[0].mxu0
  %v13630 = vadd.f32 %v13358, %v13629
  %v13631 = vpop.f32.mrb[0].mxu0
  %13632 = vmatprep.mubr.f32.mxu0 0.0
  %13633 = vmatmul.mubr.f32.gmra.mrb[0].mxu0 %v13371
  %v13634 = vpop.f32.mrb[0].mxu0
  %v13635 = vadd.f32 %v13358, %v13634
  %v13636 = vpop.f32.mrb[0].mxu0
  %13637 = vmatprep.mubr.f32.mxu0 0.0
  %13638 = vmatmul.mubr.f32.gmra.mrb[0].mxu0 %v13374
  %v13639 = vpop.f32.mrb[0].mxu0
  %v13640 = vadd.f32 %v13358, %v13639
  %v13641 = vpop.f32.mrb[0].mxu0
  %13642 = vmatprep.mubr.f32.mxu0 0.0
  %13643 = vmatmul.mubr.f32.gmra.mrb[0].mxu0 %v13377
  %v13644 = vpop.f32.mrb[0].mxu0
  %v13645 = vadd.f32 %v13358, %v13644
  %v13646 = vpop.f32.mrb[0].mxu0
  %13647 = vmatprep.mubr.f32.mxu0 0.0
  %13648 = vmatmul.mubr.f32.gmra.mrb[0].mxu0 %v13380
  %v13649 = vpop.f32.mrb[0].mxu0
  %v13650 = vadd.f32 %v13358, %v13649
  %v13651 = vpop.f32.mrb[0].mxu0
  %13652 = vmatprep.mubr.f32.mxu0 0.0
  %13653 = vmatmul.mubr.f32.gmra.mrb[0].mxu0 %v13383
  %v13654 = vpop.f32.mrb[0].mxu0
  %v13655 = vadd.f32 %v13358, %v13654
  %v13656 = vpop.f32.mrb[0].mxu0
  %13657 = vmatprep.mubr.f32.mxu0 0.0
  %13658 = vmatmul.mubr.f32.gmra.mrb[0].mxu0 %v13386
  %v13659 = vpop.f32.mrb[0].mxu0
  %v13660 = vadd.f32 %v13358, %v13659
  %v13661 = vpop.f32.mrb[0].mxu0
  %13662 = vmatprep.mubr.f32.mxu0 0.0
  %13663 = vmatmul.mubr.f32.gmra.mrb[0].mxu0 %v13389
  %v13664 = vpop.f32.mrb[0].mxu0
  %v13665 = vadd.f32 %v13358, %v13664
  %v13666 = vpop.f32.mrb[0].mxu0
  %13667 = vmatprep.mubr.f32.mxu0 0.0
  %13668 = vmatmul.mubr.f32.gmra.mrb[0].mxu0 %v13392
  %v13669 = vpop.f32.mrb[0].mxu0
  %v13670 = vadd.f32 %v13358, %v13669
  %v13671 = vpop.f32.mrb[0].mxu0
  %13672 = vmatprep.mubr.f32.mxu0 0.0
  %13673 = vmatmul.mubr.f32.gmra.mrb[0].mxu0 %v13395
  %v13674 = vpop.f32.mrb[0].mxu0
  %v13675 = vadd.f32 %v13358, %v13674
  %v13676 = vpop.f32.mrb[0].mxu0
  %13677 = vmatprep.mubr.f32.mxu0 0.0
  %13678 = vmatmul.mubr.f32.gmra.mrb[0].mxu0 %v13398
  %v13679 = vpop.f32.mrb[0].mxu0
  %v13680 = vadd.f32 %v13358, %v13679
  %v13681 = vpop.f32.mrb[0].mxu0
  %13682 = vmatprep.mubr.f32.mxu0 0.0
  %13683 = vmatmul.mubr.f32.gmra.mrb[0].mxu0 %v13401
  %v13684 = vpop.f32.mrb[0].mxu0
  %v13685 = vadd.f32 %v13358, %v13684
  %v13686 = vpop.f32.mrb[0].mxu0
  %13687 = vmatprep.mubr.f32.mxu0 0.0
  %13688 = vmatmul.mubr.f32.gmra.mrb[0].mxu0 %v13404
  %v13689 = vpop.f32.mrb[0].mxu0
  %v13690 = vadd.f32 %v13358, %v13689
  %v13691 = vpop.f32.mrb[0].mxu0
  %13692 = vmatprep.mubr.f32.mxu0 0.0
  %13693 = vmatmul.mubr.f32.gmra.mrb[0].mxu0 %v13407
  %v13694 = vpop.f32.mrb[0].mxu0
  %v13695 = vadd.f32 %v13358, %v13694
  %v13696 = vpop.f32.mrb[0].mxu0
  %13697 = vmatprep.mubr.f32.mxu0 0.0
  %13698 = vmatmul.mubr.f32.gmra.mrb[0].mxu0 %v13410
  %v13699 = vpop.f32.mrb[0].mxu0
  %v13700 = vadd.f32 %v13358, %v13699
  %v13701 = vpop.f32.mrb[0].mxu0
  %13702 = vmatprep.mubr.f32.mxu0 0.0
  %13703 = vmatmul.mubr.f32.gmra.mrb[0].mxu0 %v13413
  %v13704 = vpop.f32.mrb[0].mxu0
  %v13705 = vadd.f32 %v13358, %v13704
  %v13706 = vpop.f32.mrb[0].mxu0
  %13707 = vmatprep.mubr.f32.mxu0 0.0
  %13708 = vmatmul.mubr.f32.gmra.mrb[0].mxu0 %v13416
  %v13709 = vpop.f32.mrb[0].mxu0
  %v13710 = vadd.f32 %v13358, %v13709
  %v13711 = vpop.f32.mrb[0].mxu0
  %13712 = vmatprep.mubr.f32.mxu0 0.0
  %13713 = vmatmul.mubr.f32.gmra.mrb[0].mxu0 %v13419
  %v13714 = vpop.f32.mrb[0].mxu0
  %v13715 = vadd.f32 %v13358, %v13714
  %v13716 = vpop.f32.mrb[0].mxu0
  %13717 = vmatprep.mubr.f32.mxu0 0.0
  %13718 = vmatmul.mubr.f32.gmra.mrb[0].mxu0 %v13422
  %v13719 = vpop.f32.mrb[0].mxu0
  %v13720 = vadd.f32 %v13358, %v13719
  %v13721 = vpop.f32.mrb[0].mxu0
  %13722 = vmatprep.mubr.f32.mxu0 0.0
  %13723 = vmatmul.mubr.f32.gmra.mrb[0].mxu0 %v13425
  %v13724 = vpop.f32.mrb[0].mxu0
  %v13725 = vadd.f32 %v13358, %v13724
  %v13726 = vpop.f32.mrb[0].mxu0
  %13727 = vmatprep.mubr.f32.mxu0 0.0
  %13728 = vmatmul.mubr.f32.gmra.mrb[0].mxu0 %v13428
  %v13729 = vpop.f32.mrb[0].mxu0
  %v13730 = vadd.f32 %v13358, %v13729
  %v13731 = vpop.f32.mrb[0].mxu0
  %13732 = vmatprep.mubr.f32.mxu0 0.0
  %13733 = vmatmul.mubr.f32.gmra.mrb[0].mxu0 %v13431
  %v13734 = vpop.f32.mrb[0].mxu0
  %v13735 = vadd.f32 %v13358, %v13734
  %v13736 = vpop.f32.mrb[0].mxu0
  %13737 = vmatprep.mubr.f32.mxu0 0.0
  %13738 = vmatmul.mubr.f32.gmra.mrb[0].mxu0 %v13434
  %v13739 = vpop.f32.mrb[0].mxu0
  %v13740 = vadd.f32 %v13358, %v13739
  %v13741 = vpop.f32.mrb[0].mxu0
  %13742 = vmatprep.mubr.f32.mxu0 0.0
  %13743 = vmatmul.mubr.f32.gmra.mrb[0].mxu0 %v13437
  %v13744 = vpop.f32.mrb[0].mxu0
  %v13745 = vadd.f32 %v13358, %v13744
  %v13746 = vpop.f32.mrb[0].mxu0
  %13747 = vmatprep.mubr.f32.mxu0 0.0
  %13748 = vmatmul.mubr.f32.gmra.mrb[0].mxu0 %v13440
  %v13749 = vpop.f32.mrb[0].mxu0
  %v13750 = vadd.f32 %v13358, %v13749
  %v13751 = vpop.f32.mrb[0].mxu0
  %13752 = vmatprep.mubr.f32.mxu0 0.0
  %13753 = vmatmul.mubr.f32.gmra.mrb[0].mxu0 %v13443
  %v13754 = vpop.f32.mrb[0].mxu0
  %v13755 = vadd.f32 %v13358, %v13754
  %v13756 = vpop.f32.mrb[0].mxu0
  %13757 = vmatprep.mubr.f32.mxu0 0.0
  %13758 = vmatmul.mubr.f32.gmra.mrb[0].mxu0 %v13446
  %v13759 = vpop.f32.mrb[0].mxu0
  %v13760 = vadd.f32 %v13358, %v13759
  %v13761 = vpop.f32.mrb[0].mxu0
  %13762 = vmatprep.mubr.f32.mxu0 0.0
  %13763 = vmatmul.mubr.f32.gmra.mrb[0].mxu0 %v13449
  %v13764 = vpop.f32.mrb[0].mxu0
  %v13765 = vadd.f32 %v13358, %v13764
  %v13766 = vpop.f32.mrb[0].mxu0
  %13767 = vmatprep.mubr.f32.mxu0 0.0
  %13768 = vmatmul.mubr.f32.gmra.mrb[0].mxu0 %v13452
  %v13769 = vpop.f32.mrb[0].mxu0
  %v13770 = vadd.f32 %v13358, %v13769
  %v13771 = vpop.f32.mrb[0].mxu0
  %13772 = vmatprep.mubr.f32.mxu0 0.0
  %13773 = vmatmul.mubr.f32.gmra.mrb[0].mxu0 %v13455
  %v13774 = vpop.f32.mrb[0].mxu0
  %v13775 = vadd.f32 %v13358, %v13774
  %v13776 = vpop.f32.mrb[0].mxu0
  %13777 = vmatprep.mubr.f32.mxu0 0.0
  %13778 = vmatmul.mubr.f32.gmra.mrb[0].mxu0 %v13458
  %v13779 = vpop.f32.mrb[0].mxu0
  %v13780 = vadd.f32 %v13358, %v13779
  %v13781 = vpop.f32.mrb[0].mxu0
  %13782 = vmatprep.mubr.f32.mxu0 0.0
  %13783 = vmatmul.mubr.f32.gmra.mrb[0].mxu0 %v13461
  %v13784 = vpop.f32.mrb[0].mxu0
  %v13785 = vadd.f32 %v13358, %v13784
  %v13786 = vpop.f32.mrb[0].mxu0
  %13787 = vmatprep.mubr.f32.mxu0 0.0
  %13788 = vmatmul.mubr.f32.gmra.mrb[0].mxu0 %v13464
  %v13789 = vpop.f32.mrb[0].mxu0
  %v13790 = vadd.f32 %v13358, %v13789
  %v13791 = vpop.f32.mrb[0].mxu0
  %13792 = vmatprep.mubr.f32.mxu0 0.0
  %13793 = vmatmul.mubr.f32.gmra.mrb[0].mxu0 %v13467
  %v13794 = vpop.f32.mrb[0].mxu0
  %v13795 = vadd.f32 %v13358, %v13794
  %v13796 = vpop.f32.mrb[0].mxu0
  %13797 = vmatprep.mubr.f32.mxu0 0.0
  %13798 = vmatmul.mubr.f32.gmra.mrb[0].mxu0 %v13470
  %v13799 = vpop.f32.mrb[0].mxu0
  %v13800 = vadd.f32 %v13358, %v13799
  %v13801 = vpop.f32.mrb[0].mxu0
  %13802 = vmatprep.mubr.f32.mxu0 0.0
  %13803 = vmatmul.mubr.f32.gmra.mrb[0].mxu0 %v13473
  %v13804 = vpop.f32.mrb[0].mxu0
  %v13805 = vadd.f32 %v13358, %v13804
  %v13806 = vpop.f32.mrb[0].mxu0
  %13807 = vmatprep.mubr.f32.mxu0 0.0
  %13808 = vmatmul.mubr.f32.gmra.mrb[0].mxu0 %v13476
  %v13809 = vpop.f32.mrb[0].mxu0
  %v13810 = vadd.f32 %v13358, %v13809
  %v13811 = vpop.f32.mrb[0].mxu0
  %13812 = vmatprep.mubr.f32.mxu0 0.0
  %13813 = vmatmul.mubr.f32.gmra.mrb[0].mxu0 %v13479
  %v13814 = vpop.f32.mrb[0].mxu0
  %v13815 = vadd.f32 %v13358, %v13814
  %v13816 = vpop.f32.mrb[0].mxu0
  %13817 = vmatprep.mubr.f32.mxu0 0.0
  %13818 = vmatmul.mubr.f32.gmra.mrb[0].mxu0 %v13482
  %v13819 = vpop.f32.mrb[0].mxu0
  %v13820 = vadd.f32 %v13358, %v13819
  %v13821 = vpop.f32.mrb[0].mxu0
  %13822 = vmatprep.mubr.f32.mxu0 0.0
  %13823 = vmatmul.mubr.f32.gmra.mrb[0].mxu0 %v13485
  %v13824 = vpop.f32.mrb[0].mxu0
  %v13825 = vadd.f32 %v13358, %v13824
  %v13826 = vpop.f32.mrb[0].mxu0
  %13827 = vmatprep.mubr.f32.mxu0 0.0
  %13828 = vmatmul.mubr.f32.gmra.mrb[0].mxu0 %v13488
  %v13829 = vpop.f32.mrb[0].mxu0
  %v13830 = vadd.f32 %v13358, %v13829
  %v13831 = vpop.f32.mrb[0].mxu0
  %13832 = vmatprep.mubr.f32.mxu0 0.0
  %13833 = vmatmul.mubr.f32.gmra.mrb[0].mxu0 %v13491
  %v13834 = vpop.f32.mrb[0].mxu0
  %v13835 = vadd.f32 %v13358, %v13834
  %v13836 = vpop.f32.mrb[0].mxu0
  %13837 = vmatprep.mubr.f32.mxu0 0.0
  %13838 = vmatmul.mubr.f32.gmra.mrb[0].mxu0 %v13494
  %v13839 = vpop.f32.mrb[0].mxu0
  %v13840 = vadd.f32 %v13358, %v13839
  %v13841 = vpop.f32.mrb[0].mxu0
  %13842 = vmatprep.mubr.f32.mxu0 0.0
  %13843 = vmatmul.mubr.f32.gmra.mrb[0].mxu0 %v13497
  %v13844 = vpop.f32.mrb[0].mxu0
  %v13845 = vadd.f32 %v13358, %v13844
  %v13846 = vpop.f32.mrb[0].mxu0
  %13847 = vmatprep.mubr.f32.mxu0 0.0
  %13848 = vmatmul.mubr.f32.gmra.mrb[0].mxu0 %v13500
  %v13849 = vpop.f32.mrb[0].mxu0
  %v13850 = vadd.f32 %v13358, %v13849
  %v13851 = vpop.f32.mrb[0].mxu0
  %13852 = vmatprep.mubr.f32.mxu0 0.0
  %13853 = vmatmul.mubr.f32.gmra.mrb[0].mxu0 %v13503
  %v13854 = vpop.f32.mrb[0].mxu0
  %v13855 = vadd.f32 %v13358, %v13854
  %v13856 = vpop.f32.mrb[0].mxu0
  %13857 = vmatprep.mubr.f32.mxu0 0.0
  %13858 = vmatmul.mubr.f32.gmra.mrb[0].mxu0 %v13506
  %v13859 = vpop.f32.mrb[0].mxu0
  %v13860 = vadd.f32 %v13358, %v13859
  %v13861 = vpop.f32.mrb[0].mxu0
  %13862 = vmatprep.mubr.f32.mxu0 0.0
  %13863 = vmatmul.mubr.f32.gmra.mrb[0].mxu0 %v13509
  %v13864 = vpop.f32.mrb[0].mxu0
  %v13865 = vadd.f32 %v13358, %v13864
  %v13866 = vpop.f32.mrb[0].mxu0
  %13867 = vmatprep.mubr.f32.mxu0 0.0
  %13868 = vmatmul.mubr.f32.gmra.mrb[0].mxu0 %v13512
  %v13869 = vpop.f32.mrb[0].mxu0
  %v13870 = vadd.f32 %v13358, %v13869
  %v13871 = vpop.f32.mrb[0].mxu0
  %13872 = vmatprep.mubr.f32.mxu0 0.0
  %13873 = vmatmul.mubr.f32.gmra.mrb[0].mxu0 %v13515
  %v13874 = vpop.f32.mrb[0].mxu0
  %v13875 = vadd.f32 %v13358, %v13874
  %v13876 = vpop.f32.mrb[0].mxu0
  %13877 = vmatprep.mubr.f32.mxu0 0.0
  %13878 = vmatmul.mubr.f32.gmra.mrb[0].mxu0 %v13518
  %v13879 = vpop.f32.mrb[0].mxu0
  %v13880 = vadd.f32 %v13358, %v13879
  %v13881 = vpop.f32.mrb[0].mxu0
  %13882 = vmatprep.mubr.f32.mxu0 0.0
  %13883 = vmatmul.mubr.f32.gmra.mrb[0].mxu0 %v13521
  %v13884 = vpop.f32.mrb[0].mxu0
  %v13885 = vadd.f32 %v13358, %v13884
  %v13886 = vpop.f32.mrb[0].mxu0
  %13887 = vmatprep.mubr.f32.mxu0 0.0
  %13888 = vmatmul.mubr.f32.gmra.mrb[0].mxu0 %v13524
  %v13889 = vpop.f32.mrb[0].mxu0
  %v13890 = vadd.f32 %v13358, %v13889
  %v13891 = vpop.f32.mrb[0].mxu0
  %13892 = vmatprep.mubr.f32.mxu0 0.0
  %13893 = vmatmul.mubr.f32.gmra.mrb[0].mxu0 %v13527
  %v13894 = vpop.f32.mrb[0].mxu0
  %v13895 = vadd.f32 %v13358, %v13894
  %v13896 = vpop.f32.mrb[0].mxu0
  %13897 = vmatprep.mubr.f32.mxu0 0.0
  %13898 = vmatmul.mubr.f32.gmra.mrb[0].mxu0 %v13530
  %v13899 = vpop.f32.mrb[0].mxu0
  %v13900 = vadd.f32 %v13358, %v13899
  %v13901 = vpop.f32.mrb[0].mxu0
  %13902 = vmatprep.mubr.f32.mxu0 0.0
  %13903 = vmatmul.mubr.f32.gmra.mrb[0].mxu0 %v13533
  %v13904 = vpop.f32.mrb[0].mxu0
  %v13905 = vadd.f32 %v13358, %v13904
  %v13906 = vpop.f32.mrb[0].mxu0
  %13907 = vmatprep.mubr.f32.mxu0 0.0
  %13908 = vmatmul.mubr.f32.gmra.mrb[0].mxu0 %v13536
  %v13909 = vpop.f32.mrb[0].mxu0
  %v13910 = vadd.f32 %v13358, %v13909
  %v13911 = vpop.f32.mrb[0].mxu0
  %13912 = vmatprep.mubr.f32.mxu0 0.0
  %13913 = vmatmul.mubr.f32.gmra.mrb[0].mxu0 %v13539
  %v13914 = vpop.f32.mrb[0].mxu0
  %v13915 = vadd.f32 %v13358, %v13914
  %v13916 = vpop.f32.mrb[0].mxu0
  %13917 = vmatprep.mubr.f32.mxu0 0.0
  %13918 = vmatmul.mubr.f32.gmra.mrb[0].mxu0 %v13542
  %v13919 = vpop.f32.mrb[0].mxu0
  %v13920 = vadd.f32 %v13358, %v13919
  %v13921 = vpop.f32.mrb[0].mxu0
  %13922 = vmatprep.mubr.f32.mxu0 0.0
  %13923 = vmatmul.mubr.f32.gmra.mrb[0].mxu0 %v13545
  %v13924 = vpop.f32.mrb[0].mxu0
  %v13925 = vadd.f32 %v13358, %v13924
  %v13926 = vpop.f32.mrb[0].mxu0
  %13927 = vmatprep.mubr.f32.mxu0 0.0
  %13928 = vmatmul.mubr.f32.gmra.mrb[0].mxu0 %v13548
  %v13929 = vpop.f32.mrb[0].mxu0
  %v13930 = vadd.f32 %v13358, %v13929
  %v13931 = vpop.f32.mrb[0].mxu0
  %13932 = vmatprep.mubr.f32.mxu0 0.0
  %13933 = vmatmul.mubr.f32.gmra.mrb[0].mxu0 %v13551
  %v13934 = vpop.f32.mrb[0].mxu0
  %v13935 = vadd.f32 %v13358, %v13934
  %v13936 = vpop.f32.mrb[0].mxu0
  %13937 = vdwg.mxu0
  %v13938 = vmax.f32 %v13620, 0.0
  %v13939 = vmax.f32 %v13625, 0.0
  %v13940 = vmax.f32 %v13630, 0.0
  %v13941 = vmax.f32 %v13635, 0.0
  %v13942 = vmax.f32 %v13640, 0.0
  %v13943 = vmax.f32 %v13645, 0.0
  %v13944 = vmax.f32 %v13650, 0.0
  %v13945 = vmax.f32 %v13655, 0.0
  %v13946 = vmax.f32 %v13660, 0.0
  %v13947 = vmax.f32 %v13665, 0.0
  %v13948 = vmax.f32 %v13670, 0.0
  %v13949 = vmax.f32 %v13675, 0.0
  %v13950 = vmax.f32 %v13680, 0.0
  %v13951 = vmax.f32 %v13685, 0.0
  %v13952 = vmax.f32 %v13690, 0.0
  %v13953 = vmax.f32 %v13695, 0.0
  %v13954 = vmax.f32 %v13700, 0.0
  %v13955 = vmax.f32 %v13705, 0.0
  %v13956 = vmax.f32 %v13710, 0.0
  %v13957 = vmax.f32 %v13715, 0.0
  %v13958 = vmax.f32 %v13720, 0.0
  %v13959 = vmax.f32 %v13725, 0.0
  %v13960 = vmax.f32 %v13730, 0.0
  %v13961 = vmax.f32 %v13735, 0.0
  %v13962 = vmax.f32 %v13740, 0.0
  %v13963 = vmax.f32 %v13745, 0.0
  %v13964 = vmax.f32 %v13750, 0.0
  %v13965 = vmax.f32 %v13755, 0.0
  %v13966 = vmax.f32 %v13760, 0.0
  %v13967 = vmax.f32 %v13765, 0.0
  %v13968 = vmax.f32 %v13770, 0.0
  %v13969 = vmax.f32 %v13775, 0.0
  %v13970 = vmax.f32 %v13780, 0.0
  %v13971 = vmax.f32 %v13785, 0.0
  %v13972 = vmax.f32 %v13790, 0.0
  %v13973 = vmax.f32 %v13795, 0.0
  %v13974 = vmax.f32 %v13800, 0.0
  %v13975 = vmax.f32 %v13805, 0.0
  %v13976 = vmax.f32 %v13810, 0.0
  %v13977 = vmax.f32 %v13815, 0.0
  %v13978 = vmax.f32 %v13820, 0.0
  %v13979 = vmax.f32 %v13825, 0.0
  %v13980 = vmax.f32 %v13830, 0.0
  %v13981 = vmax.f32 %v13835, 0.0
  %v13982 = vmax.f32 %v13840, 0.0
  %v13983 = vmax.f32 %v13845, 0.0
  %v13984 = vmax.f32 %v13850, 0.0
  %v13985 = vmax.f32 %v13855, 0.0
  %v13986 = vmax.f32 %v13860, 0.0
  %v13987 = vmax.f32 %v13865, 0.0
  %v13988 = vmax.f32 %v13870, 0.0
  %v13989 = vmax.f32 %v13875, 0.0
  %v13990 = vmax.f32 %v13880, 0.0
  %v13991 = vmax.f32 %v13885, 0.0
  %v13992 = vmax.f32 %v13890, 0.0
  %v13993 = vmax.f32 %v13895, 0.0
  %v13994 = vmax.f32 %v13900, 0.0
  %v13995 = vmax.f32 %v13905, 0.0
  %v13996 = vmax.f32 %v13910, 0.0
  %v13997 = vmax.f32 %v13915, 0.0
  %v13998 = vmax.f32 %v13920, 0.0
  %v13999 = vmax.f32 %v13925, 0.0
  %v14000 = vmax.f32 %v13930, 0.0
  %v14001 = vmax.f32 %v13935, 0.0
  %v14002 = vmax.f32 %v13938, %v13946
  %v14003 = vmax.f32 %v13939, %v13947
  %v14004 = vmax.f32 %v13940, %v13948
  %v14005 = vmax.f32 %v13941, %v13949
  %v14006 = vmax.f32 %v13942, %v13950
  %v14007 = vmax.f32 %v13943, %v13951
  %v14008 = vmax.f32 %v13944, %v13952
  %v14009 = vmax.f32 %v13945, %v13953
  %v14010 = vmax.f32 %v13954, %v13962
  %v14011 = vmax.f32 %v13955, %v13963
  %v14012 = vmax.f32 %v13956, %v13964
  %v14013 = vmax.f32 %v13957, %v13965
  %v14014 = vmax.f32 %v13958, %v13966
  %v14015 = vmax.f32 %v13959, %v13967
  %v14016 = vmax.f32 %v13960, %v13968
  %v14017 = vmax.f32 %v13961, %v13969
  %v14018 = vmax.f32 %v13970, %v13978
  %v14019 = vmax.f32 %v13971, %v13979
  %v14020 = vmax.f32 %v13972, %v13980
  %v14021 = vmax.f32 %v13973, %v13981
  %v14022 = vmax.f32 %v13974, %v13982
  %v14023 = vmax.f32 %v13975, %v13983
  %v14024 = vmax.f32 %v13976, %v13984
  %v14025 = vmax.f32 %v13977, %v13985
  %v14026 = vmax.f32 %v13986, %v13994
  %v14027 = vmax.f32 %v13987, %v13995
  %v14028 = vmax.f32 %v13988, %v13996
  %v14029 = vmax.f32 %v13989, %v13997
  %v14030 = vmax.f32 %v13990, %v13998
  %v14031 = vmax.f32 %v13991, %v13999
  %v14032 = vmax.f32 %v13992, %v14000
  %v14033 = vmax.f32 %v13993, %v14001
  %v14034 = vmax.f32 %v14002, %v14003
  %v14035 = vmax.f32 %v14004, %v14005
  %v14036 = vmax.f32 %v14006, %v14007
  %v14037 = vmax.f32 %v14008, %v14009
  %v14038 = vmax.f32 %v14010, %v14011
  %v14039 = vmax.f32 %v14012, %v14013
  %v14040 = vmax.f32 %v14014, %v14015
  %v14041 = vmax.f32 %v14016, %v14017
  %v14042 = vmax.f32 %v14018, %v14019
  %v14043 = vmax.f32 %v14020, %v14021
  %v14044 = vmax.f32 %v14022, %v14023
  %v14045 = vmax.f32 %v14024, %v14025
  %v14046 = vmax.f32 %v14026, %v14027
  %v14047 = vmax.f32 %v14028, %v14029
  %v14048 = vmax.f32 %v14030, %v14031
  %v14049 = vmax.f32 %v14032, %v14033
  %14051 = vrot.lane.b32.xlu0 %v14035, 16
  %v14052 = vpop.permute.xlu0 %14051
  %14055 = vrot.lane.b32.xlu0 %v14036, 32
  %v14056 = vpop.permute.xlu0 %14055
  %14059 = vrot.lane.b32.xlu0 %v14037, 48
  %v14060 = vpop.permute.xlu0 %14059
  %14063 = vrot.lane.b32.xlu0 %v14038, 64
  %v14064 = vpop.permute.xlu0 %14063
  %14067 = vrot.lane.b32.xlu0 %v14039, 80
  %v14068 = vpop.permute.xlu0 %14067
  %14071 = vrot.lane.b32.xlu0 %v14040, 96
  %v14072 = vpop.permute.xlu0 %14071
  %14075 = vrot.lane.b32.xlu0 %v14041, 112
  %v14076 = vpop.permute.xlu0 %14075
  %14079 = vrot.lane.b32.xlu0 %v14043, 16
  %v14080 = vpop.permute.xlu0 %14079
  %14083 = vrot.lane.b32.xlu0 %v14044, 32
  %v14084 = vpop.permute.xlu0 %14083
  %14087 = vrot.lane.b32.xlu0 %v14045, 48
  %v14088 = vpop.permute.xlu0 %14087
  %14091 = vrot.lane.b32.xlu0 %v14046, 64
  %v14092 = vpop.permute.xlu0 %14091
  %14095 = vrot.lane.b32.xlu0 %v14047, 80
  %v14096 = vpop.permute.xlu0 %14095
  %14099 = vrot.lane.b32.xlu0 %v14048, 96
  %v14100 = vpop.permute.xlu0 %14099
  %14103 = vrot.lane.b32.xlu0 %v14049, 112
  %v14104 = vpop.permute.xlu0 %14103
  %v14106 = vsel %vm7594, %v14034, %v14052
  %v14107 = vsel %vm8622, %v14106, %v14056
  %v14108 = vsel %vm13159, %v14107, %v14060
  %v14109 = vsel %vm13289, %v14108, %v14064
  %vm14110 = vcmask 654336
  %v14111 = vsel %vm14110, %v14109, %v14068
  %vm14112 = vcmask 785408
  %v14113 = vsel %vm14112, %v14111, %v14072
  %vm14114 = vcmask 916480
  %v14115 = vsel %vm14114, %v14113, %v14076
  %v14116 = vsel %vm7594, %v14042, %v14080
  %v14117 = vsel %vm8622, %v14116, %v14084
  %v14118 = vsel %vm13159, %v14117, %v14088
  %v14119 = vsel %vm13289, %v14118, %v14092
  %v14120 = vsel %vm14110, %v14119, %v14096
  %v14121 = vsel %vm14112, %v14120, %v14100
  %v14122 = vsel %vm14114, %v14121, %v14104
  %v14123 = vld [vmem:[%s5] sm:$0xff]
  %v14124 = vld [vmem:[%s5 + $0x8] sm:$0xff]
  %v14125 = vld [vmem:[%s5 + $0x10] sm:$0xff]
  %v14126 = vld [vmem:[%s5 + $0x18] sm:$0xff]
  %v14127 = vld [vmem:[%s5 + $0x20] sm:$0xff]
  %v14128 = vld [vmem:[%s5 + $0x28] sm:$0xff]
  %v14129 = vld [vmem:[%s5 + $0x30] sm:$0xff]
  %v14130 = vld [vmem:[%s5 + $0x38] sm:$0xff]
  %v14131 = vld [vmem:[%s5 + $0x40] sm:$0xff]
  %v14132 = vld [vmem:[%s5 + $0x48] sm:$0xff]
  %v14133 = vld [vmem:[%s5 + $0x50] sm:$0xff]
  %v14134 = vld [vmem:[%s5 + $0x58] sm:$0xff]
  %v14135 = vld [vmem:[%s5 + $0x60] sm:$0xff]
  %v14136 = vld [vmem:[%s5 + $0x68] sm:$0xff]
  %v14137 = vld [vmem:[%s5 + $0x70] sm:$0xff]
  %v14138 = vld [vmem:[%s5 + $0x78] sm:$0xff]
  %v14139 = vld [vmem:[%s5 + $0x80] sm:$0xff]
  %v14140 = vld [vmem:[%s5 + $0x88] sm:$0xff]
  %v14141 = vld [vmem:[%s5 + $0x90] sm:$0xff]
  %v14142 = vld [vmem:[%s5 + $0x98] sm:$0xff]
  %v14143 = vld [vmem:[%s5 + $0xa0] sm:$0xff]
  %v14144 = vld [vmem:[%s5 + $0xa8] sm:$0xff]
  %v14145 = vld [vmem:[%s5 + $0xb0] sm:$0xff]
  %v14146 = vld [vmem:[%s5 + $0xb8] sm:$0xff]
  %v14147 = vld [vmem:[%s5 + $0xc0] sm:$0xff]
  %v14148 = vld [vmem:[%s5 + $0xc8] sm:$0xff]
  %v14149 = vld [vmem:[%s5 + $0xd0] sm:$0xff]
  %v14150 = vld [vmem:[%s5 + $0xd8] sm:$0xff]
  %v14151 = vld [vmem:[%s5 + $0xe0] sm:$0xff]
  %v14152 = vld [vmem:[%s5 + $0xe8] sm:$0xff]
  %v14153 = vld [vmem:[%s5 + $0xf0] sm:$0xff]
  %v14154 = vld [vmem:[%s5 + $0xf8] sm:$0xff]
  %v14155 = vld [vmem:[%s6] sm:$0x1]
  %v14157 = vlaneseq
  %v14158 = vshrl.u32 %v14157, 7
  %v14159 = vsub.s32 0, %v14158
  %v14160 = vrot.slane %v14155, %v14159
  %14162 = vmatprep.subr.mxu0 0.0
  %14163 = vmatpush1.msra.mxu0 %v14123
  %14164 = vmatprep.subr.mxu0 0.0
  %14165 = vmatpush1.msra.mxu0 %v14124
  %14166 = vmatprep.subr.mxu0 0.0
  %14167 = vmatpush1.msra.mxu0 %v14125
  %14168 = vmatprep.subr.mxu0 0.0
  %14169 = vmatpush1.msra.mxu0 %v14126
  %14170 = vmatprep.subr.mxu0 0.0
  %14171 = vmatpush1.msra.mxu0 %v14127
  %14172 = vmatprep.subr.mxu0 0.0
  %14173 = vmatpush1.msra.mxu0 %v14128
  %14174 = vmatprep.subr.mxu0 0.0
  %14175 = vmatpush1.msra.mxu0 %v14129
  %14176 = vmatprep.subr.mxu0 0.0
  %14177 = vmatpush1.msra.mxu0 %v14130
  %14178 = vmatprep.subr.mxu0 0.0
  %14179 = vmatpush1.msra.mxu0 %v14131
  %14180 = vmatprep.subr.mxu0 0.0
  %14181 = vmatpush1.msra.mxu0 %v14132
  %14182 = vmatprep.subr.mxu0 0.0
  %14183 = vmatpush1.msra.mxu0 %v14133
  %14184 = vmatprep.subr.mxu0 0.0
  %14185 = vmatpush1.msra.mxu0 %v14134
  %14186 = vmatprep.subr.mxu0 0.0
  %14187 = vmatpush1.msra.mxu0 %v14135
  %14188 = vmatprep.subr.mxu0 0.0
  %14189 = vmatpush1.msra.mxu0 %v14136
  %14190 = vmatprep.subr.mxu0 0.0
  %14191 = vmatpush1.msra.mxu0 %v14137
  %14192 = vmatprep.subr.mxu0 0.0
  %14193 = vmatpush1.msra.mxu0 %v14138
  %14194 = vmatprep.subr.mxu0 0.0
  %14195 = vmatpush1.msra.mxu0 %v14139
  %14196 = vmatprep.subr.mxu0 0.0
  %14197 = vmatpush1.msra.mxu0 %v14140
  %14198 = vmatprep.subr.mxu0 0.0
  %14199 = vmatpush1.msra.mxu0 %v14141
  %14200 = vmatprep.subr.mxu0 0.0
  %14201 = vmatpush1.msra.mxu0 %v14142
  %14202 = vmatprep.subr.mxu0 0.0
  %14203 = vmatpush1.msra.mxu0 %v14143
  %14204 = vmatprep.subr.mxu0 0.0
  %14205 = vmatpush1.msra.mxu0 %v14144
  %14206 = vmatprep.subr.mxu0 0.0
  %14207 = vmatpush1.msra.mxu0 %v14145
  %14208 = vmatprep.subr.mxu0 0.0
  %14209 = vmatpush1.msra.mxu0 %v14146
  %14210 = vmatprep.subr.mxu0 0.0
  %14211 = vmatpush1.msra.mxu0 %v14147
  %14212 = vmatprep.subr.mxu0 0.0
  %14213 = vmatpush1.msra.mxu0 %v14148
  %14214 = vmatprep.subr.mxu0 0.0
  %14215 = vmatpush1.msra.mxu0 %v14149
  %14216 = vmatprep.subr.mxu0 0.0
  %14217 = vmatpush1.msra.mxu0 %v14150
  %14218 = vmatprep.subr.mxu0 0.0
  %14219 = vmatpush1.msra.mxu0 %v14151
  %14220 = vmatprep.subr.mxu0 0.0
  %14221 = vmatpush1.msra.mxu0 %v14152
  %14222 = vmatprep.subr.mxu0 0.0
  %14223 = vmatpush1.msra.mxu0 %v14153
  %14224 = vmatprep.subr.mxu0 0.0
  %14225 = vmatpush1.msra.mxu0 %v14154
  %14226 = vmatprep.mubr.f32.mxu0 %v14122
  %14227 = vmatmul.mubr.f32.gmra.mrb[0].mxu0 %v14115
  %v14228 = vpop.f32.mrb[0].mxu0
  %v14229 = vadd.f32 %v14160, %v14228
  %v14230 = vpop.f32.mrb[0].mxu0
  %14231 = vdwg.mxu0
  %vm14232 = vcmask 80896
  %14233 = vst.msk [vmem:[%s7] sm:$0xff] %vm14232, %v14229
  // Predicated region
  $region30: #{model_forward.1} parent=0 // pred_check
    _
  $region31: #{model_forward.1} parent=0 // pred_check_branch
    %14235 = sbr.rel (0) target = $region33
  $region32: #{model_forward.1} parent=0 // pred_region
    _
  $region33: #{model_forward.1} parent=0 // pred_fallthru
    _
  // Predicated region
  $region34: #{model_forward.1} parent=0 // pred_check
    _
  $region35: #{model_forward.1} parent=0 // pred_check_branch
    %14237 = sbr.rel (0) target = $region37
  $region36: #{model_forward.1} parent=0 // pred_region
    _
  $region37: #{model_forward.1} parent=0 // pred_fallthru
    _

</llo_original>
